<compile_context>
chip_gen: v5e
topology: v5e:2x2
jax: 0.10.0
libtpu: 0.0.40
codegen_flags: <defaults>
</compile_context>

<pallas_src>
import jax
import jax.numpy as jnp
import numpy as np
from jax.experimental import pallas as pl
from jax.experimental.pallas import tpu as pltpu

_EPS = 1e-5


def spatial_attention_gating(shared_ncdhw, task_specific_ncdhw, params,
                             *, mxu_dtype=jnp.float32):
    """Pallas port of SpatialAttentionGatingModule.forward (5-D branch)."""
    # task_specific_features only participates in the torch module's dim()
    # check; for 5-D inputs it never affects the output.
    del task_specific_ncdhw
    w1, b1, gamma, beta, w2, b2 = params

    B, C, D, H, W = shared_ncdhw.shape
    Ch = C // 2
    HW = H * W
    DHW = D * HW
    NL = B * DHW                         # compact flattened grid (lane axis)
    f32 = jnp.float32
    # Margin so every tap shift is an in-bounds static lane slice; 128-aligned
    # so the compact center starts on a lane boundary.
    MARGIN = -(-(HW + W + 1) // 128) * 128
    NLX = NL + 2 * MARGIN
    CENTER = 13                          # tap (dd, hh, ww) = (0, 0, 0)
    assert MARGIN >= HW + W + 1

    # Tap enumeration, dd-major, matching the (Cout, Cin, kd, kh, kw) weight
    # reshape below (k = kd*9 + kh*3 + kw with kd = dd + 1, ...).
    taps = [(dd, hh, ww) for dd in (-1, 0, 1) for hh in (-1, 0, 1)
            for ww in (-1, 0, 1)]
    shifts = [dd * HW + hh * W + ww for dd, hh, ww in taps]

    # Per-tap validity masks over the compact grid (1 = shifted read is the
    # real neighbour, 0 = neighbour falls into the conv zero padding).
    d_ix = np.arange(D)[:, None, None]
    h_ix = np.arange(H)[None, :, None]
    w_ix = np.arange(W)[None, None, :]
    masks_np = np.empty((27, NL), np.float32)
    for k, (dd, hh, ww) in enumerate(taps):
        ok = ((0 <= d_ix + dd) & (d_ix + dd < D) &
              (0 <= h_ix + hh) & (h_ix + hh < H) &
              (0 <= w_ix + ww) & (w_ix + ww < W))
        masks_np[k] = np.tile(ok.reshape(-1).astype(np.float32), B)
    masks = jnp.asarray(masks_np)

    # torch conv weights (Cout, Cin, kd, kh, kw) -> per-tap (27, Cout, Cin).
    w1t = jnp.transpose(w1.reshape(Ch, C, 27), (2, 0, 1)).astype(mxu_dtype)
    w2t = jnp.transpose(w2.reshape(C, Ch, 27), (2, 0, 1)).astype(mxu_dtype)

    x_flat = shared_ncdhw.reshape(B, C, DHW)     # free reshape (NCDHW kept)

    def kernel(x_ref, m_ref, w1_ref, b1_ref, g_ref, bt_ref, w2_ref, b2_ref,
               o_ref, xc_ref, hc_ref):
        # -- stage 0: lane-dense copy into the compact grid; zero only the
        #    margins (the interior is fully overwritten) ----------------------
        xc_ref[:, 0:MARGIN] = jnp.zeros((C, MARGIN), f32)
        xc_ref[:, MARGIN + NL:MARGIN + NL + MARGIN] = jnp.zeros((C, MARGIN), f32)
        for b in range(B):               # B lane-dense (C, DHW) stores
            xc_ref[:, MARGIN + b * DHW:MARGIN + (b + 1) * DHW] = (
                x_ref[b].astype(f32))

        # -- conv1: 27 accumulated (Ch, C) x (C, NL) MXU dots -----------------
        # (zero padding emulated by masking the dot OUTPUT: Cout=Ch < Cin=C,
        #  so post-dot masking is the cheaper, mathematically identical side)
        acc1 = jnp.zeros((Ch, NL), f32)
        for k, s in enumerate(shifts):   # 27 static taps, static lane offsets
            xk = xc_ref[:, MARGIN + s:MARGIN + s + NL].astype(mxu_dtype)
            yk = jnp.dot(w1_ref[k], xk, preferred_element_type=f32)
            if k != CENTER:
                yk = yk * m_ref[k:k + 1, :]
            acc1 = acc1 + yk
        y1 = acc1 + b1_ref[...]                                  # (Ch, NL)

        # -- BatchNorm3d (training): fused one-pass biased stats over N*D*H*W -
        n = float(NL)
        s1 = jnp.sum(y1, axis=1, keepdims=True)
        s2 = jnp.sum(y1 * y1, axis=1, keepdims=True)
        mean = s1 / n
        var = s2 / n - mean * mean
        scale = g_ref[...] * jax.lax.rsqrt(var + _EPS)
        bn_shift = bt_ref[...] - mean * scale

        # -- ReLU -> margin-padded hidden buffer -------------------------------
        hid = jnp.maximum(y1 * scale + bn_shift, 0.0)            # (Ch, NL)
        hc_ref[:, 0:MARGIN] = jnp.zeros((Ch, MARGIN), f32)
        hc_ref[:, MARGIN + NL:MARGIN + NL + MARGIN] = jnp.zeros((Ch, MARGIN), f32)
        hc_ref[:, MARGIN:MARGIN + NL] = hid

        # -- conv2: 27 accumulated (C, Ch) x (Ch, NL) MXU dots -----------------
        # (Cin=Ch < Cout=C here, so mask the dot INPUT instead)
        acc2 = jnp.zeros((C, NL), f32)
        for k, s in enumerate(shifts):
            hk = hc_ref[:, MARGIN + s:MARGIN + s + NL]
            if k != CENTER:
                hk = hk * m_ref[k:k + 1, :]
            acc2 = acc2 + jnp.dot(w2_ref[k], hk.astype(mxu_dtype),
                                  preferred_element_type=f32)

        # -- sigmoid gate + lane-dense per-batch output stores -----------------
        attn = jax.nn.sigmoid(acc2 + b2_ref[...])                # (C, NL)
        gated = xc_ref[:, MARGIN:MARGIN + NL] * attn
        for b in range(B):               # B lane-dense (C, DHW) stores
            o_ref[b] = gated[:, b * DHW:(b + 1) * DHW].astype(o_ref.dtype)

    def full(shape):
        return pl.BlockSpec(shape, lambda i: (0,) * len(shape))

    out = pl.pallas_call(
        kernel,
        out_shape=jax.ShapeDtypeStruct((B, C, DHW), shared_ncdhw.dtype),
        grid_spec=pltpu.PrefetchScalarGridSpec(
            num_scalar_prefetch=0,
            # tiny problem, fully VMEM-resident; train-mode BN needs the whole
            # batch at once.
            grid=(1,),
            in_specs=[
                full((B, C, DHW)),       # x, compact layout
                full((27, NL)),          # per-tap validity masks
                full((27, Ch, C)),       # conv1 per-tap weights
                full((Ch, 1)),           # conv1 bias
                full((Ch, 1)),           # BN gamma
                full((Ch, 1)),           # BN beta
                full((27, C, Ch)),       # conv2 per-tap weights
                full((C, 1)),            # conv2 bias
            ],
            out_specs=full((B, C, DHW)),
            scratch_shapes=[
                pltpu.VMEM((C, NLX), f32),    # compact input grid + margins
                pltpu.VMEM((Ch, NLX), f32),   # hidden layer + margins
            ],
        ),
        compiler_params=pltpu.CompilerParams(
            dimension_semantics=("arbitrary",)),
    )(x_flat, masks, w1t,
      b1.reshape(Ch, 1).astype(f32), gamma.reshape(Ch, 1).astype(f32),
      beta.reshape(Ch, 1).astype(f32), w2t, b2.reshape(C, 1).astype(f32))

    return out.reshape(B, C, D, H, W)


def _reference(shared_ncdhw, params):
    """Pure-JAX reference of the torch forward (5-D branch, train-mode BN)."""
    w1, b1, gamma, beta, w2, b2 = params
    x = jnp.transpose(shared_ncdhw, (0, 2, 3, 4, 1))
    dn = ("NDHWC", "DHWIO", "NDHWC")
    prec = jax.lax.Precision.HIGHEST
    y = jax.lax.conv_general_dilated(x, jnp.transpose(w1, (2, 3, 4, 1, 0)),
                                     (1, 1, 1), "SAME", dimension_numbers=dn,
                                     precision=prec) + b1
    mean = jnp.mean(y, axis=(0, 1, 2, 3), keepdims=True)
    var = jnp.mean((y - mean) ** 2, axis=(0, 1, 2, 3), keepdims=True)
    y = (y - mean) * jax.lax.rsqrt(var + _EPS) * gamma + beta
    y = jnp.maximum(y, 0.0)
    y = jax.lax.conv_general_dilated(y, jnp.transpose(w2, (2, 3, 4, 1, 0)),
                                     (1, 1, 1), "SAME", dimension_numbers=dn,
                                     precision=prec) + b2
    gated = x * jax.nn.sigmoid(y)
    return jnp.transpose(gated, (0, 4, 1, 2, 3))


if __name__ == "__main__":
    B, C, D, H, W = 2, 8, 4, 8, 8          # feature_dim = 8
    Ch = C // 2
    ks = jax.random.split(jax.random.PRNGKey(0), 6)
    shared = jax.random.normal(ks[0], (B, C, D, H, W), jnp.float32)
    task_specific = jax.random.normal(ks[1], (B, C, D, H, W), jnp.float32)

    # Deterministic parameter init (shapes from the torch module's __init__).
    w1 = 0.2 * jax.random.normal(ks[2], (Ch, C, 3, 3, 3), jnp.float32)
    b1 = 0.1 * jax.random.normal(ks[3], (Ch,), jnp.float32)
    gamma = jnp.ones((Ch,), jnp.float32)   # BatchNorm3d default affine init
    beta = jnp.zeros((Ch,), jnp.float32)
    w2 = 0.2 * jax.random.normal(ks[4], (C, Ch, 3, 3, 3), jnp.float32)
    b2 = 0.1 * jax.random.normal(ks[5], (C,), jnp.float32)
    params = (w1, b1, gamma, beta, w2, b2)

    out = spatial_attention_gating(shared, task_specific, params)
    out = jax.block_until_ready(out)

    ref = _reference(shared, params)
    np.testing.assert_allclose(np.asarray(out), np.asarray(ref),
                               rtol=1e-4, atol=1e-4)
    print("KERNEL_OK")
</pallas_src>

<mosaic_0001>
module attributes {stable_mosaic.version = 11 : i64} {
  func.func @kernel(%arg0: i32, %arg1: memref<2x8x256xf32, #tpu.memory_space<vmem>>, %arg2: memref<27x512xf32, #tpu.memory_space<vmem>>, %arg3: memref<27x4x8xf32, #tpu.memory_space<vmem>>, %arg4: memref<4x1xf32, #tpu.memory_space<vmem>>, %arg5: memref<4x1xf32, #tpu.memory_space<vmem>>, %arg6: memref<4x1xf32, #tpu.memory_space<vmem>>, %arg7: memref<27x8x4xf32, #tpu.memory_space<vmem>>, %arg8: memref<8x1xf32, #tpu.memory_space<vmem>>, %arg9: memref<2x8x256xf32, #tpu.memory_space<vmem>>, %arg10: memref<8x768xf32, #tpu.memory_space<vmem>>, %arg11: memref<4x768xf32, #tpu.memory_space<vmem>>) attributes {dimension_semantics = [#tpu.dimension_semantics<arbitrary>], iteration_bounds = array<i64: 1>, scalar_prefetch = 0 : i64, scratch_operands = 2 : i64, tpu.core_type = #tpu.core_type<tc>, window_params = [{pipeline_mode = #tpu.pipeline_mode<synchronous>, transform_indices = @transform_0, window_bounds = array<i64: 2, 8, 256>}, {pipeline_mode = #tpu.pipeline_mode<synchronous>, transform_indices = @transform_1, window_bounds = array<i64: 27, 512>}, {pipeline_mode = #tpu.pipeline_mode<synchronous>, transform_indices = @transform_2, window_bounds = array<i64: 27, 4, 8>}, {pipeline_mode = #tpu.pipeline_mode<synchronous>, transform_indices = @transform_3, window_bounds = array<i64: 4, 1>}, {pipeline_mode = #tpu.pipeline_mode<synchronous>, transform_indices = @transform_4, window_bounds = array<i64: 4, 1>}, {pipeline_mode = #tpu.pipeline_mode<synchronous>, transform_indices = @transform_5, window_bounds = array<i64: 4, 1>}, {pipeline_mode = #tpu.pipeline_mode<synchronous>, transform_indices = @transform_6, window_bounds = array<i64: 27, 8, 4>}, {pipeline_mode = #tpu.pipeline_mode<synchronous>, transform_indices = @transform_7, window_bounds = array<i64: 8, 1>}, {pipeline_mode = #tpu.pipeline_mode<synchronous>, transform_indices = @transform_8, window_bounds = array<i64: 2, 8, 256>}]} {
    %cst = arith.constant 0.000000e+00 : f32
    %0 = vector.broadcast %cst : f32 to vector<8x128xf32>
    %c0 = arith.constant 0 : index
    %c0_0 = arith.constant 0 : index
    %1 = vector.load %arg10[%c0, %c0_0] : memref<8x768xf32, #tpu.memory_space<vmem>>, vector<8x128xf32>
    tpu.vector_store %arg10[%c0, %c0_0], %0 {strides = array<i32>} : memref<8x768xf32, #tpu.memory_space<vmem>>, vector<8x128xf32>,
    %cst_1 = arith.constant 0.000000e+00 : f32
    %2 = vector.broadcast %cst_1 : f32 to vector<8x128xf32>
    %c0_2 = arith.constant 0 : index
    %c640 = arith.constant 640 : index
    %3 = vector.load %arg10[%c0_2, %c640] : memref<8x768xf32, #tpu.memory_space<vmem>>, vector<8x128xf32>
    tpu.vector_store %arg10[%c0_2, %c640], %2 {strides = array<i32>} : memref<8x768xf32, #tpu.memory_space<vmem>>, vector<8x128xf32>,
    %c0_3 = arith.constant 0 : index
    %c0_4 = arith.constant 0 : index
    %c0_5 = arith.constant 0 : index
    %4 = vector.load %arg1[%c0_3, %c0_4, %c0_5] : memref<2x8x256xf32, #tpu.memory_space<vmem>>, vector<1x8x256xf32>
    %5 = vector.shape_cast %4 : vector<1x8x256xf32> to vector<8x256xf32>
    %c0_6 = arith.constant 0 : index
    %c128 = arith.constant 128 : index
    %6 = vector.load %arg10[%c0_6, %c128] : memref<8x768xf32, #tpu.memory_space<vmem>>, vector<8x256xf32>
    tpu.vector_store %arg10[%c0_6, %c128], %5 {strides = array<i32>} : memref<8x768xf32, #tpu.memory_space<vmem>>, vector<8x256xf32>,
    %c1 = arith.constant 1 : index
    %c0_7 = arith.constant 0 : index
    %c0_8 = arith.constant 0 : index
    %7 = vector.load %arg1[%c1, %c0_7, %c0_8] : memref<2x8x256xf32, #tpu.memory_space<vmem>>, vector<1x8x256xf32>
    %8 = vector.shape_cast %7 : vector<1x8x256xf32> to vector<8x256xf32>
    %c0_9 = arith.constant 0 : index
    %c384 = arith.constant 384 : index
    %9 = vector.load %arg10[%c0_9, %c384] : memref<8x768xf32, #tpu.memory_space<vmem>>, vector<8x256xf32>
    tpu.vector_store %arg10[%c0_9, %c384], %8 {strides = array<i32>} : memref<8x768xf32, #tpu.memory_space<vmem>>, vector<8x256xf32>,
    %cst_10 = arith.constant 0.000000e+00 : f32
    %10 = vector.broadcast %cst_10 : f32 to vector<4x512xf32>
    %c0_11 = arith.constant 0 : index
    %c55 = arith.constant 55 : index
    %11 = vector.load %arg10[%c0_11, %c55] : memref<8x768xf32, #tpu.memory_space<vmem>>, vector<8x512xf32>
    %c0_12 = arith.constant 0 : index
    %c0_13 = arith.constant 0 : index
    %c0_14 = arith.constant 0 : index
    %12 = vector.load %arg3[%c0_12, %c0_13, %c0_14] : memref<27x4x8xf32, #tpu.memory_space<vmem>>, vector<1x4x8xf32>
    %13 = vector.shape_cast %12 : vector<1x4x8xf32> to vector<4x8xf32>
    %cst_15 = arith.constant dense<0.000000e+00> : vector<4x512xf32>
    %14 = tpu.matmul %13, %11, %cst_15 {dimension_numbers = #tpu.dot_dimension_numbers<[1], [0], [0], [1], [0, 0, 1, 1], [], []>} : vector<4x8xf32>, vector<8x512xf32>, vector<4x512xf32> -> vector<4x512xf32>
    %c0_16 = arith.constant 0 : index
    %c0_17 = arith.constant 0 : index
    %15 = vector.load %arg2[%c0_16, %c0_17] : memref<27x512xf32, #tpu.memory_space<vmem>>, vector<1x512xf32>
    %16 = vector.broadcast %15 : vector<1x512xf32> to vector<4x512xf32>
    %17 = arith.mulf %14, %16 : vector<4x512xf32>
    %18 = arith.addf %10, %17 : vector<4x512xf32>
    %c0_18 = arith.constant 0 : index
    %c56 = arith.constant 56 : index
    %19 = vector.load %arg10[%c0_18, %c56] : memref<8x768xf32, #tpu.memory_space<vmem>>, vector<8x512xf32>
    %c1_19 = arith.constant 1 : index
    %c0_20 = arith.constant 0 : index
    %c0_21 = arith.constant 0 : index
    %20 = vector.load %arg3[%c1_19, %c0_20, %c0_21] : memref<27x4x8xf32, #tpu.memory_space<vmem>>, vector<1x4x8xf32>
    %21 = vector.shape_cast %20 : vector<1x4x8xf32> to vector<4x8xf32>
    %cst_22 = arith.constant dense<0.000000e+00> : vector<4x512xf32>
    %22 = tpu.matmul %21, %19, %cst_22 {dimension_numbers = #tpu.dot_dimension_numbers<[1], [0], [0], [1], [0, 0, 1, 1], [], []>} : vector<4x8xf32>, vector<8x512xf32>, vector<4x512xf32> -> vector<4x512xf32>
    %c1_23 = arith.constant 1 : index
    %c0_24 = arith.constant 0 : index
    %23 = vector.load %arg2[%c1_23, %c0_24] : memref<27x512xf32, #tpu.memory_space<vmem>>, vector<1x512xf32>
    %24 = vector.broadcast %23 : vector<1x512xf32> to vector<4x512xf32>
    %25 = arith.mulf %22, %24 : vector<4x512xf32>
    %26 = arith.addf %18, %25 : vector<4x512xf32>
    %c0_25 = arith.constant 0 : index
    %c57 = arith.constant 57 : index
    %27 = vector.load %arg10[%c0_25, %c57] : memref<8x768xf32, #tpu.memory_space<vmem>>, vector<8x512xf32>
    %c2 = arith.constant 2 : index
    %c0_26 = arith.constant 0 : index
    %c0_27 = arith.constant 0 : index
    %28 = vector.load %arg3[%c2, %c0_26, %c0_27] : memref<27x4x8xf32, #tpu.memory_space<vmem>>, vector<1x4x8xf32>
    %29 = vector.shape_cast %28 : vector<1x4x8xf32> to vector<4x8xf32>
    %cst_28 = arith.constant dense<0.000000e+00> : vector<4x512xf32>
    %30 = tpu.matmul %29, %27, %cst_28 {dimension_numbers = #tpu.dot_dimension_numbers<[1], [0], [0], [1], [0, 0, 1, 1], [], []>} : vector<4x8xf32>, vector<8x512xf32>, vector<4x512xf32> -> vector<4x512xf32>
    %c2_29 = arith.constant 2 : index
    %c0_30 = arith.constant 0 : index
    %31 = vector.load %arg2[%c2_29, %c0_30] : memref<27x512xf32, #tpu.memory_space<vmem>>, vector<1x512xf32>
    %32 = vector.broadcast %31 : vector<1x512xf32> to vector<4x512xf32>
    %33 = arith.mulf %30, %32 : vector<4x512xf32>
    %34 = arith.addf %26, %33 : vector<4x512xf32>
    %c0_31 = arith.constant 0 : index
    %c63 = arith.constant 63 : index
    %35 = vector.load %arg10[%c0_31, %c63] : memref<8x768xf32, #tpu.memory_space<vmem>>, vector<8x512xf32>
    %c3 = arith.constant 3 : index
    %c0_32 = arith.constant 0 : index
    %c0_33 = arith.constant 0 : index
    %36 = vector.load %arg3[%c3, %c0_32, %c0_33] : memref<27x4x8xf32, #tpu.memory_space<vmem>>, vector<1x4x8xf32>
    %37 = vector.shape_cast %36 : vector<1x4x8xf32> to vector<4x8xf32>
    %cst_34 = arith.constant dense<0.000000e+00> : vector<4x512xf32>
    %38 = tpu.matmul %37, %35, %cst_34 {dimension_numbers = #tpu.dot_dimension_numbers<[1], [0], [0], [1], [0, 0, 1, 1], [], []>} : vector<4x8xf32>, vector<8x512xf32>, vector<4x512xf32> -> vector<4x512xf32>
    %c3_35 = arith.constant 3 : index
    %c0_36 = arith.constant 0 : index
    %39 = vector.load %arg2[%c3_35, %c0_36] : memref<27x512xf32, #tpu.memory_space<vmem>>, vector<1x512xf32>
    %40 = vector.broadcast %39 : vector<1x512xf32> to vector<4x512xf32>
    %41 = arith.mulf %38, %40 : vector<4x512xf32>
    %42 = arith.addf %34, %41 : vector<4x512xf32>
    %c0_37 = arith.constant 0 : index
    %c64 = arith.constant 64 : index
    %43 = vector.load %arg10[%c0_37, %c64] : memref<8x768xf32, #tpu.memory_space<vmem>>, vector<8x512xf32>
    %c4 = arith.constant 4 : index
    %c0_38 = arith.constant 0 : index
    %c0_39 = arith.constant 0 : index
    %44 = vector.load %arg3[%c4, %c0_38, %c0_39] : memref<27x4x8xf32, #tpu.memory_space<vmem>>, vector<1x4x8xf32>
    %45 = vector.shape_cast %44 : vector<1x4x8xf32> to vector<4x8xf32>
    %cst_40 = arith.constant dense<0.000000e+00> : vector<4x512xf32>
    %46 = tpu.matmul %45, %43, %cst_40 {dimension_numbers = #tpu.dot_dimension_numbers<[1], [0], [0], [1], [0, 0, 1, 1], [], []>} : vector<4x8xf32>, vector<8x512xf32>, vector<4x512xf32> -> vector<4x512xf32>
    %c4_41 = arith.constant 4 : index
    %c0_42 = arith.constant 0 : index
    %47 = vector.load %arg2[%c4_41, %c0_42] : memref<27x512xf32, #tpu.memory_space<vmem>>, vector<1x512xf32>
    %48 = vector.broadcast %47 : vector<1x512xf32> to vector<4x512xf32>
    %49 = arith.mulf %46, %48 : vector<4x512xf32>
    %50 = arith.addf %42, %49 : vector<4x512xf32>
    %c0_43 = arith.constant 0 : index
    %c65 = arith.constant 65 : index
    %51 = vector.load %arg10[%c0_43, %c65] : memref<8x768xf32, #tpu.memory_space<vmem>>, vector<8x512xf32>
    %c5 = arith.constant 5 : index
    %c0_44 = arith.constant 0 : index
    %c0_45 = arith.constant 0 : index
    %52 = vector.load %arg3[%c5, %c0_44, %c0_45] : memref<27x4x8xf32, #tpu.memory_space<vmem>>, vector<1x4x8xf32>
    %53 = vector.shape_cast %52 : vector<1x4x8xf32> to vector<4x8xf32>
    %cst_46 = arith.constant dense<0.000000e+00> : vector<4x512xf32>
    %54 = tpu.matmul %53, %51, %cst_46 {dimension_numbers = #tpu.dot_dimension_numbers<[1], [0], [0], [1], [0, 0, 1, 1], [], []>} : vector<4x8xf32>, vector<8x512xf32>, vector<4x512xf32> -> vector<4x512xf32>
    %c5_47 = arith.constant 5 : index
    %c0_48 = arith.constant 0 : index
    %55 = vector.load %arg2[%c5_47, %c0_48] : memref<27x512xf32, #tpu.memory_space<vmem>>, vector<1x512xf32>
    %56 = vector.broadcast %55 : vector<1x512xf32> to vector<4x512xf32>
    %57 = arith.mulf %54, %56 : vector<4x512xf32>
    %58 = arith.addf %50, %57 : vector<4x512xf32>
    %c0_49 = arith.constant 0 : index
    %c71 = arith.constant 71 : index
    %59 = vector.load %arg10[%c0_49, %c71] : memref<8x768xf32, #tpu.memory_space<vmem>>, vector<8x512xf32>
    %c6 = arith.constant 6 : index
    %c0_50 = arith.constant 0 : index
    %c0_51 = arith.constant 0 : index
    %60 = vector.load %arg3[%c6, %c0_50, %c0_51] : memref<27x4x8xf32, #tpu.memory_space<vmem>>, vector<1x4x8xf32>
    %61 = vector.shape_cast %60 : vector<1x4x8xf32> to vector<4x8xf32>
    %cst_52 = arith.constant dense<0.000000e+00> : vector<4x512xf32>
    %62 = tpu.matmul %61, %59, %cst_52 {dimension_numbers = #tpu.dot_dimension_numbers<[1], [0], [0], [1], [0, 0, 1, 1], [], []>} : vector<4x8xf32>, vector<8x512xf32>, vector<4x512xf32> -> vector<4x512xf32>
    %c6_53 = arith.constant 6 : index
    %c0_54 = arith.constant 0 : index
    %63 = vector.load %arg2[%c6_53, %c0_54] : memref<27x512xf32, #tpu.memory_space<vmem>>, vector<1x512xf32>
    %64 = vector.broadcast %63 : vector<1x512xf32> to vector<4x512xf32>
    %65 = arith.mulf %62, %64 : vector<4x512xf32>
    %66 = arith.addf %58, %65 : vector<4x512xf32>
    %c0_55 = arith.constant 0 : index
    %c72 = arith.constant 72 : index
    %67 = vector.load %arg10[%c0_55, %c72] : memref<8x768xf32, #tpu.memory_space<vmem>>, vector<8x512xf32>
    %c7 = arith.constant 7 : index
    %c0_56 = arith.constant 0 : index
    %c0_57 = arith.constant 0 : index
    %68 = vector.load %arg3[%c7, %c0_56, %c0_57] : memref<27x4x8xf32, #tpu.memory_space<vmem>>, vector<1x4x8xf32>
    %69 = vector.shape_cast %68 : vector<1x4x8xf32> to vector<4x8xf32>
    %cst_58 = arith.constant dense<0.000000e+00> : vector<4x512xf32>
    %70 = tpu.matmul %69, %67, %cst_58 {dimension_numbers = #tpu.dot_dimension_numbers<[1], [0], [0], [1], [0, 0, 1, 1], [], []>} : vector<4x8xf32>, vector<8x512xf32>, vector<4x512xf32> -> vector<4x512xf32>
    %c7_59 = arith.constant 7 : index
    %c0_60 = arith.constant 0 : index
    %71 = vector.load %arg2[%c7_59, %c0_60] : memref<27x512xf32, #tpu.memory_space<vmem>>, vector<1x512xf32>
    %72 = vector.broadcast %71 : vector<1x512xf32> to vector<4x512xf32>
    %73 = arith.mulf %70, %72 : vector<4x512xf32>
    %74 = arith.addf %66, %73 : vector<4x512xf32>
    %c0_61 = arith.constant 0 : index
    %c73 = arith.constant 73 : index
    %75 = vector.load %arg10[%c0_61, %c73] : memref<8x768xf32, #tpu.memory_space<vmem>>, vector<8x512xf32>
    %c8 = arith.constant 8 : index
    %c0_62 = arith.constant 0 : index
    %c0_63 = arith.constant 0 : index
    %76 = vector.load %arg3[%c8, %c0_62, %c0_63] : memref<27x4x8xf32, #tpu.memory_space<vmem>>, vector<1x4x8xf32>
    %77 = vector.shape_cast %76 : vector<1x4x8xf32> to vector<4x8xf32>
    %cst_64 = arith.constant dense<0.000000e+00> : vector<4x512xf32>
    %78 = tpu.matmul %77, %75, %cst_64 {dimension_numbers = #tpu.dot_dimension_numbers<[1], [0], [0], [1], [0, 0, 1, 1], [], []>} : vector<4x8xf32>, vector<8x512xf32>, vector<4x512xf32> -> vector<4x512xf32>
    %c8_65 = arith.constant 8 : index
    %c0_66 = arith.constant 0 : index
    %79 = vector.load %arg2[%c8_65, %c0_66] : memref<27x512xf32, #tpu.memory_space<vmem>>, vector<1x512xf32>
    %80 = vector.broadcast %79 : vector<1x512xf32> to vector<4x512xf32>
    %81 = arith.mulf %78, %80 : vector<4x512xf32>
    %82 = arith.addf %74, %81 : vector<4x512xf32>
    %c0_67 = arith.constant 0 : index
    %c119 = arith.constant 119 : index
    %83 = vector.load %arg10[%c0_67, %c119] : memref<8x768xf32, #tpu.memory_space<vmem>>, vector<8x512xf32>
    %c9 = arith.constant 9 : index
    %c0_68 = arith.constant 0 : index
    %c0_69 = arith.constant 0 : index
    %84 = vector.load %arg3[%c9, %c0_68, %c0_69] : memref<27x4x8xf32, #tpu.memory_space<vmem>>, vector<1x4x8xf32>
    %85 = vector.shape_cast %84 : vector<1x4x8xf32> to vector<4x8xf32>
    %cst_70 = arith.constant dense<0.000000e+00> : vector<4x512xf32>
    %86 = tpu.matmul %85, %83, %cst_70 {dimension_numbers = #tpu.dot_dimension_numbers<[1], [0], [0], [1], [0, 0, 1, 1], [], []>} : vector<4x8xf32>, vector<8x512xf32>, vector<4x512xf32> -> vector<4x512xf32>
    %c9_71 = arith.constant 9 : index
    %c0_72 = arith.constant 0 : index
    %87 = vector.load %arg2[%c9_71, %c0_72] : memref<27x512xf32, #tpu.memory_space<vmem>>, vector<1x512xf32>
    %88 = vector.broadcast %87 : vector<1x512xf32> to vector<4x512xf32>
    %89 = arith.mulf %86, %88 : vector<4x512xf32>
    %90 = arith.addf %82, %89 : vector<4x512xf32>
    %c0_73 = arith.constant 0 : index
    %c120 = arith.constant 120 : index
    %91 = vector.load %arg10[%c0_73, %c120] : memref<8x768xf32, #tpu.memory_space<vmem>>, vector<8x512xf32>
    %c10 = arith.constant 10 : index
    %c0_74 = arith.constant 0 : index
    %c0_75 = arith.constant 0 : index
    %92 = vector.load %arg3[%c10, %c0_74, %c0_75] : memref<27x4x8xf32, #tpu.memory_space<vmem>>, vector<1x4x8xf32>
    %93 = vector.shape_cast %92 : vector<1x4x8xf32> to vector<4x8xf32>
    %cst_76 = arith.constant dense<0.000000e+00> : vector<4x512xf32>
    %94 = tpu.matmul %93, %91, %cst_76 {dimension_numbers = #tpu.dot_dimension_numbers<[1], [0], [0], [1], [0, 0, 1, 1], [], []>} : vector<4x8xf32>, vector<8x512xf32>, vector<4x512xf32> -> vector<4x512xf32>
    %c10_77 = arith.constant 10 : index
    %c0_78 = arith.constant 0 : index
    %95 = vector.load %arg2[%c10_77, %c0_78] : memref<27x512xf32, #tpu.memory_space<vmem>>, vector<1x512xf32>
    %96 = vector.broadcast %95 : vector<1x512xf32> to vector<4x512xf32>
    %97 = arith.mulf %94, %96 : vector<4x512xf32>
    %98 = arith.addf %90, %97 : vector<4x512xf32>
    %c0_79 = arith.constant 0 : index
    %c121 = arith.constant 121 : index
    %99 = vector.load %arg10[%c0_79, %c121] : memref<8x768xf32, #tpu.memory_space<vmem>>, vector<8x512xf32>
    %c11 = arith.constant 11 : index
    %c0_80 = arith.constant 0 : index
    %c0_81 = arith.constant 0 : index
    %100 = vector.load %arg3[%c11, %c0_80, %c0_81] : memref<27x4x8xf32, #tpu.memory_space<vmem>>, vector<1x4x8xf32>
    %101 = vector.shape_cast %100 : vector<1x4x8xf32> to vector<4x8xf32>
    %cst_82 = arith.constant dense<0.000000e+00> : vector<4x512xf32>
    %102 = tpu.matmul %101, %99, %cst_82 {dimension_numbers = #tpu.dot_dimension_numbers<[1], [0], [0], [1], [0, 0, 1, 1], [], []>} : vector<4x8xf32>, vector<8x512xf32>, vector<4x512xf32> -> vector<4x512xf32>
    %c11_83 = arith.constant 11 : index
    %c0_84 = arith.constant 0 : index
    %103 = vector.load %arg2[%c11_83, %c0_84] : memref<27x512xf32, #tpu.memory_space<vmem>>, vector<1x512xf32>
    %104 = vector.broadcast %103 : vector<1x512xf32> to vector<4x512xf32>
    %105 = arith.mulf %102, %104 : vector<4x512xf32>
    %106 = arith.addf %98, %105 : vector<4x512xf32>
    %c0_85 = arith.constant 0 : index
    %c127 = arith.constant 127 : index
    %107 = vector.load %arg10[%c0_85, %c127] : memref<8x768xf32, #tpu.memory_space<vmem>>, vector<8x512xf32>
    %c12 = arith.constant 12 : index
    %c0_86 = arith.constant 0 : index
    %c0_87 = arith.constant 0 : index
    %108 = vector.load %arg3[%c12, %c0_86, %c0_87] : memref<27x4x8xf32, #tpu.memory_space<vmem>>, vector<1x4x8xf32>
    %109 = vector.shape_cast %108 : vector<1x4x8xf32> to vector<4x8xf32>
    %cst_88 = arith.constant dense<0.000000e+00> : vector<4x512xf32>
    %110 = tpu.matmul %109, %107, %cst_88 {dimension_numbers = #tpu.dot_dimension_numbers<[1], [0], [0], [1], [0, 0, 1, 1], [], []>} : vector<4x8xf32>, vector<8x512xf32>, vector<4x512xf32> -> vector<4x512xf32>
    %c12_89 = arith.constant 12 : index
    %c0_90 = arith.constant 0 : index
    %111 = vector.load %arg2[%c12_89, %c0_90] : memref<27x512xf32, #tpu.memory_space<vmem>>, vector<1x512xf32>
    %112 = vector.broadcast %111 : vector<1x512xf32> to vector<4x512xf32>
    %113 = arith.mulf %110, %112 : vector<4x512xf32>
    %114 = arith.addf %106, %113 : vector<4x512xf32>
    %c0_91 = arith.constant 0 : index
    %c128_92 = arith.constant 128 : index
    %115 = vector.load %arg10[%c0_91, %c128_92] : memref<8x768xf32, #tpu.memory_space<vmem>>, vector<8x512xf32>
    %c13 = arith.constant 13 : index
    %c0_93 = arith.constant 0 : index
    %c0_94 = arith.constant 0 : index
    %116 = vector.load %arg3[%c13, %c0_93, %c0_94] : memref<27x4x8xf32, #tpu.memory_space<vmem>>, vector<1x4x8xf32>
    %117 = vector.shape_cast %116 : vector<1x4x8xf32> to vector<4x8xf32>
    %cst_95 = arith.constant dense<0.000000e+00> : vector<4x512xf32>
    %118 = tpu.matmul %117, %115, %cst_95 {dimension_numbers = #tpu.dot_dimension_numbers<[1], [0], [0], [1], [0, 0, 1, 1], [], []>} : vector<4x8xf32>, vector<8x512xf32>, vector<4x512xf32> -> vector<4x512xf32>
    %119 = arith.addf %114, %118 : vector<4x512xf32>
    %c0_96 = arith.constant 0 : index
    %c129 = arith.constant 129 : index
    %120 = vector.load %arg10[%c0_96, %c129] : memref<8x768xf32, #tpu.memory_space<vmem>>, vector<8x512xf32>
    %c14 = arith.constant 14 : index
    %c0_97 = arith.constant 0 : index
    %c0_98 = arith.constant 0 : index
    %121 = vector.load %arg3[%c14, %c0_97, %c0_98] : memref<27x4x8xf32, #tpu.memory_space<vmem>>, vector<1x4x8xf32>
    %122 = vector.shape_cast %121 : vector<1x4x8xf32> to vector<4x8xf32>
    %cst_99 = arith.constant dense<0.000000e+00> : vector<4x512xf32>
    %123 = tpu.matmul %122, %120, %cst_99 {dimension_numbers = #tpu.dot_dimension_numbers<[1], [0], [0], [1], [0, 0, 1, 1], [], []>} : vector<4x8xf32>, vector<8x512xf32>, vector<4x512xf32> -> vector<4x512xf32>
    %c14_100 = arith.constant 14 : index
    %c0_101 = arith.constant 0 : index
    %124 = vector.load %arg2[%c14_100, %c0_101] : memref<27x512xf32, #tpu.memory_space<vmem>>, vector<1x512xf32>
    %125 = vector.broadcast %124 : vector<1x512xf32> to vector<4x512xf32>
    %126 = arith.mulf %123, %125 : vector<4x512xf32>
    %127 = arith.addf %119, %126 : vector<4x512xf32>
    %c0_102 = arith.constant 0 : index
    %c135 = arith.constant 135 : index
    %128 = vector.load %arg10[%c0_102, %c135] : memref<8x768xf32, #tpu.memory_space<vmem>>, vector<8x512xf32>
    %c15 = arith.constant 15 : index
    %c0_103 = arith.constant 0 : index
    %c0_104 = arith.constant 0 : index
    %129 = vector.load %arg3[%c15, %c0_103, %c0_104] : memref<27x4x8xf32, #tpu.memory_space<vmem>>, vector<1x4x8xf32>
    %130 = vector.shape_cast %129 : vector<1x4x8xf32> to vector<4x8xf32>
    %cst_105 = arith.constant dense<0.000000e+00> : vector<4x512xf32>
    %131 = tpu.matmul %130, %128, %cst_105 {dimension_numbers = #tpu.dot_dimension_numbers<[1], [0], [0], [1], [0, 0, 1, 1], [], []>} : vector<4x8xf32>, vector<8x512xf32>, vector<4x512xf32> -> vector<4x512xf32>
    %c15_106 = arith.constant 15 : index
    %c0_107 = arith.constant 0 : index
    %132 = vector.load %arg2[%c15_106, %c0_107] : memref<27x512xf32, #tpu.memory_space<vmem>>, vector<1x512xf32>
    %133 = vector.broadcast %132 : vector<1x512xf32> to vector<4x512xf32>
    %134 = arith.mulf %131, %133 : vector<4x512xf32>
    %135 = arith.addf %127, %134 : vector<4x512xf32>
    %c0_108 = arith.constant 0 : index
    %c136 = arith.constant 136 : index
    %136 = vector.load %arg10[%c0_108, %c136] : memref<8x768xf32, #tpu.memory_space<vmem>>, vector<8x512xf32>
    %c16 = arith.constant 16 : index
    %c0_109 = arith.constant 0 : index
    %c0_110 = arith.constant 0 : index
    %137 = vector.load %arg3[%c16, %c0_109, %c0_110] : memref<27x4x8xf32, #tpu.memory_space<vmem>>, vector<1x4x8xf32>
    %138 = vector.shape_cast %137 : vector<1x4x8xf32> to vector<4x8xf32>
    %cst_111 = arith.constant dense<0.000000e+00> : vector<4x512xf32>
    %139 = tpu.matmul %138, %136, %cst_111 {dimension_numbers = #tpu.dot_dimension_numbers<[1], [0], [0], [1], [0, 0, 1, 1], [], []>} : vector<4x8xf32>, vector<8x512xf32>, vector<4x512xf32> -> vector<4x512xf32>
    %c16_112 = arith.constant 16 : index
    %c0_113 = arith.constant 0 : index
    %140 = vector.load %arg2[%c16_112, %c0_113] : memref<27x512xf32, #tpu.memory_space<vmem>>, vector<1x512xf32>
    %141 = vector.broadcast %140 : vector<1x512xf32> to vector<4x512xf32>
    %142 = arith.mulf %139, %141 : vector<4x512xf32>
    %143 = arith.addf %135, %142 : vector<4x512xf32>
    %c0_114 = arith.constant 0 : index
    %c137 = arith.constant 137 : index
    %144 = vector.load %arg10[%c0_114, %c137] : memref<8x768xf32, #tpu.memory_space<vmem>>, vector<8x512xf32>
    %c17 = arith.constant 17 : index
    %c0_115 = arith.constant 0 : index
    %c0_116 = arith.constant 0 : index
    %145 = vector.load %arg3[%c17, %c0_115, %c0_116] : memref<27x4x8xf32, #tpu.memory_space<vmem>>, vector<1x4x8xf32>
    %146 = vector.shape_cast %145 : vector<1x4x8xf32> to vector<4x8xf32>
    %cst_117 = arith.constant dense<0.000000e+00> : vector<4x512xf32>
    %147 = tpu.matmul %146, %144, %cst_117 {dimension_numbers = #tpu.dot_dimension_numbers<[1], [0], [0], [1], [0, 0, 1, 1], [], []>} : vector<4x8xf32>, vector<8x512xf32>, vector<4x512xf32> -> vector<4x512xf32>
    %c17_118 = arith.constant 17 : index
    %c0_119 = arith.constant 0 : index
    %148 = vector.load %arg2[%c17_118, %c0_119] : memref<27x512xf32, #tpu.memory_space<vmem>>, vector<1x512xf32>
    %149 = vector.broadcast %148 : vector<1x512xf32> to vector<4x512xf32>
    %150 = arith.mulf %147, %149 : vector<4x512xf32>
    %151 = arith.addf %143, %150 : vector<4x512xf32>
    %c0_120 = arith.constant 0 : index
    %c183 = arith.constant 183 : index
    %152 = vector.load %arg10[%c0_120, %c183] : memref<8x768xf32, #tpu.memory_space<vmem>>, vector<8x512xf32>
    %c18 = arith.constant 18 : index
    %c0_121 = arith.constant 0 : index
    %c0_122 = arith.constant 0 : index
    %153 = vector.load %arg3[%c18, %c0_121, %c0_122] : memref<27x4x8xf32, #tpu.memory_space<vmem>>, vector<1x4x8xf32>
    %154 = vector.shape_cast %153 : vector<1x4x8xf32> to vector<4x8xf32>
    %cst_123 = arith.constant dense<0.000000e+00> : vector<4x512xf32>
    %155 = tpu.matmul %154, %152, %cst_123 {dimension_numbers = #tpu.dot_dimension_numbers<[1], [0], [0], [1], [0, 0, 1, 1], [], []>} : vector<4x8xf32>, vector<8x512xf32>, vector<4x512xf32> -> vector<4x512xf32>
    %c18_124 = arith.constant 18 : index
    %c0_125 = arith.constant 0 : index
    %156 = vector.load %arg2[%c18_124, %c0_125] : memref<27x512xf32, #tpu.memory_space<vmem>>, vector<1x512xf32>
    %157 = vector.broadcast %156 : vector<1x512xf32> to vector<4x512xf32>
    %158 = arith.mulf %155, %157 : vector<4x512xf32>
    %159 = arith.addf %151, %158 : vector<4x512xf32>
    %c0_126 = arith.constant 0 : index
    %c184 = arith.constant 184 : index
    %160 = vector.load %arg10[%c0_126, %c184] : memref<8x768xf32, #tpu.memory_space<vmem>>, vector<8x512xf32>
    %c19 = arith.constant 19 : index
    %c0_127 = arith.constant 0 : index
    %c0_128 = arith.constant 0 : index
    %161 = vector.load %arg3[%c19, %c0_127, %c0_128] : memref<27x4x8xf32, #tpu.memory_space<vmem>>, vector<1x4x8xf32>
    %162 = vector.shape_cast %161 : vector<1x4x8xf32> to vector<4x8xf32>
    %cst_129 = arith.constant dense<0.000000e+00> : vector<4x512xf32>
    %163 = tpu.matmul %162, %160, %cst_129 {dimension_numbers = #tpu.dot_dimension_numbers<[1], [0], [0], [1], [0, 0, 1, 1], [], []>} : vector<4x8xf32>, vector<8x512xf32>, vector<4x512xf32> -> vector<4x512xf32>
    %c19_130 = arith.constant 19 : index
    %c0_131 = arith.constant 0 : index
    %164 = vector.load %arg2[%c19_130, %c0_131] : memref<27x512xf32, #tpu.memory_space<vmem>>, vector<1x512xf32>
    %165 = vector.broadcast %164 : vector<1x512xf32> to vector<4x512xf32>
    %166 = arith.mulf %163, %165 : vector<4x512xf32>
    %167 = arith.addf %159, %166 : vector<4x512xf32>
    %c0_132 = arith.constant 0 : index
    %c185 = arith.constant 185 : index
    %168 = vector.load %arg10[%c0_132, %c185] : memref<8x768xf32, #tpu.memory_space<vmem>>, vector<8x512xf32>
    %c20 = arith.constant 20 : index
    %c0_133 = arith.constant 0 : index
    %c0_134 = arith.constant 0 : index
    %169 = vector.load %arg3[%c20, %c0_133, %c0_134] : memref<27x4x8xf32, #tpu.memory_space<vmem>>, vector<1x4x8xf32>
    %170 = vector.shape_cast %169 : vector<1x4x8xf32> to vector<4x8xf32>
    %cst_135 = arith.constant dense<0.000000e+00> : vector<4x512xf32>
    %171 = tpu.matmul %170, %168, %cst_135 {dimension_numbers = #tpu.dot_dimension_numbers<[1], [0], [0], [1], [0, 0, 1, 1], [], []>} : vector<4x8xf32>, vector<8x512xf32>, vector<4x512xf32> -> vector<4x512xf32>
    %c20_136 = arith.constant 20 : index
    %c0_137 = arith.constant 0 : index
    %172 = vector.load %arg2[%c20_136, %c0_137] : memref<27x512xf32, #tpu.memory_space<vmem>>, vector<1x512xf32>
    %173 = vector.broadcast %172 : vector<1x512xf32> to vector<4x512xf32>
    %174 = arith.mulf %171, %173 : vector<4x512xf32>
    %175 = arith.addf %167, %174 : vector<4x512xf32>
    %c0_138 = arith.constant 0 : index
    %c191 = arith.constant 191 : index
    %176 = vector.load %arg10[%c0_138, %c191] : memref<8x768xf32, #tpu.memory_space<vmem>>, vector<8x512xf32>
    %c21 = arith.constant 21 : index
    %c0_139 = arith.constant 0 : index
    %c0_140 = arith.constant 0 : index
    %177 = vector.load %arg3[%c21, %c0_139, %c0_140] : memref<27x4x8xf32, #tpu.memory_space<vmem>>, vector<1x4x8xf32>
    %178 = vector.shape_cast %177 : vector<1x4x8xf32> to vector<4x8xf32>
    %cst_141 = arith.constant dense<0.000000e+00> : vector<4x512xf32>
    %179 = tpu.matmul %178, %176, %cst_141 {dimension_numbers = #tpu.dot_dimension_numbers<[1], [0], [0], [1], [0, 0, 1, 1], [], []>} : vector<4x8xf32>, vector<8x512xf32>, vector<4x512xf32> -> vector<4x512xf32>
    %c21_142 = arith.constant 21 : index
    %c0_143 = arith.constant 0 : index
    %180 = vector.load %arg2[%c21_142, %c0_143] : memref<27x512xf32, #tpu.memory_space<vmem>>, vector<1x512xf32>
    %181 = vector.broadcast %180 : vector<1x512xf32> to vector<4x512xf32>
    %182 = arith.mulf %179, %181 : vector<4x512xf32>
    %183 = arith.addf %175, %182 : vector<4x512xf32>
    %c0_144 = arith.constant 0 : index
    %c192 = arith.constant 192 : index
    %184 = vector.load %arg10[%c0_144, %c192] : memref<8x768xf32, #tpu.memory_space<vmem>>, vector<8x512xf32>
    %c22 = arith.constant 22 : index
    %c0_145 = arith.constant 0 : index
    %c0_146 = arith.constant 0 : index
    %185 = vector.load %arg3[%c22, %c0_145, %c0_146] : memref<27x4x8xf32, #tpu.memory_space<vmem>>, vector<1x4x8xf32>
    %186 = vector.shape_cast %185 : vector<1x4x8xf32> to vector<4x8xf32>
    %cst_147 = arith.constant dense<0.000000e+00> : vector<4x512xf32>
    %187 = tpu.matmul %186, %184, %cst_147 {dimension_numbers = #tpu.dot_dimension_numbers<[1], [0], [0], [1], [0, 0, 1, 1], [], []>} : vector<4x8xf32>, vector<8x512xf32>, vector<4x512xf32> -> vector<4x512xf32>
    %c22_148 = arith.constant 22 : index
    %c0_149 = arith.constant 0 : index
    %188 = vector.load %arg2[%c22_148, %c0_149] : memref<27x512xf32, #tpu.memory_space<vmem>>, vector<1x512xf32>
    %189 = vector.broadcast %188 : vector<1x512xf32> to vector<4x512xf32>
    %190 = arith.mulf %187, %189 : vector<4x512xf32>
    %191 = arith.addf %183, %190 : vector<4x512xf32>
    %c0_150 = arith.constant 0 : index
    %c193 = arith.constant 193 : index
    %192 = vector.load %arg10[%c0_150, %c193] : memref<8x768xf32, #tpu.memory_space<vmem>>, vector<8x512xf32>
    %c23 = arith.constant 23 : index
    %c0_151 = arith.constant 0 : index
    %c0_152 = arith.constant 0 : index
    %193 = vector.load %arg3[%c23, %c0_151, %c0_152] : memref<27x4x8xf32, #tpu.memory_space<vmem>>, vector<1x4x8xf32>
    %194 = vector.shape_cast %193 : vector<1x4x8xf32> to vector<4x8xf32>
    %cst_153 = arith.constant dense<0.000000e+00> : vector<4x512xf32>
    %195 = tpu.matmul %194, %192, %cst_153 {dimension_numbers = #tpu.dot_dimension_numbers<[1], [0], [0], [1], [0, 0, 1, 1], [], []>} : vector<4x8xf32>, vector<8x512xf32>, vector<4x512xf32> -> vector<4x512xf32>
    %c23_154 = arith.constant 23 : index
    %c0_155 = arith.constant 0 : index
    %196 = vector.load %arg2[%c23_154, %c0_155] : memref<27x512xf32, #tpu.memory_space<vmem>>, vector<1x512xf32>
    %197 = vector.broadcast %196 : vector<1x512xf32> to vector<4x512xf32>
    %198 = arith.mulf %195, %197 : vector<4x512xf32>
    %199 = arith.addf %191, %198 : vector<4x512xf32>
    %c0_156 = arith.constant 0 : index
    %c199 = arith.constant 199 : index
    %200 = vector.load %arg10[%c0_156, %c199] : memref<8x768xf32, #tpu.memory_space<vmem>>, vector<8x512xf32>
    %c24 = arith.constant 24 : index
    %c0_157 = arith.constant 0 : index
    %c0_158 = arith.constant 0 : index
    %201 = vector.load %arg3[%c24, %c0_157, %c0_158] : memref<27x4x8xf32, #tpu.memory_space<vmem>>, vector<1x4x8xf32>
    %202 = vector.shape_cast %201 : vector<1x4x8xf32> to vector<4x8xf32>
    %cst_159 = arith.constant dense<0.000000e+00> : vector<4x512xf32>
    %203 = tpu.matmul %202, %200, %cst_159 {dimension_numbers = #tpu.dot_dimension_numbers<[1], [0], [0], [1], [0, 0, 1, 1], [], []>} : vector<4x8xf32>, vector<8x512xf32>, vector<4x512xf32> -> vector<4x512xf32>
    %c24_160 = arith.constant 24 : index
    %c0_161 = arith.constant 0 : index
    %204 = vector.load %arg2[%c24_160, %c0_161] : memref<27x512xf32, #tpu.memory_space<vmem>>, vector<1x512xf32>
    %205 = vector.broadcast %204 : vector<1x512xf32> to vector<4x512xf32>
    %206 = arith.mulf %203, %205 : vector<4x512xf32>
    %207 = arith.addf %199, %206 : vector<4x512xf32>
    %c0_162 = arith.constant 0 : index
    %c200 = arith.constant 200 : index
    %208 = vector.load %arg10[%c0_162, %c200] : memref<8x768xf32, #tpu.memory_space<vmem>>, vector<8x512xf32>
    %c25 = arith.constant 25 : index
    %c0_163 = arith.constant 0 : index
    %c0_164 = arith.constant 0 : index
    %209 = vector.load %arg3[%c25, %c0_163, %c0_164] : memref<27x4x8xf32, #tpu.memory_space<vmem>>, vector<1x4x8xf32>
    %210 = vector.shape_cast %209 : vector<1x4x8xf32> to vector<4x8xf32>
    %cst_165 = arith.constant dense<0.000000e+00> : vector<4x512xf32>
    %211 = tpu.matmul %210, %208, %cst_165 {dimension_numbers = #tpu.dot_dimension_numbers<[1], [0], [0], [1], [0, 0, 1, 1], [], []>} : vector<4x8xf32>, vector<8x512xf32>, vector<4x512xf32> -> vector<4x512xf32>
    %c25_166 = arith.constant 25 : index
    %c0_167 = arith.constant 0 : index
    %212 = vector.load %arg2[%c25_166, %c0_167] : memref<27x512xf32, #tpu.memory_space<vmem>>, vector<1x512xf32>
    %213 = vector.broadcast %212 : vector<1x512xf32> to vector<4x512xf32>
    %214 = arith.mulf %211, %213 : vector<4x512xf32>
    %215 = arith.addf %207, %214 : vector<4x512xf32>
    %c0_168 = arith.constant 0 : index
    %c201 = arith.constant 201 : index
    %216 = vector.load %arg10[%c0_168, %c201] : memref<8x768xf32, #tpu.memory_space<vmem>>, vector<8x512xf32>
    %c26 = arith.constant 26 : index
    %c0_169 = arith.constant 0 : index
    %c0_170 = arith.constant 0 : index
    %217 = vector.load %arg3[%c26, %c0_169, %c0_170] : memref<27x4x8xf32, #tpu.memory_space<vmem>>, vector<1x4x8xf32>
    %218 = vector.shape_cast %217 : vector<1x4x8xf32> to vector<4x8xf32>
    %cst_171 = arith.constant dense<0.000000e+00> : vector<4x512xf32>
    %219 = tpu.matmul %218, %216, %cst_171 {dimension_numbers = #tpu.dot_dimension_numbers<[1], [0], [0], [1], [0, 0, 1, 1], [], []>} : vector<4x8xf32>, vector<8x512xf32>, vector<4x512xf32> -> vector<4x512xf32>
    %c26_172 = arith.constant 26 : index
    %c0_173 = arith.constant 0 : index
    %220 = vector.load %arg2[%c26_172, %c0_173] : memref<27x512xf32, #tpu.memory_space<vmem>>, vector<1x512xf32>
    %221 = vector.broadcast %220 : vector<1x512xf32> to vector<4x512xf32>
    %222 = arith.mulf %219, %221 : vector<4x512xf32>
    %223 = arith.addf %215, %222 : vector<4x512xf32>
    %c0_174 = arith.constant 0 : index
    %c0_175 = arith.constant 0 : index
    %224 = vector.load %arg4[%c0_174, %c0_175] : memref<4x1xf32, #tpu.memory_space<vmem>>, vector<4x1xf32>
    %225 = vector.broadcast %224 : vector<4x1xf32> to vector<4x512xf32>
    %226 = arith.addf %223, %225 : vector<4x512xf32>
    %cst_176 = arith.constant dense<0.000000e+00> : vector<4xf32>
    %227 = vector.multi_reduction <add>, %226, %cst_176 [1] : vector<4x512xf32> to vector<4xf32>
    %228 = vector.shape_cast %227 : vector<4xf32> to vector<4x1xf32>
    %229 = arith.mulf %226, %226 : vector<4x512xf32>
    %cst_177 = arith.constant dense<0.000000e+00> : vector<4xf32>
    %230 = vector.multi_reduction <add>, %229, %cst_177 [1] : vector<4x512xf32> to vector<4xf32>
    %231 = vector.shape_cast %230 : vector<4xf32> to vector<4x1xf32>
    %cst_178 = arith.constant 5.120000e+02 : f32
    %232 = vector.broadcast %cst_178 : f32 to vector<4x1xf32>
    %233 = arith.divf %228, %232 : vector<4x1xf32>
    %cst_179 = arith.constant 5.120000e+02 : f32
    %234 = vector.broadcast %cst_179 : f32 to vector<4x1xf32>
    %235 = arith.divf %231, %234 : vector<4x1xf32>
    %236 = arith.mulf %233, %233 : vector<4x1xf32>
    %237 = arith.subf %235, %236 : vector<4x1xf32>
    %c0_180 = arith.constant 0 : index
    %c0_181 = arith.constant 0 : index
    %238 = vector.load %arg5[%c0_180, %c0_181] : memref<4x1xf32, #tpu.memory_space<vmem>>, vector<4x1xf32>
    %cst_182 = arith.constant 9.99999974E-6 : f32
    %239 = vector.broadcast %cst_182 : f32 to vector<4x1xf32>
    %240 = arith.addf %237, %239 : vector<4x1xf32>
    %241 = math.rsqrt %240 : vector<4x1xf32>
    %242 = arith.mulf %238, %241 : vector<4x1xf32>
    %c0_183 = arith.constant 0 : index
    %c0_184 = arith.constant 0 : index
    %243 = vector.load %arg6[%c0_183, %c0_184] : memref<4x1xf32, #tpu.memory_space<vmem>>, vector<4x1xf32>
    %244 = arith.mulf %233, %242 : vector<4x1xf32>
    %245 = arith.subf %243, %244 : vector<4x1xf32>
    %246 = vector.broadcast %242 : vector<4x1xf32> to vector<4x512xf32>
    %247 = arith.mulf %226, %246 : vector<4x512xf32>
    %248 = vector.broadcast %245 : vector<4x1xf32> to vector<4x512xf32>
    %249 = arith.addf %247, %248 : vector<4x512xf32>
    %cst_185 = arith.constant 0.000000e+00 : f32
    %250 = vector.broadcast %cst_185 : f32 to vector<4x512xf32>
    %251 = arith.maximumf %249, %250 : vector<4x512xf32>
    %cst_186 = arith.constant 0.000000e+00 : f32
    %252 = vector.broadcast %cst_186 : f32 to vector<4x128xf32>
    %c0_187 = arith.constant 0 : index
    %c0_188 = arith.constant 0 : index
    %253 = vector.load %arg11[%c0_187, %c0_188] : memref<4x768xf32, #tpu.memory_space<vmem>>, vector<4x128xf32>
    tpu.vector_store %arg11[%c0_187, %c0_188], %252 {strides = array<i32>} : memref<4x768xf32, #tpu.memory_space<vmem>>, vector<4x128xf32>,
    %cst_189 = arith.constant 0.000000e+00 : f32
    %254 = vector.broadcast %cst_189 : f32 to vector<4x128xf32>
    %c0_190 = arith.constant 0 : index
    %c640_191 = arith.constant 640 : index
    %255 = vector.load %arg11[%c0_190, %c640_191] : memref<4x768xf32, #tpu.memory_space<vmem>>, vector<4x128xf32>
    tpu.vector_store %arg11[%c0_190, %c640_191], %254 {strides = array<i32>} : memref<4x768xf32, #tpu.memory_space<vmem>>, vector<4x128xf32>,
    %c0_192 = arith.constant 0 : index
    %c128_193 = arith.constant 128 : index
    %256 = vector.load %arg11[%c0_192, %c128_193] : memref<4x768xf32, #tpu.memory_space<vmem>>, vector<4x512xf32>
    tpu.vector_store %arg11[%c0_192, %c128_193], %251 {strides = array<i32>} : memref<4x768xf32, #tpu.memory_space<vmem>>, vector<4x512xf32>,
    %cst_194 = arith.constant 0.000000e+00 : f32
    %257 = vector.broadcast %cst_194 : f32 to vector<8x512xf32>
    %c0_195 = arith.constant 0 : index
    %c55_196 = arith.constant 55 : index
    %258 = vector.load %arg11[%c0_195, %c55_196] : memref<4x768xf32, #tpu.memory_space<vmem>>, vector<4x512xf32>
    %c0_197 = arith.constant 0 : index
    %c0_198 = arith.constant 0 : index
    %259 = vector.load %arg2[%c0_197, %c0_198] : memref<27x512xf32, #tpu.memory_space<vmem>>, vector<1x512xf32>
    %260 = vector.broadcast %259 : vector<1x512xf32> to vector<4x512xf32>
    %261 = arith.mulf %258, %260 : vector<4x512xf32>
    %c0_199 = arith.constant 0 : index
    %c0_200 = arith.constant 0 : index
    %c0_201 = arith.constant 0 : index
    %262 = vector.load %arg7[%c0_199, %c0_200, %c0_201] : memref<27x8x4xf32, #tpu.memory_space<vmem>>, vector<1x8x4xf32>
    %263 = vector.shape_cast %262 : vector<1x8x4xf32> to vector<8x4xf32>
    %cst_202 = arith.constant dense<0.000000e+00> : vector<8x512xf32>
    %264 = tpu.matmul %263, %261, %cst_202 {dimension_numbers = #tpu.dot_dimension_numbers<[1], [0], [0], [1], [0, 0, 1, 1], [], []>} : vector<8x4xf32>, vector<4x512xf32>, vector<8x512xf32> -> vector<8x512xf32>
    %265 = arith.addf %257, %264 : vector<8x512xf32>
    %c0_203 = arith.constant 0 : index
    %c56_204 = arith.constant 56 : index
    %266 = vector.load %arg11[%c0_203, %c56_204] : memref<4x768xf32, #tpu.memory_space<vmem>>, vector<4x512xf32>
    %c1_205 = arith.constant 1 : index
    %c0_206 = arith.constant 0 : index
    %267 = vector.load %arg2[%c1_205, %c0_206] : memref<27x512xf32, #tpu.memory_space<vmem>>, vector<1x512xf32>
    %268 = vector.broadcast %267 : vector<1x512xf32> to vector<4x512xf32>
    %269 = arith.mulf %266, %268 : vector<4x512xf32>
    %c1_207 = arith.constant 1 : index
    %c0_208 = arith.constant 0 : index
    %c0_209 = arith.constant 0 : index
    %270 = vector.load %arg7[%c1_207, %c0_208, %c0_209] : memref<27x8x4xf32, #tpu.memory_space<vmem>>, vector<1x8x4xf32>
    %271 = vector.shape_cast %270 : vector<1x8x4xf32> to vector<8x4xf32>
    %cst_210 = arith.constant dense<0.000000e+00> : vector<8x512xf32>
    %272 = tpu.matmul %271, %269, %cst_210 {dimension_numbers = #tpu.dot_dimension_numbers<[1], [0], [0], [1], [0, 0, 1, 1], [], []>} : vector<8x4xf32>, vector<4x512xf32>, vector<8x512xf32> -> vector<8x512xf32>
    %273 = arith.addf %265, %272 : vector<8x512xf32>
    %c0_211 = arith.constant 0 : index
    %c57_212 = arith.constant 57 : index
    %274 = vector.load %arg11[%c0_211, %c57_212] : memref<4x768xf32, #tpu.memory_space<vmem>>, vector<4x512xf32>
    %c2_213 = arith.constant 2 : index
    %c0_214 = arith.constant 0 : index
    %275 = vector.load %arg2[%c2_213, %c0_214] : memref<27x512xf32, #tpu.memory_space<vmem>>, vector<1x512xf32>
    %276 = vector.broadcast %275 : vector<1x512xf32> to vector<4x512xf32>
    %277 = arith.mulf %274, %276 : vector<4x512xf32>
    %c2_215 = arith.constant 2 : index
    %c0_216 = arith.constant 0 : index
    %c0_217 = arith.constant 0 : index
    %278 = vector.load %arg7[%c2_215, %c0_216, %c0_217] : memref<27x8x4xf32, #tpu.memory_space<vmem>>, vector<1x8x4xf32>
    %279 = vector.shape_cast %278 : vector<1x8x4xf32> to vector<8x4xf32>
    %cst_218 = arith.constant dense<0.000000e+00> : vector<8x512xf32>
    %280 = tpu.matmul %279, %277, %cst_218 {dimension_numbers = #tpu.dot_dimension_numbers<[1], [0], [0], [1], [0, 0, 1, 1], [], []>} : vector<8x4xf32>, vector<4x512xf32>, vector<8x512xf32> -> vector<8x512xf32>
    %281 = arith.addf %273, %280 : vector<8x512xf32>
    %c0_219 = arith.constant 0 : index
    %c63_220 = arith.constant 63 : index
    %282 = vector.load %arg11[%c0_219, %c63_220] : memref<4x768xf32, #tpu.memory_space<vmem>>, vector<4x512xf32>
    %c3_221 = arith.constant 3 : index
    %c0_222 = arith.constant 0 : index
    %283 = vector.load %arg2[%c3_221, %c0_222] : memref<27x512xf32, #tpu.memory_space<vmem>>, vector<1x512xf32>
    %284 = vector.broadcast %283 : vector<1x512xf32> to vector<4x512xf32>
    %285 = arith.mulf %282, %284 : vector<4x512xf32>
    %c3_223 = arith.constant 3 : index
    %c0_224 = arith.constant 0 : index
    %c0_225 = arith.constant 0 : index
    %286 = vector.load %arg7[%c3_223, %c0_224, %c0_225] : memref<27x8x4xf32, #tpu.memory_space<vmem>>, vector<1x8x4xf32>
    %287 = vector.shape_cast %286 : vector<1x8x4xf32> to vector<8x4xf32>
    %cst_226 = arith.constant dense<0.000000e+00> : vector<8x512xf32>
    %288 = tpu.matmul %287, %285, %cst_226 {dimension_numbers = #tpu.dot_dimension_numbers<[1], [0], [0], [1], [0, 0, 1, 1], [], []>} : vector<8x4xf32>, vector<4x512xf32>, vector<8x512xf32> -> vector<8x512xf32>
    %289 = arith.addf %281, %288 : vector<8x512xf32>
    %c0_227 = arith.constant 0 : index
    %c64_228 = arith.constant 64 : index
    %290 = vector.load %arg11[%c0_227, %c64_228] : memref<4x768xf32, #tpu.memory_space<vmem>>, vector<4x512xf32>
    %c4_229 = arith.constant 4 : index
    %c0_230 = arith.constant 0 : index
    %291 = vector.load %arg2[%c4_229, %c0_230] : memref<27x512xf32, #tpu.memory_space<vmem>>, vector<1x512xf32>
    %292 = vector.broadcast %291 : vector<1x512xf32> to vector<4x512xf32>
    %293 = arith.mulf %290, %292 : vector<4x512xf32>
    %c4_231 = arith.constant 4 : index
    %c0_232 = arith.constant 0 : index
    %c0_233 = arith.constant 0 : index
    %294 = vector.load %arg7[%c4_231, %c0_232, %c0_233] : memref<27x8x4xf32, #tpu.memory_space<vmem>>, vector<1x8x4xf32>
    %295 = vector.shape_cast %294 : vector<1x8x4xf32> to vector<8x4xf32>
    %cst_234 = arith.constant dense<0.000000e+00> : vector<8x512xf32>
    %296 = tpu.matmul %295, %293, %cst_234 {dimension_numbers = #tpu.dot_dimension_numbers<[1], [0], [0], [1], [0, 0, 1, 1], [], []>} : vector<8x4xf32>, vector<4x512xf32>, vector<8x512xf32> -> vector<8x512xf32>
    %297 = arith.addf %289, %296 : vector<8x512xf32>
    %c0_235 = arith.constant 0 : index
    %c65_236 = arith.constant 65 : index
    %298 = vector.load %arg11[%c0_235, %c65_236] : memref<4x768xf32, #tpu.memory_space<vmem>>, vector<4x512xf32>
    %c5_237 = arith.constant 5 : index
    %c0_238 = arith.constant 0 : index
    %299 = vector.load %arg2[%c5_237, %c0_238] : memref<27x512xf32, #tpu.memory_space<vmem>>, vector<1x512xf32>
    %300 = vector.broadcast %299 : vector<1x512xf32> to vector<4x512xf32>
    %301 = arith.mulf %298, %300 : vector<4x512xf32>
    %c5_239 = arith.constant 5 : index
    %c0_240 = arith.constant 0 : index
    %c0_241 = arith.constant 0 : index
    %302 = vector.load %arg7[%c5_239, %c0_240, %c0_241] : memref<27x8x4xf32, #tpu.memory_space<vmem>>, vector<1x8x4xf32>
    %303 = vector.shape_cast %302 : vector<1x8x4xf32> to vector<8x4xf32>
    %cst_242 = arith.constant dense<0.000000e+00> : vector<8x512xf32>
    %304 = tpu.matmul %303, %301, %cst_242 {dimension_numbers = #tpu.dot_dimension_numbers<[1], [0], [0], [1], [0, 0, 1, 1], [], []>} : vector<8x4xf32>, vector<4x512xf32>, vector<8x512xf32> -> vector<8x512xf32>
    %305 = arith.addf %297, %304 : vector<8x512xf32>
    %c0_243 = arith.constant 0 : index
    %c71_244 = arith.constant 71 : index
    %306 = vector.load %arg11[%c0_243, %c71_244] : memref<4x768xf32, #tpu.memory_space<vmem>>, vector<4x512xf32>
    %c6_245 = arith.constant 6 : index
    %c0_246 = arith.constant 0 : index
    %307 = vector.load %arg2[%c6_245, %c0_246] : memref<27x512xf32, #tpu.memory_space<vmem>>, vector<1x512xf32>
    %308 = vector.broadcast %307 : vector<1x512xf32> to vector<4x512xf32>
    %309 = arith.mulf %306, %308 : vector<4x512xf32>
    %c6_247 = arith.constant 6 : index
    %c0_248 = arith.constant 0 : index
    %c0_249 = arith.constant 0 : index
    %310 = vector.load %arg7[%c6_247, %c0_248, %c0_249] : memref<27x8x4xf32, #tpu.memory_space<vmem>>, vector<1x8x4xf32>
    %311 = vector.shape_cast %310 : vector<1x8x4xf32> to vector<8x4xf32>
    %cst_250 = arith.constant dense<0.000000e+00> : vector<8x512xf32>
    %312 = tpu.matmul %311, %309, %cst_250 {dimension_numbers = #tpu.dot_dimension_numbers<[1], [0], [0], [1], [0, 0, 1, 1], [], []>} : vector<8x4xf32>, vector<4x512xf32>, vector<8x512xf32> -> vector<8x512xf32>
    %313 = arith.addf %305, %312 : vector<8x512xf32>
    %c0_251 = arith.constant 0 : index
    %c72_252 = arith.constant 72 : index
    %314 = vector.load %arg11[%c0_251, %c72_252] : memref<4x768xf32, #tpu.memory_space<vmem>>, vector<4x512xf32>
    %c7_253 = arith.constant 7 : index
    %c0_254 = arith.constant 0 : index
    %315 = vector.load %arg2[%c7_253, %c0_254] : memref<27x512xf32, #tpu.memory_space<vmem>>, vector<1x512xf32>
    %316 = vector.broadcast %315 : vector<1x512xf32> to vector<4x512xf32>
    %317 = arith.mulf %314, %316 : vector<4x512xf32>
    %c7_255 = arith.constant 7 : index
    %c0_256 = arith.constant 0 : index
    %c0_257 = arith.constant 0 : index
    %318 = vector.load %arg7[%c7_255, %c0_256, %c0_257] : memref<27x8x4xf32, #tpu.memory_space<vmem>>, vector<1x8x4xf32>
    %319 = vector.shape_cast %318 : vector<1x8x4xf32> to vector<8x4xf32>
    %cst_258 = arith.constant dense<0.000000e+00> : vector<8x512xf32>
    %320 = tpu.matmul %319, %317, %cst_258 {dimension_numbers = #tpu.dot_dimension_numbers<[1], [0], [0], [1], [0, 0, 1, 1], [], []>} : vector<8x4xf32>, vector<4x512xf32>, vector<8x512xf32> -> vector<8x512xf32>
    %321 = arith.addf %313, %320 : vector<8x512xf32>
    %c0_259 = arith.constant 0 : index
    %c73_260 = arith.constant 73 : index
    %322 = vector.load %arg11[%c0_259, %c73_260] : memref<4x768xf32, #tpu.memory_space<vmem>>, vector<4x512xf32>
    %c8_261 = arith.constant 8 : index
    %c0_262 = arith.constant 0 : index
    %323 = vector.load %arg2[%c8_261, %c0_262] : memref<27x512xf32, #tpu.memory_space<vmem>>, vector<1x512xf32>
    %324 = vector.broadcast %323 : vector<1x512xf32> to vector<4x512xf32>
    %325 = arith.mulf %322, %324 : vector<4x512xf32>
    %c8_263 = arith.constant 8 : index
    %c0_264 = arith.constant 0 : index
    %c0_265 = arith.constant 0 : index
    %326 = vector.load %arg7[%c8_263, %c0_264, %c0_265] : memref<27x8x4xf32, #tpu.memory_space<vmem>>, vector<1x8x4xf32>
    %327 = vector.shape_cast %326 : vector<1x8x4xf32> to vector<8x4xf32>
    %cst_266 = arith.constant dense<0.000000e+00> : vector<8x512xf32>
    %328 = tpu.matmul %327, %325, %cst_266 {dimension_numbers = #tpu.dot_dimension_numbers<[1], [0], [0], [1], [0, 0, 1, 1], [], []>} : vector<8x4xf32>, vector<4x512xf32>, vector<8x512xf32> -> vector<8x512xf32>
    %329 = arith.addf %321, %328 : vector<8x512xf32>
    %c0_267 = arith.constant 0 : index
    %c119_268 = arith.constant 119 : index
    %330 = vector.load %arg11[%c0_267, %c119_268] : memref<4x768xf32, #tpu.memory_space<vmem>>, vector<4x512xf32>
    %c9_269 = arith.constant 9 : index
    %c0_270 = arith.constant 0 : index
    %331 = vector.load %arg2[%c9_269, %c0_270] : memref<27x512xf32, #tpu.memory_space<vmem>>, vector<1x512xf32>
    %332 = vector.broadcast %331 : vector<1x512xf32> to vector<4x512xf32>
    %333 = arith.mulf %330, %332 : vector<4x512xf32>
    %c9_271 = arith.constant 9 : index
    %c0_272 = arith.constant 0 : index
    %c0_273 = arith.constant 0 : index
    %334 = vector.load %arg7[%c9_271, %c0_272, %c0_273] : memref<27x8x4xf32, #tpu.memory_space<vmem>>, vector<1x8x4xf32>
    %335 = vector.shape_cast %334 : vector<1x8x4xf32> to vector<8x4xf32>
    %cst_274 = arith.constant dense<0.000000e+00> : vector<8x512xf32>
    %336 = tpu.matmul %335, %333, %cst_274 {dimension_numbers = #tpu.dot_dimension_numbers<[1], [0], [0], [1], [0, 0, 1, 1], [], []>} : vector<8x4xf32>, vector<4x512xf32>, vector<8x512xf32> -> vector<8x512xf32>
    %337 = arith.addf %329, %336 : vector<8x512xf32>
    %c0_275 = arith.constant 0 : index
    %c120_276 = arith.constant 120 : index
    %338 = vector.load %arg11[%c0_275, %c120_276] : memref<4x768xf32, #tpu.memory_space<vmem>>, vector<4x512xf32>
    %c10_277 = arith.constant 10 : index
    %c0_278 = arith.constant 0 : index
    %339 = vector.load %arg2[%c10_277, %c0_278] : memref<27x512xf32, #tpu.memory_space<vmem>>, vector<1x512xf32>
    %340 = vector.broadcast %339 : vector<1x512xf32> to vector<4x512xf32>
    %341 = arith.mulf %338, %340 : vector<4x512xf32>
    %c10_279 = arith.constant 10 : index
    %c0_280 = arith.constant 0 : index
    %c0_281 = arith.constant 0 : index
    %342 = vector.load %arg7[%c10_279, %c0_280, %c0_281] : memref<27x8x4xf32, #tpu.memory_space<vmem>>, vector<1x8x4xf32>
    %343 = vector.shape_cast %342 : vector<1x8x4xf32> to vector<8x4xf32>
    %cst_282 = arith.constant dense<0.000000e+00> : vector<8x512xf32>
    %344 = tpu.matmul %343, %341, %cst_282 {dimension_numbers = #tpu.dot_dimension_numbers<[1], [0], [0], [1], [0, 0, 1, 1], [], []>} : vector<8x4xf32>, vector<4x512xf32>, vector<8x512xf32> -> vector<8x512xf32>
    %345 = arith.addf %337, %344 : vector<8x512xf32>
    %c0_283 = arith.constant 0 : index
    %c121_284 = arith.constant 121 : index
    %346 = vector.load %arg11[%c0_283, %c121_284] : memref<4x768xf32, #tpu.memory_space<vmem>>, vector<4x512xf32>
    %c11_285 = arith.constant 11 : index
    %c0_286 = arith.constant 0 : index
    %347 = vector.load %arg2[%c11_285, %c0_286] : memref<27x512xf32, #tpu.memory_space<vmem>>, vector<1x512xf32>
    %348 = vector.broadcast %347 : vector<1x512xf32> to vector<4x512xf32>
    %349 = arith.mulf %346, %348 : vector<4x512xf32>
    %c11_287 = arith.constant 11 : index
    %c0_288 = arith.constant 0 : index
    %c0_289 = arith.constant 0 : index
    %350 = vector.load %arg7[%c11_287, %c0_288, %c0_289] : memref<27x8x4xf32, #tpu.memory_space<vmem>>, vector<1x8x4xf32>
    %351 = vector.shape_cast %350 : vector<1x8x4xf32> to vector<8x4xf32>
    %cst_290 = arith.constant dense<0.000000e+00> : vector<8x512xf32>
    %352 = tpu.matmul %351, %349, %cst_290 {dimension_numbers = #tpu.dot_dimension_numbers<[1], [0], [0], [1], [0, 0, 1, 1], [], []>} : vector<8x4xf32>, vector<4x512xf32>, vector<8x512xf32> -> vector<8x512xf32>
    %353 = arith.addf %345, %352 : vector<8x512xf32>
    %c0_291 = arith.constant 0 : index
    %c127_292 = arith.constant 127 : index
    %354 = vector.load %arg11[%c0_291, %c127_292] : memref<4x768xf32, #tpu.memory_space<vmem>>, vector<4x512xf32>
    %c12_293 = arith.constant 12 : index
    %c0_294 = arith.constant 0 : index
    %355 = vector.load %arg2[%c12_293, %c0_294] : memref<27x512xf32, #tpu.memory_space<vmem>>, vector<1x512xf32>
    %356 = vector.broadcast %355 : vector<1x512xf32> to vector<4x512xf32>
    %357 = arith.mulf %354, %356 : vector<4x512xf32>
    %c12_295 = arith.constant 12 : index
    %c0_296 = arith.constant 0 : index
    %c0_297 = arith.constant 0 : index
    %358 = vector.load %arg7[%c12_295, %c0_296, %c0_297] : memref<27x8x4xf32, #tpu.memory_space<vmem>>, vector<1x8x4xf32>
    %359 = vector.shape_cast %358 : vector<1x8x4xf32> to vector<8x4xf32>
    %cst_298 = arith.constant dense<0.000000e+00> : vector<8x512xf32>
    %360 = tpu.matmul %359, %357, %cst_298 {dimension_numbers = #tpu.dot_dimension_numbers<[1], [0], [0], [1], [0, 0, 1, 1], [], []>} : vector<8x4xf32>, vector<4x512xf32>, vector<8x512xf32> -> vector<8x512xf32>
    %361 = arith.addf %353, %360 : vector<8x512xf32>
    %c0_299 = arith.constant 0 : index
    %c128_300 = arith.constant 128 : index
    %362 = vector.load %arg11[%c0_299, %c128_300] : memref<4x768xf32, #tpu.memory_space<vmem>>, vector<4x512xf32>
    %c13_301 = arith.constant 13 : index
    %c0_302 = arith.constant 0 : index
    %c0_303 = arith.constant 0 : index
    %363 = vector.load %arg7[%c13_301, %c0_302, %c0_303] : memref<27x8x4xf32, #tpu.memory_space<vmem>>, vector<1x8x4xf32>
    %364 = vector.shape_cast %363 : vector<1x8x4xf32> to vector<8x4xf32>
    %cst_304 = arith.constant dense<0.000000e+00> : vector<8x512xf32>
    %365 = tpu.matmul %364, %362, %cst_304 {dimension_numbers = #tpu.dot_dimension_numbers<[1], [0], [0], [1], [0, 0, 1, 1], [], []>} : vector<8x4xf32>, vector<4x512xf32>, vector<8x512xf32> -> vector<8x512xf32>
    %366 = arith.addf %361, %365 : vector<8x512xf32>
    %c0_305 = arith.constant 0 : index
    %c129_306 = arith.constant 129 : index
    %367 = vector.load %arg11[%c0_305, %c129_306] : memref<4x768xf32, #tpu.memory_space<vmem>>, vector<4x512xf32>
    %c14_307 = arith.constant 14 : index
    %c0_308 = arith.constant 0 : index
    %368 = vector.load %arg2[%c14_307, %c0_308] : memref<27x512xf32, #tpu.memory_space<vmem>>, vector<1x512xf32>
    %369 = vector.broadcast %368 : vector<1x512xf32> to vector<4x512xf32>
    %370 = arith.mulf %367, %369 : vector<4x512xf32>
    %c14_309 = arith.constant 14 : index
    %c0_310 = arith.constant 0 : index
    %c0_311 = arith.constant 0 : index
    %371 = vector.load %arg7[%c14_309, %c0_310, %c0_311] : memref<27x8x4xf32, #tpu.memory_space<vmem>>, vector<1x8x4xf32>
    %372 = vector.shape_cast %371 : vector<1x8x4xf32> to vector<8x4xf32>
    %cst_312 = arith.constant dense<0.000000e+00> : vector<8x512xf32>
    %373 = tpu.matmul %372, %370, %cst_312 {dimension_numbers = #tpu.dot_dimension_numbers<[1], [0], [0], [1], [0, 0, 1, 1], [], []>} : vector<8x4xf32>, vector<4x512xf32>, vector<8x512xf32> -> vector<8x512xf32>
    %374 = arith.addf %366, %373 : vector<8x512xf32>
    %c0_313 = arith.constant 0 : index
    %c135_314 = arith.constant 135 : index
    %375 = vector.load %arg11[%c0_313, %c135_314] : memref<4x768xf32, #tpu.memory_space<vmem>>, vector<4x512xf32>
    %c15_315 = arith.constant 15 : index
    %c0_316 = arith.constant 0 : index
    %376 = vector.load %arg2[%c15_315, %c0_316] : memref<27x512xf32, #tpu.memory_space<vmem>>, vector<1x512xf32>
    %377 = vector.broadcast %376 : vector<1x512xf32> to vector<4x512xf32>
    %378 = arith.mulf %375, %377 : vector<4x512xf32>
    %c15_317 = arith.constant 15 : index
    %c0_318 = arith.constant 0 : index
    %c0_319 = arith.constant 0 : index
    %379 = vector.load %arg7[%c15_317, %c0_318, %c0_319] : memref<27x8x4xf32, #tpu.memory_space<vmem>>, vector<1x8x4xf32>
    %380 = vector.shape_cast %379 : vector<1x8x4xf32> to vector<8x4xf32>
    %cst_320 = arith.constant dense<0.000000e+00> : vector<8x512xf32>
    %381 = tpu.matmul %380, %378, %cst_320 {dimension_numbers = #tpu.dot_dimension_numbers<[1], [0], [0], [1], [0, 0, 1, 1], [], []>} : vector<8x4xf32>, vector<4x512xf32>, vector<8x512xf32> -> vector<8x512xf32>
    %382 = arith.addf %374, %381 : vector<8x512xf32>
    %c0_321 = arith.constant 0 : index
    %c136_322 = arith.constant 136 : index
    %383 = vector.load %arg11[%c0_321, %c136_322] : memref<4x768xf32, #tpu.memory_space<vmem>>, vector<4x512xf32>
    %c16_323 = arith.constant 16 : index
    %c0_324 = arith.constant 0 : index
    %384 = vector.load %arg2[%c16_323, %c0_324] : memref<27x512xf32, #tpu.memory_space<vmem>>, vector<1x512xf32>
    %385 = vector.broadcast %384 : vector<1x512xf32> to vector<4x512xf32>
    %386 = arith.mulf %383, %385 : vector<4x512xf32>
    %c16_325 = arith.constant 16 : index
    %c0_326 = arith.constant 0 : index
    %c0_327 = arith.constant 0 : index
    %387 = vector.load %arg7[%c16_325, %c0_326, %c0_327] : memref<27x8x4xf32, #tpu.memory_space<vmem>>, vector<1x8x4xf32>
    %388 = vector.shape_cast %387 : vector<1x8x4xf32> to vector<8x4xf32>
    %cst_328 = arith.constant dense<0.000000e+00> : vector<8x512xf32>
    %389 = tpu.matmul %388, %386, %cst_328 {dimension_numbers = #tpu.dot_dimension_numbers<[1], [0], [0], [1], [0, 0, 1, 1], [], []>} : vector<8x4xf32>, vector<4x512xf32>, vector<8x512xf32> -> vector<8x512xf32>
    %390 = arith.addf %382, %389 : vector<8x512xf32>
    %c0_329 = arith.constant 0 : index
    %c137_330 = arith.constant 137 : index
    %391 = vector.load %arg11[%c0_329, %c137_330] : memref<4x768xf32, #tpu.memory_space<vmem>>, vector<4x512xf32>
    %c17_331 = arith.constant 17 : index
    %c0_332 = arith.constant 0 : index
    %392 = vector.load %arg2[%c17_331, %c0_332] : memref<27x512xf32, #tpu.memory_space<vmem>>, vector<1x512xf32>
    %393 = vector.broadcast %392 : vector<1x512xf32> to vector<4x512xf32>
    %394 = arith.mulf %391, %393 : vector<4x512xf32>
    %c17_333 = arith.constant 17 : index
    %c0_334 = arith.constant 0 : index
    %c0_335 = arith.constant 0 : index
    %395 = vector.load %arg7[%c17_333, %c0_334, %c0_335] : memref<27x8x4xf32, #tpu.memory_space<vmem>>, vector<1x8x4xf32>
    %396 = vector.shape_cast %395 : vector<1x8x4xf32> to vector<8x4xf32>
    %cst_336 = arith.constant dense<0.000000e+00> : vector<8x512xf32>
    %397 = tpu.matmul %396, %394, %cst_336 {dimension_numbers = #tpu.dot_dimension_numbers<[1], [0], [0], [1], [0, 0, 1, 1], [], []>} : vector<8x4xf32>, vector<4x512xf32>, vector<8x512xf32> -> vector<8x512xf32>
    %398 = arith.addf %390, %397 : vector<8x512xf32>
    %c0_337 = arith.constant 0 : index
    %c183_338 = arith.constant 183 : index
    %399 = vector.load %arg11[%c0_337, %c183_338] : memref<4x768xf32, #tpu.memory_space<vmem>>, vector<4x512xf32>
    %c18_339 = arith.constant 18 : index
    %c0_340 = arith.constant 0 : index
    %400 = vector.load %arg2[%c18_339, %c0_340] : memref<27x512xf32, #tpu.memory_space<vmem>>, vector<1x512xf32>
    %401 = vector.broadcast %400 : vector<1x512xf32> to vector<4x512xf32>
    %402 = arith.mulf %399, %401 : vector<4x512xf32>
    %c18_341 = arith.constant 18 : index
    %c0_342 = arith.constant 0 : index
    %c0_343 = arith.constant 0 : index
    %403 = vector.load %arg7[%c18_341, %c0_342, %c0_343] : memref<27x8x4xf32, #tpu.memory_space<vmem>>, vector<1x8x4xf32>
    %404 = vector.shape_cast %403 : vector<1x8x4xf32> to vector<8x4xf32>
    %cst_344 = arith.constant dense<0.000000e+00> : vector<8x512xf32>
    %405 = tpu.matmul %404, %402, %cst_344 {dimension_numbers = #tpu.dot_dimension_numbers<[1], [0], [0], [1], [0, 0, 1, 1], [], []>} : vector<8x4xf32>, vector<4x512xf32>, vector<8x512xf32> -> vector<8x512xf32>
    %406 = arith.addf %398, %405 : vector<8x512xf32>
    %c0_345 = arith.constant 0 : index
    %c184_346 = arith.constant 184 : index
    %407 = vector.load %arg11[%c0_345, %c184_346] : memref<4x768xf32, #tpu.memory_space<vmem>>, vector<4x512xf32>
    %c19_347 = arith.constant 19 : index
    %c0_348 = arith.constant 0 : index
    %408 = vector.load %arg2[%c19_347, %c0_348] : memref<27x512xf32, #tpu.memory_space<vmem>>, vector<1x512xf32>
    %409 = vector.broadcast %408 : vector<1x512xf32> to vector<4x512xf32>
    %410 = arith.mulf %407, %409 : vector<4x512xf32>
    %c19_349 = arith.constant 19 : index
    %c0_350 = arith.constant 0 : index
    %c0_351 = arith.constant 0 : index
    %411 = vector.load %arg7[%c19_349, %c0_350, %c0_351] : memref<27x8x4xf32, #tpu.memory_space<vmem>>, vector<1x8x4xf32>
    %412 = vector.shape_cast %411 : vector<1x8x4xf32> to vector<8x4xf32>
    %cst_352 = arith.constant dense<0.000000e+00> : vector<8x512xf32>
    %413 = tpu.matmul %412, %410, %cst_352 {dimension_numbers = #tpu.dot_dimension_numbers<[1], [0], [0], [1], [0, 0, 1, 1], [], []>} : vector<8x4xf32>, vector<4x512xf32>, vector<8x512xf32> -> vector<8x512xf32>
    %414 = arith.addf %406, %413 : vector<8x512xf32>
    %c0_353 = arith.constant 0 : index
    %c185_354 = arith.constant 185 : index
    %415 = vector.load %arg11[%c0_353, %c185_354] : memref<4x768xf32, #tpu.memory_space<vmem>>, vector<4x512xf32>
    %c20_355 = arith.constant 20 : index
    %c0_356 = arith.constant 0 : index
    %416 = vector.load %arg2[%c20_355, %c0_356] : memref<27x512xf32, #tpu.memory_space<vmem>>, vector<1x512xf32>
    %417 = vector.broadcast %416 : vector<1x512xf32> to vector<4x512xf32>
    %418 = arith.mulf %415, %417 : vector<4x512xf32>
    %c20_357 = arith.constant 20 : index
    %c0_358 = arith.constant 0 : index
    %c0_359 = arith.constant 0 : index
    %419 = vector.load %arg7[%c20_357, %c0_358, %c0_359] : memref<27x8x4xf32, #tpu.memory_space<vmem>>, vector<1x8x4xf32>
    %420 = vector.shape_cast %419 : vector<1x8x4xf32> to vector<8x4xf32>
    %cst_360 = arith.constant dense<0.000000e+00> : vector<8x512xf32>
    %421 = tpu.matmul %420, %418, %cst_360 {dimension_numbers = #tpu.dot_dimension_numbers<[1], [0], [0], [1], [0, 0, 1, 1], [], []>} : vector<8x4xf32>, vector<4x512xf32>, vector<8x512xf32> -> vector<8x512xf32>
    %422 = arith.addf %414, %421 : vector<8x512xf32>
    %c0_361 = arith.constant 0 : index
    %c191_362 = arith.constant 191 : index
    %423 = vector.load %arg11[%c0_361, %c191_362] : memref<4x768xf32, #tpu.memory_space<vmem>>, vector<4x512xf32>
    %c21_363 = arith.constant 21 : index
    %c0_364 = arith.constant 0 : index
    %424 = vector.load %arg2[%c21_363, %c0_364] : memref<27x512xf32, #tpu.memory_space<vmem>>, vector<1x512xf32>
    %425 = vector.broadcast %424 : vector<1x512xf32> to vector<4x512xf32>
    %426 = arith.mulf %423, %425 : vector<4x512xf32>
    %c21_365 = arith.constant 21 : index
    %c0_366 = arith.constant 0 : index
    %c0_367 = arith.constant 0 : index
    %427 = vector.load %arg7[%c21_365, %c0_366, %c0_367] : memref<27x8x4xf32, #tpu.memory_space<vmem>>, vector<1x8x4xf32>
    %428 = vector.shape_cast %427 : vector<1x8x4xf32> to vector<8x4xf32>
    %cst_368 = arith.constant dense<0.000000e+00> : vector<8x512xf32>
    %429 = tpu.matmul %428, %426, %cst_368 {dimension_numbers = #tpu.dot_dimension_numbers<[1], [0], [0], [1], [0, 0, 1, 1], [], []>} : vector<8x4xf32>, vector<4x512xf32>, vector<8x512xf32> -> vector<8x512xf32>
    %430 = arith.addf %422, %429 : vector<8x512xf32>
    %c0_369 = arith.constant 0 : index
    %c192_370 = arith.constant 192 : index
    %431 = vector.load %arg11[%c0_369, %c192_370] : memref<4x768xf32, #tpu.memory_space<vmem>>, vector<4x512xf32>
    %c22_371 = arith.constant 22 : index
    %c0_372 = arith.constant 0 : index
    %432 = vector.load %arg2[%c22_371, %c0_372] : memref<27x512xf32, #tpu.memory_space<vmem>>, vector<1x512xf32>
    %433 = vector.broadcast %432 : vector<1x512xf32> to vector<4x512xf32>
    %434 = arith.mulf %431, %433 : vector<4x512xf32>
    %c22_373 = arith.constant 22 : index
    %c0_374 = arith.constant 0 : index
    %c0_375 = arith.constant 0 : index
    %435 = vector.load %arg7[%c22_373, %c0_374, %c0_375] : memref<27x8x4xf32, #tpu.memory_space<vmem>>, vector<1x8x4xf32>
    %436 = vector.shape_cast %435 : vector<1x8x4xf32> to vector<8x4xf32>
    %cst_376 = arith.constant dense<0.000000e+00> : vector<8x512xf32>
    %437 = tpu.matmul %436, %434, %cst_376 {dimension_numbers = #tpu.dot_dimension_numbers<[1], [0], [0], [1], [0, 0, 1, 1], [], []>} : vector<8x4xf32>, vector<4x512xf32>, vector<8x512xf32> -> vector<8x512xf32>
    %438 = arith.addf %430, %437 : vector<8x512xf32>
    %c0_377 = arith.constant 0 : index
    %c193_378 = arith.constant 193 : index
    %439 = vector.load %arg11[%c0_377, %c193_378] : memref<4x768xf32, #tpu.memory_space<vmem>>, vector<4x512xf32>
    %c23_379 = arith.constant 23 : index
    %c0_380 = arith.constant 0 : index
    %440 = vector.load %arg2[%c23_379, %c0_380] : memref<27x512xf32, #tpu.memory_space<vmem>>, vector<1x512xf32>
    %441 = vector.broadcast %440 : vector<1x512xf32> to vector<4x512xf32>
    %442 = arith.mulf %439, %441 : vector<4x512xf32>
    %c23_381 = arith.constant 23 : index
    %c0_382 = arith.constant 0 : index
    %c0_383 = arith.constant 0 : index
    %443 = vector.load %arg7[%c23_381, %c0_382, %c0_383] : memref<27x8x4xf32, #tpu.memory_space<vmem>>, vector<1x8x4xf32>
    %444 = vector.shape_cast %443 : vector<1x8x4xf32> to vector<8x4xf32>
    %cst_384 = arith.constant dense<0.000000e+00> : vector<8x512xf32>
    %445 = tpu.matmul %444, %442, %cst_384 {dimension_numbers = #tpu.dot_dimension_numbers<[1], [0], [0], [1], [0, 0, 1, 1], [], []>} : vector<8x4xf32>, vector<4x512xf32>, vector<8x512xf32> -> vector<8x512xf32>
    %446 = arith.addf %438, %445 : vector<8x512xf32>
    %c0_385 = arith.constant 0 : index
    %c199_386 = arith.constant 199 : index
    %447 = vector.load %arg11[%c0_385, %c199_386] : memref<4x768xf32, #tpu.memory_space<vmem>>, vector<4x512xf32>
    %c24_387 = arith.constant 24 : index
    %c0_388 = arith.constant 0 : index
    %448 = vector.load %arg2[%c24_387, %c0_388] : memref<27x512xf32, #tpu.memory_space<vmem>>, vector<1x512xf32>
    %449 = vector.broadcast %448 : vector<1x512xf32> to vector<4x512xf32>
    %450 = arith.mulf %447, %449 : vector<4x512xf32>
    %c24_389 = arith.constant 24 : index
    %c0_390 = arith.constant 0 : index
    %c0_391 = arith.constant 0 : index
    %451 = vector.load %arg7[%c24_389, %c0_390, %c0_391] : memref<27x8x4xf32, #tpu.memory_space<vmem>>, vector<1x8x4xf32>
    %452 = vector.shape_cast %451 : vector<1x8x4xf32> to vector<8x4xf32>
    %cst_392 = arith.constant dense<0.000000e+00> : vector<8x512xf32>
    %453 = tpu.matmul %452, %450, %cst_392 {dimension_numbers = #tpu.dot_dimension_numbers<[1], [0], [0], [1], [0, 0, 1, 1], [], []>} : vector<8x4xf32>, vector<4x512xf32>, vector<8x512xf32> -> vector<8x512xf32>
    %454 = arith.addf %446, %453 : vector<8x512xf32>
    %c0_393 = arith.constant 0 : index
    %c200_394 = arith.constant 200 : index
    %455 = vector.load %arg11[%c0_393, %c200_394] : memref<4x768xf32, #tpu.memory_space<vmem>>, vector<4x512xf32>
    %c25_395 = arith.constant 25 : index
    %c0_396 = arith.constant 0 : index
    %456 = vector.load %arg2[%c25_395, %c0_396] : memref<27x512xf32, #tpu.memory_space<vmem>>, vector<1x512xf32>
    %457 = vector.broadcast %456 : vector<1x512xf32> to vector<4x512xf32>
    %458 = arith.mulf %455, %457 : vector<4x512xf32>
    %c25_397 = arith.constant 25 : index
    %c0_398 = arith.constant 0 : index
    %c0_399 = arith.constant 0 : index
    %459 = vector.load %arg7[%c25_397, %c0_398, %c0_399] : memref<27x8x4xf32, #tpu.memory_space<vmem>>, vector<1x8x4xf32>
    %460 = vector.shape_cast %459 : vector<1x8x4xf32> to vector<8x4xf32>
    %cst_400 = arith.constant dense<0.000000e+00> : vector<8x512xf32>
    %461 = tpu.matmul %460, %458, %cst_400 {dimension_numbers = #tpu.dot_dimension_numbers<[1], [0], [0], [1], [0, 0, 1, 1], [], []>} : vector<8x4xf32>, vector<4x512xf32>, vector<8x512xf32> -> vector<8x512xf32>
    %462 = arith.addf %454, %461 : vector<8x512xf32>
    %c0_401 = arith.constant 0 : index
    %c201_402 = arith.constant 201 : index
    %463 = vector.load %arg11[%c0_401, %c201_402] : memref<4x768xf32, #tpu.memory_space<vmem>>, vector<4x512xf32>
    %c26_403 = arith.constant 26 : index
    %c0_404 = arith.constant 0 : index
    %464 = vector.load %arg2[%c26_403, %c0_404] : memref<27x512xf32, #tpu.memory_space<vmem>>, vector<1x512xf32>
    %465 = vector.broadcast %464 : vector<1x512xf32> to vector<4x512xf32>
    %466 = arith.mulf %463, %465 : vector<4x512xf32>
    %c26_405 = arith.constant 26 : index
    %c0_406 = arith.constant 0 : index
    %c0_407 = arith.constant 0 : index
    %467 = vector.load %arg7[%c26_405, %c0_406, %c0_407] : memref<27x8x4xf32, #tpu.memory_space<vmem>>, vector<1x8x4xf32>
    %468 = vector.shape_cast %467 : vector<1x8x4xf32> to vector<8x4xf32>
    %cst_408 = arith.constant dense<0.000000e+00> : vector<8x512xf32>
    %469 = tpu.matmul %468, %466, %cst_408 {dimension_numbers = #tpu.dot_dimension_numbers<[1], [0], [0], [1], [0, 0, 1, 1], [], []>} : vector<8x4xf32>, vector<4x512xf32>, vector<8x512xf32> -> vector<8x512xf32>
    %470 = arith.addf %462, %469 : vector<8x512xf32>
    %c0_409 = arith.constant 0 : index
    %c0_410 = arith.constant 0 : index
    %471 = vector.load %arg8[%c0_409, %c0_410] : memref<8x1xf32, #tpu.memory_space<vmem>>, vector<8x1xf32>
    %472 = vector.broadcast %471 : vector<8x1xf32> to vector<8x512xf32>
    %473 = arith.addf %470, %472 : vector<8x512xf32>
    %474 = arith.negf %473 : vector<8x512xf32>
    %475 = math.exp %474 : vector<8x512xf32>
    %cst_411 = arith.constant 1.000000e+00 : f32
    %476 = vector.broadcast %cst_411 : f32 to vector<8x512xf32>
    %477 = arith.addf %476, %475 : vector<8x512xf32>
    %478 = arith.divf %476, %477 : vector<8x512xf32>
    %c0_412 = arith.constant 0 : index
    %c128_413 = arith.constant 128 : index
    %479 = vector.load %arg10[%c0_412, %c128_413] : memref<8x768xf32, #tpu.memory_space<vmem>>, vector<8x512xf32>
    %480 = arith.mulf %479, %478 : vector<8x512xf32>
    %481 = vector.extract_strided_slice %480 {offsets = [0, 0], sizes = [8, 256], strides = [1, 1]} : vector<8x512xf32> to vector<8x256xf32>
    %c0_414 = arith.constant 0 : index
    %c0_415 = arith.constant 0 : index
    %c0_416 = arith.constant 0 : index
    %482 = vector.load %arg9[%c0_414, %c0_415, %c0_416] : memref<2x8x256xf32, #tpu.memory_space<vmem>>, vector<1x8x256xf32>
    %483 = vector.shape_cast %482 : vector<1x8x256xf32> to vector<8x256xf32>
    %484 = vector.shape_cast %481 : vector<8x256xf32> to vector<1x8x256xf32>
    tpu.vector_store %arg9[%c0_414, %c0_415, %c0_416], %484 {strides = array<i32>} : memref<2x8x256xf32, #tpu.memory_space<vmem>>, vector<1x8x256xf32>,
    %485 = vector.extract_strided_slice %480 {offsets = [0, 256], sizes = [8, 256], strides = [1, 1]} : vector<8x512xf32> to vector<8x256xf32>
    %c1_417 = arith.constant 1 : index
    %c0_418 = arith.constant 0 : index
    %c0_419 = arith.constant 0 : index
    %486 = vector.load %arg9[%c1_417, %c0_418, %c0_419] : memref<2x8x256xf32, #tpu.memory_space<vmem>>, vector<1x8x256xf32>
    %487 = vector.shape_cast %486 : vector<1x8x256xf32> to vector<8x256xf32>
    %488 = vector.shape_cast %485 : vector<8x256xf32> to vector<1x8x256xf32>
    tpu.vector_store %arg9[%c1_417, %c0_418, %c0_419], %488 {strides = array<i32>} : memref<2x8x256xf32, #tpu.memory_space<vmem>>, vector<1x8x256xf32>,
    return
  }
  func.func @transform_0(%arg0: i32) -> (i32, i32, i32) {
    %c0_i32 = arith.constant 0 : i32
    %c0_i32_0 = arith.constant 0 : i32
    %c0_i32_1 = arith.constant 0 : i32
    %c0_i32_2 = arith.constant 0 : i32
    return %c0_i32, %c0_i32_0, %c0_i32_1 : i32, i32, i32
  }
  func.func @transform_1(%arg0: i32) -> (i32, i32) {
    %c0_i32 = arith.constant 0 : i32
    %c0_i32_0 = arith.constant 0 : i32
    %c0_i32_1 = arith.constant 0 : i32
    return %c0_i32, %c0_i32_0 : i32, i32
  }
  func.func @transform_2(%arg0: i32) -> (i32, i32, i32) {
    %c0_i32 = arith.constant 0 : i32
    %c0_i32_0 = arith.constant 0 : i32
    %c0_i32_1 = arith.constant 0 : i32
    %c0_i32_2 = arith.constant 0 : i32
    return %c0_i32, %c0_i32_0, %c0_i32_1 : i32, i32, i32
  }
  func.func @transform_3(%arg0: i32) -> (i32, i32) {
    %c0_i32 = arith.constant 0 : i32
    %c0_i32_0 = arith.constant 0 : i32
    %c0_i32_1 = arith.constant 0 : i32
    return %c0_i32, %c0_i32_0 : i32, i32
  }
  func.func @transform_4(%arg0: i32) -> (i32, i32) {
    %c0_i32 = arith.constant 0 : i32
    %c0_i32_0 = arith.constant 0 : i32
    %c0_i32_1 = arith.constant 0 : i32
    return %c0_i32, %c0_i32_0 : i32, i32
  }
  func.func @transform_5(%arg0: i32) -> (i32, i32) {
    %c0_i32 = arith.constant 0 : i32
    %c0_i32_0 = arith.constant 0 : i32
    %c0_i32_1 = arith.constant 0 : i32
    return %c0_i32, %c0_i32_0 : i32, i32
  }
  func.func @transform_6(%arg0: i32) -> (i32, i32, i32) {
    %c0_i32 = arith.constant 0 : i32
    %c0_i32_0 = arith.constant 0 : i32
    %c0_i32_1 = arith.constant 0 : i32
    %c0_i32_2 = arith.constant 0 : i32
    return %c0_i32, %c0_i32_0, %c0_i32_1 : i32, i32, i32
  }
  func.func @transform_7(%arg0: i32) -> (i32, i32) {
    %c0_i32 = arith.constant 0 : i32
    %c0_i32_0 = arith.constant 0 : i32
    %c0_i32_1 = arith.constant 0 : i32
    return %c0_i32, %c0_i32_0 : i32, i32
  }
  func.func @transform_8(%arg0: i32) -> (i32, i32, i32) {
    %c0_i32 = arith.constant 0 : i32
    %c0_i32_0 = arith.constant 0 : i32
    %c0_i32_1 = arith.constant 0 : i32
    %c0_i32_2 = arith.constant 0 : i32
    return %c0_i32, %c0_i32_0, %c0_i32_1 : i32, i32, i32
  }
}

</mosaic_0001>

<llo_original>
// kernel: tpu_custom_call.1
$region0: #{tpu_custom_call.1}
  #allocation0 [shape = 'u32[]', space=smem, size = 0x4, offset = 0x4, fixed_abs, tag = 'smem constant byte address 0x4 - core index']
  #allocation1 [shape = 'u32[72,128]{1,0:T(1,128)}', space=vmem, size = 0x9000, scoped, tag = 'internal scratch']
  #allocation2 [shape = 'f32[8,768]{1,0:T(8,128)}', space=vmem, size = 0x6000, scoped, tag = 'scratch operand']
  #allocation3 [shape = 'f32[4,768]{1,0:T(4,128)}', space=vmem, size = 0x3000, scoped, tag = 'scratch operand']
  %s0 = inlined_call_operand.vmem [shape: f32[2,8,256], index: 0, kind: input, shape index: {}]
  %s1 = inlined_call_operand.vmem [shape: f32[27,512], index: 1, kind: input, shape index: {}]
  %s2 = inlined_call_operand.vmem [shape: f32[27,4,8], index: 2, kind: input, shape index: {}]
  %s3 = inlined_call_operand.vmem [shape: f32[4,1], index: 3, kind: input, shape index: {}]
  %s4 = inlined_call_operand.vmem [shape: f32[4,1], index: 4, kind: input, shape index: {}]
  %s5 = inlined_call_operand.vmem [shape: f32[4,1], index: 5, kind: input, shape index: {}]
  %s6 = inlined_call_operand.vmem [shape: f32[27,8,4], index: 6, kind: input, shape index: {}]
  %s7 = inlined_call_operand.vmem [shape: f32[8,1], index: 7, kind: input, shape index: {}]
  %s8 = inlined_call_operand.hbm [shape: f32[2,8,256], index: 8, kind: output, shape index: {}]
  %s9 = sld [smem:[#allocation0]]
  $region42: #{tpu_custom_call.1} parent=0
    _
  %s11 = ssub.s32 1, %s9
  %s12 = scalar_select 0, %s11, %s9
  $region1: #{tpu_custom_call.1} parent=0
    #allocation4 [shape = 'u8[16384]{0}', space=vmem, size = 0x4000, scoped, tag = 'output window, operand 0, single buffered']
    #allocation5 [shape = 's32[1]{0}', space=sflag, size = 0x4, scoped, tag = 'scoped memory for tpu_custom_call.1']
    %13 = vsyncpa [#allocation5], 0
    // Predicated region
    $region2: #{tpu_custom_call.1} parent=1 // pred_check
      _
    $region3: #{tpu_custom_call.1} parent=1 // pred_check_branch
      %15 = sbr.rel (0) target = $region5
    $region4: #{tpu_custom_call.1} parent=1 // pred_region
      _
    $region5: #{tpu_custom_call.1} parent=1 // pred_fallthru
      _
    // Predicated region
    $region6: #{tpu_custom_call.1} parent=1 // pred_check
      _
    $region7: #{tpu_custom_call.1} parent=1 // pred_check_branch
      %17 = sbr.rel (0) target = $region9
    $region8: #{tpu_custom_call.1} parent=1 // pred_region
      _
    $region9: #{tpu_custom_call.1} parent=1 // pred_fallthru
      _
    // Predicated region
    $region10: #{tpu_custom_call.1} parent=1 // pred_check
      _
    $region11: #{tpu_custom_call.1} parent=1 // pred_check_branch
      %19 = sbr.rel (0) target = $region13
    $region12: #{tpu_custom_call.1} parent=1 // pred_region
      _
    $region13: #{tpu_custom_call.1} parent=1 // pred_fallthru
      _
    // Predicated region
    $region14: #{tpu_custom_call.1} parent=1 // pred_check
      _
    $region15: #{tpu_custom_call.1} parent=1 // pred_check_branch
      %21 = sbr.rel (0) target = $region17
    $region16: #{tpu_custom_call.1} parent=1 // pred_region
      _
    $region17: #{tpu_custom_call.1} parent=1 // pred_fallthru
      _
    // Predicated region
    $region18: #{tpu_custom_call.1} parent=1 // pred_check
      _
    $region19: #{tpu_custom_call.1} parent=1 // pred_check_branch
      %23 = sbr.rel (0) target = $region21
    $region20: #{tpu_custom_call.1} parent=1 // pred_region
      _
    $region21: #{tpu_custom_call.1} parent=1 // pred_fallthru
      _
    // Predicated region
    $region22: #{tpu_custom_call.1} parent=1 // pred_check
      _
    $region23: #{tpu_custom_call.1} parent=1 // pred_check_branch
      %25 = sbr.rel (0) target = $region25
    $region24: #{tpu_custom_call.1} parent=1 // pred_region
      _
    $region25: #{tpu_custom_call.1} parent=1 // pred_fallthru
      _
    // Predicated region
    $region26: #{tpu_custom_call.1} parent=1 // pred_check
      _
    $region27: #{tpu_custom_call.1} parent=1 // pred_check_branch
      %27 = sbr.rel (0) target = $region29
    $region28: #{tpu_custom_call.1} parent=1 // pred_region
      _
    $region29: #{tpu_custom_call.1} parent=1 // pred_fallthru
      _
    // Predicated region
    $region30: #{tpu_custom_call.1} parent=1 // pred_check
      _
    $region31: #{tpu_custom_call.1} parent=1 // pred_check_branch
      %29 = sbr.rel (0) target = $region33
    $region32: #{tpu_custom_call.1} parent=1 // pred_region
      _
    $region33: #{tpu_custom_call.1} parent=1 // pred_fallthru
      _
    %30 = vst [vmem:[#allocation2] sm:$0xff] 0.0
    %31 = vst [vmem:[#allocation2 + $0x28] sm:$0xff] 0.0
    %v32 = vld [vmem:[%s0] sm:$0xff]
    %v33 = vld [vmem:[%s0 + $0x8] sm:$0xff]
    %34 = vst [vmem:[#allocation2 + $0x8] sm:$0xff] %v32
    %35 = vst [vmem:[#allocation2 + $0x10] sm:$0xff] %v33
    %s36 = scalar_lea.vmem %s0, 16
    %v37 = vld [vmem:[%s36] sm:$0xff]
    %v38 = vld [vmem:[%s36 + $0x8] sm:$0xff]
    %39 = vst [vmem:[#allocation2 + $0x18] sm:$0xff] %v37
    %40 = vst [vmem:[#allocation2 + $0x20] sm:$0xff] %v38
    %v41 = vld [vmem:[#allocation2] sm:$0xff]
    %v42 = vld [vmem:[#allocation2 + $0x8] sm:$0xff]
    %v43 = vld [vmem:[#allocation2 + $0x10] sm:$0xff]
    %v44 = vld [vmem:[#allocation2 + $0x18] sm:$0xff]
    %v45 = vld [vmem:[#allocation2 + $0x20] sm:$0xff]
    %v46 = vld [vmem:[%s2] sm:$0xf]
    %52 = vrot.lane.b32.xlu0 %v41, 73
    %v53 = vpop.permute.xlu0 %52
    %54 = vrot.lane.b32.xlu0 %v42, 73
    %v55 = vpop.permute.xlu0 %54
    %56 = vrot.lane.b32.xlu0 %v43, 73
    %v57 = vpop.permute.xlu0 %56
    %58 = vrot.lane.b32.xlu0 %v44, 73
    %v59 = vpop.permute.xlu0 %58
    %60 = vrot.lane.b32.xlu0 %v45, 73
    %v61 = vpop.permute.xlu0 %60
    %vm62 = vcmask 596992
    %v63 = vsel %vm62, %v53, %v55
    %v64 = vsel %vm62, %v55, %v57
    %v65 = vsel %vm62, %v57, %v59
    %v66 = vsel %vm62, %v59, %v61
    %vm71 = vcmask 64512
    %v73 = vsel %vm71, %v46, 0
    %75 = vmatpush.msra.mxu0 0.0
    %76 = vmatpush.msra.mxu0 0.0
    %77 = vmatpush.msra.mxu0 0.0
    %78 = vmatpush.msra.mxu0 0.0
    %79 = vmatpush.msra.mxu0 0.0
    %80 = vmatpush.msra.mxu0 0.0
    %81 = vmatpush.msra.mxu0 0.0
    %82 = vmatpush.msra.mxu0 0.0
    %83 = vmatpush.msra.mxu0 0.0
    %84 = vmatpush.msra.mxu0 0.0
    %85 = vmatpush.msra.mxu0 0.0
    %86 = vmatpush.msra.mxu0 0.0
    %87 = vmatpush.msra.mxu0 0.0
    %88 = vmatpush.msra.mxu0 0.0
    %89 = vmatpush.msra.mxu0 0.0
    %90 = vmatpush.msra.mxu0 %v63
    %91 = vmatmul.f32.gmra.mxu0 %v73
    %v92 = vpop.f32.mrf.mxu0
    %v93 = vadd.f32 0.0, %v92
    %94 = vdwg.mxu0
    %95 = vmatpush.msra.mxu0 0.0
    %96 = vmatpush.msra.mxu0 0.0
    %97 = vmatpush.msra.mxu0 0.0
    %98 = vmatpush.msra.mxu0 0.0
    %99 = vmatpush.msra.mxu0 0.0
    %100 = vmatpush.msra.mxu0 0.0
    %101 = vmatpush.msra.mxu0 0.0
    %102 = vmatpush.msra.mxu0 0.0
    %103 = vmatpush.msra.mxu0 0.0
    %104 = vmatpush.msra.mxu0 0.0
    %105 = vmatpush.msra.mxu0 0.0
    %106 = vmatpush.msra.mxu0 0.0
    %107 = vmatpush.msra.mxu0 0.0
    %108 = vmatpush.msra.mxu0 0.0
    %109 = vmatpush.msra.mxu0 0.0
    %110 = vmatpush.msra.mxu0 %v64
    %111 = vmatmul.f32.gmra.mxu0 %v73
    %v112 = vpop.f32.mrf.mxu0
    %v113 = vadd.f32 0.0, %v112
    %114 = vdwg.mxu0
    %115 = vmatpush.msra.mxu0 0.0
    %116 = vmatpush.msra.mxu0 0.0
    %117 = vmatpush.msra.mxu0 0.0
    %118 = vmatpush.msra.mxu0 0.0
    %119 = vmatpush.msra.mxu0 0.0
    %120 = vmatpush.msra.mxu0 0.0
    %121 = vmatpush.msra.mxu0 0.0
    %122 = vmatpush.msra.mxu0 0.0
    %123 = vmatpush.msra.mxu0 0.0
    %124 = vmatpush.msra.mxu0 0.0
    %125 = vmatpush.msra.mxu0 0.0
    %126 = vmatpush.msra.mxu0 0.0
    %127 = vmatpush.msra.mxu0 0.0
    %128 = vmatpush.msra.mxu0 0.0
    %129 = vmatpush.msra.mxu0 0.0
    %130 = vmatpush.msra.mxu0 %v65
    %131 = vmatmul.f32.gmra.mxu0 %v73
    %v132 = vpop.f32.mrf.mxu0
    %v133 = vadd.f32 0.0, %v132
    %134 = vdwg.mxu0
    %135 = vmatpush.msra.mxu0 0.0
    %136 = vmatpush.msra.mxu0 0.0
    %137 = vmatpush.msra.mxu0 0.0
    %138 = vmatpush.msra.mxu0 0.0
    %139 = vmatpush.msra.mxu0 0.0
    %140 = vmatpush.msra.mxu0 0.0
    %141 = vmatpush.msra.mxu0 0.0
    %142 = vmatpush.msra.mxu0 0.0
    %143 = vmatpush.msra.mxu0 0.0
    %144 = vmatpush.msra.mxu0 0.0
    %145 = vmatpush.msra.mxu0 0.0
    %146 = vmatpush.msra.mxu0 0.0
    %147 = vmatpush.msra.mxu0 0.0
    %148 = vmatpush.msra.mxu0 0.0
    %149 = vmatpush.msra.mxu0 0.0
    %150 = vmatpush.msra.mxu0 %v66
    %151 = vmatmul.f32.gmra.mxu0 %v73
    %v152 = vpop.f32.mrf.mxu0
    %v153 = vadd.f32 0.0, %v152
    %154 = vdwg.mxu0
    %v155 = vld [vmem:[%s1] ss:$8 sm:$0xf]
    %v157 = vperm.slane %v155, 0
    %v158 = vperm.slane %v155, 1
    %v159 = vperm.slane %v155, 2
    %v160 = vperm.slane %v155, 3
    %v165 = vmul.f32 %v93, %v157
    %v166 = vmul.f32 %v113, %v158
    %v167 = vmul.f32 %v133, %v159
    %v168 = vmul.f32 %v153, %v160
    %v169 = vadd.f32 %v165, 0.0
    %v170 = vadd.f32 %v166, 0.0
    %v171 = vadd.f32 %v167, 0.0
    %v172 = vadd.f32 %v168, 0.0
    %s173 = scalar_lea.vmem %s2, 4
    %v174 = vld [vmem:[%s173] sm:$0xf]
    %175 = vrot.lane.b32.xlu0 %v41, 72
    %v176 = vpop.permute.xlu0 %175
    %177 = vrot.lane.b32.xlu0 %v42, 72
    %v178 = vpop.permute.xlu0 %177
    %179 = vrot.lane.b32.xlu0 %v43, 72
    %v180 = vpop.permute.xlu0 %179
    %181 = vrot.lane.b32.xlu0 %v44, 72
    %v182 = vpop.permute.xlu0 %181
    %183 = vrot.lane.b32.xlu0 %v45, 72
    %v184 = vpop.permute.xlu0 %183
    %vm185 = vcmask 588800
    %v186 = vsel %vm185, %v176, %v178
    %v187 = vsel %vm185, %v178, %v180
    %v188 = vsel %vm185, %v180, %v182
    %v189 = vsel %vm185, %v182, %v184
    %v195 = vsel %vm71, %v174, 0
    %197 = vmatpush.msra.mxu0 0.0
    %198 = vmatpush.msra.mxu0 0.0
    %199 = vmatpush.msra.mxu0 0.0
    %200 = vmatpush.msra.mxu0 0.0
    %201 = vmatpush.msra.mxu0 0.0
    %202 = vmatpush.msra.mxu0 0.0
    %203 = vmatpush.msra.mxu0 0.0
    %204 = vmatpush.msra.mxu0 0.0
    %205 = vmatpush.msra.mxu0 0.0
    %206 = vmatpush.msra.mxu0 0.0
    %207 = vmatpush.msra.mxu0 0.0
    %208 = vmatpush.msra.mxu0 0.0
    %209 = vmatpush.msra.mxu0 0.0
    %210 = vmatpush.msra.mxu0 0.0
    %211 = vmatpush.msra.mxu0 0.0
    %212 = vmatpush.msra.mxu0 %v186
    %213 = vmatmul.f32.gmra.mxu0 %v195
    %v214 = vpop.f32.mrf.mxu0
    %v215 = vadd.f32 0.0, %v214
    %216 = vdwg.mxu0
    %217 = vmatpush.msra.mxu0 0.0
    %218 = vmatpush.msra.mxu0 0.0
    %219 = vmatpush.msra.mxu0 0.0
    %220 = vmatpush.msra.mxu0 0.0
    %221 = vmatpush.msra.mxu0 0.0
    %222 = vmatpush.msra.mxu0 0.0
    %223 = vmatpush.msra.mxu0 0.0
    %224 = vmatpush.msra.mxu0 0.0
    %225 = vmatpush.msra.mxu0 0.0
    %226 = vmatpush.msra.mxu0 0.0
    %227 = vmatpush.msra.mxu0 0.0
    %228 = vmatpush.msra.mxu0 0.0
    %229 = vmatpush.msra.mxu0 0.0
    %230 = vmatpush.msra.mxu0 0.0
    %231 = vmatpush.msra.mxu0 0.0
    %232 = vmatpush.msra.mxu0 %v187
    %233 = vmatmul.f32.gmra.mxu0 %v195
    %v234 = vpop.f32.mrf.mxu0
    %v235 = vadd.f32 0.0, %v234
    %236 = vdwg.mxu0
    %237 = vmatpush.msra.mxu0 0.0
    %238 = vmatpush.msra.mxu0 0.0
    %239 = vmatpush.msra.mxu0 0.0
    %240 = vmatpush.msra.mxu0 0.0
    %241 = vmatpush.msra.mxu0 0.0
    %242 = vmatpush.msra.mxu0 0.0
    %243 = vmatpush.msra.mxu0 0.0
    %244 = vmatpush.msra.mxu0 0.0
    %245 = vmatpush.msra.mxu0 0.0
    %246 = vmatpush.msra.mxu0 0.0
    %247 = vmatpush.msra.mxu0 0.0
    %248 = vmatpush.msra.mxu0 0.0
    %249 = vmatpush.msra.mxu0 0.0
    %250 = vmatpush.msra.mxu0 0.0
    %251 = vmatpush.msra.mxu0 0.0
    %252 = vmatpush.msra.mxu0 %v188
    %253 = vmatmul.f32.gmra.mxu0 %v195
    %v254 = vpop.f32.mrf.mxu0
    %v255 = vadd.f32 0.0, %v254
    %256 = vdwg.mxu0
    %257 = vmatpush.msra.mxu0 0.0
    %258 = vmatpush.msra.mxu0 0.0
    %259 = vmatpush.msra.mxu0 0.0
    %260 = vmatpush.msra.mxu0 0.0
    %261 = vmatpush.msra.mxu0 0.0
    %262 = vmatpush.msra.mxu0 0.0
    %263 = vmatpush.msra.mxu0 0.0
    %264 = vmatpush.msra.mxu0 0.0
    %265 = vmatpush.msra.mxu0 0.0
    %266 = vmatpush.msra.mxu0 0.0
    %267 = vmatpush.msra.mxu0 0.0
    %268 = vmatpush.msra.mxu0 0.0
    %269 = vmatpush.msra.mxu0 0.0
    %270 = vmatpush.msra.mxu0 0.0
    %271 = vmatpush.msra.mxu0 0.0
    %272 = vmatpush.msra.mxu0 %v189
    %273 = vmatmul.f32.gmra.mxu0 %v195
    %v274 = vpop.f32.mrf.mxu0
    %v275 = vadd.f32 0.0, %v274
    %276 = vdwg.mxu0
    %s277 = scalar_lea.vmem %s1, 1
    %v278 = vld [vmem:[%s277] ss:$8 sm:$0xf]
    %v280 = vperm.slane %v278, 0
    %v281 = vperm.slane %v278, 1
    %v282 = vperm.slane %v278, 2
    %v283 = vperm.slane %v278, 3
    %v288 = vmul.f32 %v215, %v280
    %v289 = vmul.f32 %v235, %v281
    %v290 = vmul.f32 %v255, %v282
    %v291 = vmul.f32 %v275, %v283
    %v292 = vadd.f32 %v169, %v288
    %v293 = vadd.f32 %v170, %v289
    %v294 = vadd.f32 %v171, %v290
    %v295 = vadd.f32 %v172, %v291
    %s296 = scalar_lea.vmem %s2, 8
    %v297 = vld [vmem:[%s296] sm:$0xf]
    %298 = vrot.lane.b32.xlu0 %v41, 71
    %v299 = vpop.permute.xlu0 %298
    %300 = vrot.lane.b32.xlu0 %v42, 71
    %v301 = vpop.permute.xlu0 %300
    %302 = vrot.lane.b32.xlu0 %v43, 71
    %v303 = vpop.permute.xlu0 %302
    %304 = vrot.lane.b32.xlu0 %v44, 71
    %v305 = vpop.permute.xlu0 %304
    %306 = vrot.lane.b32.xlu0 %v45, 71
    %v307 = vpop.permute.xlu0 %306
    %vm308 = vcmask 580608
    %v309 = vsel %vm308, %v299, %v301
    %v310 = vsel %vm308, %v301, %v303
    %v311 = vsel %vm308, %v303, %v305
    %v312 = vsel %vm308, %v305, %v307
    %v318 = vsel %vm71, %v297, 0
    %320 = vmatpush.msra.mxu0 0.0
    %321 = vmatpush.msra.mxu0 0.0
    %322 = vmatpush.msra.mxu0 0.0
    %323 = vmatpush.msra.mxu0 0.0
    %324 = vmatpush.msra.mxu0 0.0
    %325 = vmatpush.msra.mxu0 0.0
    %326 = vmatpush.msra.mxu0 0.0
    %327 = vmatpush.msra.mxu0 0.0
    %328 = vmatpush.msra.mxu0 0.0
    %329 = vmatpush.msra.mxu0 0.0
    %330 = vmatpush.msra.mxu0 0.0
    %331 = vmatpush.msra.mxu0 0.0
    %332 = vmatpush.msra.mxu0 0.0
    %333 = vmatpush.msra.mxu0 0.0
    %334 = vmatpush.msra.mxu0 0.0
    %335 = vmatpush.msra.mxu0 %v309
    %336 = vmatmul.f32.gmra.mxu0 %v318
    %v337 = vpop.f32.mrf.mxu0
    %v338 = vadd.f32 0.0, %v337
    %339 = vdwg.mxu0
    %340 = vmatpush.msra.mxu0 0.0
    %341 = vmatpush.msra.mxu0 0.0
    %342 = vmatpush.msra.mxu0 0.0
    %343 = vmatpush.msra.mxu0 0.0
    %344 = vmatpush.msra.mxu0 0.0
    %345 = vmatpush.msra.mxu0 0.0
    %346 = vmatpush.msra.mxu0 0.0
    %347 = vmatpush.msra.mxu0 0.0
    %348 = vmatpush.msra.mxu0 0.0
    %349 = vmatpush.msra.mxu0 0.0
    %350 = vmatpush.msra.mxu0 0.0
    %351 = vmatpush.msra.mxu0 0.0
    %352 = vmatpush.msra.mxu0 0.0
    %353 = vmatpush.msra.mxu0 0.0
    %354 = vmatpush.msra.mxu0 0.0
    %355 = vmatpush.msra.mxu0 %v310
    %356 = vmatmul.f32.gmra.mxu0 %v318
    %v357 = vpop.f32.mrf.mxu0
    %v358 = vadd.f32 0.0, %v357
    %359 = vdwg.mxu0
    %360 = vmatpush.msra.mxu0 0.0
    %361 = vmatpush.msra.mxu0 0.0
    %362 = vmatpush.msra.mxu0 0.0
    %363 = vmatpush.msra.mxu0 0.0
    %364 = vmatpush.msra.mxu0 0.0
    %365 = vmatpush.msra.mxu0 0.0
    %366 = vmatpush.msra.mxu0 0.0
    %367 = vmatpush.msra.mxu0 0.0
    %368 = vmatpush.msra.mxu0 0.0
    %369 = vmatpush.msra.mxu0 0.0
    %370 = vmatpush.msra.mxu0 0.0
    %371 = vmatpush.msra.mxu0 0.0
    %372 = vmatpush.msra.mxu0 0.0
    %373 = vmatpush.msra.mxu0 0.0
    %374 = vmatpush.msra.mxu0 0.0
    %375 = vmatpush.msra.mxu0 %v311
    %376 = vmatmul.f32.gmra.mxu0 %v318
    %v377 = vpop.f32.mrf.mxu0
    %v378 = vadd.f32 0.0, %v377
    %379 = vdwg.mxu0
    %380 = vmatpush.msra.mxu0 0.0
    %381 = vmatpush.msra.mxu0 0.0
    %382 = vmatpush.msra.mxu0 0.0
    %383 = vmatpush.msra.mxu0 0.0
    %384 = vmatpush.msra.mxu0 0.0
    %385 = vmatpush.msra.mxu0 0.0
    %386 = vmatpush.msra.mxu0 0.0
    %387 = vmatpush.msra.mxu0 0.0
    %388 = vmatpush.msra.mxu0 0.0
    %389 = vmatpush.msra.mxu0 0.0
    %390 = vmatpush.msra.mxu0 0.0
    %391 = vmatpush.msra.mxu0 0.0
    %392 = vmatpush.msra.mxu0 0.0
    %393 = vmatpush.msra.mxu0 0.0
    %394 = vmatpush.msra.mxu0 0.0
    %395 = vmatpush.msra.mxu0 %v312
    %396 = vmatmul.f32.gmra.mxu0 %v318
    %v397 = vpop.f32.mrf.mxu0
    %v398 = vadd.f32 0.0, %v397
    %399 = vdwg.mxu0
    %s400 = scalar_lea.vmem %s1, 2
    %v401 = vld [vmem:[%s400] ss:$8 sm:$0xf]
    %v403 = vperm.slane %v401, 0
    %v404 = vperm.slane %v401, 1
    %v405 = vperm.slane %v401, 2
    %v406 = vperm.slane %v401, 3
    %v411 = vmul.f32 %v338, %v403
    %v412 = vmul.f32 %v358, %v404
    %v413 = vmul.f32 %v378, %v405
    %v414 = vmul.f32 %v398, %v406
    %v415 = vadd.f32 %v292, %v411
    %v416 = vadd.f32 %v293, %v412
    %v417 = vadd.f32 %v294, %v413
    %v418 = vadd.f32 %v295, %v414
    %s419 = scalar_lea.vmem %s2, 12
    %v420 = vld [vmem:[%s419] sm:$0xf]
    %421 = vrot.lane.b32.xlu0 %v41, 65
    %v422 = vpop.permute.xlu0 %421
    %423 = vrot.lane.b32.xlu0 %v42, 65
    %v424 = vpop.permute.xlu0 %423
    %425 = vrot.lane.b32.xlu0 %v43, 65
    %v426 = vpop.permute.xlu0 %425
    %427 = vrot.lane.b32.xlu0 %v44, 65
    %v428 = vpop.permute.xlu0 %427
    %429 = vrot.lane.b32.xlu0 %v45, 65
    %v430 = vpop.permute.xlu0 %429
    %vm431 = vcmask 531456
    %v432 = vsel %vm431, %v422, %v424
    %v433 = vsel %vm431, %v424, %v426
    %v434 = vsel %vm431, %v426, %v428
    %v435 = vsel %vm431, %v428, %v430
    %v441 = vsel %vm71, %v420, 0
    %443 = vmatpush.msra.mxu0 0.0
    %444 = vmatpush.msra.mxu0 0.0
    %445 = vmatpush.msra.mxu0 0.0
    %446 = vmatpush.msra.mxu0 0.0
    %447 = vmatpush.msra.mxu0 0.0
    %448 = vmatpush.msra.mxu0 0.0
    %449 = vmatpush.msra.mxu0 0.0
    %450 = vmatpush.msra.mxu0 0.0
    %451 = vmatpush.msra.mxu0 0.0
    %452 = vmatpush.msra.mxu0 0.0
    %453 = vmatpush.msra.mxu0 0.0
    %454 = vmatpush.msra.mxu0 0.0
    %455 = vmatpush.msra.mxu0 0.0
    %456 = vmatpush.msra.mxu0 0.0
    %457 = vmatpush.msra.mxu0 0.0
    %458 = vmatpush.msra.mxu0 %v432
    %459 = vmatmul.f32.gmra.mxu0 %v441
    %v460 = vpop.f32.mrf.mxu0
    %v461 = vadd.f32 0.0, %v460
    %462 = vdwg.mxu0
    %463 = vmatpush.msra.mxu0 0.0
    %464 = vmatpush.msra.mxu0 0.0
    %465 = vmatpush.msra.mxu0 0.0
    %466 = vmatpush.msra.mxu0 0.0
    %467 = vmatpush.msra.mxu0 0.0
    %468 = vmatpush.msra.mxu0 0.0
    %469 = vmatpush.msra.mxu0 0.0
    %470 = vmatpush.msra.mxu0 0.0
    %471 = vmatpush.msra.mxu0 0.0
    %472 = vmatpush.msra.mxu0 0.0
    %473 = vmatpush.msra.mxu0 0.0
    %474 = vmatpush.msra.mxu0 0.0
    %475 = vmatpush.msra.mxu0 0.0
    %476 = vmatpush.msra.mxu0 0.0
    %477 = vmatpush.msra.mxu0 0.0
    %478 = vmatpush.msra.mxu0 %v433
    %479 = vmatmul.f32.gmra.mxu0 %v441
    %v480 = vpop.f32.mrf.mxu0
    %v481 = vadd.f32 0.0, %v480
    %482 = vdwg.mxu0
    %483 = vmatpush.msra.mxu0 0.0
    %484 = vmatpush.msra.mxu0 0.0
    %485 = vmatpush.msra.mxu0 0.0
    %486 = vmatpush.msra.mxu0 0.0
    %487 = vmatpush.msra.mxu0 0.0
    %488 = vmatpush.msra.mxu0 0.0
    %489 = vmatpush.msra.mxu0 0.0
    %490 = vmatpush.msra.mxu0 0.0
    %491 = vmatpush.msra.mxu0 0.0
    %492 = vmatpush.msra.mxu0 0.0
    %493 = vmatpush.msra.mxu0 0.0
    %494 = vmatpush.msra.mxu0 0.0
    %495 = vmatpush.msra.mxu0 0.0
    %496 = vmatpush.msra.mxu0 0.0
    %497 = vmatpush.msra.mxu0 0.0
    %498 = vmatpush.msra.mxu0 %v434
    %499 = vmatmul.f32.gmra.mxu0 %v441
    %v500 = vpop.f32.mrf.mxu0
    %v501 = vadd.f32 0.0, %v500
    %502 = vdwg.mxu0
    %503 = vmatpush.msra.mxu0 0.0
    %504 = vmatpush.msra.mxu0 0.0
    %505 = vmatpush.msra.mxu0 0.0
    %506 = vmatpush.msra.mxu0 0.0
    %507 = vmatpush.msra.mxu0 0.0
    %508 = vmatpush.msra.mxu0 0.0
    %509 = vmatpush.msra.mxu0 0.0
    %510 = vmatpush.msra.mxu0 0.0
    %511 = vmatpush.msra.mxu0 0.0
    %512 = vmatpush.msra.mxu0 0.0
    %513 = vmatpush.msra.mxu0 0.0
    %514 = vmatpush.msra.mxu0 0.0
    %515 = vmatpush.msra.mxu0 0.0
    %516 = vmatpush.msra.mxu0 0.0
    %517 = vmatpush.msra.mxu0 0.0
    %518 = vmatpush.msra.mxu0 %v435
    %519 = vmatmul.f32.gmra.mxu0 %v441
    %v520 = vpop.f32.mrf.mxu0
    %v521 = vadd.f32 0.0, %v520
    %522 = vdwg.mxu0
    %s523 = scalar_lea.vmem %s1, 3
    %v524 = vld [vmem:[%s523] ss:$8 sm:$0xf]
    %v526 = vperm.slane %v524, 0
    %v527 = vperm.slane %v524, 1
    %v528 = vperm.slane %v524, 2
    %v529 = vperm.slane %v524, 3
    %v534 = vmul.f32 %v461, %v526
    %v535 = vmul.f32 %v481, %v527
    %v536 = vmul.f32 %v501, %v528
    %v537 = vmul.f32 %v521, %v529
    %v538 = vadd.f32 %v415, %v534
    %v539 = vadd.f32 %v416, %v535
    %v540 = vadd.f32 %v417, %v536
    %v541 = vadd.f32 %v418, %v537
    %s542 = scalar_lea.vmem %s2, 16
    %v543 = vld [vmem:[%s542] sm:$0xf]
    %544 = vrot.lane.b32.xlu0 %v41, 64
    %v545 = vpop.permute.xlu0 %544
    %546 = vrot.lane.b32.xlu0 %v42, 64
    %v547 = vpop.permute.xlu0 %546
    %548 = vrot.lane.b32.xlu0 %v43, 64
    %v549 = vpop.permute.xlu0 %548
    %550 = vrot.lane.b32.xlu0 %v44, 64
    %v551 = vpop.permute.xlu0 %550
    %552 = vrot.lane.b32.xlu0 %v45, 64
    %v553 = vpop.permute.xlu0 %552
    %vm554 = vcmask 523264
    %v555 = vsel %vm554, %v545, %v547
    %v556 = vsel %vm554, %v547, %v549
    %v557 = vsel %vm554, %v549, %v551
    %v558 = vsel %vm554, %v551, %v553
    %v564 = vsel %vm71, %v543, 0
    %566 = vmatpush.msra.mxu0 0.0
    %567 = vmatpush.msra.mxu0 0.0
    %568 = vmatpush.msra.mxu0 0.0
    %569 = vmatpush.msra.mxu0 0.0
    %570 = vmatpush.msra.mxu0 0.0
    %571 = vmatpush.msra.mxu0 0.0
    %572 = vmatpush.msra.mxu0 0.0
    %573 = vmatpush.msra.mxu0 0.0
    %574 = vmatpush.msra.mxu0 0.0
    %575 = vmatpush.msra.mxu0 0.0
    %576 = vmatpush.msra.mxu0 0.0
    %577 = vmatpush.msra.mxu0 0.0
    %578 = vmatpush.msra.mxu0 0.0
    %579 = vmatpush.msra.mxu0 0.0
    %580 = vmatpush.msra.mxu0 0.0
    %581 = vmatpush.msra.mxu0 %v555
    %582 = vmatmul.f32.gmra.mxu0 %v564
    %v583 = vpop.f32.mrf.mxu0
    %v584 = vadd.f32 0.0, %v583
    %585 = vdwg.mxu0
    %586 = vmatpush.msra.mxu0 0.0
    %587 = vmatpush.msra.mxu0 0.0
    %588 = vmatpush.msra.mxu0 0.0
    %589 = vmatpush.msra.mxu0 0.0
    %590 = vmatpush.msra.mxu0 0.0
    %591 = vmatpush.msra.mxu0 0.0
    %592 = vmatpush.msra.mxu0 0.0
    %593 = vmatpush.msra.mxu0 0.0
    %594 = vmatpush.msra.mxu0 0.0
    %595 = vmatpush.msra.mxu0 0.0
    %596 = vmatpush.msra.mxu0 0.0
    %597 = vmatpush.msra.mxu0 0.0
    %598 = vmatpush.msra.mxu0 0.0
    %599 = vmatpush.msra.mxu0 0.0
    %600 = vmatpush.msra.mxu0 0.0
    %601 = vmatpush.msra.mxu0 %v556
    %602 = vmatmul.f32.gmra.mxu0 %v564
    %v603 = vpop.f32.mrf.mxu0
    %v604 = vadd.f32 0.0, %v603
    %605 = vdwg.mxu0
    %606 = vmatpush.msra.mxu0 0.0
    %607 = vmatpush.msra.mxu0 0.0
    %608 = vmatpush.msra.mxu0 0.0
    %609 = vmatpush.msra.mxu0 0.0
    %610 = vmatpush.msra.mxu0 0.0
    %611 = vmatpush.msra.mxu0 0.0
    %612 = vmatpush.msra.mxu0 0.0
    %613 = vmatpush.msra.mxu0 0.0
    %614 = vmatpush.msra.mxu0 0.0
    %615 = vmatpush.msra.mxu0 0.0
    %616 = vmatpush.msra.mxu0 0.0
    %617 = vmatpush.msra.mxu0 0.0
    %618 = vmatpush.msra.mxu0 0.0
    %619 = vmatpush.msra.mxu0 0.0
    %620 = vmatpush.msra.mxu0 0.0
    %621 = vmatpush.msra.mxu0 %v557
    %622 = vmatmul.f32.gmra.mxu0 %v564
    %v623 = vpop.f32.mrf.mxu0
    %v624 = vadd.f32 0.0, %v623
    %625 = vdwg.mxu0
    %626 = vmatpush.msra.mxu0 0.0
    %627 = vmatpush.msra.mxu0 0.0
    %628 = vmatpush.msra.mxu0 0.0
    %629 = vmatpush.msra.mxu0 0.0
    %630 = vmatpush.msra.mxu0 0.0
    %631 = vmatpush.msra.mxu0 0.0
    %632 = vmatpush.msra.mxu0 0.0
    %633 = vmatpush.msra.mxu0 0.0
    %634 = vmatpush.msra.mxu0 0.0
    %635 = vmatpush.msra.mxu0 0.0
    %636 = vmatpush.msra.mxu0 0.0
    %637 = vmatpush.msra.mxu0 0.0
    %638 = vmatpush.msra.mxu0 0.0
    %639 = vmatpush.msra.mxu0 0.0
    %640 = vmatpush.msra.mxu0 0.0
    %641 = vmatpush.msra.mxu0 %v558
    %642 = vmatmul.f32.gmra.mxu0 %v564
    %v643 = vpop.f32.mrf.mxu0
    %v644 = vadd.f32 0.0, %v643
    %645 = vdwg.mxu0
    %s646 = scalar_lea.vmem %s1, 4
    %v647 = vld [vmem:[%s646] ss:$8 sm:$0xf]
    %v649 = vperm.slane %v647, 0
    %v650 = vperm.slane %v647, 1
    %v651 = vperm.slane %v647, 2
    %v652 = vperm.slane %v647, 3
    %v657 = vmul.f32 %v584, %v649
    %v658 = vmul.f32 %v604, %v650
    %v659 = vmul.f32 %v624, %v651
    %v660 = vmul.f32 %v644, %v652
    %v661 = vadd.f32 %v538, %v657
    %v662 = vadd.f32 %v539, %v658
    %v663 = vadd.f32 %v540, %v659
    %v664 = vadd.f32 %v541, %v660
    %s665 = scalar_lea.vmem %s2, 20
    %v666 = vld [vmem:[%s665] sm:$0xf]
    %667 = vrot.lane.b32.xlu0 %v41, 63
    %v668 = vpop.permute.xlu0 %667
    %669 = vrot.lane.b32.xlu0 %v42, 63
    %v670 = vpop.permute.xlu0 %669
    %671 = vrot.lane.b32.xlu0 %v43, 63
    %v672 = vpop.permute.xlu0 %671
    %673 = vrot.lane.b32.xlu0 %v44, 63
    %v674 = vpop.permute.xlu0 %673
    %675 = vrot.lane.b32.xlu0 %v45, 63
    %v676 = vpop.permute.xlu0 %675
    %vm677 = vcmask 515072
    %v678 = vsel %vm677, %v668, %v670
    %v679 = vsel %vm677, %v670, %v672
    %v680 = vsel %vm677, %v672, %v674
    %v681 = vsel %vm677, %v674, %v676
    %v687 = vsel %vm71, %v666, 0
    %689 = vmatpush.msra.mxu0 0.0
    %690 = vmatpush.msra.mxu0 0.0
    %691 = vmatpush.msra.mxu0 0.0
    %692 = vmatpush.msra.mxu0 0.0
    %693 = vmatpush.msra.mxu0 0.0
    %694 = vmatpush.msra.mxu0 0.0
    %695 = vmatpush.msra.mxu0 0.0
    %696 = vmatpush.msra.mxu0 0.0
    %697 = vmatpush.msra.mxu0 0.0
    %698 = vmatpush.msra.mxu0 0.0
    %699 = vmatpush.msra.mxu0 0.0
    %700 = vmatpush.msra.mxu0 0.0
    %701 = vmatpush.msra.mxu0 0.0
    %702 = vmatpush.msra.mxu0 0.0
    %703 = vmatpush.msra.mxu0 0.0
    %704 = vmatpush.msra.mxu0 %v678
    %705 = vmatmul.f32.gmra.mxu0 %v687
    %v706 = vpop.f32.mrf.mxu0
    %v707 = vadd.f32 0.0, %v706
    %708 = vdwg.mxu0
    %709 = vmatpush.msra.mxu0 0.0
    %710 = vmatpush.msra.mxu0 0.0
    %711 = vmatpush.msra.mxu0 0.0
    %712 = vmatpush.msra.mxu0 0.0
    %713 = vmatpush.msra.mxu0 0.0
    %714 = vmatpush.msra.mxu0 0.0
    %715 = vmatpush.msra.mxu0 0.0
    %716 = vmatpush.msra.mxu0 0.0
    %717 = vmatpush.msra.mxu0 0.0
    %718 = vmatpush.msra.mxu0 0.0
    %719 = vmatpush.msra.mxu0 0.0
    %720 = vmatpush.msra.mxu0 0.0
    %721 = vmatpush.msra.mxu0 0.0
    %722 = vmatpush.msra.mxu0 0.0
    %723 = vmatpush.msra.mxu0 0.0
    %724 = vmatpush.msra.mxu0 %v679
    %725 = vmatmul.f32.gmra.mxu0 %v687
    %v726 = vpop.f32.mrf.mxu0
    %v727 = vadd.f32 0.0, %v726
    %728 = vdwg.mxu0
    %729 = vmatpush.msra.mxu0 0.0
    %730 = vmatpush.msra.mxu0 0.0
    %731 = vmatpush.msra.mxu0 0.0
    %732 = vmatpush.msra.mxu0 0.0
    %733 = vmatpush.msra.mxu0 0.0
    %734 = vmatpush.msra.mxu0 0.0
    %735 = vmatpush.msra.mxu0 0.0
    %736 = vmatpush.msra.mxu0 0.0
    %737 = vmatpush.msra.mxu0 0.0
    %738 = vmatpush.msra.mxu0 0.0
    %739 = vmatpush.msra.mxu0 0.0
    %740 = vmatpush.msra.mxu0 0.0
    %741 = vmatpush.msra.mxu0 0.0
    %742 = vmatpush.msra.mxu0 0.0
    %743 = vmatpush.msra.mxu0 0.0
    %744 = vmatpush.msra.mxu0 %v680
    %745 = vmatmul.f32.gmra.mxu0 %v687
    %v746 = vpop.f32.mrf.mxu0
    %v747 = vadd.f32 0.0, %v746
    %748 = vdwg.mxu0
    %749 = vmatpush.msra.mxu0 0.0
    %750 = vmatpush.msra.mxu0 0.0
    %751 = vmatpush.msra.mxu0 0.0
    %752 = vmatpush.msra.mxu0 0.0
    %753 = vmatpush.msra.mxu0 0.0
    %754 = vmatpush.msra.mxu0 0.0
    %755 = vmatpush.msra.mxu0 0.0
    %756 = vmatpush.msra.mxu0 0.0
    %757 = vmatpush.msra.mxu0 0.0
    %758 = vmatpush.msra.mxu0 0.0
    %759 = vmatpush.msra.mxu0 0.0
    %760 = vmatpush.msra.mxu0 0.0
    %761 = vmatpush.msra.mxu0 0.0
    %762 = vmatpush.msra.mxu0 0.0
    %763 = vmatpush.msra.mxu0 0.0
    %764 = vmatpush.msra.mxu0 %v681
    %765 = vmatmul.f32.gmra.mxu0 %v687
    %v766 = vpop.f32.mrf.mxu0
    %v767 = vadd.f32 0.0, %v766
    %768 = vdwg.mxu0
    %s769 = scalar_lea.vmem %s1, 5
    %v770 = vld [vmem:[%s769] ss:$8 sm:$0xf]
    %v772 = vperm.slane %v770, 0
    %v773 = vperm.slane %v770, 1
    %v774 = vperm.slane %v770, 2
    %v775 = vperm.slane %v770, 3
    %v780 = vmul.f32 %v707, %v772
    %v781 = vmul.f32 %v727, %v773
    %v782 = vmul.f32 %v747, %v774
    %v783 = vmul.f32 %v767, %v775
    %v784 = vadd.f32 %v661, %v780
    %v785 = vadd.f32 %v662, %v781
    %v786 = vadd.f32 %v663, %v782
    %v787 = vadd.f32 %v664, %v783
    %s788 = scalar_lea.vmem %s2, 24
    %v789 = vld [vmem:[%s788] sm:$0xf]
    %790 = vrot.lane.b32.xlu0 %v41, 57
    %v791 = vpop.permute.xlu0 %790
    %792 = vrot.lane.b32.xlu0 %v42, 57
    %v793 = vpop.permute.xlu0 %792
    %794 = vrot.lane.b32.xlu0 %v43, 57
    %v795 = vpop.permute.xlu0 %794
    %796 = vrot.lane.b32.xlu0 %v44, 57
    %v797 = vpop.permute.xlu0 %796
    %798 = vrot.lane.b32.xlu0 %v45, 57
    %v799 = vpop.permute.xlu0 %798
    %vm800 = vcmask 465920
    %v801 = vsel %vm800, %v791, %v793
    %v802 = vsel %vm800, %v793, %v795
    %v803 = vsel %vm800, %v795, %v797
    %v804 = vsel %vm800, %v797, %v799
    %v810 = vsel %vm71, %v789, 0
    %812 = vmatpush.msra.mxu0 0.0
    %813 = vmatpush.msra.mxu0 0.0
    %814 = vmatpush.msra.mxu0 0.0
    %815 = vmatpush.msra.mxu0 0.0
    %816 = vmatpush.msra.mxu0 0.0
    %817 = vmatpush.msra.mxu0 0.0
    %818 = vmatpush.msra.mxu0 0.0
    %819 = vmatpush.msra.mxu0 0.0
    %820 = vmatpush.msra.mxu0 0.0
    %821 = vmatpush.msra.mxu0 0.0
    %822 = vmatpush.msra.mxu0 0.0
    %823 = vmatpush.msra.mxu0 0.0
    %824 = vmatpush.msra.mxu0 0.0
    %825 = vmatpush.msra.mxu0 0.0
    %826 = vmatpush.msra.mxu0 0.0
    %827 = vmatpush.msra.mxu0 %v801
    %828 = vmatmul.f32.gmra.mxu0 %v810
    %v829 = vpop.f32.mrf.mxu0
    %v830 = vadd.f32 0.0, %v829
    %831 = vdwg.mxu0
    %832 = vmatpush.msra.mxu0 0.0
    %833 = vmatpush.msra.mxu0 0.0
    %834 = vmatpush.msra.mxu0 0.0
    %835 = vmatpush.msra.mxu0 0.0
    %836 = vmatpush.msra.mxu0 0.0
    %837 = vmatpush.msra.mxu0 0.0
    %838 = vmatpush.msra.mxu0 0.0
    %839 = vmatpush.msra.mxu0 0.0
    %840 = vmatpush.msra.mxu0 0.0
    %841 = vmatpush.msra.mxu0 0.0
    %842 = vmatpush.msra.mxu0 0.0
    %843 = vmatpush.msra.mxu0 0.0
    %844 = vmatpush.msra.mxu0 0.0
    %845 = vmatpush.msra.mxu0 0.0
    %846 = vmatpush.msra.mxu0 0.0
    %847 = vmatpush.msra.mxu0 %v802
    %848 = vmatmul.f32.gmra.mxu0 %v810
    %v849 = vpop.f32.mrf.mxu0
    %v850 = vadd.f32 0.0, %v849
    %851 = vdwg.mxu0
    %852 = vmatpush.msra.mxu0 0.0
    %853 = vmatpush.msra.mxu0 0.0
    %854 = vmatpush.msra.mxu0 0.0
    %855 = vmatpush.msra.mxu0 0.0
    %856 = vmatpush.msra.mxu0 0.0
    %857 = vmatpush.msra.mxu0 0.0
    %858 = vmatpush.msra.mxu0 0.0
    %859 = vmatpush.msra.mxu0 0.0
    %860 = vmatpush.msra.mxu0 0.0
    %861 = vmatpush.msra.mxu0 0.0
    %862 = vmatpush.msra.mxu0 0.0
    %863 = vmatpush.msra.mxu0 0.0
    %864 = vmatpush.msra.mxu0 0.0
    %865 = vmatpush.msra.mxu0 0.0
    %866 = vmatpush.msra.mxu0 0.0
    %867 = vmatpush.msra.mxu0 %v803
    %868 = vmatmul.f32.gmra.mxu0 %v810
    %v869 = vpop.f32.mrf.mxu0
    %v870 = vadd.f32 0.0, %v869
    %871 = vdwg.mxu0
    %872 = vmatpush.msra.mxu0 0.0
    %873 = vmatpush.msra.mxu0 0.0
    %874 = vmatpush.msra.mxu0 0.0
    %875 = vmatpush.msra.mxu0 0.0
    %876 = vmatpush.msra.mxu0 0.0
    %877 = vmatpush.msra.mxu0 0.0
    %878 = vmatpush.msra.mxu0 0.0
    %879 = vmatpush.msra.mxu0 0.0
    %880 = vmatpush.msra.mxu0 0.0
    %881 = vmatpush.msra.mxu0 0.0
    %882 = vmatpush.msra.mxu0 0.0
    %883 = vmatpush.msra.mxu0 0.0
    %884 = vmatpush.msra.mxu0 0.0
    %885 = vmatpush.msra.mxu0 0.0
    %886 = vmatpush.msra.mxu0 0.0
    %887 = vmatpush.msra.mxu0 %v804
    %888 = vmatmul.f32.gmra.mxu0 %v810
    %v889 = vpop.f32.mrf.mxu0
    %v890 = vadd.f32 0.0, %v889
    %891 = vdwg.mxu0
    %s892 = scalar_lea.vmem %s1, 6
    %v893 = vld [vmem:[%s892] ss:$8 sm:$0xf]
    %v895 = vperm.slane %v893, 0
    %v896 = vperm.slane %v893, 1
    %v897 = vperm.slane %v893, 2
    %v898 = vperm.slane %v893, 3
    %v903 = vmul.f32 %v830, %v895
    %v904 = vmul.f32 %v850, %v896
    %v905 = vmul.f32 %v870, %v897
    %v906 = vmul.f32 %v890, %v898
    %v907 = vadd.f32 %v784, %v903
    %v908 = vadd.f32 %v785, %v904
    %v909 = vadd.f32 %v786, %v905
    %v910 = vadd.f32 %v787, %v906
    %s911 = scalar_lea.vmem %s2, 28
    %v912 = vld [vmem:[%s911] sm:$0xf]
    %913 = vrot.lane.b32.xlu0 %v41, 56
    %v914 = vpop.permute.xlu0 %913
    %915 = vrot.lane.b32.xlu0 %v42, 56
    %v916 = vpop.permute.xlu0 %915
    %917 = vrot.lane.b32.xlu0 %v43, 56
    %v918 = vpop.permute.xlu0 %917
    %919 = vrot.lane.b32.xlu0 %v44, 56
    %v920 = vpop.permute.xlu0 %919
    %921 = vrot.lane.b32.xlu0 %v45, 56
    %v922 = vpop.permute.xlu0 %921
    %vm923 = vcmask 457728
    %v924 = vsel %vm923, %v914, %v916
    %v925 = vsel %vm923, %v916, %v918
    %v926 = vsel %vm923, %v918, %v920
    %v927 = vsel %vm923, %v920, %v922
    %v933 = vsel %vm71, %v912, 0
    %935 = vmatpush.msra.mxu0 0.0
    %936 = vmatpush.msra.mxu0 0.0
    %937 = vmatpush.msra.mxu0 0.0
    %938 = vmatpush.msra.mxu0 0.0
    %939 = vmatpush.msra.mxu0 0.0
    %940 = vmatpush.msra.mxu0 0.0
    %941 = vmatpush.msra.mxu0 0.0
    %942 = vmatpush.msra.mxu0 0.0
    %943 = vmatpush.msra.mxu0 0.0
    %944 = vmatpush.msra.mxu0 0.0
    %945 = vmatpush.msra.mxu0 0.0
    %946 = vmatpush.msra.mxu0 0.0
    %947 = vmatpush.msra.mxu0 0.0
    %948 = vmatpush.msra.mxu0 0.0
    %949 = vmatpush.msra.mxu0 0.0
    %950 = vmatpush.msra.mxu0 %v924
    %951 = vmatmul.f32.gmra.mxu0 %v933
    %v952 = vpop.f32.mrf.mxu0
    %v953 = vadd.f32 0.0, %v952
    %954 = vdwg.mxu0
    %955 = vmatpush.msra.mxu0 0.0
    %956 = vmatpush.msra.mxu0 0.0
    %957 = vmatpush.msra.mxu0 0.0
    %958 = vmatpush.msra.mxu0 0.0
    %959 = vmatpush.msra.mxu0 0.0
    %960 = vmatpush.msra.mxu0 0.0
    %961 = vmatpush.msra.mxu0 0.0
    %962 = vmatpush.msra.mxu0 0.0
    %963 = vmatpush.msra.mxu0 0.0
    %964 = vmatpush.msra.mxu0 0.0
    %965 = vmatpush.msra.mxu0 0.0
    %966 = vmatpush.msra.mxu0 0.0
    %967 = vmatpush.msra.mxu0 0.0
    %968 = vmatpush.msra.mxu0 0.0
    %969 = vmatpush.msra.mxu0 0.0
    %970 = vmatpush.msra.mxu0 %v925
    %971 = vmatmul.f32.gmra.mxu0 %v933
    %v972 = vpop.f32.mrf.mxu0
    %v973 = vadd.f32 0.0, %v972
    %974 = vdwg.mxu0
    %975 = vmatpush.msra.mxu0 0.0
    %976 = vmatpush.msra.mxu0 0.0
    %977 = vmatpush.msra.mxu0 0.0
    %978 = vmatpush.msra.mxu0 0.0
    %979 = vmatpush.msra.mxu0 0.0
    %980 = vmatpush.msra.mxu0 0.0
    %981 = vmatpush.msra.mxu0 0.0
    %982 = vmatpush.msra.mxu0 0.0
    %983 = vmatpush.msra.mxu0 0.0
    %984 = vmatpush.msra.mxu0 0.0
    %985 = vmatpush.msra.mxu0 0.0
    %986 = vmatpush.msra.mxu0 0.0
    %987 = vmatpush.msra.mxu0 0.0
    %988 = vmatpush.msra.mxu0 0.0
    %989 = vmatpush.msra.mxu0 0.0
    %990 = vmatpush.msra.mxu0 %v926
    %991 = vmatmul.f32.gmra.mxu0 %v933
    %v992 = vpop.f32.mrf.mxu0
    %v993 = vadd.f32 0.0, %v992
    %994 = vdwg.mxu0
    %995 = vmatpush.msra.mxu0 0.0
    %996 = vmatpush.msra.mxu0 0.0
    %997 = vmatpush.msra.mxu0 0.0
    %998 = vmatpush.msra.mxu0 0.0
    %999 = vmatpush.msra.mxu0 0.0
    %1000 = vmatpush.msra.mxu0 0.0
    %1001 = vmatpush.msra.mxu0 0.0
    %1002 = vmatpush.msra.mxu0 0.0
    %1003 = vmatpush.msra.mxu0 0.0
    %1004 = vmatpush.msra.mxu0 0.0
    %1005 = vmatpush.msra.mxu0 0.0
    %1006 = vmatpush.msra.mxu0 0.0
    %1007 = vmatpush.msra.mxu0 0.0
    %1008 = vmatpush.msra.mxu0 0.0
    %1009 = vmatpush.msra.mxu0 0.0
    %1010 = vmatpush.msra.mxu0 %v927
    %1011 = vmatmul.f32.gmra.mxu0 %v933
    %v1012 = vpop.f32.mrf.mxu0
    %v1013 = vadd.f32 0.0, %v1012
    %1014 = vdwg.mxu0
    %s1015 = scalar_lea.vmem %s1, 7
    %v1016 = vld [vmem:[%s1015] ss:$8 sm:$0xf]
    %v1018 = vperm.slane %v1016, 0
    %v1019 = vperm.slane %v1016, 1
    %v1020 = vperm.slane %v1016, 2
    %v1021 = vperm.slane %v1016, 3
    %v1026 = vmul.f32 %v953, %v1018
    %v1027 = vmul.f32 %v973, %v1019
    %v1028 = vmul.f32 %v993, %v1020
    %v1029 = vmul.f32 %v1013, %v1021
    %v1030 = vadd.f32 %v907, %v1026
    %v1031 = vadd.f32 %v908, %v1027
    %v1032 = vadd.f32 %v909, %v1028
    %v1033 = vadd.f32 %v910, %v1029
    %s1034 = scalar_lea.vmem %s2, 32
    %v1035 = vld [vmem:[%s1034] sm:$0xf]
    %1036 = vrot.lane.b32.xlu0 %v41, 55
    %v1037 = vpop.permute.xlu0 %1036
    %1038 = vrot.lane.b32.xlu0 %v42, 55
    %v1039 = vpop.permute.xlu0 %1038
    %1040 = vrot.lane.b32.xlu0 %v43, 55
    %v1041 = vpop.permute.xlu0 %1040
    %1042 = vrot.lane.b32.xlu0 %v44, 55
    %v1043 = vpop.permute.xlu0 %1042
    %1044 = vrot.lane.b32.xlu0 %v45, 55
    %v1045 = vpop.permute.xlu0 %1044
    %vm1046 = vcmask 449536
    %v1047 = vsel %vm1046, %v1037, %v1039
    %v1048 = vsel %vm1046, %v1039, %v1041
    %v1049 = vsel %vm1046, %v1041, %v1043
    %v1050 = vsel %vm1046, %v1043, %v1045
    %v1056 = vsel %vm71, %v1035, 0
    %1058 = vmatpush.msra.mxu0 0.0
    %1059 = vmatpush.msra.mxu0 0.0
    %1060 = vmatpush.msra.mxu0 0.0
    %1061 = vmatpush.msra.mxu0 0.0
    %1062 = vmatpush.msra.mxu0 0.0
    %1063 = vmatpush.msra.mxu0 0.0
    %1064 = vmatpush.msra.mxu0 0.0
    %1065 = vmatpush.msra.mxu0 0.0
    %1066 = vmatpush.msra.mxu0 0.0
    %1067 = vmatpush.msra.mxu0 0.0
    %1068 = vmatpush.msra.mxu0 0.0
    %1069 = vmatpush.msra.mxu0 0.0
    %1070 = vmatpush.msra.mxu0 0.0
    %1071 = vmatpush.msra.mxu0 0.0
    %1072 = vmatpush.msra.mxu0 0.0
    %1073 = vmatpush.msra.mxu0 %v1047
    %1074 = vmatmul.f32.gmra.mxu0 %v1056
    %v1075 = vpop.f32.mrf.mxu0
    %v1076 = vadd.f32 0.0, %v1075
    %1077 = vdwg.mxu0
    %1078 = vmatpush.msra.mxu0 0.0
    %1079 = vmatpush.msra.mxu0 0.0
    %1080 = vmatpush.msra.mxu0 0.0
    %1081 = vmatpush.msra.mxu0 0.0
    %1082 = vmatpush.msra.mxu0 0.0
    %1083 = vmatpush.msra.mxu0 0.0
    %1084 = vmatpush.msra.mxu0 0.0
    %1085 = vmatpush.msra.mxu0 0.0
    %1086 = vmatpush.msra.mxu0 0.0
    %1087 = vmatpush.msra.mxu0 0.0
    %1088 = vmatpush.msra.mxu0 0.0
    %1089 = vmatpush.msra.mxu0 0.0
    %1090 = vmatpush.msra.mxu0 0.0
    %1091 = vmatpush.msra.mxu0 0.0
    %1092 = vmatpush.msra.mxu0 0.0
    %1093 = vmatpush.msra.mxu0 %v1048
    %1094 = vmatmul.f32.gmra.mxu0 %v1056
    %v1095 = vpop.f32.mrf.mxu0
    %v1096 = vadd.f32 0.0, %v1095
    %1097 = vdwg.mxu0
    %1098 = vmatpush.msra.mxu0 0.0
    %1099 = vmatpush.msra.mxu0 0.0
    %1100 = vmatpush.msra.mxu0 0.0
    %1101 = vmatpush.msra.mxu0 0.0
    %1102 = vmatpush.msra.mxu0 0.0
    %1103 = vmatpush.msra.mxu0 0.0
    %1104 = vmatpush.msra.mxu0 0.0
    %1105 = vmatpush.msra.mxu0 0.0
    %1106 = vmatpush.msra.mxu0 0.0
    %1107 = vmatpush.msra.mxu0 0.0
    %1108 = vmatpush.msra.mxu0 0.0
    %1109 = vmatpush.msra.mxu0 0.0
    %1110 = vmatpush.msra.mxu0 0.0
    %1111 = vmatpush.msra.mxu0 0.0
    %1112 = vmatpush.msra.mxu0 0.0
    %1113 = vmatpush.msra.mxu0 %v1049
    %1114 = vmatmul.f32.gmra.mxu0 %v1056
    %v1115 = vpop.f32.mrf.mxu0
    %v1116 = vadd.f32 0.0, %v1115
    %1117 = vdwg.mxu0
    %1118 = vmatpush.msra.mxu0 0.0
    %1119 = vmatpush.msra.mxu0 0.0
    %1120 = vmatpush.msra.mxu0 0.0
    %1121 = vmatpush.msra.mxu0 0.0
    %1122 = vmatpush.msra.mxu0 0.0
    %1123 = vmatpush.msra.mxu0 0.0
    %1124 = vmatpush.msra.mxu0 0.0
    %1125 = vmatpush.msra.mxu0 0.0
    %1126 = vmatpush.msra.mxu0 0.0
    %1127 = vmatpush.msra.mxu0 0.0
    %1128 = vmatpush.msra.mxu0 0.0
    %1129 = vmatpush.msra.mxu0 0.0
    %1130 = vmatpush.msra.mxu0 0.0
    %1131 = vmatpush.msra.mxu0 0.0
    %1132 = vmatpush.msra.mxu0 0.0
    %1133 = vmatpush.msra.mxu0 %v1050
    %1134 = vmatmul.f32.gmra.mxu0 %v1056
    %v1135 = vpop.f32.mrf.mxu0
    %v1136 = vadd.f32 0.0, %v1135
    %1137 = vdwg.mxu0
    %s1138 = scalar_lea.vmem %s1, 32
    %v1139 = vld [vmem:[%s1138] ss:$8 sm:$0xf]
    %v1141 = vperm.slane %v1139, 0
    %v1142 = vperm.slane %v1139, 1
    %v1143 = vperm.slane %v1139, 2
    %v1144 = vperm.slane %v1139, 3
    %v1149 = vmul.f32 %v1076, %v1141
    %v1150 = vmul.f32 %v1096, %v1142
    %v1151 = vmul.f32 %v1116, %v1143
    %v1152 = vmul.f32 %v1136, %v1144
    %v1153 = vadd.f32 %v1030, %v1149
    %v1154 = vadd.f32 %v1031, %v1150
    %v1155 = vadd.f32 %v1032, %v1151
    %v1156 = vadd.f32 %v1033, %v1152
    %s1157 = scalar_lea.vmem %s2, 36
    %v1158 = vld [vmem:[%s1157] sm:$0xf]
    %1159 = vrot.lane.b32.xlu0 %v41, 9
    %v1160 = vpop.permute.xlu0 %1159
    %1161 = vrot.lane.b32.xlu0 %v42, 9
    %v1162 = vpop.permute.xlu0 %1161
    %1163 = vrot.lane.b32.xlu0 %v43, 9
    %v1164 = vpop.permute.xlu0 %1163
    %1165 = vrot.lane.b32.xlu0 %v44, 9
    %v1166 = vpop.permute.xlu0 %1165
    %1167 = vrot.lane.b32.xlu0 %v45, 9
    %v1168 = vpop.permute.xlu0 %1167
    %vm1169 = vcmask 72704
    %v1170 = vsel %vm1169, %v1160, %v1162
    %v1171 = vsel %vm1169, %v1162, %v1164
    %v1172 = vsel %vm1169, %v1164, %v1166
    %v1173 = vsel %vm1169, %v1166, %v1168
    %v1179 = vsel %vm71, %v1158, 0
    %1181 = vmatpush.msra.mxu0 0.0
    %1182 = vmatpush.msra.mxu0 0.0
    %1183 = vmatpush.msra.mxu0 0.0
    %1184 = vmatpush.msra.mxu0 0.0
    %1185 = vmatpush.msra.mxu0 0.0
    %1186 = vmatpush.msra.mxu0 0.0
    %1187 = vmatpush.msra.mxu0 0.0
    %1188 = vmatpush.msra.mxu0 0.0
    %1189 = vmatpush.msra.mxu0 0.0
    %1190 = vmatpush.msra.mxu0 0.0
    %1191 = vmatpush.msra.mxu0 0.0
    %1192 = vmatpush.msra.mxu0 0.0
    %1193 = vmatpush.msra.mxu0 0.0
    %1194 = vmatpush.msra.mxu0 0.0
    %1195 = vmatpush.msra.mxu0 0.0
    %1196 = vmatpush.msra.mxu0 %v1170
    %1197 = vmatmul.f32.gmra.mxu0 %v1179
    %v1198 = vpop.f32.mrf.mxu0
    %v1199 = vadd.f32 0.0, %v1198
    %1200 = vdwg.mxu0
    %1201 = vmatpush.msra.mxu0 0.0
    %1202 = vmatpush.msra.mxu0 0.0
    %1203 = vmatpush.msra.mxu0 0.0
    %1204 = vmatpush.msra.mxu0 0.0
    %1205 = vmatpush.msra.mxu0 0.0
    %1206 = vmatpush.msra.mxu0 0.0
    %1207 = vmatpush.msra.mxu0 0.0
    %1208 = vmatpush.msra.mxu0 0.0
    %1209 = vmatpush.msra.mxu0 0.0
    %1210 = vmatpush.msra.mxu0 0.0
    %1211 = vmatpush.msra.mxu0 0.0
    %1212 = vmatpush.msra.mxu0 0.0
    %1213 = vmatpush.msra.mxu0 0.0
    %1214 = vmatpush.msra.mxu0 0.0
    %1215 = vmatpush.msra.mxu0 0.0
    %1216 = vmatpush.msra.mxu0 %v1171
    %1217 = vmatmul.f32.gmra.mxu0 %v1179
    %v1218 = vpop.f32.mrf.mxu0
    %v1219 = vadd.f32 0.0, %v1218
    %1220 = vdwg.mxu0
    %1221 = vmatpush.msra.mxu0 0.0
    %1222 = vmatpush.msra.mxu0 0.0
    %1223 = vmatpush.msra.mxu0 0.0
    %1224 = vmatpush.msra.mxu0 0.0
    %1225 = vmatpush.msra.mxu0 0.0
    %1226 = vmatpush.msra.mxu0 0.0
    %1227 = vmatpush.msra.mxu0 0.0
    %1228 = vmatpush.msra.mxu0 0.0
    %1229 = vmatpush.msra.mxu0 0.0
    %1230 = vmatpush.msra.mxu0 0.0
    %1231 = vmatpush.msra.mxu0 0.0
    %1232 = vmatpush.msra.mxu0 0.0
    %1233 = vmatpush.msra.mxu0 0.0
    %1234 = vmatpush.msra.mxu0 0.0
    %1235 = vmatpush.msra.mxu0 0.0
    %1236 = vmatpush.msra.mxu0 %v1172
    %1237 = vmatmul.f32.gmra.mxu0 %v1179
    %v1238 = vpop.f32.mrf.mxu0
    %v1239 = vadd.f32 0.0, %v1238
    %1240 = vdwg.mxu0
    %1241 = vmatpush.msra.mxu0 0.0
    %1242 = vmatpush.msra.mxu0 0.0
    %1243 = vmatpush.msra.mxu0 0.0
    %1244 = vmatpush.msra.mxu0 0.0
    %1245 = vmatpush.msra.mxu0 0.0
    %1246 = vmatpush.msra.mxu0 0.0
    %1247 = vmatpush.msra.mxu0 0.0
    %1248 = vmatpush.msra.mxu0 0.0
    %1249 = vmatpush.msra.mxu0 0.0
    %1250 = vmatpush.msra.mxu0 0.0
    %1251 = vmatpush.msra.mxu0 0.0
    %1252 = vmatpush.msra.mxu0 0.0
    %1253 = vmatpush.msra.mxu0 0.0
    %1254 = vmatpush.msra.mxu0 0.0
    %1255 = vmatpush.msra.mxu0 0.0
    %1256 = vmatpush.msra.mxu0 %v1173
    %1257 = vmatmul.f32.gmra.mxu0 %v1179
    %v1258 = vpop.f32.mrf.mxu0
    %v1259 = vadd.f32 0.0, %v1258
    %1260 = vdwg.mxu0
    %s1261 = scalar_lea.vmem %s1, 33
    %v1262 = vld [vmem:[%s1261] ss:$8 sm:$0xf]
    %v1264 = vperm.slane %v1262, 0
    %v1265 = vperm.slane %v1262, 1
    %v1266 = vperm.slane %v1262, 2
    %v1267 = vperm.slane %v1262, 3
    %v1272 = vmul.f32 %v1199, %v1264
    %v1273 = vmul.f32 %v1219, %v1265
    %v1274 = vmul.f32 %v1239, %v1266
    %v1275 = vmul.f32 %v1259, %v1267
    %v1276 = vadd.f32 %v1153, %v1272
    %v1277 = vadd.f32 %v1154, %v1273
    %v1278 = vadd.f32 %v1155, %v1274
    %v1279 = vadd.f32 %v1156, %v1275
    %s1280 = scalar_lea.vmem %s2, 40
    %v1281 = vld [vmem:[%s1280] sm:$0xf]
    %1282 = vrot.lane.b32.xlu0 %v41, 8
    %v1283 = vpop.permute.xlu0 %1282
    %1284 = vrot.lane.b32.xlu0 %v42, 8
    %v1285 = vpop.permute.xlu0 %1284
    %1286 = vrot.lane.b32.xlu0 %v43, 8
    %v1287 = vpop.permute.xlu0 %1286
    %1288 = vrot.lane.b32.xlu0 %v44, 8
    %v1289 = vpop.permute.xlu0 %1288
    %1290 = vrot.lane.b32.xlu0 %v45, 8
    %v1291 = vpop.permute.xlu0 %1290
    %v1292 = vsel %vm71, %v1283, %v1285
    %v1293 = vsel %vm71, %v1285, %v1287
    %v1294 = vsel %vm71, %v1287, %v1289
    %v1295 = vsel %vm71, %v1289, %v1291
    %v1301 = vsel %vm71, %v1281, 0
    %1303 = vmatpush.msra.mxu0 0.0
    %1304 = vmatpush.msra.mxu0 0.0
    %1305 = vmatpush.msra.mxu0 0.0
    %1306 = vmatpush.msra.mxu0 0.0
    %1307 = vmatpush.msra.mxu0 0.0
    %1308 = vmatpush.msra.mxu0 0.0
    %1309 = vmatpush.msra.mxu0 0.0
    %1310 = vmatpush.msra.mxu0 0.0
    %1311 = vmatpush.msra.mxu0 0.0
    %1312 = vmatpush.msra.mxu0 0.0
    %1313 = vmatpush.msra.mxu0 0.0
    %1314 = vmatpush.msra.mxu0 0.0
    %1315 = vmatpush.msra.mxu0 0.0
    %1316 = vmatpush.msra.mxu0 0.0
    %1317 = vmatpush.msra.mxu0 0.0
    %1318 = vmatpush.msra.mxu0 %v1292
    %1319 = vmatmul.f32.gmra.mxu0 %v1301
    %v1320 = vpop.f32.mrf.mxu0
    %v1321 = vadd.f32 0.0, %v1320
    %1322 = vdwg.mxu0
    %1323 = vmatpush.msra.mxu0 0.0
    %1324 = vmatpush.msra.mxu0 0.0
    %1325 = vmatpush.msra.mxu0 0.0
    %1326 = vmatpush.msra.mxu0 0.0
    %1327 = vmatpush.msra.mxu0 0.0
    %1328 = vmatpush.msra.mxu0 0.0
    %1329 = vmatpush.msra.mxu0 0.0
    %1330 = vmatpush.msra.mxu0 0.0
    %1331 = vmatpush.msra.mxu0 0.0
    %1332 = vmatpush.msra.mxu0 0.0
    %1333 = vmatpush.msra.mxu0 0.0
    %1334 = vmatpush.msra.mxu0 0.0
    %1335 = vmatpush.msra.mxu0 0.0
    %1336 = vmatpush.msra.mxu0 0.0
    %1337 = vmatpush.msra.mxu0 0.0
    %1338 = vmatpush.msra.mxu0 %v1293
    %1339 = vmatmul.f32.gmra.mxu0 %v1301
    %v1340 = vpop.f32.mrf.mxu0
    %v1341 = vadd.f32 0.0, %v1340
    %1342 = vdwg.mxu0
    %1343 = vmatpush.msra.mxu0 0.0
    %1344 = vmatpush.msra.mxu0 0.0
    %1345 = vmatpush.msra.mxu0 0.0
    %1346 = vmatpush.msra.mxu0 0.0
    %1347 = vmatpush.msra.mxu0 0.0
    %1348 = vmatpush.msra.mxu0 0.0
    %1349 = vmatpush.msra.mxu0 0.0
    %1350 = vmatpush.msra.mxu0 0.0
    %1351 = vmatpush.msra.mxu0 0.0
    %1352 = vmatpush.msra.mxu0 0.0
    %1353 = vmatpush.msra.mxu0 0.0
    %1354 = vmatpush.msra.mxu0 0.0
    %1355 = vmatpush.msra.mxu0 0.0
    %1356 = vmatpush.msra.mxu0 0.0
    %1357 = vmatpush.msra.mxu0 0.0
    %1358 = vmatpush.msra.mxu0 %v1294
    %1359 = vmatmul.f32.gmra.mxu0 %v1301
    %v1360 = vpop.f32.mrf.mxu0
    %v1361 = vadd.f32 0.0, %v1360
    %1362 = vdwg.mxu0
    %1363 = vmatpush.msra.mxu0 0.0
    %1364 = vmatpush.msra.mxu0 0.0
    %1365 = vmatpush.msra.mxu0 0.0
    %1366 = vmatpush.msra.mxu0 0.0
    %1367 = vmatpush.msra.mxu0 0.0
    %1368 = vmatpush.msra.mxu0 0.0
    %1369 = vmatpush.msra.mxu0 0.0
    %1370 = vmatpush.msra.mxu0 0.0
    %1371 = vmatpush.msra.mxu0 0.0
    %1372 = vmatpush.msra.mxu0 0.0
    %1373 = vmatpush.msra.mxu0 0.0
    %1374 = vmatpush.msra.mxu0 0.0
    %1375 = vmatpush.msra.mxu0 0.0
    %1376 = vmatpush.msra.mxu0 0.0
    %1377 = vmatpush.msra.mxu0 0.0
    %1378 = vmatpush.msra.mxu0 %v1295
    %1379 = vmatmul.f32.gmra.mxu0 %v1301
    %v1380 = vpop.f32.mrf.mxu0
    %v1381 = vadd.f32 0.0, %v1380
    %1382 = vdwg.mxu0
    %s1383 = scalar_lea.vmem %s1, 34
    %v1384 = vld [vmem:[%s1383] ss:$8 sm:$0xf]
    %v1386 = vperm.slane %v1384, 0
    %v1387 = vperm.slane %v1384, 1
    %v1388 = vperm.slane %v1384, 2
    %v1389 = vperm.slane %v1384, 3
    %v1394 = vmul.f32 %v1321, %v1386
    %v1395 = vmul.f32 %v1341, %v1387
    %v1396 = vmul.f32 %v1361, %v1388
    %v1397 = vmul.f32 %v1381, %v1389
    %v1398 = vadd.f32 %v1276, %v1394
    %v1399 = vadd.f32 %v1277, %v1395
    %v1400 = vadd.f32 %v1278, %v1396
    %v1401 = vadd.f32 %v1279, %v1397
    %s1402 = scalar_lea.vmem %s2, 44
    %v1403 = vld [vmem:[%s1402] sm:$0xf]
    %1404 = vrot.lane.b32.xlu0 %v41, 7
    %v1405 = vpop.permute.xlu0 %1404
    %1406 = vrot.lane.b32.xlu0 %v42, 7
    %v1407 = vpop.permute.xlu0 %1406
    %1408 = vrot.lane.b32.xlu0 %v43, 7
    %v1409 = vpop.permute.xlu0 %1408
    %1410 = vrot.lane.b32.xlu0 %v44, 7
    %v1411 = vpop.permute.xlu0 %1410
    %1412 = vrot.lane.b32.xlu0 %v45, 7
    %v1413 = vpop.permute.xlu0 %1412
    %vm1414 = vcmask 56320
    %v1415 = vsel %vm1414, %v1405, %v1407
    %v1416 = vsel %vm1414, %v1407, %v1409
    %v1417 = vsel %vm1414, %v1409, %v1411
    %v1418 = vsel %vm1414, %v1411, %v1413
    %v1424 = vsel %vm71, %v1403, 0
    %1426 = vmatpush.msra.mxu0 0.0
    %1427 = vmatpush.msra.mxu0 0.0
    %1428 = vmatpush.msra.mxu0 0.0
    %1429 = vmatpush.msra.mxu0 0.0
    %1430 = vmatpush.msra.mxu0 0.0
    %1431 = vmatpush.msra.mxu0 0.0
    %1432 = vmatpush.msra.mxu0 0.0
    %1433 = vmatpush.msra.mxu0 0.0
    %1434 = vmatpush.msra.mxu0 0.0
    %1435 = vmatpush.msra.mxu0 0.0
    %1436 = vmatpush.msra.mxu0 0.0
    %1437 = vmatpush.msra.mxu0 0.0
    %1438 = vmatpush.msra.mxu0 0.0
    %1439 = vmatpush.msra.mxu0 0.0
    %1440 = vmatpush.msra.mxu0 0.0
    %1441 = vmatpush.msra.mxu0 %v1415
    %1442 = vmatmul.f32.gmra.mxu0 %v1424
    %v1443 = vpop.f32.mrf.mxu0
    %v1444 = vadd.f32 0.0, %v1443
    %1445 = vdwg.mxu0
    %1446 = vmatpush.msra.mxu0 0.0
    %1447 = vmatpush.msra.mxu0 0.0
    %1448 = vmatpush.msra.mxu0 0.0
    %1449 = vmatpush.msra.mxu0 0.0
    %1450 = vmatpush.msra.mxu0 0.0
    %1451 = vmatpush.msra.mxu0 0.0
    %1452 = vmatpush.msra.mxu0 0.0
    %1453 = vmatpush.msra.mxu0 0.0
    %1454 = vmatpush.msra.mxu0 0.0
    %1455 = vmatpush.msra.mxu0 0.0
    %1456 = vmatpush.msra.mxu0 0.0
    %1457 = vmatpush.msra.mxu0 0.0
    %1458 = vmatpush.msra.mxu0 0.0
    %1459 = vmatpush.msra.mxu0 0.0
    %1460 = vmatpush.msra.mxu0 0.0
    %1461 = vmatpush.msra.mxu0 %v1416
    %1462 = vmatmul.f32.gmra.mxu0 %v1424
    %v1463 = vpop.f32.mrf.mxu0
    %v1464 = vadd.f32 0.0, %v1463
    %1465 = vdwg.mxu0
    %1466 = vmatpush.msra.mxu0 0.0
    %1467 = vmatpush.msra.mxu0 0.0
    %1468 = vmatpush.msra.mxu0 0.0
    %1469 = vmatpush.msra.mxu0 0.0
    %1470 = vmatpush.msra.mxu0 0.0
    %1471 = vmatpush.msra.mxu0 0.0
    %1472 = vmatpush.msra.mxu0 0.0
    %1473 = vmatpush.msra.mxu0 0.0
    %1474 = vmatpush.msra.mxu0 0.0
    %1475 = vmatpush.msra.mxu0 0.0
    %1476 = vmatpush.msra.mxu0 0.0
    %1477 = vmatpush.msra.mxu0 0.0
    %1478 = vmatpush.msra.mxu0 0.0
    %1479 = vmatpush.msra.mxu0 0.0
    %1480 = vmatpush.msra.mxu0 0.0
    %1481 = vmatpush.msra.mxu0 %v1417
    %1482 = vmatmul.f32.gmra.mxu0 %v1424
    %v1483 = vpop.f32.mrf.mxu0
    %v1484 = vadd.f32 0.0, %v1483
    %1485 = vdwg.mxu0
    %1486 = vmatpush.msra.mxu0 0.0
    %1487 = vmatpush.msra.mxu0 0.0
    %1488 = vmatpush.msra.mxu0 0.0
    %1489 = vmatpush.msra.mxu0 0.0
    %1490 = vmatpush.msra.mxu0 0.0
    %1491 = vmatpush.msra.mxu0 0.0
    %1492 = vmatpush.msra.mxu0 0.0
    %1493 = vmatpush.msra.mxu0 0.0
    %1494 = vmatpush.msra.mxu0 0.0
    %1495 = vmatpush.msra.mxu0 0.0
    %1496 = vmatpush.msra.mxu0 0.0
    %1497 = vmatpush.msra.mxu0 0.0
    %1498 = vmatpush.msra.mxu0 0.0
    %1499 = vmatpush.msra.mxu0 0.0
    %1500 = vmatpush.msra.mxu0 0.0
    %1501 = vmatpush.msra.mxu0 %v1418
    %1502 = vmatmul.f32.gmra.mxu0 %v1424
    %v1503 = vpop.f32.mrf.mxu0
    %v1504 = vadd.f32 0.0, %v1503
    %1505 = vdwg.mxu0
    %s1506 = scalar_lea.vmem %s1, 35
    %v1507 = vld [vmem:[%s1506] ss:$8 sm:$0xf]
    %v1509 = vperm.slane %v1507, 0
    %v1510 = vperm.slane %v1507, 1
    %v1511 = vperm.slane %v1507, 2
    %v1512 = vperm.slane %v1507, 3
    %v1517 = vmul.f32 %v1444, %v1509
    %v1518 = vmul.f32 %v1464, %v1510
    %v1519 = vmul.f32 %v1484, %v1511
    %v1520 = vmul.f32 %v1504, %v1512
    %v1521 = vadd.f32 %v1398, %v1517
    %v1522 = vadd.f32 %v1399, %v1518
    %v1523 = vadd.f32 %v1400, %v1519
    %v1524 = vadd.f32 %v1401, %v1520
    %s1525 = scalar_lea.vmem %s2, 48
    %v1526 = vld [vmem:[%s1525] sm:$0xf]
    %1527 = vrot.lane.b32.xlu0 %v41, 1
    %v1528 = vpop.permute.xlu0 %1527
    %1529 = vrot.lane.b32.xlu0 %v42, 1
    %v1530 = vpop.permute.xlu0 %1529
    %1531 = vrot.lane.b32.xlu0 %v43, 1
    %v1532 = vpop.permute.xlu0 %1531
    %1533 = vrot.lane.b32.xlu0 %v44, 1
    %v1534 = vpop.permute.xlu0 %1533
    %1535 = vrot.lane.b32.xlu0 %v45, 1
    %v1536 = vpop.permute.xlu0 %1535
    %vm1537 = vcmask 7168
    %v1538 = vsel %vm1537, %v1528, %v1530
    %v1539 = vsel %vm1537, %v1530, %v1532
    %v1540 = vsel %vm1537, %v1532, %v1534
    %v1541 = vsel %vm1537, %v1534, %v1536
    %v1547 = vsel %vm71, %v1526, 0
    %1549 = vmatpush.msra.mxu0 0.0
    %1550 = vmatpush.msra.mxu0 0.0
    %1551 = vmatpush.msra.mxu0 0.0
    %1552 = vmatpush.msra.mxu0 0.0
    %1553 = vmatpush.msra.mxu0 0.0
    %1554 = vmatpush.msra.mxu0 0.0
    %1555 = vmatpush.msra.mxu0 0.0
    %1556 = vmatpush.msra.mxu0 0.0
    %1557 = vmatpush.msra.mxu0 0.0
    %1558 = vmatpush.msra.mxu0 0.0
    %1559 = vmatpush.msra.mxu0 0.0
    %1560 = vmatpush.msra.mxu0 0.0
    %1561 = vmatpush.msra.mxu0 0.0
    %1562 = vmatpush.msra.mxu0 0.0
    %1563 = vmatpush.msra.mxu0 0.0
    %1564 = vmatpush.msra.mxu0 %v1538
    %1565 = vmatmul.f32.gmra.mxu0 %v1547
    %v1566 = vpop.f32.mrf.mxu0
    %v1567 = vadd.f32 0.0, %v1566
    %1568 = vdwg.mxu0
    %1569 = vmatpush.msra.mxu0 0.0
    %1570 = vmatpush.msra.mxu0 0.0
    %1571 = vmatpush.msra.mxu0 0.0
    %1572 = vmatpush.msra.mxu0 0.0
    %1573 = vmatpush.msra.mxu0 0.0
    %1574 = vmatpush.msra.mxu0 0.0
    %1575 = vmatpush.msra.mxu0 0.0
    %1576 = vmatpush.msra.mxu0 0.0
    %1577 = vmatpush.msra.mxu0 0.0
    %1578 = vmatpush.msra.mxu0 0.0
    %1579 = vmatpush.msra.mxu0 0.0
    %1580 = vmatpush.msra.mxu0 0.0
    %1581 = vmatpush.msra.mxu0 0.0
    %1582 = vmatpush.msra.mxu0 0.0
    %1583 = vmatpush.msra.mxu0 0.0
    %1584 = vmatpush.msra.mxu0 %v1539
    %1585 = vmatmul.f32.gmra.mxu0 %v1547
    %v1586 = vpop.f32.mrf.mxu0
    %v1587 = vadd.f32 0.0, %v1586
    %1588 = vdwg.mxu0
    %1589 = vmatpush.msra.mxu0 0.0
    %1590 = vmatpush.msra.mxu0 0.0
    %1591 = vmatpush.msra.mxu0 0.0
    %1592 = vmatpush.msra.mxu0 0.0
    %1593 = vmatpush.msra.mxu0 0.0
    %1594 = vmatpush.msra.mxu0 0.0
    %1595 = vmatpush.msra.mxu0 0.0
    %1596 = vmatpush.msra.mxu0 0.0
    %1597 = vmatpush.msra.mxu0 0.0
    %1598 = vmatpush.msra.mxu0 0.0
    %1599 = vmatpush.msra.mxu0 0.0
    %1600 = vmatpush.msra.mxu0 0.0
    %1601 = vmatpush.msra.mxu0 0.0
    %1602 = vmatpush.msra.mxu0 0.0
    %1603 = vmatpush.msra.mxu0 0.0
    %1604 = vmatpush.msra.mxu0 %v1540
    %1605 = vmatmul.f32.gmra.mxu0 %v1547
    %v1606 = vpop.f32.mrf.mxu0
    %v1607 = vadd.f32 0.0, %v1606
    %1608 = vdwg.mxu0
    %1609 = vmatpush.msra.mxu0 0.0
    %1610 = vmatpush.msra.mxu0 0.0
    %1611 = vmatpush.msra.mxu0 0.0
    %1612 = vmatpush.msra.mxu0 0.0
    %1613 = vmatpush.msra.mxu0 0.0
    %1614 = vmatpush.msra.mxu0 0.0
    %1615 = vmatpush.msra.mxu0 0.0
    %1616 = vmatpush.msra.mxu0 0.0
    %1617 = vmatpush.msra.mxu0 0.0
    %1618 = vmatpush.msra.mxu0 0.0
    %1619 = vmatpush.msra.mxu0 0.0
    %1620 = vmatpush.msra.mxu0 0.0
    %1621 = vmatpush.msra.mxu0 0.0
    %1622 = vmatpush.msra.mxu0 0.0
    %1623 = vmatpush.msra.mxu0 0.0
    %1624 = vmatpush.msra.mxu0 %v1541
    %1625 = vmatmul.f32.gmra.mxu0 %v1547
    %v1626 = vpop.f32.mrf.mxu0
    %v1627 = vadd.f32 0.0, %v1626
    %1628 = vdwg.mxu0
    %s1629 = scalar_lea.vmem %s1, 36
    %v1630 = vld [vmem:[%s1629] ss:$8 sm:$0xf]
    %v1632 = vperm.slane %v1630, 0
    %v1633 = vperm.slane %v1630, 1
    %v1634 = vperm.slane %v1630, 2
    %v1635 = vperm.slane %v1630, 3
    %v1640 = vmul.f32 %v1567, %v1632
    %v1641 = vmul.f32 %v1587, %v1633
    %v1642 = vmul.f32 %v1607, %v1634
    %v1643 = vmul.f32 %v1627, %v1635
    %v1644 = vadd.f32 %v1521, %v1640
    %v1645 = vadd.f32 %v1522, %v1641
    %v1646 = vadd.f32 %v1523, %v1642
    %v1647 = vadd.f32 %v1524, %v1643
    %s1648 = scalar_lea.vmem %s2, 52
    %v1649 = vld [vmem:[%s1648] sm:$0xf]
    %v1651 = vsel %vm71, %v1649, 0
    %1653 = vmatpush.msra.mxu0 0.0
    %1654 = vmatpush.msra.mxu0 0.0
    %1655 = vmatpush.msra.mxu0 0.0
    %1656 = vmatpush.msra.mxu0 0.0
    %1657 = vmatpush.msra.mxu0 0.0
    %1658 = vmatpush.msra.mxu0 0.0
    %1659 = vmatpush.msra.mxu0 0.0
    %1660 = vmatpush.msra.mxu0 0.0
    %1661 = vmatpush.msra.mxu0 0.0
    %1662 = vmatpush.msra.mxu0 0.0
    %1663 = vmatpush.msra.mxu0 0.0
    %1664 = vmatpush.msra.mxu0 0.0
    %1665 = vmatpush.msra.mxu0 0.0
    %1666 = vmatpush.msra.mxu0 0.0
    %1667 = vmatpush.msra.mxu0 0.0
    %1668 = vmatpush.msra.mxu0 %v42
    %1669 = vmatmul.f32.gmra.mxu0 %v1651
    %v1670 = vpop.f32.mrf.mxu0
    %v1671 = vadd.f32 0.0, %v1670
    %1672 = vdwg.mxu0
    %1673 = vmatpush.msra.mxu0 0.0
    %1674 = vmatpush.msra.mxu0 0.0
    %1675 = vmatpush.msra.mxu0 0.0
    %1676 = vmatpush.msra.mxu0 0.0
    %1677 = vmatpush.msra.mxu0 0.0
    %1678 = vmatpush.msra.mxu0 0.0
    %1679 = vmatpush.msra.mxu0 0.0
    %1680 = vmatpush.msra.mxu0 0.0
    %1681 = vmatpush.msra.mxu0 0.0
    %1682 = vmatpush.msra.mxu0 0.0
    %1683 = vmatpush.msra.mxu0 0.0
    %1684 = vmatpush.msra.mxu0 0.0
    %1685 = vmatpush.msra.mxu0 0.0
    %1686 = vmatpush.msra.mxu0 0.0
    %1687 = vmatpush.msra.mxu0 0.0
    %1688 = vmatpush.msra.mxu0 %v43
    %1689 = vmatmul.f32.gmra.mxu0 %v1651
    %v1690 = vpop.f32.mrf.mxu0
    %v1691 = vadd.f32 0.0, %v1690
    %1692 = vdwg.mxu0
    %1693 = vmatpush.msra.mxu0 0.0
    %1694 = vmatpush.msra.mxu0 0.0
    %1695 = vmatpush.msra.mxu0 0.0
    %1696 = vmatpush.msra.mxu0 0.0
    %1697 = vmatpush.msra.mxu0 0.0
    %1698 = vmatpush.msra.mxu0 0.0
    %1699 = vmatpush.msra.mxu0 0.0
    %1700 = vmatpush.msra.mxu0 0.0
    %1701 = vmatpush.msra.mxu0 0.0
    %1702 = vmatpush.msra.mxu0 0.0
    %1703 = vmatpush.msra.mxu0 0.0
    %1704 = vmatpush.msra.mxu0 0.0
    %1705 = vmatpush.msra.mxu0 0.0
    %1706 = vmatpush.msra.mxu0 0.0
    %1707 = vmatpush.msra.mxu0 0.0
    %1708 = vmatpush.msra.mxu0 %v44
    %1709 = vmatmul.f32.gmra.mxu0 %v1651
    %v1710 = vpop.f32.mrf.mxu0
    %v1711 = vadd.f32 0.0, %v1710
    %1712 = vdwg.mxu0
    %1713 = vmatpush.msra.mxu0 0.0
    %1714 = vmatpush.msra.mxu0 0.0
    %1715 = vmatpush.msra.mxu0 0.0
    %1716 = vmatpush.msra.mxu0 0.0
    %1717 = vmatpush.msra.mxu0 0.0
    %1718 = vmatpush.msra.mxu0 0.0
    %1719 = vmatpush.msra.mxu0 0.0
    %1720 = vmatpush.msra.mxu0 0.0
    %1721 = vmatpush.msra.mxu0 0.0
    %1722 = vmatpush.msra.mxu0 0.0
    %1723 = vmatpush.msra.mxu0 0.0
    %1724 = vmatpush.msra.mxu0 0.0
    %1725 = vmatpush.msra.mxu0 0.0
    %1726 = vmatpush.msra.mxu0 0.0
    %1727 = vmatpush.msra.mxu0 0.0
    %1728 = vmatpush.msra.mxu0 %v45
    %1729 = vmatmul.f32.gmra.mxu0 %v1651
    %v1730 = vpop.f32.mrf.mxu0
    %v1731 = vadd.f32 0.0, %v1730
    %1732 = vdwg.mxu0
    %v1733 = vadd.f32 %v1644, %v1671
    %v1734 = vadd.f32 %v1645, %v1691
    %v1735 = vadd.f32 %v1646, %v1711
    %v1736 = vadd.f32 %v1647, %v1731
    %v1737 = vld [vmem:[#allocation2 + $0x8] sm:$0xff]
    %v1738 = vld [vmem:[#allocation2 + $0x10] sm:$0xff]
    %v1739 = vld [vmem:[#allocation2 + $0x18] sm:$0xff]
    %v1740 = vld [vmem:[#allocation2 + $0x20] sm:$0xff]
    %v1741 = vld [vmem:[#allocation2 + $0x28] sm:$0xff]
    %s1742 = scalar_lea.vmem %s2, 56
    %v1743 = vld [vmem:[%s1742] sm:$0xf]
    %1749 = vrot.lane.b32.xlu0 %v1737, 127
    %v1750 = vpop.permute.xlu0 %1749
    %1751 = vrot.lane.b32.xlu0 %v1738, 127
    %v1752 = vpop.permute.xlu0 %1751
    %1753 = vrot.lane.b32.xlu0 %v1739, 127
    %v1754 = vpop.permute.xlu0 %1753
    %1755 = vrot.lane.b32.xlu0 %v1740, 127
    %v1756 = vpop.permute.xlu0 %1755
    %1757 = vrot.lane.b32.xlu0 %v1741, 127
    %v1758 = vpop.permute.xlu0 %1757
    %vm1759 = vcmask 1039360
    %v1760 = vsel %vm1759, %v1750, %v1752
    %v1761 = vsel %vm1759, %v1752, %v1754
    %v1762 = vsel %vm1759, %v1754, %v1756
    %v1763 = vsel %vm1759, %v1756, %v1758
    %v1769 = vsel %vm71, %v1743, 0
    %1771 = vmatpush.msra.mxu0 0.0
    %1772 = vmatpush.msra.mxu0 0.0
    %1773 = vmatpush.msra.mxu0 0.0
    %1774 = vmatpush.msra.mxu0 0.0
    %1775 = vmatpush.msra.mxu0 0.0
    %1776 = vmatpush.msra.mxu0 0.0
    %1777 = vmatpush.msra.mxu0 0.0
    %1778 = vmatpush.msra.mxu0 0.0
    %1779 = vmatpush.msra.mxu0 0.0
    %1780 = vmatpush.msra.mxu0 0.0
    %1781 = vmatpush.msra.mxu0 0.0
    %1782 = vmatpush.msra.mxu0 0.0
    %1783 = vmatpush.msra.mxu0 0.0
    %1784 = vmatpush.msra.mxu0 0.0
    %1785 = vmatpush.msra.mxu0 0.0
    %1786 = vmatpush.msra.mxu0 %v1760
    %1787 = vmatmul.f32.gmra.mxu0 %v1769
    %v1788 = vpop.f32.mrf.mxu0
    %v1789 = vadd.f32 0.0, %v1788
    %1790 = vdwg.mxu0
    %1791 = vmatpush.msra.mxu0 0.0
    %1792 = vmatpush.msra.mxu0 0.0
    %1793 = vmatpush.msra.mxu0 0.0
    %1794 = vmatpush.msra.mxu0 0.0
    %1795 = vmatpush.msra.mxu0 0.0
    %1796 = vmatpush.msra.mxu0 0.0
    %1797 = vmatpush.msra.mxu0 0.0
    %1798 = vmatpush.msra.mxu0 0.0
    %1799 = vmatpush.msra.mxu0 0.0
    %1800 = vmatpush.msra.mxu0 0.0
    %1801 = vmatpush.msra.mxu0 0.0
    %1802 = vmatpush.msra.mxu0 0.0
    %1803 = vmatpush.msra.mxu0 0.0
    %1804 = vmatpush.msra.mxu0 0.0
    %1805 = vmatpush.msra.mxu0 0.0
    %1806 = vmatpush.msra.mxu0 %v1761
    %1807 = vmatmul.f32.gmra.mxu0 %v1769
    %v1808 = vpop.f32.mrf.mxu0
    %v1809 = vadd.f32 0.0, %v1808
    %1810 = vdwg.mxu0
    %1811 = vmatpush.msra.mxu0 0.0
    %1812 = vmatpush.msra.mxu0 0.0
    %1813 = vmatpush.msra.mxu0 0.0
    %1814 = vmatpush.msra.mxu0 0.0
    %1815 = vmatpush.msra.mxu0 0.0
    %1816 = vmatpush.msra.mxu0 0.0
    %1817 = vmatpush.msra.mxu0 0.0
    %1818 = vmatpush.msra.mxu0 0.0
    %1819 = vmatpush.msra.mxu0 0.0
    %1820 = vmatpush.msra.mxu0 0.0
    %1821 = vmatpush.msra.mxu0 0.0
    %1822 = vmatpush.msra.mxu0 0.0
    %1823 = vmatpush.msra.mxu0 0.0
    %1824 = vmatpush.msra.mxu0 0.0
    %1825 = vmatpush.msra.mxu0 0.0
    %1826 = vmatpush.msra.mxu0 %v1762
    %1827 = vmatmul.f32.gmra.mxu0 %v1769
    %v1828 = vpop.f32.mrf.mxu0
    %v1829 = vadd.f32 0.0, %v1828
    %1830 = vdwg.mxu0
    %1831 = vmatpush.msra.mxu0 0.0
    %1832 = vmatpush.msra.mxu0 0.0
    %1833 = vmatpush.msra.mxu0 0.0
    %1834 = vmatpush.msra.mxu0 0.0
    %1835 = vmatpush.msra.mxu0 0.0
    %1836 = vmatpush.msra.mxu0 0.0
    %1837 = vmatpush.msra.mxu0 0.0
    %1838 = vmatpush.msra.mxu0 0.0
    %1839 = vmatpush.msra.mxu0 0.0
    %1840 = vmatpush.msra.mxu0 0.0
    %1841 = vmatpush.msra.mxu0 0.0
    %1842 = vmatpush.msra.mxu0 0.0
    %1843 = vmatpush.msra.mxu0 0.0
    %1844 = vmatpush.msra.mxu0 0.0
    %1845 = vmatpush.msra.mxu0 0.0
    %1846 = vmatpush.msra.mxu0 %v1763
    %1847 = vmatmul.f32.gmra.mxu0 %v1769
    %v1848 = vpop.f32.mrf.mxu0
    %v1849 = vadd.f32 0.0, %v1848
    %1850 = vdwg.mxu0
    %s1851 = scalar_lea.vmem %s1, 38
    %v1852 = vld [vmem:[%s1851] ss:$8 sm:$0xf]
    %v1854 = vperm.slane %v1852, 0
    %v1855 = vperm.slane %v1852, 1
    %v1856 = vperm.slane %v1852, 2
    %v1857 = vperm.slane %v1852, 3
    %v1862 = vmul.f32 %v1789, %v1854
    %v1863 = vmul.f32 %v1809, %v1855
    %v1864 = vmul.f32 %v1829, %v1856
    %v1865 = vmul.f32 %v1849, %v1857
    %v1866 = vadd.f32 %v1733, %v1862
    %v1867 = vadd.f32 %v1734, %v1863
    %v1868 = vadd.f32 %v1735, %v1864
    %v1869 = vadd.f32 %v1736, %v1865
    %s1870 = scalar_lea.vmem %s2, 60
    %v1871 = vld [vmem:[%s1870] sm:$0xf]
    %1872 = vrot.lane.b32.xlu0 %v1737, 121
    %v1873 = vpop.permute.xlu0 %1872
    %1874 = vrot.lane.b32.xlu0 %v1738, 121
    %v1875 = vpop.permute.xlu0 %1874
    %1876 = vrot.lane.b32.xlu0 %v1739, 121
    %v1877 = vpop.permute.xlu0 %1876
    %1878 = vrot.lane.b32.xlu0 %v1740, 121
    %v1879 = vpop.permute.xlu0 %1878
    %1880 = vrot.lane.b32.xlu0 %v1741, 121
    %v1881 = vpop.permute.xlu0 %1880
    %vm1882 = vcmask 990208
    %v1883 = vsel %vm1882, %v1873, %v1875
    %v1884 = vsel %vm1882, %v1875, %v1877
    %v1885 = vsel %vm1882, %v1877, %v1879
    %v1886 = vsel %vm1882, %v1879, %v1881
    %v1892 = vsel %vm71, %v1871, 0
    %1894 = vmatpush.msra.mxu0 0.0
    %1895 = vmatpush.msra.mxu0 0.0
    %1896 = vmatpush.msra.mxu0 0.0
    %1897 = vmatpush.msra.mxu0 0.0
    %1898 = vmatpush.msra.mxu0 0.0
    %1899 = vmatpush.msra.mxu0 0.0
    %1900 = vmatpush.msra.mxu0 0.0
    %1901 = vmatpush.msra.mxu0 0.0
    %1902 = vmatpush.msra.mxu0 0.0
    %1903 = vmatpush.msra.mxu0 0.0
    %1904 = vmatpush.msra.mxu0 0.0
    %1905 = vmatpush.msra.mxu0 0.0
    %1906 = vmatpush.msra.mxu0 0.0
    %1907 = vmatpush.msra.mxu0 0.0
    %1908 = vmatpush.msra.mxu0 0.0
    %1909 = vmatpush.msra.mxu0 %v1883
    %1910 = vmatmul.f32.gmra.mxu0 %v1892
    %v1911 = vpop.f32.mrf.mxu0
    %v1912 = vadd.f32 0.0, %v1911
    %1913 = vdwg.mxu0
    %1914 = vmatpush.msra.mxu0 0.0
    %1915 = vmatpush.msra.mxu0 0.0
    %1916 = vmatpush.msra.mxu0 0.0
    %1917 = vmatpush.msra.mxu0 0.0
    %1918 = vmatpush.msra.mxu0 0.0
    %1919 = vmatpush.msra.mxu0 0.0
    %1920 = vmatpush.msra.mxu0 0.0
    %1921 = vmatpush.msra.mxu0 0.0
    %1922 = vmatpush.msra.mxu0 0.0
    %1923 = vmatpush.msra.mxu0 0.0
    %1924 = vmatpush.msra.mxu0 0.0
    %1925 = vmatpush.msra.mxu0 0.0
    %1926 = vmatpush.msra.mxu0 0.0
    %1927 = vmatpush.msra.mxu0 0.0
    %1928 = vmatpush.msra.mxu0 0.0
    %1929 = vmatpush.msra.mxu0 %v1884
    %1930 = vmatmul.f32.gmra.mxu0 %v1892
    %v1931 = vpop.f32.mrf.mxu0
    %v1932 = vadd.f32 0.0, %v1931
    %1933 = vdwg.mxu0
    %1934 = vmatpush.msra.mxu0 0.0
    %1935 = vmatpush.msra.mxu0 0.0
    %1936 = vmatpush.msra.mxu0 0.0
    %1937 = vmatpush.msra.mxu0 0.0
    %1938 = vmatpush.msra.mxu0 0.0
    %1939 = vmatpush.msra.mxu0 0.0
    %1940 = vmatpush.msra.mxu0 0.0
    %1941 = vmatpush.msra.mxu0 0.0
    %1942 = vmatpush.msra.mxu0 0.0
    %1943 = vmatpush.msra.mxu0 0.0
    %1944 = vmatpush.msra.mxu0 0.0
    %1945 = vmatpush.msra.mxu0 0.0
    %1946 = vmatpush.msra.mxu0 0.0
    %1947 = vmatpush.msra.mxu0 0.0
    %1948 = vmatpush.msra.mxu0 0.0
    %1949 = vmatpush.msra.mxu0 %v1885
    %1950 = vmatmul.f32.gmra.mxu0 %v1892
    %v1951 = vpop.f32.mrf.mxu0
    %v1952 = vadd.f32 0.0, %v1951
    %1953 = vdwg.mxu0
    %1954 = vmatpush.msra.mxu0 0.0
    %1955 = vmatpush.msra.mxu0 0.0
    %1956 = vmatpush.msra.mxu0 0.0
    %1957 = vmatpush.msra.mxu0 0.0
    %1958 = vmatpush.msra.mxu0 0.0
    %1959 = vmatpush.msra.mxu0 0.0
    %1960 = vmatpush.msra.mxu0 0.0
    %1961 = vmatpush.msra.mxu0 0.0
    %1962 = vmatpush.msra.mxu0 0.0
    %1963 = vmatpush.msra.mxu0 0.0
    %1964 = vmatpush.msra.mxu0 0.0
    %1965 = vmatpush.msra.mxu0 0.0
    %1966 = vmatpush.msra.mxu0 0.0
    %1967 = vmatpush.msra.mxu0 0.0
    %1968 = vmatpush.msra.mxu0 0.0
    %1969 = vmatpush.msra.mxu0 %v1886
    %1970 = vmatmul.f32.gmra.mxu0 %v1892
    %v1971 = vpop.f32.mrf.mxu0
    %v1972 = vadd.f32 0.0, %v1971
    %1973 = vdwg.mxu0
    %s1974 = scalar_lea.vmem %s1, 39
    %v1975 = vld [vmem:[%s1974] ss:$8 sm:$0xf]
    %v1977 = vperm.slane %v1975, 0
    %v1978 = vperm.slane %v1975, 1
    %v1979 = vperm.slane %v1975, 2
    %v1980 = vperm.slane %v1975, 3
    %v1985 = vmul.f32 %v1912, %v1977
    %v1986 = vmul.f32 %v1932, %v1978
    %v1987 = vmul.f32 %v1952, %v1979
    %v1988 = vmul.f32 %v1972, %v1980
    %v1989 = vadd.f32 %v1866, %v1985
    %v1990 = vadd.f32 %v1867, %v1986
    %v1991 = vadd.f32 %v1868, %v1987
    %v1992 = vadd.f32 %v1869, %v1988
    %s1993 = scalar_lea.vmem %s2, 64
    %v1994 = vld [vmem:[%s1993] sm:$0xf]
    %1995 = vrot.lane.b32.xlu0 %v1737, 120
    %v1996 = vpop.permute.xlu0 %1995
    %1997 = vrot.lane.b32.xlu0 %v1738, 120
    %v1998 = vpop.permute.xlu0 %1997
    %1999 = vrot.lane.b32.xlu0 %v1739, 120
    %v2000 = vpop.permute.xlu0 %1999
    %2001 = vrot.lane.b32.xlu0 %v1740, 120
    %v2002 = vpop.permute.xlu0 %2001
    %2003 = vrot.lane.b32.xlu0 %v1741, 120
    %v2004 = vpop.permute.xlu0 %2003
    %vm2005 = vcmask 982016
    %v2006 = vsel %vm2005, %v1996, %v1998
    %v2007 = vsel %vm2005, %v1998, %v2000
    %v2008 = vsel %vm2005, %v2000, %v2002
    %v2009 = vsel %vm2005, %v2002, %v2004
    %v2015 = vsel %vm71, %v1994, 0
    %2017 = vmatpush.msra.mxu0 0.0
    %2018 = vmatpush.msra.mxu0 0.0
    %2019 = vmatpush.msra.mxu0 0.0
    %2020 = vmatpush.msra.mxu0 0.0
    %2021 = vmatpush.msra.mxu0 0.0
    %2022 = vmatpush.msra.mxu0 0.0
    %2023 = vmatpush.msra.mxu0 0.0
    %2024 = vmatpush.msra.mxu0 0.0
    %2025 = vmatpush.msra.mxu0 0.0
    %2026 = vmatpush.msra.mxu0 0.0
    %2027 = vmatpush.msra.mxu0 0.0
    %2028 = vmatpush.msra.mxu0 0.0
    %2029 = vmatpush.msra.mxu0 0.0
    %2030 = vmatpush.msra.mxu0 0.0
    %2031 = vmatpush.msra.mxu0 0.0
    %2032 = vmatpush.msra.mxu0 %v2006
    %2033 = vmatmul.f32.gmra.mxu0 %v2015
    %v2034 = vpop.f32.mrf.mxu0
    %v2035 = vadd.f32 0.0, %v2034
    %2036 = vdwg.mxu0
    %2037 = vmatpush.msra.mxu0 0.0
    %2038 = vmatpush.msra.mxu0 0.0
    %2039 = vmatpush.msra.mxu0 0.0
    %2040 = vmatpush.msra.mxu0 0.0
    %2041 = vmatpush.msra.mxu0 0.0
    %2042 = vmatpush.msra.mxu0 0.0
    %2043 = vmatpush.msra.mxu0 0.0
    %2044 = vmatpush.msra.mxu0 0.0
    %2045 = vmatpush.msra.mxu0 0.0
    %2046 = vmatpush.msra.mxu0 0.0
    %2047 = vmatpush.msra.mxu0 0.0
    %2048 = vmatpush.msra.mxu0 0.0
    %2049 = vmatpush.msra.mxu0 0.0
    %2050 = vmatpush.msra.mxu0 0.0
    %2051 = vmatpush.msra.mxu0 0.0
    %2052 = vmatpush.msra.mxu0 %v2007
    %2053 = vmatmul.f32.gmra.mxu0 %v2015
    %v2054 = vpop.f32.mrf.mxu0
    %v2055 = vadd.f32 0.0, %v2054
    %2056 = vdwg.mxu0
    %2057 = vmatpush.msra.mxu0 0.0
    %2058 = vmatpush.msra.mxu0 0.0
    %2059 = vmatpush.msra.mxu0 0.0
    %2060 = vmatpush.msra.mxu0 0.0
    %2061 = vmatpush.msra.mxu0 0.0
    %2062 = vmatpush.msra.mxu0 0.0
    %2063 = vmatpush.msra.mxu0 0.0
    %2064 = vmatpush.msra.mxu0 0.0
    %2065 = vmatpush.msra.mxu0 0.0
    %2066 = vmatpush.msra.mxu0 0.0
    %2067 = vmatpush.msra.mxu0 0.0
    %2068 = vmatpush.msra.mxu0 0.0
    %2069 = vmatpush.msra.mxu0 0.0
    %2070 = vmatpush.msra.mxu0 0.0
    %2071 = vmatpush.msra.mxu0 0.0
    %2072 = vmatpush.msra.mxu0 %v2008
    %2073 = vmatmul.f32.gmra.mxu0 %v2015
    %v2074 = vpop.f32.mrf.mxu0
    %v2075 = vadd.f32 0.0, %v2074
    %2076 = vdwg.mxu0
    %2077 = vmatpush.msra.mxu0 0.0
    %2078 = vmatpush.msra.mxu0 0.0
    %2079 = vmatpush.msra.mxu0 0.0
    %2080 = vmatpush.msra.mxu0 0.0
    %2081 = vmatpush.msra.mxu0 0.0
    %2082 = vmatpush.msra.mxu0 0.0
    %2083 = vmatpush.msra.mxu0 0.0
    %2084 = vmatpush.msra.mxu0 0.0
    %2085 = vmatpush.msra.mxu0 0.0
    %2086 = vmatpush.msra.mxu0 0.0
    %2087 = vmatpush.msra.mxu0 0.0
    %2088 = vmatpush.msra.mxu0 0.0
    %2089 = vmatpush.msra.mxu0 0.0
    %2090 = vmatpush.msra.mxu0 0.0
    %2091 = vmatpush.msra.mxu0 0.0
    %2092 = vmatpush.msra.mxu0 %v2009
    %2093 = vmatmul.f32.gmra.mxu0 %v2015
    %v2094 = vpop.f32.mrf.mxu0
    %v2095 = vadd.f32 0.0, %v2094
    %2096 = vdwg.mxu0
    %s2097 = scalar_lea.vmem %s1, 64
    %v2098 = vld [vmem:[%s2097] ss:$8 sm:$0xf]
    %v2100 = vperm.slane %v2098, 0
    %v2101 = vperm.slane %v2098, 1
    %v2102 = vperm.slane %v2098, 2
    %v2103 = vperm.slane %v2098, 3
    %v2108 = vmul.f32 %v2035, %v2100
    %v2109 = vmul.f32 %v2055, %v2101
    %v2110 = vmul.f32 %v2075, %v2102
    %v2111 = vmul.f32 %v2095, %v2103
    %v2112 = vadd.f32 %v1989, %v2108
    %v2113 = vadd.f32 %v1990, %v2109
    %v2114 = vadd.f32 %v1991, %v2110
    %v2115 = vadd.f32 %v1992, %v2111
    %s2116 = scalar_lea.vmem %s2, 68
    %v2117 = vld [vmem:[%s2116] sm:$0xf]
    %2118 = vrot.lane.b32.xlu0 %v1737, 119
    %v2119 = vpop.permute.xlu0 %2118
    %2120 = vrot.lane.b32.xlu0 %v1738, 119
    %v2121 = vpop.permute.xlu0 %2120
    %2122 = vrot.lane.b32.xlu0 %v1739, 119
    %v2123 = vpop.permute.xlu0 %2122
    %2124 = vrot.lane.b32.xlu0 %v1740, 119
    %v2125 = vpop.permute.xlu0 %2124
    %2126 = vrot.lane.b32.xlu0 %v1741, 119
    %v2127 = vpop.permute.xlu0 %2126
    %vm2128 = vcmask 973824
    %v2129 = vsel %vm2128, %v2119, %v2121
    %v2130 = vsel %vm2128, %v2121, %v2123
    %v2131 = vsel %vm2128, %v2123, %v2125
    %v2132 = vsel %vm2128, %v2125, %v2127
    %v2138 = vsel %vm71, %v2117, 0
    %2140 = vmatpush.msra.mxu0 0.0
    %2141 = vmatpush.msra.mxu0 0.0
    %2142 = vmatpush.msra.mxu0 0.0
    %2143 = vmatpush.msra.mxu0 0.0
    %2144 = vmatpush.msra.mxu0 0.0
    %2145 = vmatpush.msra.mxu0 0.0
    %2146 = vmatpush.msra.mxu0 0.0
    %2147 = vmatpush.msra.mxu0 0.0
    %2148 = vmatpush.msra.mxu0 0.0
    %2149 = vmatpush.msra.mxu0 0.0
    %2150 = vmatpush.msra.mxu0 0.0
    %2151 = vmatpush.msra.mxu0 0.0
    %2152 = vmatpush.msra.mxu0 0.0
    %2153 = vmatpush.msra.mxu0 0.0
    %2154 = vmatpush.msra.mxu0 0.0
    %2155 = vmatpush.msra.mxu0 %v2129
    %2156 = vmatmul.f32.gmra.mxu0 %v2138
    %v2157 = vpop.f32.mrf.mxu0
    %v2158 = vadd.f32 0.0, %v2157
    %2159 = vdwg.mxu0
    %2160 = vmatpush.msra.mxu0 0.0
    %2161 = vmatpush.msra.mxu0 0.0
    %2162 = vmatpush.msra.mxu0 0.0
    %2163 = vmatpush.msra.mxu0 0.0
    %2164 = vmatpush.msra.mxu0 0.0
    %2165 = vmatpush.msra.mxu0 0.0
    %2166 = vmatpush.msra.mxu0 0.0
    %2167 = vmatpush.msra.mxu0 0.0
    %2168 = vmatpush.msra.mxu0 0.0
    %2169 = vmatpush.msra.mxu0 0.0
    %2170 = vmatpush.msra.mxu0 0.0
    %2171 = vmatpush.msra.mxu0 0.0
    %2172 = vmatpush.msra.mxu0 0.0
    %2173 = vmatpush.msra.mxu0 0.0
    %2174 = vmatpush.msra.mxu0 0.0
    %2175 = vmatpush.msra.mxu0 %v2130
    %2176 = vmatmul.f32.gmra.mxu0 %v2138
    %v2177 = vpop.f32.mrf.mxu0
    %v2178 = vadd.f32 0.0, %v2177
    %2179 = vdwg.mxu0
    %2180 = vmatpush.msra.mxu0 0.0
    %2181 = vmatpush.msra.mxu0 0.0
    %2182 = vmatpush.msra.mxu0 0.0
    %2183 = vmatpush.msra.mxu0 0.0
    %2184 = vmatpush.msra.mxu0 0.0
    %2185 = vmatpush.msra.mxu0 0.0
    %2186 = vmatpush.msra.mxu0 0.0
    %2187 = vmatpush.msra.mxu0 0.0
    %2188 = vmatpush.msra.mxu0 0.0
    %2189 = vmatpush.msra.mxu0 0.0
    %2190 = vmatpush.msra.mxu0 0.0
    %2191 = vmatpush.msra.mxu0 0.0
    %2192 = vmatpush.msra.mxu0 0.0
    %2193 = vmatpush.msra.mxu0 0.0
    %2194 = vmatpush.msra.mxu0 0.0
    %2195 = vmatpush.msra.mxu0 %v2131
    %2196 = vmatmul.f32.gmra.mxu0 %v2138
    %v2197 = vpop.f32.mrf.mxu0
    %v2198 = vadd.f32 0.0, %v2197
    %2199 = vdwg.mxu0
    %2200 = vmatpush.msra.mxu0 0.0
    %2201 = vmatpush.msra.mxu0 0.0
    %2202 = vmatpush.msra.mxu0 0.0
    %2203 = vmatpush.msra.mxu0 0.0
    %2204 = vmatpush.msra.mxu0 0.0
    %2205 = vmatpush.msra.mxu0 0.0
    %2206 = vmatpush.msra.mxu0 0.0
    %2207 = vmatpush.msra.mxu0 0.0
    %2208 = vmatpush.msra.mxu0 0.0
    %2209 = vmatpush.msra.mxu0 0.0
    %2210 = vmatpush.msra.mxu0 0.0
    %2211 = vmatpush.msra.mxu0 0.0
    %2212 = vmatpush.msra.mxu0 0.0
    %2213 = vmatpush.msra.mxu0 0.0
    %2214 = vmatpush.msra.mxu0 0.0
    %2215 = vmatpush.msra.mxu0 %v2132
    %2216 = vmatmul.f32.gmra.mxu0 %v2138
    %v2217 = vpop.f32.mrf.mxu0
    %v2218 = vadd.f32 0.0, %v2217
    %2219 = vdwg.mxu0
    %s2220 = scalar_lea.vmem %s1, 65
    %v2221 = vld [vmem:[%s2220] ss:$8 sm:$0xf]
    %v2223 = vperm.slane %v2221, 0
    %v2224 = vperm.slane %v2221, 1
    %v2225 = vperm.slane %v2221, 2
    %v2226 = vperm.slane %v2221, 3
    %v2231 = vmul.f32 %v2158, %v2223
    %v2232 = vmul.f32 %v2178, %v2224
    %v2233 = vmul.f32 %v2198, %v2225
    %v2234 = vmul.f32 %v2218, %v2226
    %v2235 = vadd.f32 %v2112, %v2231
    %v2236 = vadd.f32 %v2113, %v2232
    %v2237 = vadd.f32 %v2114, %v2233
    %v2238 = vadd.f32 %v2115, %v2234
    %s2239 = scalar_lea.vmem %s2, 72
    %v2240 = vld [vmem:[%s2239] sm:$0xf]
    %2241 = vrot.lane.b32.xlu0 %v1737, 73
    %v2242 = vpop.permute.xlu0 %2241
    %2243 = vrot.lane.b32.xlu0 %v1738, 73
    %v2244 = vpop.permute.xlu0 %2243
    %2245 = vrot.lane.b32.xlu0 %v1739, 73
    %v2246 = vpop.permute.xlu0 %2245
    %2247 = vrot.lane.b32.xlu0 %v1740, 73
    %v2248 = vpop.permute.xlu0 %2247
    %2249 = vrot.lane.b32.xlu0 %v1741, 73
    %v2250 = vpop.permute.xlu0 %2249
    %v2251 = vsel %vm62, %v2242, %v2244
    %v2252 = vsel %vm62, %v2244, %v2246
    %v2253 = vsel %vm62, %v2246, %v2248
    %v2254 = vsel %vm62, %v2248, %v2250
    %v2260 = vsel %vm71, %v2240, 0
    %2262 = vmatpush.msra.mxu0 0.0
    %2263 = vmatpush.msra.mxu0 0.0
    %2264 = vmatpush.msra.mxu0 0.0
    %2265 = vmatpush.msra.mxu0 0.0
    %2266 = vmatpush.msra.mxu0 0.0
    %2267 = vmatpush.msra.mxu0 0.0
    %2268 = vmatpush.msra.mxu0 0.0
    %2269 = vmatpush.msra.mxu0 0.0
    %2270 = vmatpush.msra.mxu0 0.0
    %2271 = vmatpush.msra.mxu0 0.0
    %2272 = vmatpush.msra.mxu0 0.0
    %2273 = vmatpush.msra.mxu0 0.0
    %2274 = vmatpush.msra.mxu0 0.0
    %2275 = vmatpush.msra.mxu0 0.0
    %2276 = vmatpush.msra.mxu0 0.0
    %2277 = vmatpush.msra.mxu0 %v2251
    %2278 = vmatmul.f32.gmra.mxu0 %v2260
    %v2279 = vpop.f32.mrf.mxu0
    %v2280 = vadd.f32 0.0, %v2279
    %2281 = vdwg.mxu0
    %2282 = vmatpush.msra.mxu0 0.0
    %2283 = vmatpush.msra.mxu0 0.0
    %2284 = vmatpush.msra.mxu0 0.0
    %2285 = vmatpush.msra.mxu0 0.0
    %2286 = vmatpush.msra.mxu0 0.0
    %2287 = vmatpush.msra.mxu0 0.0
    %2288 = vmatpush.msra.mxu0 0.0
    %2289 = vmatpush.msra.mxu0 0.0
    %2290 = vmatpush.msra.mxu0 0.0
    %2291 = vmatpush.msra.mxu0 0.0
    %2292 = vmatpush.msra.mxu0 0.0
    %2293 = vmatpush.msra.mxu0 0.0
    %2294 = vmatpush.msra.mxu0 0.0
    %2295 = vmatpush.msra.mxu0 0.0
    %2296 = vmatpush.msra.mxu0 0.0
    %2297 = vmatpush.msra.mxu0 %v2252
    %2298 = vmatmul.f32.gmra.mxu0 %v2260
    %v2299 = vpop.f32.mrf.mxu0
    %v2300 = vadd.f32 0.0, %v2299
    %2301 = vdwg.mxu0
    %2302 = vmatpush.msra.mxu0 0.0
    %2303 = vmatpush.msra.mxu0 0.0
    %2304 = vmatpush.msra.mxu0 0.0
    %2305 = vmatpush.msra.mxu0 0.0
    %2306 = vmatpush.msra.mxu0 0.0
    %2307 = vmatpush.msra.mxu0 0.0
    %2308 = vmatpush.msra.mxu0 0.0
    %2309 = vmatpush.msra.mxu0 0.0
    %2310 = vmatpush.msra.mxu0 0.0
    %2311 = vmatpush.msra.mxu0 0.0
    %2312 = vmatpush.msra.mxu0 0.0
    %2313 = vmatpush.msra.mxu0 0.0
    %2314 = vmatpush.msra.mxu0 0.0
    %2315 = vmatpush.msra.mxu0 0.0
    %2316 = vmatpush.msra.mxu0 0.0
    %2317 = vmatpush.msra.mxu0 %v2253
    %2318 = vmatmul.f32.gmra.mxu0 %v2260
    %v2319 = vpop.f32.mrf.mxu0
    %v2320 = vadd.f32 0.0, %v2319
    %2321 = vdwg.mxu0
    %2322 = vmatpush.msra.mxu0 0.0
    %2323 = vmatpush.msra.mxu0 0.0
    %2324 = vmatpush.msra.mxu0 0.0
    %2325 = vmatpush.msra.mxu0 0.0
    %2326 = vmatpush.msra.mxu0 0.0
    %2327 = vmatpush.msra.mxu0 0.0
    %2328 = vmatpush.msra.mxu0 0.0
    %2329 = vmatpush.msra.mxu0 0.0
    %2330 = vmatpush.msra.mxu0 0.0
    %2331 = vmatpush.msra.mxu0 0.0
    %2332 = vmatpush.msra.mxu0 0.0
    %2333 = vmatpush.msra.mxu0 0.0
    %2334 = vmatpush.msra.mxu0 0.0
    %2335 = vmatpush.msra.mxu0 0.0
    %2336 = vmatpush.msra.mxu0 0.0
    %2337 = vmatpush.msra.mxu0 %v2254
    %2338 = vmatmul.f32.gmra.mxu0 %v2260
    %v2339 = vpop.f32.mrf.mxu0
    %v2340 = vadd.f32 0.0, %v2339
    %2341 = vdwg.mxu0
    %s2342 = scalar_lea.vmem %s1, 66
    %v2343 = vld [vmem:[%s2342] ss:$8 sm:$0xf]
    %v2345 = vperm.slane %v2343, 0
    %v2346 = vperm.slane %v2343, 1
    %v2347 = vperm.slane %v2343, 2
    %v2348 = vperm.slane %v2343, 3
    %v2353 = vmul.f32 %v2280, %v2345
    %v2354 = vmul.f32 %v2300, %v2346
    %v2355 = vmul.f32 %v2320, %v2347
    %v2356 = vmul.f32 %v2340, %v2348
    %v2357 = vadd.f32 %v2235, %v2353
    %v2358 = vadd.f32 %v2236, %v2354
    %v2359 = vadd.f32 %v2237, %v2355
    %v2360 = vadd.f32 %v2238, %v2356
    %s2361 = scalar_lea.vmem %s2, 76
    %v2362 = vld [vmem:[%s2361] sm:$0xf]
    %2363 = vrot.lane.b32.xlu0 %v1737, 72
    %v2364 = vpop.permute.xlu0 %2363
    %2365 = vrot.lane.b32.xlu0 %v1738, 72
    %v2366 = vpop.permute.xlu0 %2365
    %2367 = vrot.lane.b32.xlu0 %v1739, 72
    %v2368 = vpop.permute.xlu0 %2367
    %2369 = vrot.lane.b32.xlu0 %v1740, 72
    %v2370 = vpop.permute.xlu0 %2369
    %2371 = vrot.lane.b32.xlu0 %v1741, 72
    %v2372 = vpop.permute.xlu0 %2371
    %v2373 = vsel %vm185, %v2364, %v2366
    %v2374 = vsel %vm185, %v2366, %v2368
    %v2375 = vsel %vm185, %v2368, %v2370
    %v2376 = vsel %vm185, %v2370, %v2372
    %v2382 = vsel %vm71, %v2362, 0
    %2384 = vmatpush.msra.mxu0 0.0
    %2385 = vmatpush.msra.mxu0 0.0
    %2386 = vmatpush.msra.mxu0 0.0
    %2387 = vmatpush.msra.mxu0 0.0
    %2388 = vmatpush.msra.mxu0 0.0
    %2389 = vmatpush.msra.mxu0 0.0
    %2390 = vmatpush.msra.mxu0 0.0
    %2391 = vmatpush.msra.mxu0 0.0
    %2392 = vmatpush.msra.mxu0 0.0
    %2393 = vmatpush.msra.mxu0 0.0
    %2394 = vmatpush.msra.mxu0 0.0
    %2395 = vmatpush.msra.mxu0 0.0
    %2396 = vmatpush.msra.mxu0 0.0
    %2397 = vmatpush.msra.mxu0 0.0
    %2398 = vmatpush.msra.mxu0 0.0
    %2399 = vmatpush.msra.mxu0 %v2373
    %2400 = vmatmul.f32.gmra.mxu0 %v2382
    %v2401 = vpop.f32.mrf.mxu0
    %v2402 = vadd.f32 0.0, %v2401
    %2403 = vdwg.mxu0
    %2404 = vmatpush.msra.mxu0 0.0
    %2405 = vmatpush.msra.mxu0 0.0
    %2406 = vmatpush.msra.mxu0 0.0
    %2407 = vmatpush.msra.mxu0 0.0
    %2408 = vmatpush.msra.mxu0 0.0
    %2409 = vmatpush.msra.mxu0 0.0
    %2410 = vmatpush.msra.mxu0 0.0
    %2411 = vmatpush.msra.mxu0 0.0
    %2412 = vmatpush.msra.mxu0 0.0
    %2413 = vmatpush.msra.mxu0 0.0
    %2414 = vmatpush.msra.mxu0 0.0
    %2415 = vmatpush.msra.mxu0 0.0
    %2416 = vmatpush.msra.mxu0 0.0
    %2417 = vmatpush.msra.mxu0 0.0
    %2418 = vmatpush.msra.mxu0 0.0
    %2419 = vmatpush.msra.mxu0 %v2374
    %2420 = vmatmul.f32.gmra.mxu0 %v2382
    %v2421 = vpop.f32.mrf.mxu0
    %v2422 = vadd.f32 0.0, %v2421
    %2423 = vdwg.mxu0
    %2424 = vmatpush.msra.mxu0 0.0
    %2425 = vmatpush.msra.mxu0 0.0
    %2426 = vmatpush.msra.mxu0 0.0
    %2427 = vmatpush.msra.mxu0 0.0
    %2428 = vmatpush.msra.mxu0 0.0
    %2429 = vmatpush.msra.mxu0 0.0
    %2430 = vmatpush.msra.mxu0 0.0
    %2431 = vmatpush.msra.mxu0 0.0
    %2432 = vmatpush.msra.mxu0 0.0
    %2433 = vmatpush.msra.mxu0 0.0
    %2434 = vmatpush.msra.mxu0 0.0
    %2435 = vmatpush.msra.mxu0 0.0
    %2436 = vmatpush.msra.mxu0 0.0
    %2437 = vmatpush.msra.mxu0 0.0
    %2438 = vmatpush.msra.mxu0 0.0
    %2439 = vmatpush.msra.mxu0 %v2375
    %2440 = vmatmul.f32.gmra.mxu0 %v2382
    %v2441 = vpop.f32.mrf.mxu0
    %v2442 = vadd.f32 0.0, %v2441
    %2443 = vdwg.mxu0
    %2444 = vmatpush.msra.mxu0 0.0
    %2445 = vmatpush.msra.mxu0 0.0
    %2446 = vmatpush.msra.mxu0 0.0
    %2447 = vmatpush.msra.mxu0 0.0
    %2448 = vmatpush.msra.mxu0 0.0
    %2449 = vmatpush.msra.mxu0 0.0
    %2450 = vmatpush.msra.mxu0 0.0
    %2451 = vmatpush.msra.mxu0 0.0
    %2452 = vmatpush.msra.mxu0 0.0
    %2453 = vmatpush.msra.mxu0 0.0
    %2454 = vmatpush.msra.mxu0 0.0
    %2455 = vmatpush.msra.mxu0 0.0
    %2456 = vmatpush.msra.mxu0 0.0
    %2457 = vmatpush.msra.mxu0 0.0
    %2458 = vmatpush.msra.mxu0 0.0
    %2459 = vmatpush.msra.mxu0 %v2376
    %2460 = vmatmul.f32.gmra.mxu0 %v2382
    %v2461 = vpop.f32.mrf.mxu0
    %v2462 = vadd.f32 0.0, %v2461
    %2463 = vdwg.mxu0
    %s2464 = scalar_lea.vmem %s1, 67
    %v2465 = vld [vmem:[%s2464] ss:$8 sm:$0xf]
    %v2467 = vperm.slane %v2465, 0
    %v2468 = vperm.slane %v2465, 1
    %v2469 = vperm.slane %v2465, 2
    %v2470 = vperm.slane %v2465, 3
    %v2475 = vmul.f32 %v2402, %v2467
    %v2476 = vmul.f32 %v2422, %v2468
    %v2477 = vmul.f32 %v2442, %v2469
    %v2478 = vmul.f32 %v2462, %v2470
    %v2479 = vadd.f32 %v2357, %v2475
    %v2480 = vadd.f32 %v2358, %v2476
    %v2481 = vadd.f32 %v2359, %v2477
    %v2482 = vadd.f32 %v2360, %v2478
    %s2483 = scalar_lea.vmem %s2, 80
    %v2484 = vld [vmem:[%s2483] sm:$0xf]
    %2485 = vrot.lane.b32.xlu0 %v1737, 71
    %v2486 = vpop.permute.xlu0 %2485
    %2487 = vrot.lane.b32.xlu0 %v1738, 71
    %v2488 = vpop.permute.xlu0 %2487
    %2489 = vrot.lane.b32.xlu0 %v1739, 71
    %v2490 = vpop.permute.xlu0 %2489
    %2491 = vrot.lane.b32.xlu0 %v1740, 71
    %v2492 = vpop.permute.xlu0 %2491
    %2493 = vrot.lane.b32.xlu0 %v1741, 71
    %v2494 = vpop.permute.xlu0 %2493
    %v2495 = vsel %vm308, %v2486, %v2488
    %v2496 = vsel %vm308, %v2488, %v2490
    %v2497 = vsel %vm308, %v2490, %v2492
    %v2498 = vsel %vm308, %v2492, %v2494
    %v2504 = vsel %vm71, %v2484, 0
    %2506 = vmatpush.msra.mxu0 0.0
    %2507 = vmatpush.msra.mxu0 0.0
    %2508 = vmatpush.msra.mxu0 0.0
    %2509 = vmatpush.msra.mxu0 0.0
    %2510 = vmatpush.msra.mxu0 0.0
    %2511 = vmatpush.msra.mxu0 0.0
    %2512 = vmatpush.msra.mxu0 0.0
    %2513 = vmatpush.msra.mxu0 0.0
    %2514 = vmatpush.msra.mxu0 0.0
    %2515 = vmatpush.msra.mxu0 0.0
    %2516 = vmatpush.msra.mxu0 0.0
    %2517 = vmatpush.msra.mxu0 0.0
    %2518 = vmatpush.msra.mxu0 0.0
    %2519 = vmatpush.msra.mxu0 0.0
    %2520 = vmatpush.msra.mxu0 0.0
    %2521 = vmatpush.msra.mxu0 %v2495
    %2522 = vmatmul.f32.gmra.mxu0 %v2504
    %v2523 = vpop.f32.mrf.mxu0
    %v2524 = vadd.f32 0.0, %v2523
    %2525 = vdwg.mxu0
    %2526 = vmatpush.msra.mxu0 0.0
    %2527 = vmatpush.msra.mxu0 0.0
    %2528 = vmatpush.msra.mxu0 0.0
    %2529 = vmatpush.msra.mxu0 0.0
    %2530 = vmatpush.msra.mxu0 0.0
    %2531 = vmatpush.msra.mxu0 0.0
    %2532 = vmatpush.msra.mxu0 0.0
    %2533 = vmatpush.msra.mxu0 0.0
    %2534 = vmatpush.msra.mxu0 0.0
    %2535 = vmatpush.msra.mxu0 0.0
    %2536 = vmatpush.msra.mxu0 0.0
    %2537 = vmatpush.msra.mxu0 0.0
    %2538 = vmatpush.msra.mxu0 0.0
    %2539 = vmatpush.msra.mxu0 0.0
    %2540 = vmatpush.msra.mxu0 0.0
    %2541 = vmatpush.msra.mxu0 %v2496
    %2542 = vmatmul.f32.gmra.mxu0 %v2504
    %v2543 = vpop.f32.mrf.mxu0
    %v2544 = vadd.f32 0.0, %v2543
    %2545 = vdwg.mxu0
    %2546 = vmatpush.msra.mxu0 0.0
    %2547 = vmatpush.msra.mxu0 0.0
    %2548 = vmatpush.msra.mxu0 0.0
    %2549 = vmatpush.msra.mxu0 0.0
    %2550 = vmatpush.msra.mxu0 0.0
    %2551 = vmatpush.msra.mxu0 0.0
    %2552 = vmatpush.msra.mxu0 0.0
    %2553 = vmatpush.msra.mxu0 0.0
    %2554 = vmatpush.msra.mxu0 0.0
    %2555 = vmatpush.msra.mxu0 0.0
    %2556 = vmatpush.msra.mxu0 0.0
    %2557 = vmatpush.msra.mxu0 0.0
    %2558 = vmatpush.msra.mxu0 0.0
    %2559 = vmatpush.msra.mxu0 0.0
    %2560 = vmatpush.msra.mxu0 0.0
    %2561 = vmatpush.msra.mxu0 %v2497
    %2562 = vmatmul.f32.gmra.mxu0 %v2504
    %v2563 = vpop.f32.mrf.mxu0
    %v2564 = vadd.f32 0.0, %v2563
    %2565 = vdwg.mxu0
    %2566 = vmatpush.msra.mxu0 0.0
    %2567 = vmatpush.msra.mxu0 0.0
    %2568 = vmatpush.msra.mxu0 0.0
    %2569 = vmatpush.msra.mxu0 0.0
    %2570 = vmatpush.msra.mxu0 0.0
    %2571 = vmatpush.msra.mxu0 0.0
    %2572 = vmatpush.msra.mxu0 0.0
    %2573 = vmatpush.msra.mxu0 0.0
    %2574 = vmatpush.msra.mxu0 0.0
    %2575 = vmatpush.msra.mxu0 0.0
    %2576 = vmatpush.msra.mxu0 0.0
    %2577 = vmatpush.msra.mxu0 0.0
    %2578 = vmatpush.msra.mxu0 0.0
    %2579 = vmatpush.msra.mxu0 0.0
    %2580 = vmatpush.msra.mxu0 0.0
    %2581 = vmatpush.msra.mxu0 %v2498
    %2582 = vmatmul.f32.gmra.mxu0 %v2504
    %v2583 = vpop.f32.mrf.mxu0
    %v2584 = vadd.f32 0.0, %v2583
    %2585 = vdwg.mxu0
    %s2586 = scalar_lea.vmem %s1, 68
    %v2587 = vld [vmem:[%s2586] ss:$8 sm:$0xf]
    %v2589 = vperm.slane %v2587, 0
    %v2590 = vperm.slane %v2587, 1
    %v2591 = vperm.slane %v2587, 2
    %v2592 = vperm.slane %v2587, 3
    %v2597 = vmul.f32 %v2524, %v2589
    %v2598 = vmul.f32 %v2544, %v2590
    %v2599 = vmul.f32 %v2564, %v2591
    %v2600 = vmul.f32 %v2584, %v2592
    %v2601 = vadd.f32 %v2479, %v2597
    %v2602 = vadd.f32 %v2480, %v2598
    %v2603 = vadd.f32 %v2481, %v2599
    %v2604 = vadd.f32 %v2482, %v2600
    %s2605 = scalar_lea.vmem %s2, 84
    %v2606 = vld [vmem:[%s2605] sm:$0xf]
    %2607 = vrot.lane.b32.xlu0 %v1737, 65
    %v2608 = vpop.permute.xlu0 %2607
    %2609 = vrot.lane.b32.xlu0 %v1738, 65
    %v2610 = vpop.permute.xlu0 %2609
    %2611 = vrot.lane.b32.xlu0 %v1739, 65
    %v2612 = vpop.permute.xlu0 %2611
    %2613 = vrot.lane.b32.xlu0 %v1740, 65
    %v2614 = vpop.permute.xlu0 %2613
    %2615 = vrot.lane.b32.xlu0 %v1741, 65
    %v2616 = vpop.permute.xlu0 %2615
    %v2617 = vsel %vm431, %v2608, %v2610
    %v2618 = vsel %vm431, %v2610, %v2612
    %v2619 = vsel %vm431, %v2612, %v2614
    %v2620 = vsel %vm431, %v2614, %v2616
    %v2626 = vsel %vm71, %v2606, 0
    %2628 = vmatpush.msra.mxu0 0.0
    %2629 = vmatpush.msra.mxu0 0.0
    %2630 = vmatpush.msra.mxu0 0.0
    %2631 = vmatpush.msra.mxu0 0.0
    %2632 = vmatpush.msra.mxu0 0.0
    %2633 = vmatpush.msra.mxu0 0.0
    %2634 = vmatpush.msra.mxu0 0.0
    %2635 = vmatpush.msra.mxu0 0.0
    %2636 = vmatpush.msra.mxu0 0.0
    %2637 = vmatpush.msra.mxu0 0.0
    %2638 = vmatpush.msra.mxu0 0.0
    %2639 = vmatpush.msra.mxu0 0.0
    %2640 = vmatpush.msra.mxu0 0.0
    %2641 = vmatpush.msra.mxu0 0.0
    %2642 = vmatpush.msra.mxu0 0.0
    %2643 = vmatpush.msra.mxu0 %v2617
    %2644 = vmatmul.f32.gmra.mxu0 %v2626
    %v2645 = vpop.f32.mrf.mxu0
    %v2646 = vadd.f32 0.0, %v2645
    %2647 = vdwg.mxu0
    %2648 = vmatpush.msra.mxu0 0.0
    %2649 = vmatpush.msra.mxu0 0.0
    %2650 = vmatpush.msra.mxu0 0.0
    %2651 = vmatpush.msra.mxu0 0.0
    %2652 = vmatpush.msra.mxu0 0.0
    %2653 = vmatpush.msra.mxu0 0.0
    %2654 = vmatpush.msra.mxu0 0.0
    %2655 = vmatpush.msra.mxu0 0.0
    %2656 = vmatpush.msra.mxu0 0.0
    %2657 = vmatpush.msra.mxu0 0.0
    %2658 = vmatpush.msra.mxu0 0.0
    %2659 = vmatpush.msra.mxu0 0.0
    %2660 = vmatpush.msra.mxu0 0.0
    %2661 = vmatpush.msra.mxu0 0.0
    %2662 = vmatpush.msra.mxu0 0.0
    %2663 = vmatpush.msra.mxu0 %v2618
    %2664 = vmatmul.f32.gmra.mxu0 %v2626
    %v2665 = vpop.f32.mrf.mxu0
    %v2666 = vadd.f32 0.0, %v2665
    %2667 = vdwg.mxu0
    %2668 = vmatpush.msra.mxu0 0.0
    %2669 = vmatpush.msra.mxu0 0.0
    %2670 = vmatpush.msra.mxu0 0.0
    %2671 = vmatpush.msra.mxu0 0.0
    %2672 = vmatpush.msra.mxu0 0.0
    %2673 = vmatpush.msra.mxu0 0.0
    %2674 = vmatpush.msra.mxu0 0.0
    %2675 = vmatpush.msra.mxu0 0.0
    %2676 = vmatpush.msra.mxu0 0.0
    %2677 = vmatpush.msra.mxu0 0.0
    %2678 = vmatpush.msra.mxu0 0.0
    %2679 = vmatpush.msra.mxu0 0.0
    %2680 = vmatpush.msra.mxu0 0.0
    %2681 = vmatpush.msra.mxu0 0.0
    %2682 = vmatpush.msra.mxu0 0.0
    %2683 = vmatpush.msra.mxu0 %v2619
    %2684 = vmatmul.f32.gmra.mxu0 %v2626
    %v2685 = vpop.f32.mrf.mxu0
    %v2686 = vadd.f32 0.0, %v2685
    %2687 = vdwg.mxu0
    %2688 = vmatpush.msra.mxu0 0.0
    %2689 = vmatpush.msra.mxu0 0.0
    %2690 = vmatpush.msra.mxu0 0.0
    %2691 = vmatpush.msra.mxu0 0.0
    %2692 = vmatpush.msra.mxu0 0.0
    %2693 = vmatpush.msra.mxu0 0.0
    %2694 = vmatpush.msra.mxu0 0.0
    %2695 = vmatpush.msra.mxu0 0.0
    %2696 = vmatpush.msra.mxu0 0.0
    %2697 = vmatpush.msra.mxu0 0.0
    %2698 = vmatpush.msra.mxu0 0.0
    %2699 = vmatpush.msra.mxu0 0.0
    %2700 = vmatpush.msra.mxu0 0.0
    %2701 = vmatpush.msra.mxu0 0.0
    %2702 = vmatpush.msra.mxu0 0.0
    %2703 = vmatpush.msra.mxu0 %v2620
    %2704 = vmatmul.f32.gmra.mxu0 %v2626
    %v2705 = vpop.f32.mrf.mxu0
    %v2706 = vadd.f32 0.0, %v2705
    %2707 = vdwg.mxu0
    %s2708 = scalar_lea.vmem %s1, 69
    %v2709 = vld [vmem:[%s2708] ss:$8 sm:$0xf]
    %v2711 = vperm.slane %v2709, 0
    %v2712 = vperm.slane %v2709, 1
    %v2713 = vperm.slane %v2709, 2
    %v2714 = vperm.slane %v2709, 3
    %v2719 = vmul.f32 %v2646, %v2711
    %v2720 = vmul.f32 %v2666, %v2712
    %v2721 = vmul.f32 %v2686, %v2713
    %v2722 = vmul.f32 %v2706, %v2714
    %v2723 = vadd.f32 %v2601, %v2719
    %v2724 = vadd.f32 %v2602, %v2720
    %v2725 = vadd.f32 %v2603, %v2721
    %v2726 = vadd.f32 %v2604, %v2722
    %s2727 = scalar_lea.vmem %s2, 88
    %v2728 = vld [vmem:[%s2727] sm:$0xf]
    %2729 = vrot.lane.b32.xlu0 %v1737, 64
    %v2730 = vpop.permute.xlu0 %2729
    %2731 = vrot.lane.b32.xlu0 %v1738, 64
    %v2732 = vpop.permute.xlu0 %2731
    %2733 = vrot.lane.b32.xlu0 %v1739, 64
    %v2734 = vpop.permute.xlu0 %2733
    %2735 = vrot.lane.b32.xlu0 %v1740, 64
    %v2736 = vpop.permute.xlu0 %2735
    %2737 = vrot.lane.b32.xlu0 %v1741, 64
    %v2738 = vpop.permute.xlu0 %2737
    %v2739 = vsel %vm554, %v2730, %v2732
    %v2740 = vsel %vm554, %v2732, %v2734
    %v2741 = vsel %vm554, %v2734, %v2736
    %v2742 = vsel %vm554, %v2736, %v2738
    %v2748 = vsel %vm71, %v2728, 0
    %2750 = vmatpush.msra.mxu0 0.0
    %2751 = vmatpush.msra.mxu0 0.0
    %2752 = vmatpush.msra.mxu0 0.0
    %2753 = vmatpush.msra.mxu0 0.0
    %2754 = vmatpush.msra.mxu0 0.0
    %2755 = vmatpush.msra.mxu0 0.0
    %2756 = vmatpush.msra.mxu0 0.0
    %2757 = vmatpush.msra.mxu0 0.0
    %2758 = vmatpush.msra.mxu0 0.0
    %2759 = vmatpush.msra.mxu0 0.0
    %2760 = vmatpush.msra.mxu0 0.0
    %2761 = vmatpush.msra.mxu0 0.0
    %2762 = vmatpush.msra.mxu0 0.0
    %2763 = vmatpush.msra.mxu0 0.0
    %2764 = vmatpush.msra.mxu0 0.0
    %2765 = vmatpush.msra.mxu0 %v2739
    %2766 = vmatmul.f32.gmra.mxu0 %v2748
    %v2767 = vpop.f32.mrf.mxu0
    %v2768 = vadd.f32 0.0, %v2767
    %2769 = vdwg.mxu0
    %2770 = vmatpush.msra.mxu0 0.0
    %2771 = vmatpush.msra.mxu0 0.0
    %2772 = vmatpush.msra.mxu0 0.0
    %2773 = vmatpush.msra.mxu0 0.0
    %2774 = vmatpush.msra.mxu0 0.0
    %2775 = vmatpush.msra.mxu0 0.0
    %2776 = vmatpush.msra.mxu0 0.0
    %2777 = vmatpush.msra.mxu0 0.0
    %2778 = vmatpush.msra.mxu0 0.0
    %2779 = vmatpush.msra.mxu0 0.0
    %2780 = vmatpush.msra.mxu0 0.0
    %2781 = vmatpush.msra.mxu0 0.0
    %2782 = vmatpush.msra.mxu0 0.0
    %2783 = vmatpush.msra.mxu0 0.0
    %2784 = vmatpush.msra.mxu0 0.0
    %2785 = vmatpush.msra.mxu0 %v2740
    %2786 = vmatmul.f32.gmra.mxu0 %v2748
    %v2787 = vpop.f32.mrf.mxu0
    %v2788 = vadd.f32 0.0, %v2787
    %2789 = vdwg.mxu0
    %2790 = vmatpush.msra.mxu0 0.0
    %2791 = vmatpush.msra.mxu0 0.0
    %2792 = vmatpush.msra.mxu0 0.0
    %2793 = vmatpush.msra.mxu0 0.0
    %2794 = vmatpush.msra.mxu0 0.0
    %2795 = vmatpush.msra.mxu0 0.0
    %2796 = vmatpush.msra.mxu0 0.0
    %2797 = vmatpush.msra.mxu0 0.0
    %2798 = vmatpush.msra.mxu0 0.0
    %2799 = vmatpush.msra.mxu0 0.0
    %2800 = vmatpush.msra.mxu0 0.0
    %2801 = vmatpush.msra.mxu0 0.0
    %2802 = vmatpush.msra.mxu0 0.0
    %2803 = vmatpush.msra.mxu0 0.0
    %2804 = vmatpush.msra.mxu0 0.0
    %2805 = vmatpush.msra.mxu0 %v2741
    %2806 = vmatmul.f32.gmra.mxu0 %v2748
    %v2807 = vpop.f32.mrf.mxu0
    %v2808 = vadd.f32 0.0, %v2807
    %2809 = vdwg.mxu0
    %2810 = vmatpush.msra.mxu0 0.0
    %2811 = vmatpush.msra.mxu0 0.0
    %2812 = vmatpush.msra.mxu0 0.0
    %2813 = vmatpush.msra.mxu0 0.0
    %2814 = vmatpush.msra.mxu0 0.0
    %2815 = vmatpush.msra.mxu0 0.0
    %2816 = vmatpush.msra.mxu0 0.0
    %2817 = vmatpush.msra.mxu0 0.0
    %2818 = vmatpush.msra.mxu0 0.0
    %2819 = vmatpush.msra.mxu0 0.0
    %2820 = vmatpush.msra.mxu0 0.0
    %2821 = vmatpush.msra.mxu0 0.0
    %2822 = vmatpush.msra.mxu0 0.0
    %2823 = vmatpush.msra.mxu0 0.0
    %2824 = vmatpush.msra.mxu0 0.0
    %2825 = vmatpush.msra.mxu0 %v2742
    %2826 = vmatmul.f32.gmra.mxu0 %v2748
    %v2827 = vpop.f32.mrf.mxu0
    %v2828 = vadd.f32 0.0, %v2827
    %2829 = vdwg.mxu0
    %s2830 = scalar_lea.vmem %s1, 70
    %v2831 = vld [vmem:[%s2830] ss:$8 sm:$0xf]
    %v2833 = vperm.slane %v2831, 0
    %v2834 = vperm.slane %v2831, 1
    %v2835 = vperm.slane %v2831, 2
    %v2836 = vperm.slane %v2831, 3
    %v2841 = vmul.f32 %v2768, %v2833
    %v2842 = vmul.f32 %v2788, %v2834
    %v2843 = vmul.f32 %v2808, %v2835
    %v2844 = vmul.f32 %v2828, %v2836
    %v2845 = vadd.f32 %v2723, %v2841
    %v2846 = vadd.f32 %v2724, %v2842
    %v2847 = vadd.f32 %v2725, %v2843
    %v2848 = vadd.f32 %v2726, %v2844
    %s2849 = scalar_lea.vmem %s2, 92
    %v2850 = vld [vmem:[%s2849] sm:$0xf]
    %2851 = vrot.lane.b32.xlu0 %v1737, 63
    %v2852 = vpop.permute.xlu0 %2851
    %2853 = vrot.lane.b32.xlu0 %v1738, 63
    %v2854 = vpop.permute.xlu0 %2853
    %2855 = vrot.lane.b32.xlu0 %v1739, 63
    %v2856 = vpop.permute.xlu0 %2855
    %2857 = vrot.lane.b32.xlu0 %v1740, 63
    %v2858 = vpop.permute.xlu0 %2857
    %2859 = vrot.lane.b32.xlu0 %v1741, 63
    %v2860 = vpop.permute.xlu0 %2859
    %v2861 = vsel %vm677, %v2852, %v2854
    %v2862 = vsel %vm677, %v2854, %v2856
    %v2863 = vsel %vm677, %v2856, %v2858
    %v2864 = vsel %vm677, %v2858, %v2860
    %v2870 = vsel %vm71, %v2850, 0
    %2872 = vmatpush.msra.mxu0 0.0
    %2873 = vmatpush.msra.mxu0 0.0
    %2874 = vmatpush.msra.mxu0 0.0
    %2875 = vmatpush.msra.mxu0 0.0
    %2876 = vmatpush.msra.mxu0 0.0
    %2877 = vmatpush.msra.mxu0 0.0
    %2878 = vmatpush.msra.mxu0 0.0
    %2879 = vmatpush.msra.mxu0 0.0
    %2880 = vmatpush.msra.mxu0 0.0
    %2881 = vmatpush.msra.mxu0 0.0
    %2882 = vmatpush.msra.mxu0 0.0
    %2883 = vmatpush.msra.mxu0 0.0
    %2884 = vmatpush.msra.mxu0 0.0
    %2885 = vmatpush.msra.mxu0 0.0
    %2886 = vmatpush.msra.mxu0 0.0
    %2887 = vmatpush.msra.mxu0 %v2861
    %2888 = vmatmul.f32.gmra.mxu0 %v2870
    %v2889 = vpop.f32.mrf.mxu0
    %v2890 = vadd.f32 0.0, %v2889
    %2891 = vdwg.mxu0
    %2892 = vmatpush.msra.mxu0 0.0
    %2893 = vmatpush.msra.mxu0 0.0
    %2894 = vmatpush.msra.mxu0 0.0
    %2895 = vmatpush.msra.mxu0 0.0
    %2896 = vmatpush.msra.mxu0 0.0
    %2897 = vmatpush.msra.mxu0 0.0
    %2898 = vmatpush.msra.mxu0 0.0
    %2899 = vmatpush.msra.mxu0 0.0
    %2900 = vmatpush.msra.mxu0 0.0
    %2901 = vmatpush.msra.mxu0 0.0
    %2902 = vmatpush.msra.mxu0 0.0
    %2903 = vmatpush.msra.mxu0 0.0
    %2904 = vmatpush.msra.mxu0 0.0
    %2905 = vmatpush.msra.mxu0 0.0
    %2906 = vmatpush.msra.mxu0 0.0
    %2907 = vmatpush.msra.mxu0 %v2862
    %2908 = vmatmul.f32.gmra.mxu0 %v2870
    %v2909 = vpop.f32.mrf.mxu0
    %v2910 = vadd.f32 0.0, %v2909
    %2911 = vdwg.mxu0
    %2912 = vmatpush.msra.mxu0 0.0
    %2913 = vmatpush.msra.mxu0 0.0
    %2914 = vmatpush.msra.mxu0 0.0
    %2915 = vmatpush.msra.mxu0 0.0
    %2916 = vmatpush.msra.mxu0 0.0
    %2917 = vmatpush.msra.mxu0 0.0
    %2918 = vmatpush.msra.mxu0 0.0
    %2919 = vmatpush.msra.mxu0 0.0
    %2920 = vmatpush.msra.mxu0 0.0
    %2921 = vmatpush.msra.mxu0 0.0
    %2922 = vmatpush.msra.mxu0 0.0
    %2923 = vmatpush.msra.mxu0 0.0
    %2924 = vmatpush.msra.mxu0 0.0
    %2925 = vmatpush.msra.mxu0 0.0
    %2926 = vmatpush.msra.mxu0 0.0
    %2927 = vmatpush.msra.mxu0 %v2863
    %2928 = vmatmul.f32.gmra.mxu0 %v2870
    %v2929 = vpop.f32.mrf.mxu0
    %v2930 = vadd.f32 0.0, %v2929
    %2931 = vdwg.mxu0
    %2932 = vmatpush.msra.mxu0 0.0
    %2933 = vmatpush.msra.mxu0 0.0
    %2934 = vmatpush.msra.mxu0 0.0
    %2935 = vmatpush.msra.mxu0 0.0
    %2936 = vmatpush.msra.mxu0 0.0
    %2937 = vmatpush.msra.mxu0 0.0
    %2938 = vmatpush.msra.mxu0 0.0
    %2939 = vmatpush.msra.mxu0 0.0
    %2940 = vmatpush.msra.mxu0 0.0
    %2941 = vmatpush.msra.mxu0 0.0
    %2942 = vmatpush.msra.mxu0 0.0
    %2943 = vmatpush.msra.mxu0 0.0
    %2944 = vmatpush.msra.mxu0 0.0
    %2945 = vmatpush.msra.mxu0 0.0
    %2946 = vmatpush.msra.mxu0 0.0
    %2947 = vmatpush.msra.mxu0 %v2864
    %2948 = vmatmul.f32.gmra.mxu0 %v2870
    %v2949 = vpop.f32.mrf.mxu0
    %v2950 = vadd.f32 0.0, %v2949
    %2951 = vdwg.mxu0
    %s2952 = scalar_lea.vmem %s1, 71
    %v2953 = vld [vmem:[%s2952] ss:$8 sm:$0xf]
    %v2955 = vperm.slane %v2953, 0
    %v2956 = vperm.slane %v2953, 1
    %v2957 = vperm.slane %v2953, 2
    %v2958 = vperm.slane %v2953, 3
    %v2963 = vmul.f32 %v2890, %v2955
    %v2964 = vmul.f32 %v2910, %v2956
    %v2965 = vmul.f32 %v2930, %v2957
    %v2966 = vmul.f32 %v2950, %v2958
    %v2967 = vadd.f32 %v2845, %v2963
    %v2968 = vadd.f32 %v2846, %v2964
    %v2969 = vadd.f32 %v2847, %v2965
    %v2970 = vadd.f32 %v2848, %v2966
    %s2971 = scalar_lea.vmem %s2, 96
    %v2972 = vld [vmem:[%s2971] sm:$0xf]
    %2973 = vrot.lane.b32.xlu0 %v1737, 57
    %v2974 = vpop.permute.xlu0 %2973
    %2975 = vrot.lane.b32.xlu0 %v1738, 57
    %v2976 = vpop.permute.xlu0 %2975
    %2977 = vrot.lane.b32.xlu0 %v1739, 57
    %v2978 = vpop.permute.xlu0 %2977
    %2979 = vrot.lane.b32.xlu0 %v1740, 57
    %v2980 = vpop.permute.xlu0 %2979
    %2981 = vrot.lane.b32.xlu0 %v1741, 57
    %v2982 = vpop.permute.xlu0 %2981
    %v2983 = vsel %vm800, %v2974, %v2976
    %v2984 = vsel %vm800, %v2976, %v2978
    %v2985 = vsel %vm800, %v2978, %v2980
    %v2986 = vsel %vm800, %v2980, %v2982
    %v2992 = vsel %vm71, %v2972, 0
    %2994 = vmatpush.msra.mxu0 0.0
    %2995 = vmatpush.msra.mxu0 0.0
    %2996 = vmatpush.msra.mxu0 0.0
    %2997 = vmatpush.msra.mxu0 0.0
    %2998 = vmatpush.msra.mxu0 0.0
    %2999 = vmatpush.msra.mxu0 0.0
    %3000 = vmatpush.msra.mxu0 0.0
    %3001 = vmatpush.msra.mxu0 0.0
    %3002 = vmatpush.msra.mxu0 0.0
    %3003 = vmatpush.msra.mxu0 0.0
    %3004 = vmatpush.msra.mxu0 0.0
    %3005 = vmatpush.msra.mxu0 0.0
    %3006 = vmatpush.msra.mxu0 0.0
    %3007 = vmatpush.msra.mxu0 0.0
    %3008 = vmatpush.msra.mxu0 0.0
    %3009 = vmatpush.msra.mxu0 %v2983
    %3010 = vmatmul.f32.gmra.mxu0 %v2992
    %v3011 = vpop.f32.mrf.mxu0
    %v3012 = vadd.f32 0.0, %v3011
    %3013 = vdwg.mxu0
    %3014 = vmatpush.msra.mxu0 0.0
    %3015 = vmatpush.msra.mxu0 0.0
    %3016 = vmatpush.msra.mxu0 0.0
    %3017 = vmatpush.msra.mxu0 0.0
    %3018 = vmatpush.msra.mxu0 0.0
    %3019 = vmatpush.msra.mxu0 0.0
    %3020 = vmatpush.msra.mxu0 0.0
    %3021 = vmatpush.msra.mxu0 0.0
    %3022 = vmatpush.msra.mxu0 0.0
    %3023 = vmatpush.msra.mxu0 0.0
    %3024 = vmatpush.msra.mxu0 0.0
    %3025 = vmatpush.msra.mxu0 0.0
    %3026 = vmatpush.msra.mxu0 0.0
    %3027 = vmatpush.msra.mxu0 0.0
    %3028 = vmatpush.msra.mxu0 0.0
    %3029 = vmatpush.msra.mxu0 %v2984
    %3030 = vmatmul.f32.gmra.mxu0 %v2992
    %v3031 = vpop.f32.mrf.mxu0
    %v3032 = vadd.f32 0.0, %v3031
    %3033 = vdwg.mxu0
    %3034 = vmatpush.msra.mxu0 0.0
    %3035 = vmatpush.msra.mxu0 0.0
    %3036 = vmatpush.msra.mxu0 0.0
    %3037 = vmatpush.msra.mxu0 0.0
    %3038 = vmatpush.msra.mxu0 0.0
    %3039 = vmatpush.msra.mxu0 0.0
    %3040 = vmatpush.msra.mxu0 0.0
    %3041 = vmatpush.msra.mxu0 0.0
    %3042 = vmatpush.msra.mxu0 0.0
    %3043 = vmatpush.msra.mxu0 0.0
    %3044 = vmatpush.msra.mxu0 0.0
    %3045 = vmatpush.msra.mxu0 0.0
    %3046 = vmatpush.msra.mxu0 0.0
    %3047 = vmatpush.msra.mxu0 0.0
    %3048 = vmatpush.msra.mxu0 0.0
    %3049 = vmatpush.msra.mxu0 %v2985
    %3050 = vmatmul.f32.gmra.mxu0 %v2992
    %v3051 = vpop.f32.mrf.mxu0
    %v3052 = vadd.f32 0.0, %v3051
    %3053 = vdwg.mxu0
    %3054 = vmatpush.msra.mxu0 0.0
    %3055 = vmatpush.msra.mxu0 0.0
    %3056 = vmatpush.msra.mxu0 0.0
    %3057 = vmatpush.msra.mxu0 0.0
    %3058 = vmatpush.msra.mxu0 0.0
    %3059 = vmatpush.msra.mxu0 0.0
    %3060 = vmatpush.msra.mxu0 0.0
    %3061 = vmatpush.msra.mxu0 0.0
    %3062 = vmatpush.msra.mxu0 0.0
    %3063 = vmatpush.msra.mxu0 0.0
    %3064 = vmatpush.msra.mxu0 0.0
    %3065 = vmatpush.msra.mxu0 0.0
    %3066 = vmatpush.msra.mxu0 0.0
    %3067 = vmatpush.msra.mxu0 0.0
    %3068 = vmatpush.msra.mxu0 0.0
    %3069 = vmatpush.msra.mxu0 %v2986
    %3070 = vmatmul.f32.gmra.mxu0 %v2992
    %v3071 = vpop.f32.mrf.mxu0
    %v3072 = vadd.f32 0.0, %v3071
    %3073 = vdwg.mxu0
    %s3074 = scalar_lea.vmem %s1, 96
    %v3075 = vld [vmem:[%s3074] ss:$8 sm:$0xf]
    %v3077 = vperm.slane %v3075, 0
    %v3078 = vperm.slane %v3075, 1
    %v3079 = vperm.slane %v3075, 2
    %v3080 = vperm.slane %v3075, 3
    %v3085 = vmul.f32 %v3012, %v3077
    %v3086 = vmul.f32 %v3032, %v3078
    %v3087 = vmul.f32 %v3052, %v3079
    %v3088 = vmul.f32 %v3072, %v3080
    %v3089 = vadd.f32 %v2967, %v3085
    %v3090 = vadd.f32 %v2968, %v3086
    %v3091 = vadd.f32 %v2969, %v3087
    %v3092 = vadd.f32 %v2970, %v3088
    %s3093 = scalar_lea.vmem %s2, 100
    %v3094 = vld [vmem:[%s3093] sm:$0xf]
    %3095 = vrot.lane.b32.xlu0 %v1737, 56
    %v3096 = vpop.permute.xlu0 %3095
    %3097 = vrot.lane.b32.xlu0 %v1738, 56
    %v3098 = vpop.permute.xlu0 %3097
    %3099 = vrot.lane.b32.xlu0 %v1739, 56
    %v3100 = vpop.permute.xlu0 %3099
    %3101 = vrot.lane.b32.xlu0 %v1740, 56
    %v3102 = vpop.permute.xlu0 %3101
    %3103 = vrot.lane.b32.xlu0 %v1741, 56
    %v3104 = vpop.permute.xlu0 %3103
    %v3105 = vsel %vm923, %v3096, %v3098
    %v3106 = vsel %vm923, %v3098, %v3100
    %v3107 = vsel %vm923, %v3100, %v3102
    %v3108 = vsel %vm923, %v3102, %v3104
    %v3114 = vsel %vm71, %v3094, 0
    %3116 = vmatpush.msra.mxu0 0.0
    %3117 = vmatpush.msra.mxu0 0.0
    %3118 = vmatpush.msra.mxu0 0.0
    %3119 = vmatpush.msra.mxu0 0.0
    %3120 = vmatpush.msra.mxu0 0.0
    %3121 = vmatpush.msra.mxu0 0.0
    %3122 = vmatpush.msra.mxu0 0.0
    %3123 = vmatpush.msra.mxu0 0.0
    %3124 = vmatpush.msra.mxu0 0.0
    %3125 = vmatpush.msra.mxu0 0.0
    %3126 = vmatpush.msra.mxu0 0.0
    %3127 = vmatpush.msra.mxu0 0.0
    %3128 = vmatpush.msra.mxu0 0.0
    %3129 = vmatpush.msra.mxu0 0.0
    %3130 = vmatpush.msra.mxu0 0.0
    %3131 = vmatpush.msra.mxu0 %v3105
    %3132 = vmatmul.f32.gmra.mxu0 %v3114
    %v3133 = vpop.f32.mrf.mxu0
    %v3134 = vadd.f32 0.0, %v3133
    %3135 = vdwg.mxu0
    %3136 = vmatpush.msra.mxu0 0.0
    %3137 = vmatpush.msra.mxu0 0.0
    %3138 = vmatpush.msra.mxu0 0.0
    %3139 = vmatpush.msra.mxu0 0.0
    %3140 = vmatpush.msra.mxu0 0.0
    %3141 = vmatpush.msra.mxu0 0.0
    %3142 = vmatpush.msra.mxu0 0.0
    %3143 = vmatpush.msra.mxu0 0.0
    %3144 = vmatpush.msra.mxu0 0.0
    %3145 = vmatpush.msra.mxu0 0.0
    %3146 = vmatpush.msra.mxu0 0.0
    %3147 = vmatpush.msra.mxu0 0.0
    %3148 = vmatpush.msra.mxu0 0.0
    %3149 = vmatpush.msra.mxu0 0.0
    %3150 = vmatpush.msra.mxu0 0.0
    %3151 = vmatpush.msra.mxu0 %v3106
    %3152 = vmatmul.f32.gmra.mxu0 %v3114
    %v3153 = vpop.f32.mrf.mxu0
    %v3154 = vadd.f32 0.0, %v3153
    %3155 = vdwg.mxu0
    %3156 = vmatpush.msra.mxu0 0.0
    %3157 = vmatpush.msra.mxu0 0.0
    %3158 = vmatpush.msra.mxu0 0.0
    %3159 = vmatpush.msra.mxu0 0.0
    %3160 = vmatpush.msra.mxu0 0.0
    %3161 = vmatpush.msra.mxu0 0.0
    %3162 = vmatpush.msra.mxu0 0.0
    %3163 = vmatpush.msra.mxu0 0.0
    %3164 = vmatpush.msra.mxu0 0.0
    %3165 = vmatpush.msra.mxu0 0.0
    %3166 = vmatpush.msra.mxu0 0.0
    %3167 = vmatpush.msra.mxu0 0.0
    %3168 = vmatpush.msra.mxu0 0.0
    %3169 = vmatpush.msra.mxu0 0.0
    %3170 = vmatpush.msra.mxu0 0.0
    %3171 = vmatpush.msra.mxu0 %v3107
    %3172 = vmatmul.f32.gmra.mxu0 %v3114
    %v3173 = vpop.f32.mrf.mxu0
    %v3174 = vadd.f32 0.0, %v3173
    %3175 = vdwg.mxu0
    %3176 = vmatpush.msra.mxu0 0.0
    %3177 = vmatpush.msra.mxu0 0.0
    %3178 = vmatpush.msra.mxu0 0.0
    %3179 = vmatpush.msra.mxu0 0.0
    %3180 = vmatpush.msra.mxu0 0.0
    %3181 = vmatpush.msra.mxu0 0.0
    %3182 = vmatpush.msra.mxu0 0.0
    %3183 = vmatpush.msra.mxu0 0.0
    %3184 = vmatpush.msra.mxu0 0.0
    %3185 = vmatpush.msra.mxu0 0.0
    %3186 = vmatpush.msra.mxu0 0.0
    %3187 = vmatpush.msra.mxu0 0.0
    %3188 = vmatpush.msra.mxu0 0.0
    %3189 = vmatpush.msra.mxu0 0.0
    %3190 = vmatpush.msra.mxu0 0.0
    %3191 = vmatpush.msra.mxu0 %v3108
    %3192 = vmatmul.f32.gmra.mxu0 %v3114
    %v3193 = vpop.f32.mrf.mxu0
    %v3194 = vadd.f32 0.0, %v3193
    %3195 = vdwg.mxu0
    %s3196 = scalar_lea.vmem %s1, 97
    %v3197 = vld [vmem:[%s3196] ss:$8 sm:$0xf]
    %v3199 = vperm.slane %v3197, 0
    %v3200 = vperm.slane %v3197, 1
    %v3201 = vperm.slane %v3197, 2
    %v3202 = vperm.slane %v3197, 3
    %v3207 = vmul.f32 %v3134, %v3199
    %v3208 = vmul.f32 %v3154, %v3200
    %v3209 = vmul.f32 %v3174, %v3201
    %v3210 = vmul.f32 %v3194, %v3202
    %v3211 = vadd.f32 %v3089, %v3207
    %v3212 = vadd.f32 %v3090, %v3208
    %v3213 = vadd.f32 %v3091, %v3209
    %v3214 = vadd.f32 %v3092, %v3210
    %s3215 = scalar_lea.vmem %s2, 104
    %v3216 = vld [vmem:[%s3215] sm:$0xf]
    %3217 = vrot.lane.b32.xlu0 %v1737, 55
    %v3218 = vpop.permute.xlu0 %3217
    %3219 = vrot.lane.b32.xlu0 %v1738, 55
    %v3220 = vpop.permute.xlu0 %3219
    %3221 = vrot.lane.b32.xlu0 %v1739, 55
    %v3222 = vpop.permute.xlu0 %3221
    %3223 = vrot.lane.b32.xlu0 %v1740, 55
    %v3224 = vpop.permute.xlu0 %3223
    %3225 = vrot.lane.b32.xlu0 %v1741, 55
    %v3226 = vpop.permute.xlu0 %3225
    %v3227 = vsel %vm1046, %v3218, %v3220
    %v3228 = vsel %vm1046, %v3220, %v3222
    %v3229 = vsel %vm1046, %v3222, %v3224
    %v3230 = vsel %vm1046, %v3224, %v3226
    %v3236 = vsel %vm71, %v3216, 0
    %3238 = vmatpush.msra.mxu0 0.0
    %3239 = vmatpush.msra.mxu0 0.0
    %3240 = vmatpush.msra.mxu0 0.0
    %3241 = vmatpush.msra.mxu0 0.0
    %3242 = vmatpush.msra.mxu0 0.0
    %3243 = vmatpush.msra.mxu0 0.0
    %3244 = vmatpush.msra.mxu0 0.0
    %3245 = vmatpush.msra.mxu0 0.0
    %3246 = vmatpush.msra.mxu0 0.0
    %3247 = vmatpush.msra.mxu0 0.0
    %3248 = vmatpush.msra.mxu0 0.0
    %3249 = vmatpush.msra.mxu0 0.0
    %3250 = vmatpush.msra.mxu0 0.0
    %3251 = vmatpush.msra.mxu0 0.0
    %3252 = vmatpush.msra.mxu0 0.0
    %3253 = vmatpush.msra.mxu0 %v3227
    %3254 = vmatmul.f32.gmra.mxu0 %v3236
    %v3255 = vpop.f32.mrf.mxu0
    %v3256 = vadd.f32 0.0, %v3255
    %3257 = vdwg.mxu0
    %3258 = vmatpush.msra.mxu0 0.0
    %3259 = vmatpush.msra.mxu0 0.0
    %3260 = vmatpush.msra.mxu0 0.0
    %3261 = vmatpush.msra.mxu0 0.0
    %3262 = vmatpush.msra.mxu0 0.0
    %3263 = vmatpush.msra.mxu0 0.0
    %3264 = vmatpush.msra.mxu0 0.0
    %3265 = vmatpush.msra.mxu0 0.0
    %3266 = vmatpush.msra.mxu0 0.0
    %3267 = vmatpush.msra.mxu0 0.0
    %3268 = vmatpush.msra.mxu0 0.0
    %3269 = vmatpush.msra.mxu0 0.0
    %3270 = vmatpush.msra.mxu0 0.0
    %3271 = vmatpush.msra.mxu0 0.0
    %3272 = vmatpush.msra.mxu0 0.0
    %3273 = vmatpush.msra.mxu0 %v3228
    %3274 = vmatmul.f32.gmra.mxu0 %v3236
    %v3275 = vpop.f32.mrf.mxu0
    %v3276 = vadd.f32 0.0, %v3275
    %3277 = vdwg.mxu0
    %3278 = vmatpush.msra.mxu0 0.0
    %3279 = vmatpush.msra.mxu0 0.0
    %3280 = vmatpush.msra.mxu0 0.0
    %3281 = vmatpush.msra.mxu0 0.0
    %3282 = vmatpush.msra.mxu0 0.0
    %3283 = vmatpush.msra.mxu0 0.0
    %3284 = vmatpush.msra.mxu0 0.0
    %3285 = vmatpush.msra.mxu0 0.0
    %3286 = vmatpush.msra.mxu0 0.0
    %3287 = vmatpush.msra.mxu0 0.0
    %3288 = vmatpush.msra.mxu0 0.0
    %3289 = vmatpush.msra.mxu0 0.0
    %3290 = vmatpush.msra.mxu0 0.0
    %3291 = vmatpush.msra.mxu0 0.0
    %3292 = vmatpush.msra.mxu0 0.0
    %3293 = vmatpush.msra.mxu0 %v3229
    %3294 = vmatmul.f32.gmra.mxu0 %v3236
    %v3295 = vpop.f32.mrf.mxu0
    %v3296 = vadd.f32 0.0, %v3295
    %3297 = vdwg.mxu0
    %3298 = vmatpush.msra.mxu0 0.0
    %3299 = vmatpush.msra.mxu0 0.0
    %3300 = vmatpush.msra.mxu0 0.0
    %3301 = vmatpush.msra.mxu0 0.0
    %3302 = vmatpush.msra.mxu0 0.0
    %3303 = vmatpush.msra.mxu0 0.0
    %3304 = vmatpush.msra.mxu0 0.0
    %3305 = vmatpush.msra.mxu0 0.0
    %3306 = vmatpush.msra.mxu0 0.0
    %3307 = vmatpush.msra.mxu0 0.0
    %3308 = vmatpush.msra.mxu0 0.0
    %3309 = vmatpush.msra.mxu0 0.0
    %3310 = vmatpush.msra.mxu0 0.0
    %3311 = vmatpush.msra.mxu0 0.0
    %3312 = vmatpush.msra.mxu0 0.0
    %3313 = vmatpush.msra.mxu0 %v3230
    %3314 = vmatmul.f32.gmra.mxu0 %v3236
    %v3315 = vpop.f32.mrf.mxu0
    %v3316 = vadd.f32 0.0, %v3315
    %3317 = vdwg.mxu0
    %s3318 = scalar_lea.vmem %s1, 98
    %v3319 = vld [vmem:[%s3318] ss:$8 sm:$0xf]
    %v3321 = vperm.slane %v3319, 0
    %v3322 = vperm.slane %v3319, 1
    %v3323 = vperm.slane %v3319, 2
    %v3324 = vperm.slane %v3319, 3
    %v3329 = vmul.f32 %v3256, %v3321
    %v3330 = vmul.f32 %v3276, %v3322
    %v3331 = vmul.f32 %v3296, %v3323
    %v3332 = vmul.f32 %v3316, %v3324
    %v3333 = vadd.f32 %v3211, %v3329
    %v3334 = vadd.f32 %v3212, %v3330
    %v3335 = vadd.f32 %v3213, %v3331
    %v3336 = vadd.f32 %v3214, %v3332
    %v3337 = vld [vmem:[%s3] sm:$0xf]
    %3339 = vset.pattern.permute.xlu0 0
    %3340 = vperm.xlu0 %3339, %v3337
    %v3341 = vpop.permute.xlu0 %3340
    %v3343 = vadd.f32 %v3333, %v3341
    %v3344 = vadd.f32 %v3334, %v3341
    %v3345 = vadd.f32 %v3335, %v3341
    %v3346 = vadd.f32 %v3336, %v3341
    %vm3347 = vcmask 1043456
    %v3348 = vsel %vm3347, %v3343, 0.0
    %v3349 = vsel %vm3347, %v3344, 0.0
    %v3350 = vadd.f32 %v3348, %v3349
    %v3351 = vsel %vm3347, %v3345, 0.0
    %v3352 = vadd.f32 %v3350, %v3351
    %v3353 = vsel %vm3347, %v3346, 0.0
    %v3354 = vadd.f32 %v3352, %v3353
    %3355 = vadd.xlane.f32.xlu0 %v3354
    %v3356 = vpop.xlane.xlu0 %3355
    %v3357 = vmul.f32 %v3343, %v3343
    %v3358 = vmul.f32 %v3344, %v3344
    %v3359 = vmul.f32 %v3345, %v3345
    %v3360 = vmul.f32 %v3346, %v3346
    %v3361 = vsel %vm3347, %v3357, 0.0
    %v3362 = vsel %vm3347, %v3358, 0.0
    %v3363 = vadd.f32 %v3361, %v3362
    %v3364 = vsel %vm3347, %v3359, 0.0
    %v3365 = vadd.f32 %v3363, %v3364
    %v3366 = vsel %vm3347, %v3360, 0.0
    %v3367 = vadd.f32 %v3365, %v3366
    %3368 = vadd.xlane.f32.xlu0 %v3367
    %v3369 = vpop.xlane.xlu0 %3368
    %v3370 = vrcp.pop 512.0
    %v3371 = vmul.f32 512.0, %v3370
    %v3372 = vsub.f32 1.0, %v3371
    %v3373 = vmul.f32 %v3370, %v3372
    %v3374 = vadd.f32 %v3370, %v3373
    %vm3375 = vweird.f32 %v3370
    %v3376 = vsel %vm3375, %v3370, %v3374
    %v3377 = vmul.f32 %v3356, %v3376
    %v3378 = vmul.f32 %v3369, %v3376
    %v3379 = vmul.f32 %v3377, %v3377
    %v3380 = vsub.f32 %v3378, %v3379
    %v3381 = vld [vmem:[%s4] sm:$0xf]
    %v3382 = vadd.f32 %v3380, 1e-05
    %v3383 = vrsqrt.pop %v3382
    %v3384 = vmul.f32 %v3383, %v3382
    %v3385 = vmul.f32 %v3384, %v3383
    %v3386 = vmul.f32 0.5, %v3385
    %v3387 = vsub.f32 1.5, %v3386
    %v3388 = vmul.f32 %v3383, %v3387
    %vm3389 = vweird.f32 %v3382
    %vm3390 = vweird.f32 %v3383
    %vm3391 = vmor %vm3389, %vm3390
    %v3392 = vsel %vm3391, %v3383, %v3388
    %v3393 = vmul.f32 %v3381, %v3392
    %v3394 = vld [vmem:[%s5] sm:$0xf]
    %v3395 = vmul.f32 %v3377, %v3393
    %v3396 = vsub.f32 %v3394, %v3395
    %3398 = vset.pattern.permute.xlu0 0
    %3399 = vperm.xlu0 %3398, %v3393
    %v3400 = vpop.permute.xlu0 %3399
    %v3402 = vmul.f32 %v3343, %v3400
    %v3403 = vmul.f32 %v3344, %v3400
    %v3404 = vmul.f32 %v3345, %v3400
    %v3405 = vmul.f32 %v3346, %v3400
    %3407 = vset.pattern.permute.xlu0 0
    %3408 = vperm.xlu0 %3407, %v3396
    %v3409 = vpop.permute.xlu0 %3408
    %v3411 = vadd.f32 %v3402, %v3409
    %v3412 = vadd.f32 %v3403, %v3409
    %v3413 = vadd.f32 %v3404, %v3409
    %v3414 = vadd.f32 %v3405, %v3409
    %v3415 = vmax.f32 %v3411, 0.0
    %v3416 = vmax.f32 %v3412, 0.0
    %v3417 = vmax.f32 %v3413, 0.0
    %v3418 = vmax.f32 %v3414, 0.0
    %3419 = vst [vmem:[#allocation3] sm:$0xf] 0.0
    %3420 = vst [vmem:[#allocation3 + $0x14] sm:$0xf] 0.0
    %v3425 = vrot.slane %v3416, 4
    %v3426 = vrot.slane %v3418, 4
    %v3427 = vsel %vm3347, %v3415, %v3425
    %v3428 = vsel %vm3347, %v3417, %v3426
    %3431 = vst [vmem:[#allocation3 + $0x4] sm:$0xff] %v3427
    %3432 = vst [vmem:[#allocation3 + $0xc] sm:$0xff] %v3428
    %v3433 = vld [vmem:[#allocation3] sm:$0xff]
    %v3434 = vld [vmem:[#allocation3 + $0x8] sm:$0xff]
    %v3435 = vld [vmem:[#allocation3 + $0x10] sm:$0xf]
    %v3436 = vld [vmem:[%s1] ss:$8 sm:$0xf]
    %v3438 = vperm.slane %v3436, 0
    %v3439 = vperm.slane %v3436, 1
    %v3440 = vperm.slane %v3436, 2
    %v3441 = vperm.slane %v3436, 3
    %v3442 = vrot.slane %v3439, 4
    %v3443 = vrot.slane %v3441, 4
    %v3444 = vsel %vm3347, %v3438, %v3442
    %v3445 = vsel %vm3347, %v3440, %v3443
    %3446 = vrot.lane.b32.xlu0 %v3444, 55
    %v3447 = vpop.permute.xlu0 %3446
    %3448 = vrot.lane.b32.xlu0 %v3445, 55
    %v3449 = vpop.permute.xlu0 %3448
    %v3450 = vrot.slane %v3447, 4
    %v3451 = vrot.slane %v3449, 4
    %v3452 = vsel %vm1046, %v3450, %v3447
    %v3453 = vsel %vm3347, %v3450, %v3451
    %v3454 = vsel %vm1046, %v3453, %v3449
    %v3458 = vmul.f32 %v3433, %v3452
    %v3459 = vmul.f32 %v3434, %v3454
    %v3460 = vmul.f32 %v3435, %v3451
    %v3461 = vld [vmem:[%s6] sm:$0xff]
    %v3462 = vld [vmem:[%s277] ss:$8 sm:$0xf]
    %v3464 = vperm.slane %v3462, 0
    %v3465 = vperm.slane %v3462, 1
    %v3466 = vperm.slane %v3462, 2
    %v3467 = vperm.slane %v3462, 3
    %v3468 = vrot.slane %v3465, 4
    %v3469 = vrot.slane %v3467, 4
    %v3470 = vsel %vm3347, %v3464, %v3468
    %v3471 = vsel %vm3347, %v3466, %v3469
    %3472 = vrot.lane.b32.xlu0 %v3470, 56
    %v3473 = vpop.permute.xlu0 %3472
    %3474 = vrot.lane.b32.xlu0 %v3471, 56
    %v3475 = vpop.permute.xlu0 %3474
    %v3476 = vrot.slane %v3473, 4
    %v3477 = vrot.slane %v3475, 4
    %v3478 = vsel %vm923, %v3476, %v3473
    %v3479 = vsel %vm3347, %v3476, %v3477
    %v3480 = vsel %vm923, %v3479, %v3475
    %v3484 = vmul.f32 %v3433, %v3478
    %v3485 = vmul.f32 %v3434, %v3480
    %v3486 = vmul.f32 %v3435, %v3477
    %s3487 = scalar_lea.vmem %s6, 8
    %v3488 = vld [vmem:[%s3487] sm:$0xff]
    %3492 = vst [vmem:[#allocation1] ss:$2 sm:$0xff] %v3484
    %s3493 = scalar_lea.vmem [#allocation1], 16
    %3494 = vst [vmem:[%s3493] ss:$2 sm:$0xff] %v3485
    %s3495 = scalar_lea.vmem [#allocation1], 32
    %3496 = vst [vmem:[%s3495] ss:$2 sm:$0xff] %v3486
    %v3497 = vld.sshfl [vmem:[#allocation1] sm:$0xff pattern:$0x75316420]
    %v3498 = vld.sshfl [vmem:[#allocation1 + $0x8] sm:$0xff pattern:$0x75316420]
    %v3499 = vld.sshfl [vmem:[#allocation1 + $0x10] sm:$0xff pattern:$0x75316420]
    %v3500 = vld.sshfl [vmem:[#allocation1 + $0x18] sm:$0xff pattern:$0x75316420]
    %v3501 = vld.sshfl [vmem:[#allocation1 + $0x20] sm:$0xff pattern:$0x75316420]
    %3502 = vrot.lane.b32.xlu0 %v3497, 72
    %v3503 = vpop.permute.xlu0 %3502
    %3504 = vrot.lane.b32.xlu0 %v3498, 72
    %v3505 = vpop.permute.xlu0 %3504
    %3506 = vrot.lane.b32.xlu0 %v3499, 72
    %v3507 = vpop.permute.xlu0 %3506
    %3508 = vrot.lane.b32.xlu0 %v3500, 72
    %v3509 = vpop.permute.xlu0 %3508
    %3510 = vrot.lane.b32.xlu0 %v3501, 72
    %v3511 = vpop.permute.xlu0 %3510
    %v3512 = vsel %vm185, %v3503, %v3505
    %v3513 = vsel %vm185, %v3505, %v3507
    %v3514 = vsel %vm185, %v3507, %v3509
    %v3515 = vsel %vm185, %v3509, %v3511
    %vm3516 = vcmask 31744
    %v3518 = vsel %vm3516, %v3488, 0
    %v3520 = vsel %vm3347, %v3512, 0
    %v3522 = vsel %vm3347, %v3513, 0
    %v3524 = vsel %vm3347, %v3514, 0
    %v3526 = vsel %vm3347, %v3515, 0
    %3528 = vmatpush.msra.mxu0 0.0
    %3529 = vmatpush.msra.mxu0 0.0
    %3530 = vmatpush.msra.mxu0 0.0
    %3531 = vmatpush.msra.mxu0 0.0
    %3532 = vmatpush.msra.mxu0 0.0
    %3533 = vmatpush.msra.mxu0 0.0
    %3534 = vmatpush.msra.mxu0 0.0
    %3535 = vmatpush.msra.mxu0 0.0
    %3536 = vmatpush.msra.mxu0 0.0
    %3537 = vmatpush.msra.mxu0 0.0
    %3538 = vmatpush.msra.mxu0 0.0
    %3539 = vmatpush.msra.mxu0 0.0
    %3540 = vmatpush.msra.mxu0 0.0
    %3541 = vmatpush.msra.mxu0 0.0
    %3542 = vmatpush.msra.mxu0 0.0
    %3543 = vmatpush.msra.mxu0 %v3520
    %3544 = vmatmul.f32.gmra.mxu0 %v3518
    %v3545 = vpop.f32.mrf.mxu0
    %v3546 = vadd.f32 0.0, %v3545
    %3547 = vdwg.mxu0
    %3548 = vmatpush.msra.mxu0 0.0
    %3549 = vmatpush.msra.mxu0 0.0
    %3550 = vmatpush.msra.mxu0 0.0
    %3551 = vmatpush.msra.mxu0 0.0
    %3552 = vmatpush.msra.mxu0 0.0
    %3553 = vmatpush.msra.mxu0 0.0
    %3554 = vmatpush.msra.mxu0 0.0
    %3555 = vmatpush.msra.mxu0 0.0
    %3556 = vmatpush.msra.mxu0 0.0
    %3557 = vmatpush.msra.mxu0 0.0
    %3558 = vmatpush.msra.mxu0 0.0
    %3559 = vmatpush.msra.mxu0 0.0
    %3560 = vmatpush.msra.mxu0 0.0
    %3561 = vmatpush.msra.mxu0 0.0
    %3562 = vmatpush.msra.mxu0 0.0
    %3563 = vmatpush.msra.mxu0 %v3522
    %3564 = vmatmul.f32.gmra.mxu0 %v3518
    %v3565 = vpop.f32.mrf.mxu0
    %v3566 = vadd.f32 0.0, %v3565
    %3567 = vdwg.mxu0
    %3568 = vmatpush.msra.mxu0 0.0
    %3569 = vmatpush.msra.mxu0 0.0
    %3570 = vmatpush.msra.mxu0 0.0
    %3571 = vmatpush.msra.mxu0 0.0
    %3572 = vmatpush.msra.mxu0 0.0
    %3573 = vmatpush.msra.mxu0 0.0
    %3574 = vmatpush.msra.mxu0 0.0
    %3575 = vmatpush.msra.mxu0 0.0
    %3576 = vmatpush.msra.mxu0 0.0
    %3577 = vmatpush.msra.mxu0 0.0
    %3578 = vmatpush.msra.mxu0 0.0
    %3579 = vmatpush.msra.mxu0 0.0
    %3580 = vmatpush.msra.mxu0 0.0
    %3581 = vmatpush.msra.mxu0 0.0
    %3582 = vmatpush.msra.mxu0 0.0
    %3583 = vmatpush.msra.mxu0 %v3524
    %3584 = vmatmul.f32.gmra.mxu0 %v3518
    %v3585 = vpop.f32.mrf.mxu0
    %v3586 = vadd.f32 0.0, %v3585
    %3587 = vdwg.mxu0
    %3588 = vmatpush.msra.mxu0 0.0
    %3589 = vmatpush.msra.mxu0 0.0
    %3590 = vmatpush.msra.mxu0 0.0
    %3591 = vmatpush.msra.mxu0 0.0
    %3592 = vmatpush.msra.mxu0 0.0
    %3593 = vmatpush.msra.mxu0 0.0
    %3594 = vmatpush.msra.mxu0 0.0
    %3595 = vmatpush.msra.mxu0 0.0
    %3596 = vmatpush.msra.mxu0 0.0
    %3597 = vmatpush.msra.mxu0 0.0
    %3598 = vmatpush.msra.mxu0 0.0
    %3599 = vmatpush.msra.mxu0 0.0
    %3600 = vmatpush.msra.mxu0 0.0
    %3601 = vmatpush.msra.mxu0 0.0
    %3602 = vmatpush.msra.mxu0 0.0
    %3603 = vmatpush.msra.mxu0 %v3526
    %3604 = vmatmul.f32.gmra.mxu0 %v3518
    %v3605 = vpop.f32.mrf.mxu0
    %v3606 = vadd.f32 0.0, %v3605
    %3607 = vdwg.mxu0
    %3611 = vst [vmem:[#allocation1] ss:$2 sm:$0xff] %v3458
    %s3612 = scalar_lea.vmem [#allocation1], 16
    %3613 = vst [vmem:[%s3612] ss:$2 sm:$0xff] %v3459
    %s3614 = scalar_lea.vmem [#allocation1], 32
    %3615 = vst [vmem:[%s3614] ss:$2 sm:$0xff] %v3460
    %v3616 = vld.sshfl [vmem:[#allocation1] sm:$0xff pattern:$0x75316420]
    %v3617 = vld.sshfl [vmem:[#allocation1 + $0x8] sm:$0xff pattern:$0x75316420]
    %v3618 = vld.sshfl [vmem:[#allocation1 + $0x10] sm:$0xff pattern:$0x75316420]
    %v3619 = vld.sshfl [vmem:[#allocation1 + $0x18] sm:$0xff pattern:$0x75316420]
    %v3620 = vld.sshfl [vmem:[#allocation1 + $0x20] sm:$0xff pattern:$0x75316420]
    %3621 = vrot.lane.b32.xlu0 %v3616, 73
    %v3622 = vpop.permute.xlu0 %3621
    %3623 = vrot.lane.b32.xlu0 %v3617, 73
    %v3624 = vpop.permute.xlu0 %3623
    %3625 = vrot.lane.b32.xlu0 %v3618, 73
    %v3626 = vpop.permute.xlu0 %3625
    %3627 = vrot.lane.b32.xlu0 %v3619, 73
    %v3628 = vpop.permute.xlu0 %3627
    %3629 = vrot.lane.b32.xlu0 %v3620, 73
    %v3630 = vpop.permute.xlu0 %3629
    %v3631 = vsel %vm62, %v3622, %v3624
    %v3632 = vsel %vm62, %v3624, %v3626
    %v3633 = vsel %vm62, %v3626, %v3628
    %v3634 = vsel %vm62, %v3628, %v3630
    %v3636 = vsel %vm3516, %v3461, 0
    %v3638 = vsel %vm3347, %v3631, 0
    %v3640 = vsel %vm3347, %v3632, 0
    %v3642 = vsel %vm3347, %v3633, 0
    %v3644 = vsel %vm3347, %v3634, 0
    %3646 = vmatpush.msra.mxu0 0.0
    %3647 = vmatpush.msra.mxu0 0.0
    %3648 = vmatpush.msra.mxu0 0.0
    %3649 = vmatpush.msra.mxu0 0.0
    %3650 = vmatpush.msra.mxu0 0.0
    %3651 = vmatpush.msra.mxu0 0.0
    %3652 = vmatpush.msra.mxu0 0.0
    %3653 = vmatpush.msra.mxu0 0.0
    %3654 = vmatpush.msra.mxu0 0.0
    %3655 = vmatpush.msra.mxu0 0.0
    %3656 = vmatpush.msra.mxu0 0.0
    %3657 = vmatpush.msra.mxu0 0.0
    %3658 = vmatpush.msra.mxu0 0.0
    %3659 = vmatpush.msra.mxu0 0.0
    %3660 = vmatpush.msra.mxu0 0.0
    %3661 = vmatpush.msra.mxu0 %v3638
    %3662 = vmatmul.f32.gmra.mxu0 %v3636
    %v3663 = vpop.f32.mrf.mxu0
    %v3664 = vadd.f32 %v3546, %v3663
    %3665 = vdwg.mxu0
    %3666 = vmatpush.msra.mxu0 0.0
    %3667 = vmatpush.msra.mxu0 0.0
    %3668 = vmatpush.msra.mxu0 0.0
    %3669 = vmatpush.msra.mxu0 0.0
    %3670 = vmatpush.msra.mxu0 0.0
    %3671 = vmatpush.msra.mxu0 0.0
    %3672 = vmatpush.msra.mxu0 0.0
    %3673 = vmatpush.msra.mxu0 0.0
    %3674 = vmatpush.msra.mxu0 0.0
    %3675 = vmatpush.msra.mxu0 0.0
    %3676 = vmatpush.msra.mxu0 0.0
    %3677 = vmatpush.msra.mxu0 0.0
    %3678 = vmatpush.msra.mxu0 0.0
    %3679 = vmatpush.msra.mxu0 0.0
    %3680 = vmatpush.msra.mxu0 0.0
    %3681 = vmatpush.msra.mxu0 %v3640
    %3682 = vmatmul.f32.gmra.mxu0 %v3636
    %v3683 = vpop.f32.mrf.mxu0
    %v3684 = vadd.f32 %v3566, %v3683
    %3685 = vdwg.mxu0
    %3686 = vmatpush.msra.mxu0 0.0
    %3687 = vmatpush.msra.mxu0 0.0
    %3688 = vmatpush.msra.mxu0 0.0
    %3689 = vmatpush.msra.mxu0 0.0
    %3690 = vmatpush.msra.mxu0 0.0
    %3691 = vmatpush.msra.mxu0 0.0
    %3692 = vmatpush.msra.mxu0 0.0
    %3693 = vmatpush.msra.mxu0 0.0
    %3694 = vmatpush.msra.mxu0 0.0
    %3695 = vmatpush.msra.mxu0 0.0
    %3696 = vmatpush.msra.mxu0 0.0
    %3697 = vmatpush.msra.mxu0 0.0
    %3698 = vmatpush.msra.mxu0 0.0
    %3699 = vmatpush.msra.mxu0 0.0
    %3700 = vmatpush.msra.mxu0 0.0
    %3701 = vmatpush.msra.mxu0 %v3642
    %3702 = vmatmul.f32.gmra.mxu0 %v3636
    %v3703 = vpop.f32.mrf.mxu0
    %v3704 = vadd.f32 %v3586, %v3703
    %3705 = vdwg.mxu0
    %3706 = vmatpush.msra.mxu0 0.0
    %3707 = vmatpush.msra.mxu0 0.0
    %3708 = vmatpush.msra.mxu0 0.0
    %3709 = vmatpush.msra.mxu0 0.0
    %3710 = vmatpush.msra.mxu0 0.0
    %3711 = vmatpush.msra.mxu0 0.0
    %3712 = vmatpush.msra.mxu0 0.0
    %3713 = vmatpush.msra.mxu0 0.0
    %3714 = vmatpush.msra.mxu0 0.0
    %3715 = vmatpush.msra.mxu0 0.0
    %3716 = vmatpush.msra.mxu0 0.0
    %3717 = vmatpush.msra.mxu0 0.0
    %3718 = vmatpush.msra.mxu0 0.0
    %3719 = vmatpush.msra.mxu0 0.0
    %3720 = vmatpush.msra.mxu0 0.0
    %3721 = vmatpush.msra.mxu0 %v3644
    %3722 = vmatmul.f32.gmra.mxu0 %v3636
    %v3723 = vpop.f32.mrf.mxu0
    %v3724 = vadd.f32 %v3606, %v3723
    %3725 = vdwg.mxu0
    %v3726 = vld [vmem:[#allocation3] sm:$0xff]
    %v3727 = vld [vmem:[#allocation3 + $0x8] sm:$0xff]
    %v3728 = vld [vmem:[#allocation3 + $0x10] sm:$0xf]
    %v3729 = vld [vmem:[%s400] ss:$8 sm:$0xf]
    %v3731 = vperm.slane %v3729, 0
    %v3732 = vperm.slane %v3729, 1
    %v3733 = vperm.slane %v3729, 2
    %v3734 = vperm.slane %v3729, 3
    %v3735 = vrot.slane %v3732, 4
    %v3736 = vrot.slane %v3734, 4
    %v3737 = vsel %vm3347, %v3731, %v3735
    %v3738 = vsel %vm3347, %v3733, %v3736
    %3739 = vrot.lane.b32.xlu0 %v3737, 57
    %v3740 = vpop.permute.xlu0 %3739
    %3741 = vrot.lane.b32.xlu0 %v3738, 57
    %v3742 = vpop.permute.xlu0 %3741
    %v3743 = vrot.slane %v3740, 4
    %v3744 = vrot.slane %v3742, 4
    %v3745 = vsel %vm800, %v3743, %v3740
    %v3746 = vsel %vm3347, %v3743, %v3744
    %v3747 = vsel %vm800, %v3746, %v3742
    %v3751 = vmul.f32 %v3726, %v3745
    %v3752 = vmul.f32 %v3727, %v3747
    %v3753 = vmul.f32 %v3728, %v3744
    %s3754 = scalar_lea.vmem %s6, 16
    %v3755 = vld [vmem:[%s3754] sm:$0xff]
    %3759 = vst [vmem:[#allocation1] ss:$2 sm:$0xff] %v3751
    %s3760 = scalar_lea.vmem [#allocation1], 16
    %3761 = vst [vmem:[%s3760] ss:$2 sm:$0xff] %v3752
    %s3762 = scalar_lea.vmem [#allocation1], 32
    %3763 = vst [vmem:[%s3762] ss:$2 sm:$0xff] %v3753
    %v3764 = vld.sshfl [vmem:[#allocation1] sm:$0xff pattern:$0x75316420]
    %v3765 = vld.sshfl [vmem:[#allocation1 + $0x8] sm:$0xff pattern:$0x75316420]
    %v3766 = vld.sshfl [vmem:[#allocation1 + $0x10] sm:$0xff pattern:$0x75316420]
    %v3767 = vld.sshfl [vmem:[#allocation1 + $0x18] sm:$0xff pattern:$0x75316420]
    %v3768 = vld.sshfl [vmem:[#allocation1 + $0x20] sm:$0xff pattern:$0x75316420]
    %3769 = vrot.lane.b32.xlu0 %v3764, 71
    %v3770 = vpop.permute.xlu0 %3769
    %3771 = vrot.lane.b32.xlu0 %v3765, 71
    %v3772 = vpop.permute.xlu0 %3771
    %3773 = vrot.lane.b32.xlu0 %v3766, 71
    %v3774 = vpop.permute.xlu0 %3773
    %3775 = vrot.lane.b32.xlu0 %v3767, 71
    %v3776 = vpop.permute.xlu0 %3775
    %3777 = vrot.lane.b32.xlu0 %v3768, 71
    %v3778 = vpop.permute.xlu0 %3777
    %v3779 = vsel %vm308, %v3770, %v3772
    %v3780 = vsel %vm308, %v3772, %v3774
    %v3781 = vsel %vm308, %v3774, %v3776
    %v3782 = vsel %vm308, %v3776, %v3778
    %v3784 = vsel %vm3516, %v3755, 0
    %v3786 = vsel %vm3347, %v3779, 0
    %v3788 = vsel %vm3347, %v3780, 0
    %v3790 = vsel %vm3347, %v3781, 0
    %v3792 = vsel %vm3347, %v3782, 0
    %3794 = vmatpush.msra.mxu0 0.0
    %3795 = vmatpush.msra.mxu0 0.0
    %3796 = vmatpush.msra.mxu0 0.0
    %3797 = vmatpush.msra.mxu0 0.0
    %3798 = vmatpush.msra.mxu0 0.0
    %3799 = vmatpush.msra.mxu0 0.0
    %3800 = vmatpush.msra.mxu0 0.0
    %3801 = vmatpush.msra.mxu0 0.0
    %3802 = vmatpush.msra.mxu0 0.0
    %3803 = vmatpush.msra.mxu0 0.0
    %3804 = vmatpush.msra.mxu0 0.0
    %3805 = vmatpush.msra.mxu0 0.0
    %3806 = vmatpush.msra.mxu0 0.0
    %3807 = vmatpush.msra.mxu0 0.0
    %3808 = vmatpush.msra.mxu0 0.0
    %3809 = vmatpush.msra.mxu0 %v3786
    %3810 = vmatmul.f32.gmra.mxu0 %v3784
    %v3811 = vpop.f32.mrf.mxu0
    %v3812 = vadd.f32 0.0, %v3811
    %3813 = vdwg.mxu0
    %3814 = vmatpush.msra.mxu0 0.0
    %3815 = vmatpush.msra.mxu0 0.0
    %3816 = vmatpush.msra.mxu0 0.0
    %3817 = vmatpush.msra.mxu0 0.0
    %3818 = vmatpush.msra.mxu0 0.0
    %3819 = vmatpush.msra.mxu0 0.0
    %3820 = vmatpush.msra.mxu0 0.0
    %3821 = vmatpush.msra.mxu0 0.0
    %3822 = vmatpush.msra.mxu0 0.0
    %3823 = vmatpush.msra.mxu0 0.0
    %3824 = vmatpush.msra.mxu0 0.0
    %3825 = vmatpush.msra.mxu0 0.0
    %3826 = vmatpush.msra.mxu0 0.0
    %3827 = vmatpush.msra.mxu0 0.0
    %3828 = vmatpush.msra.mxu0 0.0
    %3829 = vmatpush.msra.mxu0 %v3788
    %3830 = vmatmul.f32.gmra.mxu0 %v3784
    %v3831 = vpop.f32.mrf.mxu0
    %v3832 = vadd.f32 0.0, %v3831
    %3833 = vdwg.mxu0
    %3834 = vmatpush.msra.mxu0 0.0
    %3835 = vmatpush.msra.mxu0 0.0
    %3836 = vmatpush.msra.mxu0 0.0
    %3837 = vmatpush.msra.mxu0 0.0
    %3838 = vmatpush.msra.mxu0 0.0
    %3839 = vmatpush.msra.mxu0 0.0
    %3840 = vmatpush.msra.mxu0 0.0
    %3841 = vmatpush.msra.mxu0 0.0
    %3842 = vmatpush.msra.mxu0 0.0
    %3843 = vmatpush.msra.mxu0 0.0
    %3844 = vmatpush.msra.mxu0 0.0
    %3845 = vmatpush.msra.mxu0 0.0
    %3846 = vmatpush.msra.mxu0 0.0
    %3847 = vmatpush.msra.mxu0 0.0
    %3848 = vmatpush.msra.mxu0 0.0
    %3849 = vmatpush.msra.mxu0 %v3790
    %3850 = vmatmul.f32.gmra.mxu0 %v3784
    %v3851 = vpop.f32.mrf.mxu0
    %v3852 = vadd.f32 0.0, %v3851
    %3853 = vdwg.mxu0
    %3854 = vmatpush.msra.mxu0 0.0
    %3855 = vmatpush.msra.mxu0 0.0
    %3856 = vmatpush.msra.mxu0 0.0
    %3857 = vmatpush.msra.mxu0 0.0
    %3858 = vmatpush.msra.mxu0 0.0
    %3859 = vmatpush.msra.mxu0 0.0
    %3860 = vmatpush.msra.mxu0 0.0
    %3861 = vmatpush.msra.mxu0 0.0
    %3862 = vmatpush.msra.mxu0 0.0
    %3863 = vmatpush.msra.mxu0 0.0
    %3864 = vmatpush.msra.mxu0 0.0
    %3865 = vmatpush.msra.mxu0 0.0
    %3866 = vmatpush.msra.mxu0 0.0
    %3867 = vmatpush.msra.mxu0 0.0
    %3868 = vmatpush.msra.mxu0 0.0
    %3869 = vmatpush.msra.mxu0 %v3792
    %3870 = vmatmul.f32.gmra.mxu0 %v3784
    %v3871 = vpop.f32.mrf.mxu0
    %v3872 = vadd.f32 0.0, %v3871
    %3873 = vdwg.mxu0
    %v3874 = vadd.f32 %v3664, %v3812
    %v3875 = vadd.f32 %v3684, %v3832
    %v3876 = vadd.f32 %v3704, %v3852
    %v3877 = vadd.f32 %v3724, %v3872
    %v3878 = vld [vmem:[#allocation3] sm:$0xff]
    %v3879 = vld [vmem:[#allocation3 + $0x8] sm:$0xff]
    %v3880 = vld [vmem:[#allocation3 + $0x10] sm:$0xf]
    %v3881 = vld [vmem:[%s523] ss:$8 sm:$0xf]
    %v3883 = vperm.slane %v3881, 0
    %v3884 = vperm.slane %v3881, 1
    %v3885 = vperm.slane %v3881, 2
    %v3886 = vperm.slane %v3881, 3
    %v3887 = vrot.slane %v3884, 4
    %v3888 = vrot.slane %v3886, 4
    %v3889 = vsel %vm3347, %v3883, %v3887
    %v3890 = vsel %vm3347, %v3885, %v3888
    %3891 = vrot.lane.b32.xlu0 %v3889, 63
    %v3892 = vpop.permute.xlu0 %3891
    %3893 = vrot.lane.b32.xlu0 %v3890, 63
    %v3894 = vpop.permute.xlu0 %3893
    %v3895 = vrot.slane %v3892, 4
    %v3896 = vrot.slane %v3894, 4
    %v3897 = vsel %vm677, %v3895, %v3892
    %v3898 = vsel %vm3347, %v3895, %v3896
    %v3899 = vsel %vm677, %v3898, %v3894
    %v3903 = vmul.f32 %v3878, %v3897
    %v3904 = vmul.f32 %v3879, %v3899
    %v3905 = vmul.f32 %v3880, %v3896
    %s3906 = scalar_lea.vmem %s6, 24
    %v3907 = vld [vmem:[%s3906] sm:$0xff]
    %3911 = vst [vmem:[#allocation1] ss:$2 sm:$0xff] %v3903
    %s3912 = scalar_lea.vmem [#allocation1], 16
    %3913 = vst [vmem:[%s3912] ss:$2 sm:$0xff] %v3904
    %s3914 = scalar_lea.vmem [#allocation1], 32
    %3915 = vst [vmem:[%s3914] ss:$2 sm:$0xff] %v3905
    %v3916 = vld.sshfl [vmem:[#allocation1] sm:$0xff pattern:$0x75316420]
    %v3917 = vld.sshfl [vmem:[#allocation1 + $0x8] sm:$0xff pattern:$0x75316420]
    %v3918 = vld.sshfl [vmem:[#allocation1 + $0x10] sm:$0xff pattern:$0x75316420]
    %v3919 = vld.sshfl [vmem:[#allocation1 + $0x18] sm:$0xff pattern:$0x75316420]
    %v3920 = vld.sshfl [vmem:[#allocation1 + $0x20] sm:$0xff pattern:$0x75316420]
    %3921 = vrot.lane.b32.xlu0 %v3916, 65
    %v3922 = vpop.permute.xlu0 %3921
    %3923 = vrot.lane.b32.xlu0 %v3917, 65
    %v3924 = vpop.permute.xlu0 %3923
    %3925 = vrot.lane.b32.xlu0 %v3918, 65
    %v3926 = vpop.permute.xlu0 %3925
    %3927 = vrot.lane.b32.xlu0 %v3919, 65
    %v3928 = vpop.permute.xlu0 %3927
    %3929 = vrot.lane.b32.xlu0 %v3920, 65
    %v3930 = vpop.permute.xlu0 %3929
    %v3931 = vsel %vm431, %v3922, %v3924
    %v3932 = vsel %vm431, %v3924, %v3926
    %v3933 = vsel %vm431, %v3926, %v3928
    %v3934 = vsel %vm431, %v3928, %v3930
    %v3936 = vsel %vm3516, %v3907, 0
    %v3938 = vsel %vm3347, %v3931, 0
    %v3940 = vsel %vm3347, %v3932, 0
    %v3942 = vsel %vm3347, %v3933, 0
    %v3944 = vsel %vm3347, %v3934, 0
    %3946 = vmatpush.msra.mxu0 0.0
    %3947 = vmatpush.msra.mxu0 0.0
    %3948 = vmatpush.msra.mxu0 0.0
    %3949 = vmatpush.msra.mxu0 0.0
    %3950 = vmatpush.msra.mxu0 0.0
    %3951 = vmatpush.msra.mxu0 0.0
    %3952 = vmatpush.msra.mxu0 0.0
    %3953 = vmatpush.msra.mxu0 0.0
    %3954 = vmatpush.msra.mxu0 0.0
    %3955 = vmatpush.msra.mxu0 0.0
    %3956 = vmatpush.msra.mxu0 0.0
    %3957 = vmatpush.msra.mxu0 0.0
    %3958 = vmatpush.msra.mxu0 0.0
    %3959 = vmatpush.msra.mxu0 0.0
    %3960 = vmatpush.msra.mxu0 0.0
    %3961 = vmatpush.msra.mxu0 %v3938
    %3962 = vmatmul.f32.gmra.mxu0 %v3936
    %v3963 = vpop.f32.mrf.mxu0
    %v3964 = vadd.f32 0.0, %v3963
    %3965 = vdwg.mxu0
    %3966 = vmatpush.msra.mxu0 0.0
    %3967 = vmatpush.msra.mxu0 0.0
    %3968 = vmatpush.msra.mxu0 0.0
    %3969 = vmatpush.msra.mxu0 0.0
    %3970 = vmatpush.msra.mxu0 0.0
    %3971 = vmatpush.msra.mxu0 0.0
    %3972 = vmatpush.msra.mxu0 0.0
    %3973 = vmatpush.msra.mxu0 0.0
    %3974 = vmatpush.msra.mxu0 0.0
    %3975 = vmatpush.msra.mxu0 0.0
    %3976 = vmatpush.msra.mxu0 0.0
    %3977 = vmatpush.msra.mxu0 0.0
    %3978 = vmatpush.msra.mxu0 0.0
    %3979 = vmatpush.msra.mxu0 0.0
    %3980 = vmatpush.msra.mxu0 0.0
    %3981 = vmatpush.msra.mxu0 %v3940
    %3982 = vmatmul.f32.gmra.mxu0 %v3936
    %v3983 = vpop.f32.mrf.mxu0
    %v3984 = vadd.f32 0.0, %v3983
    %3985 = vdwg.mxu0
    %3986 = vmatpush.msra.mxu0 0.0
    %3987 = vmatpush.msra.mxu0 0.0
    %3988 = vmatpush.msra.mxu0 0.0
    %3989 = vmatpush.msra.mxu0 0.0
    %3990 = vmatpush.msra.mxu0 0.0
    %3991 = vmatpush.msra.mxu0 0.0
    %3992 = vmatpush.msra.mxu0 0.0
    %3993 = vmatpush.msra.mxu0 0.0
    %3994 = vmatpush.msra.mxu0 0.0
    %3995 = vmatpush.msra.mxu0 0.0
    %3996 = vmatpush.msra.mxu0 0.0
    %3997 = vmatpush.msra.mxu0 0.0
    %3998 = vmatpush.msra.mxu0 0.0
    %3999 = vmatpush.msra.mxu0 0.0
    %4000 = vmatpush.msra.mxu0 0.0
    %4001 = vmatpush.msra.mxu0 %v3942
    %4002 = vmatmul.f32.gmra.mxu0 %v3936
    %v4003 = vpop.f32.mrf.mxu0
    %v4004 = vadd.f32 0.0, %v4003
    %4005 = vdwg.mxu0
    %4006 = vmatpush.msra.mxu0 0.0
    %4007 = vmatpush.msra.mxu0 0.0
    %4008 = vmatpush.msra.mxu0 0.0
    %4009 = vmatpush.msra.mxu0 0.0
    %4010 = vmatpush.msra.mxu0 0.0
    %4011 = vmatpush.msra.mxu0 0.0
    %4012 = vmatpush.msra.mxu0 0.0
    %4013 = vmatpush.msra.mxu0 0.0
    %4014 = vmatpush.msra.mxu0 0.0
    %4015 = vmatpush.msra.mxu0 0.0
    %4016 = vmatpush.msra.mxu0 0.0
    %4017 = vmatpush.msra.mxu0 0.0
    %4018 = vmatpush.msra.mxu0 0.0
    %4019 = vmatpush.msra.mxu0 0.0
    %4020 = vmatpush.msra.mxu0 0.0
    %4021 = vmatpush.msra.mxu0 %v3944
    %4022 = vmatmul.f32.gmra.mxu0 %v3936
    %v4023 = vpop.f32.mrf.mxu0
    %v4024 = vadd.f32 0.0, %v4023
    %4025 = vdwg.mxu0
    %v4026 = vadd.f32 %v3874, %v3964
    %v4027 = vadd.f32 %v3875, %v3984
    %v4028 = vadd.f32 %v3876, %v4004
    %v4029 = vadd.f32 %v3877, %v4024
    %v4030 = vld [vmem:[#allocation3] sm:$0xff]
    %v4031 = vld [vmem:[#allocation3 + $0x8] sm:$0xff]
    %v4032 = vld [vmem:[#allocation3 + $0x10] sm:$0xf]
    %v4033 = vld [vmem:[%s646] ss:$8 sm:$0xf]
    %v4035 = vperm.slane %v4033, 0
    %v4036 = vperm.slane %v4033, 1
    %v4037 = vperm.slane %v4033, 2
    %v4038 = vperm.slane %v4033, 3
    %v4039 = vrot.slane %v4036, 4
    %v4040 = vrot.slane %v4038, 4
    %v4041 = vsel %vm3347, %v4035, %v4039
    %v4042 = vsel %vm3347, %v4037, %v4040
    %4043 = vrot.lane.b32.xlu0 %v4041, 64
    %v4044 = vpop.permute.xlu0 %4043
    %4045 = vrot.lane.b32.xlu0 %v4042, 64
    %v4046 = vpop.permute.xlu0 %4045
    %v4047 = vrot.slane %v4044, 4
    %v4048 = vrot.slane %v4046, 4
    %v4049 = vsel %vm554, %v4047, %v4044
    %v4050 = vsel %vm3347, %v4047, %v4048
    %v4051 = vsel %vm554, %v4050, %v4046
    %v4055 = vmul.f32 %v4030, %v4049
    %v4056 = vmul.f32 %v4031, %v4051
    %v4057 = vmul.f32 %v4032, %v4048
    %s4058 = scalar_lea.vmem %s6, 32
    %v4059 = vld [vmem:[%s4058] sm:$0xff]
    %4063 = vst [vmem:[#allocation1] ss:$2 sm:$0xff] %v4055
    %s4064 = scalar_lea.vmem [#allocation1], 16
    %4065 = vst [vmem:[%s4064] ss:$2 sm:$0xff] %v4056
    %s4066 = scalar_lea.vmem [#allocation1], 32
    %4067 = vst [vmem:[%s4066] ss:$2 sm:$0xff] %v4057
    %v4068 = vld.sshfl [vmem:[#allocation1] sm:$0xff pattern:$0x75316420]
    %v4069 = vld.sshfl [vmem:[#allocation1 + $0x8] sm:$0xff pattern:$0x75316420]
    %v4070 = vld.sshfl [vmem:[#allocation1 + $0x10] sm:$0xff pattern:$0x75316420]
    %v4071 = vld.sshfl [vmem:[#allocation1 + $0x18] sm:$0xff pattern:$0x75316420]
    %v4072 = vld.sshfl [vmem:[#allocation1 + $0x20] sm:$0xff pattern:$0x75316420]
    %4073 = vrot.lane.b32.xlu0 %v4068, 64
    %v4074 = vpop.permute.xlu0 %4073
    %4075 = vrot.lane.b32.xlu0 %v4069, 64
    %v4076 = vpop.permute.xlu0 %4075
    %4077 = vrot.lane.b32.xlu0 %v4070, 64
    %v4078 = vpop.permute.xlu0 %4077
    %4079 = vrot.lane.b32.xlu0 %v4071, 64
    %v4080 = vpop.permute.xlu0 %4079
    %4081 = vrot.lane.b32.xlu0 %v4072, 64
    %v4082 = vpop.permute.xlu0 %4081
    %v4083 = vsel %vm554, %v4074, %v4076
    %v4084 = vsel %vm554, %v4076, %v4078
    %v4085 = vsel %vm554, %v4078, %v4080
    %v4086 = vsel %vm554, %v4080, %v4082
    %v4088 = vsel %vm3516, %v4059, 0
    %v4090 = vsel %vm3347, %v4083, 0
    %v4092 = vsel %vm3347, %v4084, 0
    %v4094 = vsel %vm3347, %v4085, 0
    %v4096 = vsel %vm3347, %v4086, 0
    %4098 = vmatpush.msra.mxu0 0.0
    %4099 = vmatpush.msra.mxu0 0.0
    %4100 = vmatpush.msra.mxu0 0.0
    %4101 = vmatpush.msra.mxu0 0.0
    %4102 = vmatpush.msra.mxu0 0.0
    %4103 = vmatpush.msra.mxu0 0.0
    %4104 = vmatpush.msra.mxu0 0.0
    %4105 = vmatpush.msra.mxu0 0.0
    %4106 = vmatpush.msra.mxu0 0.0
    %4107 = vmatpush.msra.mxu0 0.0
    %4108 = vmatpush.msra.mxu0 0.0
    %4109 = vmatpush.msra.mxu0 0.0
    %4110 = vmatpush.msra.mxu0 0.0
    %4111 = vmatpush.msra.mxu0 0.0
    %4112 = vmatpush.msra.mxu0 0.0
    %4113 = vmatpush.msra.mxu0 %v4090
    %4114 = vmatmul.f32.gmra.mxu0 %v4088
    %v4115 = vpop.f32.mrf.mxu0
    %v4116 = vadd.f32 0.0, %v4115
    %4117 = vdwg.mxu0
    %4118 = vmatpush.msra.mxu0 0.0
    %4119 = vmatpush.msra.mxu0 0.0
    %4120 = vmatpush.msra.mxu0 0.0
    %4121 = vmatpush.msra.mxu0 0.0
    %4122 = vmatpush.msra.mxu0 0.0
    %4123 = vmatpush.msra.mxu0 0.0
    %4124 = vmatpush.msra.mxu0 0.0
    %4125 = vmatpush.msra.mxu0 0.0
    %4126 = vmatpush.msra.mxu0 0.0
    %4127 = vmatpush.msra.mxu0 0.0
    %4128 = vmatpush.msra.mxu0 0.0
    %4129 = vmatpush.msra.mxu0 0.0
    %4130 = vmatpush.msra.mxu0 0.0
    %4131 = vmatpush.msra.mxu0 0.0
    %4132 = vmatpush.msra.mxu0 0.0
    %4133 = vmatpush.msra.mxu0 %v4092
    %4134 = vmatmul.f32.gmra.mxu0 %v4088
    %v4135 = vpop.f32.mrf.mxu0
    %v4136 = vadd.f32 0.0, %v4135
    %4137 = vdwg.mxu0
    %4138 = vmatpush.msra.mxu0 0.0
    %4139 = vmatpush.msra.mxu0 0.0
    %4140 = vmatpush.msra.mxu0 0.0
    %4141 = vmatpush.msra.mxu0 0.0
    %4142 = vmatpush.msra.mxu0 0.0
    %4143 = vmatpush.msra.mxu0 0.0
    %4144 = vmatpush.msra.mxu0 0.0
    %4145 = vmatpush.msra.mxu0 0.0
    %4146 = vmatpush.msra.mxu0 0.0
    %4147 = vmatpush.msra.mxu0 0.0
    %4148 = vmatpush.msra.mxu0 0.0
    %4149 = vmatpush.msra.mxu0 0.0
    %4150 = vmatpush.msra.mxu0 0.0
    %4151 = vmatpush.msra.mxu0 0.0
    %4152 = vmatpush.msra.mxu0 0.0
    %4153 = vmatpush.msra.mxu0 %v4094
    %4154 = vmatmul.f32.gmra.mxu0 %v4088
    %v4155 = vpop.f32.mrf.mxu0
    %v4156 = vadd.f32 0.0, %v4155
    %4157 = vdwg.mxu0
    %4158 = vmatpush.msra.mxu0 0.0
    %4159 = vmatpush.msra.mxu0 0.0
    %4160 = vmatpush.msra.mxu0 0.0
    %4161 = vmatpush.msra.mxu0 0.0
    %4162 = vmatpush.msra.mxu0 0.0
    %4163 = vmatpush.msra.mxu0 0.0
    %4164 = vmatpush.msra.mxu0 0.0
    %4165 = vmatpush.msra.mxu0 0.0
    %4166 = vmatpush.msra.mxu0 0.0
    %4167 = vmatpush.msra.mxu0 0.0
    %4168 = vmatpush.msra.mxu0 0.0
    %4169 = vmatpush.msra.mxu0 0.0
    %4170 = vmatpush.msra.mxu0 0.0
    %4171 = vmatpush.msra.mxu0 0.0
    %4172 = vmatpush.msra.mxu0 0.0
    %4173 = vmatpush.msra.mxu0 %v4096
    %4174 = vmatmul.f32.gmra.mxu0 %v4088
    %v4175 = vpop.f32.mrf.mxu0
    %v4176 = vadd.f32 0.0, %v4175
    %4177 = vdwg.mxu0
    %v4178 = vadd.f32 %v4026, %v4116
    %v4179 = vadd.f32 %v4027, %v4136
    %v4180 = vadd.f32 %v4028, %v4156
    %v4181 = vadd.f32 %v4029, %v4176
    %v4182 = vld [vmem:[#allocation3] sm:$0xff]
    %v4183 = vld [vmem:[#allocation3 + $0x8] sm:$0xff]
    %v4184 = vld [vmem:[#allocation3 + $0x10] sm:$0xf]
    %v4185 = vld [vmem:[%s769] ss:$8 sm:$0xf]
    %v4187 = vperm.slane %v4185, 0
    %v4188 = vperm.slane %v4185, 1
    %v4189 = vperm.slane %v4185, 2
    %v4190 = vperm.slane %v4185, 3
    %v4191 = vrot.slane %v4188, 4
    %v4192 = vrot.slane %v4190, 4
    %v4193 = vsel %vm3347, %v4187, %v4191
    %v4194 = vsel %vm3347, %v4189, %v4192
    %4195 = vrot.lane.b32.xlu0 %v4193, 65
    %v4196 = vpop.permute.xlu0 %4195
    %4197 = vrot.lane.b32.xlu0 %v4194, 65
    %v4198 = vpop.permute.xlu0 %4197
    %v4199 = vrot.slane %v4196, 4
    %v4200 = vrot.slane %v4198, 4
    %v4201 = vsel %vm431, %v4199, %v4196
    %v4202 = vsel %vm3347, %v4199, %v4200
    %v4203 = vsel %vm431, %v4202, %v4198
    %v4207 = vmul.f32 %v4182, %v4201
    %v4208 = vmul.f32 %v4183, %v4203
    %v4209 = vmul.f32 %v4184, %v4200
    %s4210 = scalar_lea.vmem %s6, 40
    %v4211 = vld [vmem:[%s4210] sm:$0xff]
    %4215 = vst [vmem:[#allocation1] ss:$2 sm:$0xff] %v4207
    %s4216 = scalar_lea.vmem [#allocation1], 16
    %4217 = vst [vmem:[%s4216] ss:$2 sm:$0xff] %v4208
    %s4218 = scalar_lea.vmem [#allocation1], 32
    %4219 = vst [vmem:[%s4218] ss:$2 sm:$0xff] %v4209
    %v4220 = vld.sshfl [vmem:[#allocation1] sm:$0xff pattern:$0x75316420]
    %v4221 = vld.sshfl [vmem:[#allocation1 + $0x8] sm:$0xff pattern:$0x75316420]
    %v4222 = vld.sshfl [vmem:[#allocation1 + $0x10] sm:$0xff pattern:$0x75316420]
    %v4223 = vld.sshfl [vmem:[#allocation1 + $0x18] sm:$0xff pattern:$0x75316420]
    %v4224 = vld.sshfl [vmem:[#allocation1 + $0x20] sm:$0xff pattern:$0x75316420]
    %4225 = vrot.lane.b32.xlu0 %v4220, 63
    %v4226 = vpop.permute.xlu0 %4225
    %4227 = vrot.lane.b32.xlu0 %v4221, 63
    %v4228 = vpop.permute.xlu0 %4227
    %4229 = vrot.lane.b32.xlu0 %v4222, 63
    %v4230 = vpop.permute.xlu0 %4229
    %4231 = vrot.lane.b32.xlu0 %v4223, 63
    %v4232 = vpop.permute.xlu0 %4231
    %4233 = vrot.lane.b32.xlu0 %v4224, 63
    %v4234 = vpop.permute.xlu0 %4233
    %v4235 = vsel %vm677, %v4226, %v4228
    %v4236 = vsel %vm677, %v4228, %v4230
    %v4237 = vsel %vm677, %v4230, %v4232
    %v4238 = vsel %vm677, %v4232, %v4234
    %v4240 = vsel %vm3516, %v4211, 0
    %v4242 = vsel %vm3347, %v4235, 0
    %v4244 = vsel %vm3347, %v4236, 0
    %v4246 = vsel %vm3347, %v4237, 0
    %v4248 = vsel %vm3347, %v4238, 0
    %4250 = vmatpush.msra.mxu0 0.0
    %4251 = vmatpush.msra.mxu0 0.0
    %4252 = vmatpush.msra.mxu0 0.0
    %4253 = vmatpush.msra.mxu0 0.0
    %4254 = vmatpush.msra.mxu0 0.0
    %4255 = vmatpush.msra.mxu0 0.0
    %4256 = vmatpush.msra.mxu0 0.0
    %4257 = vmatpush.msra.mxu0 0.0
    %4258 = vmatpush.msra.mxu0 0.0
    %4259 = vmatpush.msra.mxu0 0.0
    %4260 = vmatpush.msra.mxu0 0.0
    %4261 = vmatpush.msra.mxu0 0.0
    %4262 = vmatpush.msra.mxu0 0.0
    %4263 = vmatpush.msra.mxu0 0.0
    %4264 = vmatpush.msra.mxu0 0.0
    %4265 = vmatpush.msra.mxu0 %v4242
    %4266 = vmatmul.f32.gmra.mxu0 %v4240
    %v4267 = vpop.f32.mrf.mxu0
    %v4268 = vadd.f32 0.0, %v4267
    %4269 = vdwg.mxu0
    %4270 = vmatpush.msra.mxu0 0.0
    %4271 = vmatpush.msra.mxu0 0.0
    %4272 = vmatpush.msra.mxu0 0.0
    %4273 = vmatpush.msra.mxu0 0.0
    %4274 = vmatpush.msra.mxu0 0.0
    %4275 = vmatpush.msra.mxu0 0.0
    %4276 = vmatpush.msra.mxu0 0.0
    %4277 = vmatpush.msra.mxu0 0.0
    %4278 = vmatpush.msra.mxu0 0.0
    %4279 = vmatpush.msra.mxu0 0.0
    %4280 = vmatpush.msra.mxu0 0.0
    %4281 = vmatpush.msra.mxu0 0.0
    %4282 = vmatpush.msra.mxu0 0.0
    %4283 = vmatpush.msra.mxu0 0.0
    %4284 = vmatpush.msra.mxu0 0.0
    %4285 = vmatpush.msra.mxu0 %v4244
    %4286 = vmatmul.f32.gmra.mxu0 %v4240
    %v4287 = vpop.f32.mrf.mxu0
    %v4288 = vadd.f32 0.0, %v4287
    %4289 = vdwg.mxu0
    %4290 = vmatpush.msra.mxu0 0.0
    %4291 = vmatpush.msra.mxu0 0.0
    %4292 = vmatpush.msra.mxu0 0.0
    %4293 = vmatpush.msra.mxu0 0.0
    %4294 = vmatpush.msra.mxu0 0.0
    %4295 = vmatpush.msra.mxu0 0.0
    %4296 = vmatpush.msra.mxu0 0.0
    %4297 = vmatpush.msra.mxu0 0.0
    %4298 = vmatpush.msra.mxu0 0.0
    %4299 = vmatpush.msra.mxu0 0.0
    %4300 = vmatpush.msra.mxu0 0.0
    %4301 = vmatpush.msra.mxu0 0.0
    %4302 = vmatpush.msra.mxu0 0.0
    %4303 = vmatpush.msra.mxu0 0.0
    %4304 = vmatpush.msra.mxu0 0.0
    %4305 = vmatpush.msra.mxu0 %v4246
    %4306 = vmatmul.f32.gmra.mxu0 %v4240
    %v4307 = vpop.f32.mrf.mxu0
    %v4308 = vadd.f32 0.0, %v4307
    %4309 = vdwg.mxu0
    %4310 = vmatpush.msra.mxu0 0.0
    %4311 = vmatpush.msra.mxu0 0.0
    %4312 = vmatpush.msra.mxu0 0.0
    %4313 = vmatpush.msra.mxu0 0.0
    %4314 = vmatpush.msra.mxu0 0.0
    %4315 = vmatpush.msra.mxu0 0.0
    %4316 = vmatpush.msra.mxu0 0.0
    %4317 = vmatpush.msra.mxu0 0.0
    %4318 = vmatpush.msra.mxu0 0.0
    %4319 = vmatpush.msra.mxu0 0.0
    %4320 = vmatpush.msra.mxu0 0.0
    %4321 = vmatpush.msra.mxu0 0.0
    %4322 = vmatpush.msra.mxu0 0.0
    %4323 = vmatpush.msra.mxu0 0.0
    %4324 = vmatpush.msra.mxu0 0.0
    %4325 = vmatpush.msra.mxu0 %v4248
    %4326 = vmatmul.f32.gmra.mxu0 %v4240
    %v4327 = vpop.f32.mrf.mxu0
    %v4328 = vadd.f32 0.0, %v4327
    %4329 = vdwg.mxu0
    %v4330 = vadd.f32 %v4178, %v4268
    %v4331 = vadd.f32 %v4179, %v4288
    %v4332 = vadd.f32 %v4180, %v4308
    %v4333 = vadd.f32 %v4181, %v4328
    %v4334 = vld [vmem:[#allocation3] sm:$0xff]
    %v4335 = vld [vmem:[#allocation3 + $0x8] sm:$0xff]
    %v4336 = vld [vmem:[#allocation3 + $0x10] sm:$0xf]
    %v4337 = vld [vmem:[%s892] ss:$8 sm:$0xf]
    %v4339 = vperm.slane %v4337, 0
    %v4340 = vperm.slane %v4337, 1
    %v4341 = vperm.slane %v4337, 2
    %v4342 = vperm.slane %v4337, 3
    %v4343 = vrot.slane %v4340, 4
    %v4344 = vrot.slane %v4342, 4
    %v4345 = vsel %vm3347, %v4339, %v4343
    %v4346 = vsel %vm3347, %v4341, %v4344
    %4347 = vrot.lane.b32.xlu0 %v4345, 71
    %v4348 = vpop.permute.xlu0 %4347
    %4349 = vrot.lane.b32.xlu0 %v4346, 71
    %v4350 = vpop.permute.xlu0 %4349
    %v4351 = vrot.slane %v4348, 4
    %v4352 = vrot.slane %v4350, 4
    %v4353 = vsel %vm308, %v4351, %v4348
    %v4354 = vsel %vm3347, %v4351, %v4352
    %v4355 = vsel %vm308, %v4354, %v4350
    %v4359 = vmul.f32 %v4334, %v4353
    %v4360 = vmul.f32 %v4335, %v4355
    %v4361 = vmul.f32 %v4336, %v4352
    %s4362 = scalar_lea.vmem %s6, 48
    %v4363 = vld [vmem:[%s4362] sm:$0xff]
    %4367 = vst [vmem:[#allocation1] ss:$2 sm:$0xff] %v4359
    %s4368 = scalar_lea.vmem [#allocation1], 16
    %4369 = vst [vmem:[%s4368] ss:$2 sm:$0xff] %v4360
    %s4370 = scalar_lea.vmem [#allocation1], 32
    %4371 = vst [vmem:[%s4370] ss:$2 sm:$0xff] %v4361
    %v4372 = vld.sshfl [vmem:[#allocation1] sm:$0xff pattern:$0x75316420]
    %v4373 = vld.sshfl [vmem:[#allocation1 + $0x8] sm:$0xff pattern:$0x75316420]
    %v4374 = vld.sshfl [vmem:[#allocation1 + $0x10] sm:$0xff pattern:$0x75316420]
    %v4375 = vld.sshfl [vmem:[#allocation1 + $0x18] sm:$0xff pattern:$0x75316420]
    %v4376 = vld.sshfl [vmem:[#allocation1 + $0x20] sm:$0xff pattern:$0x75316420]
    %4377 = vrot.lane.b32.xlu0 %v4372, 57
    %v4378 = vpop.permute.xlu0 %4377
    %4379 = vrot.lane.b32.xlu0 %v4373, 57
    %v4380 = vpop.permute.xlu0 %4379
    %4381 = vrot.lane.b32.xlu0 %v4374, 57
    %v4382 = vpop.permute.xlu0 %4381
    %4383 = vrot.lane.b32.xlu0 %v4375, 57
    %v4384 = vpop.permute.xlu0 %4383
    %4385 = vrot.lane.b32.xlu0 %v4376, 57
    %v4386 = vpop.permute.xlu0 %4385
    %v4387 = vsel %vm800, %v4378, %v4380
    %v4388 = vsel %vm800, %v4380, %v4382
    %v4389 = vsel %vm800, %v4382, %v4384
    %v4390 = vsel %vm800, %v4384, %v4386
    %v4392 = vsel %vm3516, %v4363, 0
    %v4394 = vsel %vm3347, %v4387, 0
    %v4396 = vsel %vm3347, %v4388, 0
    %v4398 = vsel %vm3347, %v4389, 0
    %v4400 = vsel %vm3347, %v4390, 0
    %4402 = vmatpush.msra.mxu0 0.0
    %4403 = vmatpush.msra.mxu0 0.0
    %4404 = vmatpush.msra.mxu0 0.0
    %4405 = vmatpush.msra.mxu0 0.0
    %4406 = vmatpush.msra.mxu0 0.0
    %4407 = vmatpush.msra.mxu0 0.0
    %4408 = vmatpush.msra.mxu0 0.0
    %4409 = vmatpush.msra.mxu0 0.0
    %4410 = vmatpush.msra.mxu0 0.0
    %4411 = vmatpush.msra.mxu0 0.0
    %4412 = vmatpush.msra.mxu0 0.0
    %4413 = vmatpush.msra.mxu0 0.0
    %4414 = vmatpush.msra.mxu0 0.0
    %4415 = vmatpush.msra.mxu0 0.0
    %4416 = vmatpush.msra.mxu0 0.0
    %4417 = vmatpush.msra.mxu0 %v4394
    %4418 = vmatmul.f32.gmra.mxu0 %v4392
    %v4419 = vpop.f32.mrf.mxu0
    %v4420 = vadd.f32 0.0, %v4419
    %4421 = vdwg.mxu0
    %4422 = vmatpush.msra.mxu0 0.0
    %4423 = vmatpush.msra.mxu0 0.0
    %4424 = vmatpush.msra.mxu0 0.0
    %4425 = vmatpush.msra.mxu0 0.0
    %4426 = vmatpush.msra.mxu0 0.0
    %4427 = vmatpush.msra.mxu0 0.0
    %4428 = vmatpush.msra.mxu0 0.0
    %4429 = vmatpush.msra.mxu0 0.0
    %4430 = vmatpush.msra.mxu0 0.0
    %4431 = vmatpush.msra.mxu0 0.0
    %4432 = vmatpush.msra.mxu0 0.0
    %4433 = vmatpush.msra.mxu0 0.0
    %4434 = vmatpush.msra.mxu0 0.0
    %4435 = vmatpush.msra.mxu0 0.0
    %4436 = vmatpush.msra.mxu0 0.0
    %4437 = vmatpush.msra.mxu0 %v4396
    %4438 = vmatmul.f32.gmra.mxu0 %v4392
    %v4439 = vpop.f32.mrf.mxu0
    %v4440 = vadd.f32 0.0, %v4439
    %4441 = vdwg.mxu0
    %4442 = vmatpush.msra.mxu0 0.0
    %4443 = vmatpush.msra.mxu0 0.0
    %4444 = vmatpush.msra.mxu0 0.0
    %4445 = vmatpush.msra.mxu0 0.0
    %4446 = vmatpush.msra.mxu0 0.0
    %4447 = vmatpush.msra.mxu0 0.0
    %4448 = vmatpush.msra.mxu0 0.0
    %4449 = vmatpush.msra.mxu0 0.0
    %4450 = vmatpush.msra.mxu0 0.0
    %4451 = vmatpush.msra.mxu0 0.0
    %4452 = vmatpush.msra.mxu0 0.0
    %4453 = vmatpush.msra.mxu0 0.0
    %4454 = vmatpush.msra.mxu0 0.0
    %4455 = vmatpush.msra.mxu0 0.0
    %4456 = vmatpush.msra.mxu0 0.0
    %4457 = vmatpush.msra.mxu0 %v4398
    %4458 = vmatmul.f32.gmra.mxu0 %v4392
    %v4459 = vpop.f32.mrf.mxu0
    %v4460 = vadd.f32 0.0, %v4459
    %4461 = vdwg.mxu0
    %4462 = vmatpush.msra.mxu0 0.0
    %4463 = vmatpush.msra.mxu0 0.0
    %4464 = vmatpush.msra.mxu0 0.0
    %4465 = vmatpush.msra.mxu0 0.0
    %4466 = vmatpush.msra.mxu0 0.0
    %4467 = vmatpush.msra.mxu0 0.0
    %4468 = vmatpush.msra.mxu0 0.0
    %4469 = vmatpush.msra.mxu0 0.0
    %4470 = vmatpush.msra.mxu0 0.0
    %4471 = vmatpush.msra.mxu0 0.0
    %4472 = vmatpush.msra.mxu0 0.0
    %4473 = vmatpush.msra.mxu0 0.0
    %4474 = vmatpush.msra.mxu0 0.0
    %4475 = vmatpush.msra.mxu0 0.0
    %4476 = vmatpush.msra.mxu0 0.0
    %4477 = vmatpush.msra.mxu0 %v4400
    %4478 = vmatmul.f32.gmra.mxu0 %v4392
    %v4479 = vpop.f32.mrf.mxu0
    %v4480 = vadd.f32 0.0, %v4479
    %4481 = vdwg.mxu0
    %v4482 = vadd.f32 %v4330, %v4420
    %v4483 = vadd.f32 %v4331, %v4440
    %v4484 = vadd.f32 %v4332, %v4460
    %v4485 = vadd.f32 %v4333, %v4480
    %v4486 = vld [vmem:[#allocation3] sm:$0xff]
    %v4487 = vld [vmem:[#allocation3 + $0x8] sm:$0xff]
    %v4488 = vld [vmem:[#allocation3 + $0x10] sm:$0xf]
    %v4489 = vld [vmem:[%s1015] ss:$8 sm:$0xf]
    %v4491 = vperm.slane %v4489, 0
    %v4492 = vperm.slane %v4489, 1
    %v4493 = vperm.slane %v4489, 2
    %v4494 = vperm.slane %v4489, 3
    %v4495 = vrot.slane %v4492, 4
    %v4496 = vrot.slane %v4494, 4
    %v4497 = vsel %vm3347, %v4491, %v4495
    %v4498 = vsel %vm3347, %v4493, %v4496
    %4499 = vrot.lane.b32.xlu0 %v4497, 72
    %v4500 = vpop.permute.xlu0 %4499
    %4501 = vrot.lane.b32.xlu0 %v4498, 72
    %v4502 = vpop.permute.xlu0 %4501
    %v4503 = vrot.slane %v4500, 4
    %v4504 = vrot.slane %v4502, 4
    %v4505 = vsel %vm185, %v4503, %v4500
    %v4506 = vsel %vm3347, %v4503, %v4504
    %v4507 = vsel %vm185, %v4506, %v4502
    %v4511 = vmul.f32 %v4486, %v4505
    %v4512 = vmul.f32 %v4487, %v4507
    %v4513 = vmul.f32 %v4488, %v4504
    %s4514 = scalar_lea.vmem %s6, 56
    %v4515 = vld [vmem:[%s4514] sm:$0xff]
    %4519 = vst [vmem:[#allocation1] ss:$2 sm:$0xff] %v4511
    %s4520 = scalar_lea.vmem [#allocation1], 16
    %4521 = vst [vmem:[%s4520] ss:$2 sm:$0xff] %v4512
    %s4522 = scalar_lea.vmem [#allocation1], 32
    %4523 = vst [vmem:[%s4522] ss:$2 sm:$0xff] %v4513
    %v4524 = vld.sshfl [vmem:[#allocation1] sm:$0xff pattern:$0x75316420]
    %v4525 = vld.sshfl [vmem:[#allocation1 + $0x8] sm:$0xff pattern:$0x75316420]
    %v4526 = vld.sshfl [vmem:[#allocation1 + $0x10] sm:$0xff pattern:$0x75316420]
    %v4527 = vld.sshfl [vmem:[#allocation1 + $0x18] sm:$0xff pattern:$0x75316420]
    %v4528 = vld.sshfl [vmem:[#allocation1 + $0x20] sm:$0xff pattern:$0x75316420]
    %4529 = vrot.lane.b32.xlu0 %v4524, 56
    %v4530 = vpop.permute.xlu0 %4529
    %4531 = vrot.lane.b32.xlu0 %v4525, 56
    %v4532 = vpop.permute.xlu0 %4531
    %4533 = vrot.lane.b32.xlu0 %v4526, 56
    %v4534 = vpop.permute.xlu0 %4533
    %4535 = vrot.lane.b32.xlu0 %v4527, 56
    %v4536 = vpop.permute.xlu0 %4535
    %4537 = vrot.lane.b32.xlu0 %v4528, 56
    %v4538 = vpop.permute.xlu0 %4537
    %v4539 = vsel %vm923, %v4530, %v4532
    %v4540 = vsel %vm923, %v4532, %v4534
    %v4541 = vsel %vm923, %v4534, %v4536
    %v4542 = vsel %vm923, %v4536, %v4538
    %v4544 = vsel %vm3516, %v4515, 0
    %v4546 = vsel %vm3347, %v4539, 0
    %v4548 = vsel %vm3347, %v4540, 0
    %v4550 = vsel %vm3347, %v4541, 0
    %v4552 = vsel %vm3347, %v4542, 0
    %4554 = vmatpush.msra.mxu0 0.0
    %4555 = vmatpush.msra.mxu0 0.0
    %4556 = vmatpush.msra.mxu0 0.0
    %4557 = vmatpush.msra.mxu0 0.0
    %4558 = vmatpush.msra.mxu0 0.0
    %4559 = vmatpush.msra.mxu0 0.0
    %4560 = vmatpush.msra.mxu0 0.0
    %4561 = vmatpush.msra.mxu0 0.0
    %4562 = vmatpush.msra.mxu0 0.0
    %4563 = vmatpush.msra.mxu0 0.0
    %4564 = vmatpush.msra.mxu0 0.0
    %4565 = vmatpush.msra.mxu0 0.0
    %4566 = vmatpush.msra.mxu0 0.0
    %4567 = vmatpush.msra.mxu0 0.0
    %4568 = vmatpush.msra.mxu0 0.0
    %4569 = vmatpush.msra.mxu0 %v4546
    %4570 = vmatmul.f32.gmra.mxu0 %v4544
    %v4571 = vpop.f32.mrf.mxu0
    %v4572 = vadd.f32 0.0, %v4571
    %4573 = vdwg.mxu0
    %4574 = vmatpush.msra.mxu0 0.0
    %4575 = vmatpush.msra.mxu0 0.0
    %4576 = vmatpush.msra.mxu0 0.0
    %4577 = vmatpush.msra.mxu0 0.0
    %4578 = vmatpush.msra.mxu0 0.0
    %4579 = vmatpush.msra.mxu0 0.0
    %4580 = vmatpush.msra.mxu0 0.0
    %4581 = vmatpush.msra.mxu0 0.0
    %4582 = vmatpush.msra.mxu0 0.0
    %4583 = vmatpush.msra.mxu0 0.0
    %4584 = vmatpush.msra.mxu0 0.0
    %4585 = vmatpush.msra.mxu0 0.0
    %4586 = vmatpush.msra.mxu0 0.0
    %4587 = vmatpush.msra.mxu0 0.0
    %4588 = vmatpush.msra.mxu0 0.0
    %4589 = vmatpush.msra.mxu0 %v4548
    %4590 = vmatmul.f32.gmra.mxu0 %v4544
    %v4591 = vpop.f32.mrf.mxu0
    %v4592 = vadd.f32 0.0, %v4591
    %4593 = vdwg.mxu0
    %4594 = vmatpush.msra.mxu0 0.0
    %4595 = vmatpush.msra.mxu0 0.0
    %4596 = vmatpush.msra.mxu0 0.0
    %4597 = vmatpush.msra.mxu0 0.0
    %4598 = vmatpush.msra.mxu0 0.0
    %4599 = vmatpush.msra.mxu0 0.0
    %4600 = vmatpush.msra.mxu0 0.0
    %4601 = vmatpush.msra.mxu0 0.0
    %4602 = vmatpush.msra.mxu0 0.0
    %4603 = vmatpush.msra.mxu0 0.0
    %4604 = vmatpush.msra.mxu0 0.0
    %4605 = vmatpush.msra.mxu0 0.0
    %4606 = vmatpush.msra.mxu0 0.0
    %4607 = vmatpush.msra.mxu0 0.0
    %4608 = vmatpush.msra.mxu0 0.0
    %4609 = vmatpush.msra.mxu0 %v4550
    %4610 = vmatmul.f32.gmra.mxu0 %v4544
    %v4611 = vpop.f32.mrf.mxu0
    %v4612 = vadd.f32 0.0, %v4611
    %4613 = vdwg.mxu0
    %4614 = vmatpush.msra.mxu0 0.0
    %4615 = vmatpush.msra.mxu0 0.0
    %4616 = vmatpush.msra.mxu0 0.0
    %4617 = vmatpush.msra.mxu0 0.0
    %4618 = vmatpush.msra.mxu0 0.0
    %4619 = vmatpush.msra.mxu0 0.0
    %4620 = vmatpush.msra.mxu0 0.0
    %4621 = vmatpush.msra.mxu0 0.0
    %4622 = vmatpush.msra.mxu0 0.0
    %4623 = vmatpush.msra.mxu0 0.0
    %4624 = vmatpush.msra.mxu0 0.0
    %4625 = vmatpush.msra.mxu0 0.0
    %4626 = vmatpush.msra.mxu0 0.0
    %4627 = vmatpush.msra.mxu0 0.0
    %4628 = vmatpush.msra.mxu0 0.0
    %4629 = vmatpush.msra.mxu0 %v4552
    %4630 = vmatmul.f32.gmra.mxu0 %v4544
    %v4631 = vpop.f32.mrf.mxu0
    %v4632 = vadd.f32 0.0, %v4631
    %4633 = vdwg.mxu0
    %v4634 = vadd.f32 %v4482, %v4572
    %v4635 = vadd.f32 %v4483, %v4592
    %v4636 = vadd.f32 %v4484, %v4612
    %v4637 = vadd.f32 %v4485, %v4632
    %v4638 = vld [vmem:[#allocation3] sm:$0xff]
    %v4639 = vld [vmem:[#allocation3 + $0x8] sm:$0xff]
    %v4640 = vld [vmem:[#allocation3 + $0x10] sm:$0xf]
    %v4641 = vld [vmem:[%s1138] ss:$8 sm:$0xf]
    %v4643 = vperm.slane %v4641, 0
    %v4644 = vperm.slane %v4641, 1
    %v4645 = vperm.slane %v4641, 2
    %v4646 = vperm.slane %v4641, 3
    %v4647 = vrot.slane %v4644, 4
    %v4648 = vrot.slane %v4646, 4
    %v4649 = vsel %vm3347, %v4643, %v4647
    %v4650 = vsel %vm3347, %v4645, %v4648
    %4651 = vrot.lane.b32.xlu0 %v4649, 73
    %v4652 = vpop.permute.xlu0 %4651
    %4653 = vrot.lane.b32.xlu0 %v4650, 73
    %v4654 = vpop.permute.xlu0 %4653
    %v4655 = vrot.slane %v4652, 4
    %v4656 = vrot.slane %v4654, 4
    %v4657 = vsel %vm62, %v4655, %v4652
    %v4658 = vsel %vm3347, %v4655, %v4656
    %v4659 = vsel %vm62, %v4658, %v4654
    %v4663 = vmul.f32 %v4638, %v4657
    %v4664 = vmul.f32 %v4639, %v4659
    %v4665 = vmul.f32 %v4640, %v4656
    %s4666 = scalar_lea.vmem %s6, 64
    %v4667 = vld [vmem:[%s4666] sm:$0xff]
    %4671 = vst [vmem:[#allocation1] ss:$2 sm:$0xff] %v4663
    %s4672 = scalar_lea.vmem [#allocation1], 16
    %4673 = vst [vmem:[%s4672] ss:$2 sm:$0xff] %v4664
    %s4674 = scalar_lea.vmem [#allocation1], 32
    %4675 = vst [vmem:[%s4674] ss:$2 sm:$0xff] %v4665
    %v4676 = vld.sshfl [vmem:[#allocation1] sm:$0xff pattern:$0x75316420]
    %v4677 = vld.sshfl [vmem:[#allocation1 + $0x8] sm:$0xff pattern:$0x75316420]
    %v4678 = vld.sshfl [vmem:[#allocation1 + $0x10] sm:$0xff pattern:$0x75316420]
    %v4679 = vld.sshfl [vmem:[#allocation1 + $0x18] sm:$0xff pattern:$0x75316420]
    %v4680 = vld.sshfl [vmem:[#allocation1 + $0x20] sm:$0xff pattern:$0x75316420]
    %4681 = vrot.lane.b32.xlu0 %v4676, 55
    %v4682 = vpop.permute.xlu0 %4681
    %4683 = vrot.lane.b32.xlu0 %v4677, 55
    %v4684 = vpop.permute.xlu0 %4683
    %4685 = vrot.lane.b32.xlu0 %v4678, 55
    %v4686 = vpop.permute.xlu0 %4685
    %4687 = vrot.lane.b32.xlu0 %v4679, 55
    %v4688 = vpop.permute.xlu0 %4687
    %4689 = vrot.lane.b32.xlu0 %v4680, 55
    %v4690 = vpop.permute.xlu0 %4689
    %v4691 = vsel %vm1046, %v4682, %v4684
    %v4692 = vsel %vm1046, %v4684, %v4686
    %v4693 = vsel %vm1046, %v4686, %v4688
    %v4694 = vsel %vm1046, %v4688, %v4690
    %v4696 = vsel %vm3516, %v4667, 0
    %v4698 = vsel %vm3347, %v4691, 0
    %v4700 = vsel %vm3347, %v4692, 0
    %v4702 = vsel %vm3347, %v4693, 0
    %v4704 = vsel %vm3347, %v4694, 0
    %4706 = vmatpush.msra.mxu0 0.0
    %4707 = vmatpush.msra.mxu0 0.0
    %4708 = vmatpush.msra.mxu0 0.0
    %4709 = vmatpush.msra.mxu0 0.0
    %4710 = vmatpush.msra.mxu0 0.0
    %4711 = vmatpush.msra.mxu0 0.0
    %4712 = vmatpush.msra.mxu0 0.0
    %4713 = vmatpush.msra.mxu0 0.0
    %4714 = vmatpush.msra.mxu0 0.0
    %4715 = vmatpush.msra.mxu0 0.0
    %4716 = vmatpush.msra.mxu0 0.0
    %4717 = vmatpush.msra.mxu0 0.0
    %4718 = vmatpush.msra.mxu0 0.0
    %4719 = vmatpush.msra.mxu0 0.0
    %4720 = vmatpush.msra.mxu0 0.0
    %4721 = vmatpush.msra.mxu0 %v4698
    %4722 = vmatmul.f32.gmra.mxu0 %v4696
    %v4723 = vpop.f32.mrf.mxu0
    %v4724 = vadd.f32 0.0, %v4723
    %4725 = vdwg.mxu0
    %4726 = vmatpush.msra.mxu0 0.0
    %4727 = vmatpush.msra.mxu0 0.0
    %4728 = vmatpush.msra.mxu0 0.0
    %4729 = vmatpush.msra.mxu0 0.0
    %4730 = vmatpush.msra.mxu0 0.0
    %4731 = vmatpush.msra.mxu0 0.0
    %4732 = vmatpush.msra.mxu0 0.0
    %4733 = vmatpush.msra.mxu0 0.0
    %4734 = vmatpush.msra.mxu0 0.0
    %4735 = vmatpush.msra.mxu0 0.0
    %4736 = vmatpush.msra.mxu0 0.0
    %4737 = vmatpush.msra.mxu0 0.0
    %4738 = vmatpush.msra.mxu0 0.0
    %4739 = vmatpush.msra.mxu0 0.0
    %4740 = vmatpush.msra.mxu0 0.0
    %4741 = vmatpush.msra.mxu0 %v4700
    %4742 = vmatmul.f32.gmra.mxu0 %v4696
    %v4743 = vpop.f32.mrf.mxu0
    %v4744 = vadd.f32 0.0, %v4743
    %4745 = vdwg.mxu0
    %4746 = vmatpush.msra.mxu0 0.0
    %4747 = vmatpush.msra.mxu0 0.0
    %4748 = vmatpush.msra.mxu0 0.0
    %4749 = vmatpush.msra.mxu0 0.0
    %4750 = vmatpush.msra.mxu0 0.0
    %4751 = vmatpush.msra.mxu0 0.0
    %4752 = vmatpush.msra.mxu0 0.0
    %4753 = vmatpush.msra.mxu0 0.0
    %4754 = vmatpush.msra.mxu0 0.0
    %4755 = vmatpush.msra.mxu0 0.0
    %4756 = vmatpush.msra.mxu0 0.0
    %4757 = vmatpush.msra.mxu0 0.0
    %4758 = vmatpush.msra.mxu0 0.0
    %4759 = vmatpush.msra.mxu0 0.0
    %4760 = vmatpush.msra.mxu0 0.0
    %4761 = vmatpush.msra.mxu0 %v4702
    %4762 = vmatmul.f32.gmra.mxu0 %v4696
    %v4763 = vpop.f32.mrf.mxu0
    %v4764 = vadd.f32 0.0, %v4763
    %4765 = vdwg.mxu0
    %4766 = vmatpush.msra.mxu0 0.0
    %4767 = vmatpush.msra.mxu0 0.0
    %4768 = vmatpush.msra.mxu0 0.0
    %4769 = vmatpush.msra.mxu0 0.0
    %4770 = vmatpush.msra.mxu0 0.0
    %4771 = vmatpush.msra.mxu0 0.0
    %4772 = vmatpush.msra.mxu0 0.0
    %4773 = vmatpush.msra.mxu0 0.0
    %4774 = vmatpush.msra.mxu0 0.0
    %4775 = vmatpush.msra.mxu0 0.0
    %4776 = vmatpush.msra.mxu0 0.0
    %4777 = vmatpush.msra.mxu0 0.0
    %4778 = vmatpush.msra.mxu0 0.0
    %4779 = vmatpush.msra.mxu0 0.0
    %4780 = vmatpush.msra.mxu0 0.0
    %4781 = vmatpush.msra.mxu0 %v4704
    %4782 = vmatmul.f32.gmra.mxu0 %v4696
    %v4783 = vpop.f32.mrf.mxu0
    %v4784 = vadd.f32 0.0, %v4783
    %4785 = vdwg.mxu0
    %v4786 = vadd.f32 %v4634, %v4724
    %v4787 = vadd.f32 %v4635, %v4744
    %v4788 = vadd.f32 %v4636, %v4764
    %v4789 = vadd.f32 %v4637, %v4784
    %v4790 = vld [vmem:[#allocation3] sm:$0xff]
    %v4791 = vld [vmem:[#allocation3 + $0x8] sm:$0xff]
    %v4792 = vld [vmem:[#allocation3 + $0x10] sm:$0xf]
    %v4793 = vld [vmem:[%s1261] ss:$8 sm:$0xf]
    %v4795 = vperm.slane %v4793, 0
    %v4796 = vperm.slane %v4793, 1
    %v4797 = vperm.slane %v4793, 2
    %v4798 = vperm.slane %v4793, 3
    %v4799 = vrot.slane %v4796, 4
    %v4800 = vrot.slane %v4798, 4
    %v4801 = vsel %vm3347, %v4795, %v4799
    %v4802 = vsel %vm3347, %v4797, %v4800
    %4803 = vrot.lane.b32.xlu0 %v4801, 119
    %v4804 = vpop.permute.xlu0 %4803
    %4805 = vrot.lane.b32.xlu0 %v4802, 119
    %v4806 = vpop.permute.xlu0 %4805
    %v4807 = vrot.slane %v4804, 4
    %v4808 = vrot.slane %v4806, 4
    %v4809 = vsel %vm2128, %v4807, %v4804
    %v4810 = vsel %vm3347, %v4807, %v4808
    %v4811 = vsel %vm2128, %v4810, %v4806
    %v4815 = vmul.f32 %v4790, %v4809
    %v4816 = vmul.f32 %v4791, %v4811
    %v4817 = vmul.f32 %v4792, %v4808
    %s4818 = scalar_lea.vmem %s6, 72
    %v4819 = vld [vmem:[%s4818] sm:$0xff]
    %4823 = vst [vmem:[#allocation1] ss:$2 sm:$0xff] %v4815
    %s4824 = scalar_lea.vmem [#allocation1], 16
    %4825 = vst [vmem:[%s4824] ss:$2 sm:$0xff] %v4816
    %s4826 = scalar_lea.vmem [#allocation1], 32
    %4827 = vst [vmem:[%s4826] ss:$2 sm:$0xff] %v4817
    %v4828 = vld.sshfl [vmem:[#allocation1] sm:$0xff pattern:$0x75316420]
    %v4829 = vld.sshfl [vmem:[#allocation1 + $0x8] sm:$0xff pattern:$0x75316420]
    %v4830 = vld.sshfl [vmem:[#allocation1 + $0x10] sm:$0xff pattern:$0x75316420]
    %v4831 = vld.sshfl [vmem:[#allocation1 + $0x18] sm:$0xff pattern:$0x75316420]
    %v4832 = vld.sshfl [vmem:[#allocation1 + $0x20] sm:$0xff pattern:$0x75316420]
    %4833 = vrot.lane.b32.xlu0 %v4828, 9
    %v4834 = vpop.permute.xlu0 %4833
    %4835 = vrot.lane.b32.xlu0 %v4829, 9
    %v4836 = vpop.permute.xlu0 %4835
    %4837 = vrot.lane.b32.xlu0 %v4830, 9
    %v4838 = vpop.permute.xlu0 %4837
    %4839 = vrot.lane.b32.xlu0 %v4831, 9
    %v4840 = vpop.permute.xlu0 %4839
    %4841 = vrot.lane.b32.xlu0 %v4832, 9
    %v4842 = vpop.permute.xlu0 %4841
    %v4843 = vsel %vm1169, %v4834, %v4836
    %v4844 = vsel %vm1169, %v4836, %v4838
    %v4845 = vsel %vm1169, %v4838, %v4840
    %v4846 = vsel %vm1169, %v4840, %v4842
    %v4848 = vsel %vm3516, %v4819, 0
    %v4850 = vsel %vm3347, %v4843, 0
    %v4852 = vsel %vm3347, %v4844, 0
    %v4854 = vsel %vm3347, %v4845, 0
    %v4856 = vsel %vm3347, %v4846, 0
    %4858 = vmatpush.msra.mxu0 0.0
    %4859 = vmatpush.msra.mxu0 0.0
    %4860 = vmatpush.msra.mxu0 0.0
    %4861 = vmatpush.msra.mxu0 0.0
    %4862 = vmatpush.msra.mxu0 0.0
    %4863 = vmatpush.msra.mxu0 0.0
    %4864 = vmatpush.msra.mxu0 0.0
    %4865 = vmatpush.msra.mxu0 0.0
    %4866 = vmatpush.msra.mxu0 0.0
    %4867 = vmatpush.msra.mxu0 0.0
    %4868 = vmatpush.msra.mxu0 0.0
    %4869 = vmatpush.msra.mxu0 0.0
    %4870 = vmatpush.msra.mxu0 0.0
    %4871 = vmatpush.msra.mxu0 0.0
    %4872 = vmatpush.msra.mxu0 0.0
    %4873 = vmatpush.msra.mxu0 %v4850
    %4874 = vmatmul.f32.gmra.mxu0 %v4848
    %v4875 = vpop.f32.mrf.mxu0
    %v4876 = vadd.f32 0.0, %v4875
    %4877 = vdwg.mxu0
    %4878 = vmatpush.msra.mxu0 0.0
    %4879 = vmatpush.msra.mxu0 0.0
    %4880 = vmatpush.msra.mxu0 0.0
    %4881 = vmatpush.msra.mxu0 0.0
    %4882 = vmatpush.msra.mxu0 0.0
    %4883 = vmatpush.msra.mxu0 0.0
    %4884 = vmatpush.msra.mxu0 0.0
    %4885 = vmatpush.msra.mxu0 0.0
    %4886 = vmatpush.msra.mxu0 0.0
    %4887 = vmatpush.msra.mxu0 0.0
    %4888 = vmatpush.msra.mxu0 0.0
    %4889 = vmatpush.msra.mxu0 0.0
    %4890 = vmatpush.msra.mxu0 0.0
    %4891 = vmatpush.msra.mxu0 0.0
    %4892 = vmatpush.msra.mxu0 0.0
    %4893 = vmatpush.msra.mxu0 %v4852
    %4894 = vmatmul.f32.gmra.mxu0 %v4848
    %v4895 = vpop.f32.mrf.mxu0
    %v4896 = vadd.f32 0.0, %v4895
    %4897 = vdwg.mxu0
    %4898 = vmatpush.msra.mxu0 0.0
    %4899 = vmatpush.msra.mxu0 0.0
    %4900 = vmatpush.msra.mxu0 0.0
    %4901 = vmatpush.msra.mxu0 0.0
    %4902 = vmatpush.msra.mxu0 0.0
    %4903 = vmatpush.msra.mxu0 0.0
    %4904 = vmatpush.msra.mxu0 0.0
    %4905 = vmatpush.msra.mxu0 0.0
    %4906 = vmatpush.msra.mxu0 0.0
    %4907 = vmatpush.msra.mxu0 0.0
    %4908 = vmatpush.msra.mxu0 0.0
    %4909 = vmatpush.msra.mxu0 0.0
    %4910 = vmatpush.msra.mxu0 0.0
    %4911 = vmatpush.msra.mxu0 0.0
    %4912 = vmatpush.msra.mxu0 0.0
    %4913 = vmatpush.msra.mxu0 %v4854
    %4914 = vmatmul.f32.gmra.mxu0 %v4848
    %v4915 = vpop.f32.mrf.mxu0
    %v4916 = vadd.f32 0.0, %v4915
    %4917 = vdwg.mxu0
    %4918 = vmatpush.msra.mxu0 0.0
    %4919 = vmatpush.msra.mxu0 0.0
    %4920 = vmatpush.msra.mxu0 0.0
    %4921 = vmatpush.msra.mxu0 0.0
    %4922 = vmatpush.msra.mxu0 0.0
    %4923 = vmatpush.msra.mxu0 0.0
    %4924 = vmatpush.msra.mxu0 0.0
    %4925 = vmatpush.msra.mxu0 0.0
    %4926 = vmatpush.msra.mxu0 0.0
    %4927 = vmatpush.msra.mxu0 0.0
    %4928 = vmatpush.msra.mxu0 0.0
    %4929 = vmatpush.msra.mxu0 0.0
    %4930 = vmatpush.msra.mxu0 0.0
    %4931 = vmatpush.msra.mxu0 0.0
    %4932 = vmatpush.msra.mxu0 0.0
    %4933 = vmatpush.msra.mxu0 %v4856
    %4934 = vmatmul.f32.gmra.mxu0 %v4848
    %v4935 = vpop.f32.mrf.mxu0
    %v4936 = vadd.f32 0.0, %v4935
    %4937 = vdwg.mxu0
    %v4938 = vadd.f32 %v4786, %v4876
    %v4939 = vadd.f32 %v4787, %v4896
    %v4940 = vadd.f32 %v4788, %v4916
    %v4941 = vadd.f32 %v4789, %v4936
    %v4942 = vld [vmem:[#allocation3] sm:$0xff]
    %v4943 = vld [vmem:[#allocation3 + $0x8] sm:$0xff]
    %v4944 = vld [vmem:[#allocation3 + $0x10] sm:$0xf]
    %v4945 = vld [vmem:[%s1383] ss:$8 sm:$0xf]
    %v4947 = vperm.slane %v4945, 0
    %v4948 = vperm.slane %v4945, 1
    %v4949 = vperm.slane %v4945, 2
    %v4950 = vperm.slane %v4945, 3
    %v4951 = vrot.slane %v4948, 4
    %v4952 = vrot.slane %v4950, 4
    %v4953 = vsel %vm3347, %v4947, %v4951
    %v4954 = vsel %vm3347, %v4949, %v4952
    %4955 = vrot.lane.b32.xlu0 %v4953, 120
    %v4956 = vpop.permute.xlu0 %4955
    %4957 = vrot.lane.b32.xlu0 %v4954, 120
    %v4958 = vpop.permute.xlu0 %4957
    %v4959 = vrot.slane %v4956, 4
    %v4960 = vrot.slane %v4958, 4
    %v4961 = vsel %vm2005, %v4959, %v4956
    %v4962 = vsel %vm3347, %v4959, %v4960
    %v4963 = vsel %vm2005, %v4962, %v4958
    %v4967 = vmul.f32 %v4942, %v4961
    %v4968 = vmul.f32 %v4943, %v4963
    %v4969 = vmul.f32 %v4944, %v4960
    %s4970 = scalar_lea.vmem %s6, 80
    %v4971 = vld [vmem:[%s4970] sm:$0xff]
    %4975 = vst [vmem:[#allocation1] ss:$2 sm:$0xff] %v4967
    %s4976 = scalar_lea.vmem [#allocation1], 16
    %4977 = vst [vmem:[%s4976] ss:$2 sm:$0xff] %v4968
    %s4978 = scalar_lea.vmem [#allocation1], 32
    %4979 = vst [vmem:[%s4978] ss:$2 sm:$0xff] %v4969
    %v4980 = vld.sshfl [vmem:[#allocation1] sm:$0xff pattern:$0x75316420]
    %v4981 = vld.sshfl [vmem:[#allocation1 + $0x8] sm:$0xff pattern:$0x75316420]
    %v4982 = vld.sshfl [vmem:[#allocation1 + $0x10] sm:$0xff pattern:$0x75316420]
    %v4983 = vld.sshfl [vmem:[#allocation1 + $0x18] sm:$0xff pattern:$0x75316420]
    %v4984 = vld.sshfl [vmem:[#allocation1 + $0x20] sm:$0xff pattern:$0x75316420]
    %4985 = vrot.lane.b32.xlu0 %v4980, 8
    %v4986 = vpop.permute.xlu0 %4985
    %4987 = vrot.lane.b32.xlu0 %v4981, 8
    %v4988 = vpop.permute.xlu0 %4987
    %4989 = vrot.lane.b32.xlu0 %v4982, 8
    %v4990 = vpop.permute.xlu0 %4989
    %4991 = vrot.lane.b32.xlu0 %v4983, 8
    %v4992 = vpop.permute.xlu0 %4991
    %4993 = vrot.lane.b32.xlu0 %v4984, 8
    %v4994 = vpop.permute.xlu0 %4993
    %v4995 = vsel %vm71, %v4986, %v4988
    %v4996 = vsel %vm71, %v4988, %v4990
    %v4997 = vsel %vm71, %v4990, %v4992
    %v4998 = vsel %vm71, %v4992, %v4994
    %v5000 = vsel %vm3516, %v4971, 0
    %v5002 = vsel %vm3347, %v4995, 0
    %v5004 = vsel %vm3347, %v4996, 0
    %v5006 = vsel %vm3347, %v4997, 0
    %v5008 = vsel %vm3347, %v4998, 0
    %5010 = vmatpush.msra.mxu0 0.0
    %5011 = vmatpush.msra.mxu0 0.0
    %5012 = vmatpush.msra.mxu0 0.0
    %5013 = vmatpush.msra.mxu0 0.0
    %5014 = vmatpush.msra.mxu0 0.0
    %5015 = vmatpush.msra.mxu0 0.0
    %5016 = vmatpush.msra.mxu0 0.0
    %5017 = vmatpush.msra.mxu0 0.0
    %5018 = vmatpush.msra.mxu0 0.0
    %5019 = vmatpush.msra.mxu0 0.0
    %5020 = vmatpush.msra.mxu0 0.0
    %5021 = vmatpush.msra.mxu0 0.0
    %5022 = vmatpush.msra.mxu0 0.0
    %5023 = vmatpush.msra.mxu0 0.0
    %5024 = vmatpush.msra.mxu0 0.0
    %5025 = vmatpush.msra.mxu0 %v5002
    %5026 = vmatmul.f32.gmra.mxu0 %v5000
    %v5027 = vpop.f32.mrf.mxu0
    %v5028 = vadd.f32 0.0, %v5027
    %5029 = vdwg.mxu0
    %5030 = vmatpush.msra.mxu0 0.0
    %5031 = vmatpush.msra.mxu0 0.0
    %5032 = vmatpush.msra.mxu0 0.0
    %5033 = vmatpush.msra.mxu0 0.0
    %5034 = vmatpush.msra.mxu0 0.0
    %5035 = vmatpush.msra.mxu0 0.0
    %5036 = vmatpush.msra.mxu0 0.0
    %5037 = vmatpush.msra.mxu0 0.0
    %5038 = vmatpush.msra.mxu0 0.0
    %5039 = vmatpush.msra.mxu0 0.0
    %5040 = vmatpush.msra.mxu0 0.0
    %5041 = vmatpush.msra.mxu0 0.0
    %5042 = vmatpush.msra.mxu0 0.0
    %5043 = vmatpush.msra.mxu0 0.0
    %5044 = vmatpush.msra.mxu0 0.0
    %5045 = vmatpush.msra.mxu0 %v5004
    %5046 = vmatmul.f32.gmra.mxu0 %v5000
    %v5047 = vpop.f32.mrf.mxu0
    %v5048 = vadd.f32 0.0, %v5047
    %5049 = vdwg.mxu0
    %5050 = vmatpush.msra.mxu0 0.0
    %5051 = vmatpush.msra.mxu0 0.0
    %5052 = vmatpush.msra.mxu0 0.0
    %5053 = vmatpush.msra.mxu0 0.0
    %5054 = vmatpush.msra.mxu0 0.0
    %5055 = vmatpush.msra.mxu0 0.0
    %5056 = vmatpush.msra.mxu0 0.0
    %5057 = vmatpush.msra.mxu0 0.0
    %5058 = vmatpush.msra.mxu0 0.0
    %5059 = vmatpush.msra.mxu0 0.0
    %5060 = vmatpush.msra.mxu0 0.0
    %5061 = vmatpush.msra.mxu0 0.0
    %5062 = vmatpush.msra.mxu0 0.0
    %5063 = vmatpush.msra.mxu0 0.0
    %5064 = vmatpush.msra.mxu0 0.0
    %5065 = vmatpush.msra.mxu0 %v5006
    %5066 = vmatmul.f32.gmra.mxu0 %v5000
    %v5067 = vpop.f32.mrf.mxu0
    %v5068 = vadd.f32 0.0, %v5067
    %5069 = vdwg.mxu0
    %5070 = vmatpush.msra.mxu0 0.0
    %5071 = vmatpush.msra.mxu0 0.0
    %5072 = vmatpush.msra.mxu0 0.0
    %5073 = vmatpush.msra.mxu0 0.0
    %5074 = vmatpush.msra.mxu0 0.0
    %5075 = vmatpush.msra.mxu0 0.0
    %5076 = vmatpush.msra.mxu0 0.0
    %5077 = vmatpush.msra.mxu0 0.0
    %5078 = vmatpush.msra.mxu0 0.0
    %5079 = vmatpush.msra.mxu0 0.0
    %5080 = vmatpush.msra.mxu0 0.0
    %5081 = vmatpush.msra.mxu0 0.0
    %5082 = vmatpush.msra.mxu0 0.0
    %5083 = vmatpush.msra.mxu0 0.0
    %5084 = vmatpush.msra.mxu0 0.0
    %5085 = vmatpush.msra.mxu0 %v5008
    %5086 = vmatmul.f32.gmra.mxu0 %v5000
    %v5087 = vpop.f32.mrf.mxu0
    %v5088 = vadd.f32 0.0, %v5087
    %5089 = vdwg.mxu0
    %v5090 = vadd.f32 %v4938, %v5028
    %v5091 = vadd.f32 %v4939, %v5048
    %v5092 = vadd.f32 %v4940, %v5068
    %v5093 = vadd.f32 %v4941, %v5088
    %v5094 = vld [vmem:[#allocation3] sm:$0xff]
    %v5095 = vld [vmem:[#allocation3 + $0x8] sm:$0xff]
    %v5096 = vld [vmem:[#allocation3 + $0x10] sm:$0xf]
    %v5097 = vld [vmem:[%s1506] ss:$8 sm:$0xf]
    %v5099 = vperm.slane %v5097, 0
    %v5100 = vperm.slane %v5097, 1
    %v5101 = vperm.slane %v5097, 2
    %v5102 = vperm.slane %v5097, 3
    %v5103 = vrot.slane %v5100, 4
    %v5104 = vrot.slane %v5102, 4
    %v5105 = vsel %vm3347, %v5099, %v5103
    %v5106 = vsel %vm3347, %v5101, %v5104
    %5107 = vrot.lane.b32.xlu0 %v5105, 121
    %v5108 = vpop.permute.xlu0 %5107
    %5109 = vrot.lane.b32.xlu0 %v5106, 121
    %v5110 = vpop.permute.xlu0 %5109
    %v5111 = vrot.slane %v5108, 4
    %v5112 = vrot.slane %v5110, 4
    %v5113 = vsel %vm1882, %v5111, %v5108
    %v5114 = vsel %vm3347, %v5111, %v5112
    %v5115 = vsel %vm1882, %v5114, %v5110
    %v5119 = vmul.f32 %v5094, %v5113
    %v5120 = vmul.f32 %v5095, %v5115
    %v5121 = vmul.f32 %v5096, %v5112
    %s5122 = scalar_lea.vmem %s6, 88
    %v5123 = vld [vmem:[%s5122] sm:$0xff]
    %5127 = vst [vmem:[#allocation1] ss:$2 sm:$0xff] %v5119
    %s5128 = scalar_lea.vmem [#allocation1], 16
    %5129 = vst [vmem:[%s5128] ss:$2 sm:$0xff] %v5120
    %s5130 = scalar_lea.vmem [#allocation1], 32
    %5131 = vst [vmem:[%s5130] ss:$2 sm:$0xff] %v5121
    %v5132 = vld.sshfl [vmem:[#allocation1] sm:$0xff pattern:$0x75316420]
    %v5133 = vld.sshfl [vmem:[#allocation1 + $0x8] sm:$0xff pattern:$0x75316420]
    %v5134 = vld.sshfl [vmem:[#allocation1 + $0x10] sm:$0xff pattern:$0x75316420]
    %v5135 = vld.sshfl [vmem:[#allocation1 + $0x18] sm:$0xff pattern:$0x75316420]
    %v5136 = vld.sshfl [vmem:[#allocation1 + $0x20] sm:$0xff pattern:$0x75316420]
    %5137 = vrot.lane.b32.xlu0 %v5132, 7
    %v5138 = vpop.permute.xlu0 %5137
    %5139 = vrot.lane.b32.xlu0 %v5133, 7
    %v5140 = vpop.permute.xlu0 %5139
    %5141 = vrot.lane.b32.xlu0 %v5134, 7
    %v5142 = vpop.permute.xlu0 %5141
    %5143 = vrot.lane.b32.xlu0 %v5135, 7
    %v5144 = vpop.permute.xlu0 %5143
    %5145 = vrot.lane.b32.xlu0 %v5136, 7
    %v5146 = vpop.permute.xlu0 %5145
    %v5147 = vsel %vm1414, %v5138, %v5140
    %v5148 = vsel %vm1414, %v5140, %v5142
    %v5149 = vsel %vm1414, %v5142, %v5144
    %v5150 = vsel %vm1414, %v5144, %v5146
    %v5152 = vsel %vm3516, %v5123, 0
    %v5154 = vsel %vm3347, %v5147, 0
    %v5156 = vsel %vm3347, %v5148, 0
    %v5158 = vsel %vm3347, %v5149, 0
    %v5160 = vsel %vm3347, %v5150, 0
    %5162 = vmatpush.msra.mxu0 0.0
    %5163 = vmatpush.msra.mxu0 0.0
    %5164 = vmatpush.msra.mxu0 0.0
    %5165 = vmatpush.msra.mxu0 0.0
    %5166 = vmatpush.msra.mxu0 0.0
    %5167 = vmatpush.msra.mxu0 0.0
    %5168 = vmatpush.msra.mxu0 0.0
    %5169 = vmatpush.msra.mxu0 0.0
    %5170 = vmatpush.msra.mxu0 0.0
    %5171 = vmatpush.msra.mxu0 0.0
    %5172 = vmatpush.msra.mxu0 0.0
    %5173 = vmatpush.msra.mxu0 0.0
    %5174 = vmatpush.msra.mxu0 0.0
    %5175 = vmatpush.msra.mxu0 0.0
    %5176 = vmatpush.msra.mxu0 0.0
    %5177 = vmatpush.msra.mxu0 %v5154
    %5178 = vmatmul.f32.gmra.mxu0 %v5152
    %v5179 = vpop.f32.mrf.mxu0
    %v5180 = vadd.f32 0.0, %v5179
    %5181 = vdwg.mxu0
    %5182 = vmatpush.msra.mxu0 0.0
    %5183 = vmatpush.msra.mxu0 0.0
    %5184 = vmatpush.msra.mxu0 0.0
    %5185 = vmatpush.msra.mxu0 0.0
    %5186 = vmatpush.msra.mxu0 0.0
    %5187 = vmatpush.msra.mxu0 0.0
    %5188 = vmatpush.msra.mxu0 0.0
    %5189 = vmatpush.msra.mxu0 0.0
    %5190 = vmatpush.msra.mxu0 0.0
    %5191 = vmatpush.msra.mxu0 0.0
    %5192 = vmatpush.msra.mxu0 0.0
    %5193 = vmatpush.msra.mxu0 0.0
    %5194 = vmatpush.msra.mxu0 0.0
    %5195 = vmatpush.msra.mxu0 0.0
    %5196 = vmatpush.msra.mxu0 0.0
    %5197 = vmatpush.msra.mxu0 %v5156
    %5198 = vmatmul.f32.gmra.mxu0 %v5152
    %v5199 = vpop.f32.mrf.mxu0
    %v5200 = vadd.f32 0.0, %v5199
    %5201 = vdwg.mxu0
    %5202 = vmatpush.msra.mxu0 0.0
    %5203 = vmatpush.msra.mxu0 0.0
    %5204 = vmatpush.msra.mxu0 0.0
    %5205 = vmatpush.msra.mxu0 0.0
    %5206 = vmatpush.msra.mxu0 0.0
    %5207 = vmatpush.msra.mxu0 0.0
    %5208 = vmatpush.msra.mxu0 0.0
    %5209 = vmatpush.msra.mxu0 0.0
    %5210 = vmatpush.msra.mxu0 0.0
    %5211 = vmatpush.msra.mxu0 0.0
    %5212 = vmatpush.msra.mxu0 0.0
    %5213 = vmatpush.msra.mxu0 0.0
    %5214 = vmatpush.msra.mxu0 0.0
    %5215 = vmatpush.msra.mxu0 0.0
    %5216 = vmatpush.msra.mxu0 0.0
    %5217 = vmatpush.msra.mxu0 %v5158
    %5218 = vmatmul.f32.gmra.mxu0 %v5152
    %v5219 = vpop.f32.mrf.mxu0
    %v5220 = vadd.f32 0.0, %v5219
    %5221 = vdwg.mxu0
    %5222 = vmatpush.msra.mxu0 0.0
    %5223 = vmatpush.msra.mxu0 0.0
    %5224 = vmatpush.msra.mxu0 0.0
    %5225 = vmatpush.msra.mxu0 0.0
    %5226 = vmatpush.msra.mxu0 0.0
    %5227 = vmatpush.msra.mxu0 0.0
    %5228 = vmatpush.msra.mxu0 0.0
    %5229 = vmatpush.msra.mxu0 0.0
    %5230 = vmatpush.msra.mxu0 0.0
    %5231 = vmatpush.msra.mxu0 0.0
    %5232 = vmatpush.msra.mxu0 0.0
    %5233 = vmatpush.msra.mxu0 0.0
    %5234 = vmatpush.msra.mxu0 0.0
    %5235 = vmatpush.msra.mxu0 0.0
    %5236 = vmatpush.msra.mxu0 0.0
    %5237 = vmatpush.msra.mxu0 %v5160
    %5238 = vmatmul.f32.gmra.mxu0 %v5152
    %v5239 = vpop.f32.mrf.mxu0
    %v5240 = vadd.f32 0.0, %v5239
    %5241 = vdwg.mxu0
    %v5242 = vadd.f32 %v5090, %v5180
    %v5243 = vadd.f32 %v5091, %v5200
    %v5244 = vadd.f32 %v5092, %v5220
    %v5245 = vadd.f32 %v5093, %v5240
    %v5246 = vld [vmem:[#allocation3] sm:$0xff]
    %v5247 = vld [vmem:[#allocation3 + $0x8] sm:$0xff]
    %v5248 = vld [vmem:[#allocation3 + $0x10] sm:$0xf]
    %v5249 = vld [vmem:[%s1629] ss:$8 sm:$0xf]
    %v5251 = vperm.slane %v5249, 0
    %v5252 = vperm.slane %v5249, 1
    %v5253 = vperm.slane %v5249, 2
    %v5254 = vperm.slane %v5249, 3
    %v5255 = vrot.slane %v5252, 4
    %v5256 = vrot.slane %v5254, 4
    %v5257 = vsel %vm3347, %v5251, %v5255
    %v5258 = vsel %vm3347, %v5253, %v5256
    %5259 = vrot.lane.b32.xlu0 %v5257, 127
    %v5260 = vpop.permute.xlu0 %5259
    %5261 = vrot.lane.b32.xlu0 %v5258, 127
    %v5262 = vpop.permute.xlu0 %5261
    %v5263 = vrot.slane %v5260, 4
    %v5264 = vrot.slane %v5262, 4
    %v5265 = vsel %vm1759, %v5263, %v5260
    %v5266 = vsel %vm3347, %v5263, %v5264
    %v5267 = vsel %vm1759, %v5266, %v5262
    %v5271 = vmul.f32 %v5246, %v5265
    %v5272 = vmul.f32 %v5247, %v5267
    %v5273 = vmul.f32 %v5248, %v5264
    %s5274 = scalar_lea.vmem %s6, 96
    %v5275 = vld [vmem:[%s5274] sm:$0xff]
    %5279 = vst [vmem:[#allocation1] ss:$2 sm:$0xff] %v5271
    %s5280 = scalar_lea.vmem [#allocation1], 16
    %5281 = vst [vmem:[%s5280] ss:$2 sm:$0xff] %v5272
    %s5282 = scalar_lea.vmem [#allocation1], 32
    %5283 = vst [vmem:[%s5282] ss:$2 sm:$0xff] %v5273
    %v5284 = vld.sshfl [vmem:[#allocation1] sm:$0xff pattern:$0x75316420]
    %v5285 = vld.sshfl [vmem:[#allocation1 + $0x8] sm:$0xff pattern:$0x75316420]
    %v5286 = vld.sshfl [vmem:[#allocation1 + $0x10] sm:$0xff pattern:$0x75316420]
    %v5287 = vld.sshfl [vmem:[#allocation1 + $0x18] sm:$0xff pattern:$0x75316420]
    %v5288 = vld.sshfl [vmem:[#allocation1 + $0x20] sm:$0xff pattern:$0x75316420]
    %5289 = vrot.lane.b32.xlu0 %v5284, 1
    %v5290 = vpop.permute.xlu0 %5289
    %5291 = vrot.lane.b32.xlu0 %v5285, 1
    %v5292 = vpop.permute.xlu0 %5291
    %5293 = vrot.lane.b32.xlu0 %v5286, 1
    %v5294 = vpop.permute.xlu0 %5293
    %5295 = vrot.lane.b32.xlu0 %v5287, 1
    %v5296 = vpop.permute.xlu0 %5295
    %5297 = vrot.lane.b32.xlu0 %v5288, 1
    %v5298 = vpop.permute.xlu0 %5297
    %v5299 = vsel %vm1537, %v5290, %v5292
    %v5300 = vsel %vm1537, %v5292, %v5294
    %v5301 = vsel %vm1537, %v5294, %v5296
    %v5302 = vsel %vm1537, %v5296, %v5298
    %v5304 = vsel %vm3516, %v5275, 0
    %v5306 = vsel %vm3347, %v5299, 0
    %v5308 = vsel %vm3347, %v5300, 0
    %v5310 = vsel %vm3347, %v5301, 0
    %v5312 = vsel %vm3347, %v5302, 0
    %5314 = vmatpush.msra.mxu0 0.0
    %5315 = vmatpush.msra.mxu0 0.0
    %5316 = vmatpush.msra.mxu0 0.0
    %5317 = vmatpush.msra.mxu0 0.0
    %5318 = vmatpush.msra.mxu0 0.0
    %5319 = vmatpush.msra.mxu0 0.0
    %5320 = vmatpush.msra.mxu0 0.0
    %5321 = vmatpush.msra.mxu0 0.0
    %5322 = vmatpush.msra.mxu0 0.0
    %5323 = vmatpush.msra.mxu0 0.0
    %5324 = vmatpush.msra.mxu0 0.0
    %5325 = vmatpush.msra.mxu0 0.0
    %5326 = vmatpush.msra.mxu0 0.0
    %5327 = vmatpush.msra.mxu0 0.0
    %5328 = vmatpush.msra.mxu0 0.0
    %5329 = vmatpush.msra.mxu0 %v5306
    %5330 = vmatmul.f32.gmra.mxu0 %v5304
    %v5331 = vpop.f32.mrf.mxu0
    %v5332 = vadd.f32 0.0, %v5331
    %5333 = vdwg.mxu0
    %5334 = vmatpush.msra.mxu0 0.0
    %5335 = vmatpush.msra.mxu0 0.0
    %5336 = vmatpush.msra.mxu0 0.0
    %5337 = vmatpush.msra.mxu0 0.0
    %5338 = vmatpush.msra.mxu0 0.0
    %5339 = vmatpush.msra.mxu0 0.0
    %5340 = vmatpush.msra.mxu0 0.0
    %5341 = vmatpush.msra.mxu0 0.0
    %5342 = vmatpush.msra.mxu0 0.0
    %5343 = vmatpush.msra.mxu0 0.0
    %5344 = vmatpush.msra.mxu0 0.0
    %5345 = vmatpush.msra.mxu0 0.0
    %5346 = vmatpush.msra.mxu0 0.0
    %5347 = vmatpush.msra.mxu0 0.0
    %5348 = vmatpush.msra.mxu0 0.0
    %5349 = vmatpush.msra.mxu0 %v5308
    %5350 = vmatmul.f32.gmra.mxu0 %v5304
    %v5351 = vpop.f32.mrf.mxu0
    %v5352 = vadd.f32 0.0, %v5351
    %5353 = vdwg.mxu0
    %5354 = vmatpush.msra.mxu0 0.0
    %5355 = vmatpush.msra.mxu0 0.0
    %5356 = vmatpush.msra.mxu0 0.0
    %5357 = vmatpush.msra.mxu0 0.0
    %5358 = vmatpush.msra.mxu0 0.0
    %5359 = vmatpush.msra.mxu0 0.0
    %5360 = vmatpush.msra.mxu0 0.0
    %5361 = vmatpush.msra.mxu0 0.0
    %5362 = vmatpush.msra.mxu0 0.0
    %5363 = vmatpush.msra.mxu0 0.0
    %5364 = vmatpush.msra.mxu0 0.0
    %5365 = vmatpush.msra.mxu0 0.0
    %5366 = vmatpush.msra.mxu0 0.0
    %5367 = vmatpush.msra.mxu0 0.0
    %5368 = vmatpush.msra.mxu0 0.0
    %5369 = vmatpush.msra.mxu0 %v5310
    %5370 = vmatmul.f32.gmra.mxu0 %v5304
    %v5371 = vpop.f32.mrf.mxu0
    %v5372 = vadd.f32 0.0, %v5371
    %5373 = vdwg.mxu0
    %5374 = vmatpush.msra.mxu0 0.0
    %5375 = vmatpush.msra.mxu0 0.0
    %5376 = vmatpush.msra.mxu0 0.0
    %5377 = vmatpush.msra.mxu0 0.0
    %5378 = vmatpush.msra.mxu0 0.0
    %5379 = vmatpush.msra.mxu0 0.0
    %5380 = vmatpush.msra.mxu0 0.0
    %5381 = vmatpush.msra.mxu0 0.0
    %5382 = vmatpush.msra.mxu0 0.0
    %5383 = vmatpush.msra.mxu0 0.0
    %5384 = vmatpush.msra.mxu0 0.0
    %5385 = vmatpush.msra.mxu0 0.0
    %5386 = vmatpush.msra.mxu0 0.0
    %5387 = vmatpush.msra.mxu0 0.0
    %5388 = vmatpush.msra.mxu0 0.0
    %5389 = vmatpush.msra.mxu0 %v5312
    %5390 = vmatmul.f32.gmra.mxu0 %v5304
    %v5391 = vpop.f32.mrf.mxu0
    %v5392 = vadd.f32 0.0, %v5391
    %5393 = vdwg.mxu0
    %v5394 = vadd.f32 %v5242, %v5332
    %v5395 = vadd.f32 %v5243, %v5352
    %v5396 = vadd.f32 %v5244, %v5372
    %v5397 = vadd.f32 %v5245, %v5392
    %v5398 = vld [vmem:[#allocation3 + $0x4] sm:$0xff]
    %v5399 = vld [vmem:[#allocation3 + $0xc] sm:$0xff]
    %s5400 = scalar_lea.vmem %s6, 104
    %v5401 = vld [vmem:[%s5400] sm:$0xff]
    %5404 = vst [vmem:[#allocation1] ss:$2 sm:$0xff] %v5398
    %s5405 = scalar_lea.vmem [#allocation1], 16
    %5406 = vst [vmem:[%s5405] ss:$2 sm:$0xff] %v5399
    %v5407 = vld.sshfl [vmem:[#allocation1] sm:$0xff pattern:$0x75316420]
    %v5408 = vld.sshfl [vmem:[#allocation1 + $0x8] sm:$0xff pattern:$0x75316420]
    %v5409 = vld.sshfl [vmem:[#allocation1 + $0x10] sm:$0xff pattern:$0x75316420]
    %v5410 = vld.sshfl [vmem:[#allocation1 + $0x18] sm:$0xff pattern:$0x75316420]
    %v5412 = vsel %vm3516, %v5401, 0
    %v5414 = vsel %vm3347, %v5407, 0
    %v5416 = vsel %vm3347, %v5408, 0
    %v5418 = vsel %vm3347, %v5409, 0
    %v5420 = vsel %vm3347, %v5410, 0
    %5422 = vmatpush.msra.mxu0 0.0
    %5423 = vmatpush.msra.mxu0 0.0
    %5424 = vmatpush.msra.mxu0 0.0
    %5425 = vmatpush.msra.mxu0 0.0
    %5426 = vmatpush.msra.mxu0 0.0
    %5427 = vmatpush.msra.mxu0 0.0
    %5428 = vmatpush.msra.mxu0 0.0
    %5429 = vmatpush.msra.mxu0 0.0
    %5430 = vmatpush.msra.mxu0 0.0
    %5431 = vmatpush.msra.mxu0 0.0
    %5432 = vmatpush.msra.mxu0 0.0
    %5433 = vmatpush.msra.mxu0 0.0
    %5434 = vmatpush.msra.mxu0 0.0
    %5435 = vmatpush.msra.mxu0 0.0
    %5436 = vmatpush.msra.mxu0 0.0
    %5437 = vmatpush.msra.mxu0 %v5414
    %5438 = vmatmul.f32.gmra.mxu0 %v5412
    %v5439 = vpop.f32.mrf.mxu0
    %v5440 = vadd.f32 0.0, %v5439
    %5441 = vdwg.mxu0
    %5442 = vmatpush.msra.mxu0 0.0
    %5443 = vmatpush.msra.mxu0 0.0
    %5444 = vmatpush.msra.mxu0 0.0
    %5445 = vmatpush.msra.mxu0 0.0
    %5446 = vmatpush.msra.mxu0 0.0
    %5447 = vmatpush.msra.mxu0 0.0
    %5448 = vmatpush.msra.mxu0 0.0
    %5449 = vmatpush.msra.mxu0 0.0
    %5450 = vmatpush.msra.mxu0 0.0
    %5451 = vmatpush.msra.mxu0 0.0
    %5452 = vmatpush.msra.mxu0 0.0
    %5453 = vmatpush.msra.mxu0 0.0
    %5454 = vmatpush.msra.mxu0 0.0
    %5455 = vmatpush.msra.mxu0 0.0
    %5456 = vmatpush.msra.mxu0 0.0
    %5457 = vmatpush.msra.mxu0 %v5416
    %5458 = vmatmul.f32.gmra.mxu0 %v5412
    %v5459 = vpop.f32.mrf.mxu0
    %v5460 = vadd.f32 0.0, %v5459
    %5461 = vdwg.mxu0
    %5462 = vmatpush.msra.mxu0 0.0
    %5463 = vmatpush.msra.mxu0 0.0
    %5464 = vmatpush.msra.mxu0 0.0
    %5465 = vmatpush.msra.mxu0 0.0
    %5466 = vmatpush.msra.mxu0 0.0
    %5467 = vmatpush.msra.mxu0 0.0
    %5468 = vmatpush.msra.mxu0 0.0
    %5469 = vmatpush.msra.mxu0 0.0
    %5470 = vmatpush.msra.mxu0 0.0
    %5471 = vmatpush.msra.mxu0 0.0
    %5472 = vmatpush.msra.mxu0 0.0
    %5473 = vmatpush.msra.mxu0 0.0
    %5474 = vmatpush.msra.mxu0 0.0
    %5475 = vmatpush.msra.mxu0 0.0
    %5476 = vmatpush.msra.mxu0 0.0
    %5477 = vmatpush.msra.mxu0 %v5418
    %5478 = vmatmul.f32.gmra.mxu0 %v5412
    %v5479 = vpop.f32.mrf.mxu0
    %v5480 = vadd.f32 0.0, %v5479
    %5481 = vdwg.mxu0
    %5482 = vmatpush.msra.mxu0 0.0
    %5483 = vmatpush.msra.mxu0 0.0
    %5484 = vmatpush.msra.mxu0 0.0
    %5485 = vmatpush.msra.mxu0 0.0
    %5486 = vmatpush.msra.mxu0 0.0
    %5487 = vmatpush.msra.mxu0 0.0
    %5488 = vmatpush.msra.mxu0 0.0
    %5489 = vmatpush.msra.mxu0 0.0
    %5490 = vmatpush.msra.mxu0 0.0
    %5491 = vmatpush.msra.mxu0 0.0
    %5492 = vmatpush.msra.mxu0 0.0
    %5493 = vmatpush.msra.mxu0 0.0
    %5494 = vmatpush.msra.mxu0 0.0
    %5495 = vmatpush.msra.mxu0 0.0
    %5496 = vmatpush.msra.mxu0 0.0
    %5497 = vmatpush.msra.mxu0 %v5420
    %5498 = vmatmul.f32.gmra.mxu0 %v5412
    %v5499 = vpop.f32.mrf.mxu0
    %v5500 = vadd.f32 0.0, %v5499
    %5501 = vdwg.mxu0
    %v5502 = vadd.f32 %v5394, %v5440
    %v5503 = vadd.f32 %v5395, %v5460
    %v5504 = vadd.f32 %v5396, %v5480
    %v5505 = vadd.f32 %v5397, %v5500
    %v5506 = vld [vmem:[#allocation3 + $0x4] sm:$0xff]
    %v5507 = vld [vmem:[#allocation3 + $0xc] sm:$0xff]
    %v5508 = vld [vmem:[#allocation3 + $0x14] sm:$0xf]
    %v5509 = vld [vmem:[%s1851] ss:$8 sm:$0xf]
    %v5511 = vperm.slane %v5509, 0
    %v5512 = vperm.slane %v5509, 1
    %v5513 = vperm.slane %v5509, 2
    %v5514 = vperm.slane %v5509, 3
    %v5515 = vrot.slane %v5512, 4
    %v5516 = vrot.slane %v5514, 4
    %v5517 = vsel %vm3347, %v5511, %v5515
    %v5518 = vsel %vm3347, %v5513, %v5516
    %5519 = vrot.lane.b32.xlu0 %v5517, 1
    %v5520 = vpop.permute.xlu0 %5519
    %5521 = vrot.lane.b32.xlu0 %v5518, 1
    %v5522 = vpop.permute.xlu0 %5521
    %v5523 = vrot.slane %v5520, 4
    %v5524 = vrot.slane %v5522, 4
    %v5525 = vsel %vm1537, %v5523, %v5520
    %v5526 = vsel %vm3347, %v5523, %v5524
    %v5527 = vsel %vm1537, %v5526, %v5522
    %v5531 = vmul.f32 %v5506, %v5525
    %v5532 = vmul.f32 %v5507, %v5527
    %v5533 = vmul.f32 %v5508, %v5524
    %s5534 = scalar_lea.vmem %s6, 112
    %v5535 = vld [vmem:[%s5534] sm:$0xff]
    %5539 = vst [vmem:[#allocation1] ss:$2 sm:$0xff] %v5531
    %s5540 = scalar_lea.vmem [#allocation1], 16
    %5541 = vst [vmem:[%s5540] ss:$2 sm:$0xff] %v5532
    %s5542 = scalar_lea.vmem [#allocation1], 32
    %5543 = vst [vmem:[%s5542] ss:$2 sm:$0xff] %v5533
    %v5544 = vld.sshfl [vmem:[#allocation1] sm:$0xff pattern:$0x75316420]
    %v5545 = vld.sshfl [vmem:[#allocation1 + $0x8] sm:$0xff pattern:$0x75316420]
    %v5546 = vld.sshfl [vmem:[#allocation1 + $0x10] sm:$0xff pattern:$0x75316420]
    %v5547 = vld.sshfl [vmem:[#allocation1 + $0x18] sm:$0xff pattern:$0x75316420]
    %v5548 = vld.sshfl [vmem:[#allocation1 + $0x20] sm:$0xff pattern:$0x75316420]
    %5549 = vrot.lane.b32.xlu0 %v5544, 127
    %v5550 = vpop.permute.xlu0 %5549
    %5551 = vrot.lane.b32.xlu0 %v5545, 127
    %v5552 = vpop.permute.xlu0 %5551
    %5553 = vrot.lane.b32.xlu0 %v5546, 127
    %v5554 = vpop.permute.xlu0 %5553
    %5555 = vrot.lane.b32.xlu0 %v5547, 127
    %v5556 = vpop.permute.xlu0 %5555
    %5557 = vrot.lane.b32.xlu0 %v5548, 127
    %v5558 = vpop.permute.xlu0 %5557
    %v5559 = vsel %vm1759, %v5550, %v5552
    %v5560 = vsel %vm1759, %v5552, %v5554
    %v5561 = vsel %vm1759, %v5554, %v5556
    %v5562 = vsel %vm1759, %v5556, %v5558
    %v5564 = vsel %vm3516, %v5535, 0
    %v5566 = vsel %vm3347, %v5559, 0
    %v5568 = vsel %vm3347, %v5560, 0
    %v5570 = vsel %vm3347, %v5561, 0
    %v5572 = vsel %vm3347, %v5562, 0
    %5574 = vmatpush.msra.mxu0 0.0
    %5575 = vmatpush.msra.mxu0 0.0
    %5576 = vmatpush.msra.mxu0 0.0
    %5577 = vmatpush.msra.mxu0 0.0
    %5578 = vmatpush.msra.mxu0 0.0
    %5579 = vmatpush.msra.mxu0 0.0
    %5580 = vmatpush.msra.mxu0 0.0
    %5581 = vmatpush.msra.mxu0 0.0
    %5582 = vmatpush.msra.mxu0 0.0
    %5583 = vmatpush.msra.mxu0 0.0
    %5584 = vmatpush.msra.mxu0 0.0
    %5585 = vmatpush.msra.mxu0 0.0
    %5586 = vmatpush.msra.mxu0 0.0
    %5587 = vmatpush.msra.mxu0 0.0
    %5588 = vmatpush.msra.mxu0 0.0
    %5589 = vmatpush.msra.mxu0 %v5566
    %5590 = vmatmul.f32.gmra.mxu0 %v5564
    %v5591 = vpop.f32.mrf.mxu0
    %v5592 = vadd.f32 0.0, %v5591
    %5593 = vdwg.mxu0
    %5594 = vmatpush.msra.mxu0 0.0
    %5595 = vmatpush.msra.mxu0 0.0
    %5596 = vmatpush.msra.mxu0 0.0
    %5597 = vmatpush.msra.mxu0 0.0
    %5598 = vmatpush.msra.mxu0 0.0
    %5599 = vmatpush.msra.mxu0 0.0
    %5600 = vmatpush.msra.mxu0 0.0
    %5601 = vmatpush.msra.mxu0 0.0
    %5602 = vmatpush.msra.mxu0 0.0
    %5603 = vmatpush.msra.mxu0 0.0
    %5604 = vmatpush.msra.mxu0 0.0
    %5605 = vmatpush.msra.mxu0 0.0
    %5606 = vmatpush.msra.mxu0 0.0
    %5607 = vmatpush.msra.mxu0 0.0
    %5608 = vmatpush.msra.mxu0 0.0
    %5609 = vmatpush.msra.mxu0 %v5568
    %5610 = vmatmul.f32.gmra.mxu0 %v5564
    %v5611 = vpop.f32.mrf.mxu0
    %v5612 = vadd.f32 0.0, %v5611
    %5613 = vdwg.mxu0
    %5614 = vmatpush.msra.mxu0 0.0
    %5615 = vmatpush.msra.mxu0 0.0
    %5616 = vmatpush.msra.mxu0 0.0
    %5617 = vmatpush.msra.mxu0 0.0
    %5618 = vmatpush.msra.mxu0 0.0
    %5619 = vmatpush.msra.mxu0 0.0
    %5620 = vmatpush.msra.mxu0 0.0
    %5621 = vmatpush.msra.mxu0 0.0
    %5622 = vmatpush.msra.mxu0 0.0
    %5623 = vmatpush.msra.mxu0 0.0
    %5624 = vmatpush.msra.mxu0 0.0
    %5625 = vmatpush.msra.mxu0 0.0
    %5626 = vmatpush.msra.mxu0 0.0
    %5627 = vmatpush.msra.mxu0 0.0
    %5628 = vmatpush.msra.mxu0 0.0
    %5629 = vmatpush.msra.mxu0 %v5570
    %5630 = vmatmul.f32.gmra.mxu0 %v5564
    %v5631 = vpop.f32.mrf.mxu0
    %v5632 = vadd.f32 0.0, %v5631
    %5633 = vdwg.mxu0
    %5634 = vmatpush.msra.mxu0 0.0
    %5635 = vmatpush.msra.mxu0 0.0
    %5636 = vmatpush.msra.mxu0 0.0
    %5637 = vmatpush.msra.mxu0 0.0
    %5638 = vmatpush.msra.mxu0 0.0
    %5639 = vmatpush.msra.mxu0 0.0
    %5640 = vmatpush.msra.mxu0 0.0
    %5641 = vmatpush.msra.mxu0 0.0
    %5642 = vmatpush.msra.mxu0 0.0
    %5643 = vmatpush.msra.mxu0 0.0
    %5644 = vmatpush.msra.mxu0 0.0
    %5645 = vmatpush.msra.mxu0 0.0
    %5646 = vmatpush.msra.mxu0 0.0
    %5647 = vmatpush.msra.mxu0 0.0
    %5648 = vmatpush.msra.mxu0 0.0
    %5649 = vmatpush.msra.mxu0 %v5572
    %5650 = vmatmul.f32.gmra.mxu0 %v5564
    %v5651 = vpop.f32.mrf.mxu0
    %v5652 = vadd.f32 0.0, %v5651
    %5653 = vdwg.mxu0
    %v5654 = vadd.f32 %v5502, %v5592
    %v5655 = vadd.f32 %v5503, %v5612
    %v5656 = vadd.f32 %v5504, %v5632
    %v5657 = vadd.f32 %v5505, %v5652
    %v5658 = vld [vmem:[#allocation3 + $0x4] sm:$0xff]
    %v5659 = vld [vmem:[#allocation3 + $0xc] sm:$0xff]
    %v5660 = vld [vmem:[#allocation3 + $0x14] sm:$0xf]
    %v5661 = vld [vmem:[%s1974] ss:$8 sm:$0xf]
    %v5663 = vperm.slane %v5661, 0
    %v5664 = vperm.slane %v5661, 1
    %v5665 = vperm.slane %v5661, 2
    %v5666 = vperm.slane %v5661, 3
    %v5667 = vrot.slane %v5664, 4
    %v5668 = vrot.slane %v5666, 4
    %v5669 = vsel %vm3347, %v5663, %v5667
    %v5670 = vsel %vm3347, %v5665, %v5668
    %5671 = vrot.lane.b32.xlu0 %v5669, 7
    %v5672 = vpop.permute.xlu0 %5671
    %5673 = vrot.lane.b32.xlu0 %v5670, 7
    %v5674 = vpop.permute.xlu0 %5673
    %v5675 = vrot.slane %v5672, 4
    %v5676 = vrot.slane %v5674, 4
    %v5677 = vsel %vm1414, %v5675, %v5672
    %v5678 = vsel %vm3347, %v5675, %v5676
    %v5679 = vsel %vm1414, %v5678, %v5674
    %v5683 = vmul.f32 %v5658, %v5677
    %v5684 = vmul.f32 %v5659, %v5679
    %v5685 = vmul.f32 %v5660, %v5676
    %s5686 = scalar_lea.vmem %s6, 120
    %v5687 = vld [vmem:[%s5686] sm:$0xff]
    %5691 = vst [vmem:[#allocation1] ss:$2 sm:$0xff] %v5683
    %s5692 = scalar_lea.vmem [#allocation1], 16
    %5693 = vst [vmem:[%s5692] ss:$2 sm:$0xff] %v5684
    %s5694 = scalar_lea.vmem [#allocation1], 32
    %5695 = vst [vmem:[%s5694] ss:$2 sm:$0xff] %v5685
    %v5696 = vld.sshfl [vmem:[#allocation1] sm:$0xff pattern:$0x75316420]
    %v5697 = vld.sshfl [vmem:[#allocation1 + $0x8] sm:$0xff pattern:$0x75316420]
    %v5698 = vld.sshfl [vmem:[#allocation1 + $0x10] sm:$0xff pattern:$0x75316420]
    %v5699 = vld.sshfl [vmem:[#allocation1 + $0x18] sm:$0xff pattern:$0x75316420]
    %v5700 = vld.sshfl [vmem:[#allocation1 + $0x20] sm:$0xff pattern:$0x75316420]
    %5701 = vrot.lane.b32.xlu0 %v5696, 121
    %v5702 = vpop.permute.xlu0 %5701
    %5703 = vrot.lane.b32.xlu0 %v5697, 121
    %v5704 = vpop.permute.xlu0 %5703
    %5705 = vrot.lane.b32.xlu0 %v5698, 121
    %v5706 = vpop.permute.xlu0 %5705
    %5707 = vrot.lane.b32.xlu0 %v5699, 121
    %v5708 = vpop.permute.xlu0 %5707
    %5709 = vrot.lane.b32.xlu0 %v5700, 121
    %v5710 = vpop.permute.xlu0 %5709
    %v5711 = vsel %vm1882, %v5702, %v5704
    %v5712 = vsel %vm1882, %v5704, %v5706
    %v5713 = vsel %vm1882, %v5706, %v5708
    %v5714 = vsel %vm1882, %v5708, %v5710
    %v5716 = vsel %vm3516, %v5687, 0
    %v5718 = vsel %vm3347, %v5711, 0
    %v5720 = vsel %vm3347, %v5712, 0
    %v5722 = vsel %vm3347, %v5713, 0
    %v5724 = vsel %vm3347, %v5714, 0
    %5726 = vmatpush.msra.mxu0 0.0
    %5727 = vmatpush.msra.mxu0 0.0
    %5728 = vmatpush.msra.mxu0 0.0
    %5729 = vmatpush.msra.mxu0 0.0
    %5730 = vmatpush.msra.mxu0 0.0
    %5731 = vmatpush.msra.mxu0 0.0
    %5732 = vmatpush.msra.mxu0 0.0
    %5733 = vmatpush.msra.mxu0 0.0
    %5734 = vmatpush.msra.mxu0 0.0
    %5735 = vmatpush.msra.mxu0 0.0
    %5736 = vmatpush.msra.mxu0 0.0
    %5737 = vmatpush.msra.mxu0 0.0
    %5738 = vmatpush.msra.mxu0 0.0
    %5739 = vmatpush.msra.mxu0 0.0
    %5740 = vmatpush.msra.mxu0 0.0
    %5741 = vmatpush.msra.mxu0 %v5718
    %5742 = vmatmul.f32.gmra.mxu0 %v5716
    %v5743 = vpop.f32.mrf.mxu0
    %v5744 = vadd.f32 0.0, %v5743
    %5745 = vdwg.mxu0
    %5746 = vmatpush.msra.mxu0 0.0
    %5747 = vmatpush.msra.mxu0 0.0
    %5748 = vmatpush.msra.mxu0 0.0
    %5749 = vmatpush.msra.mxu0 0.0
    %5750 = vmatpush.msra.mxu0 0.0
    %5751 = vmatpush.msra.mxu0 0.0
    %5752 = vmatpush.msra.mxu0 0.0
    %5753 = vmatpush.msra.mxu0 0.0
    %5754 = vmatpush.msra.mxu0 0.0
    %5755 = vmatpush.msra.mxu0 0.0
    %5756 = vmatpush.msra.mxu0 0.0
    %5757 = vmatpush.msra.mxu0 0.0
    %5758 = vmatpush.msra.mxu0 0.0
    %5759 = vmatpush.msra.mxu0 0.0
    %5760 = vmatpush.msra.mxu0 0.0
    %5761 = vmatpush.msra.mxu0 %v5720
    %5762 = vmatmul.f32.gmra.mxu0 %v5716
    %v5763 = vpop.f32.mrf.mxu0
    %v5764 = vadd.f32 0.0, %v5763
    %5765 = vdwg.mxu0
    %5766 = vmatpush.msra.mxu0 0.0
    %5767 = vmatpush.msra.mxu0 0.0
    %5768 = vmatpush.msra.mxu0 0.0
    %5769 = vmatpush.msra.mxu0 0.0
    %5770 = vmatpush.msra.mxu0 0.0
    %5771 = vmatpush.msra.mxu0 0.0
    %5772 = vmatpush.msra.mxu0 0.0
    %5773 = vmatpush.msra.mxu0 0.0
    %5774 = vmatpush.msra.mxu0 0.0
    %5775 = vmatpush.msra.mxu0 0.0
    %5776 = vmatpush.msra.mxu0 0.0
    %5777 = vmatpush.msra.mxu0 0.0
    %5778 = vmatpush.msra.mxu0 0.0
    %5779 = vmatpush.msra.mxu0 0.0
    %5780 = vmatpush.msra.mxu0 0.0
    %5781 = vmatpush.msra.mxu0 %v5722
    %5782 = vmatmul.f32.gmra.mxu0 %v5716
    %v5783 = vpop.f32.mrf.mxu0
    %v5784 = vadd.f32 0.0, %v5783
    %5785 = vdwg.mxu0
    %5786 = vmatpush.msra.mxu0 0.0
    %5787 = vmatpush.msra.mxu0 0.0
    %5788 = vmatpush.msra.mxu0 0.0
    %5789 = vmatpush.msra.mxu0 0.0
    %5790 = vmatpush.msra.mxu0 0.0
    %5791 = vmatpush.msra.mxu0 0.0
    %5792 = vmatpush.msra.mxu0 0.0
    %5793 = vmatpush.msra.mxu0 0.0
    %5794 = vmatpush.msra.mxu0 0.0
    %5795 = vmatpush.msra.mxu0 0.0
    %5796 = vmatpush.msra.mxu0 0.0
    %5797 = vmatpush.msra.mxu0 0.0
    %5798 = vmatpush.msra.mxu0 0.0
    %5799 = vmatpush.msra.mxu0 0.0
    %5800 = vmatpush.msra.mxu0 0.0
    %5801 = vmatpush.msra.mxu0 %v5724
    %5802 = vmatmul.f32.gmra.mxu0 %v5716
    %v5803 = vpop.f32.mrf.mxu0
    %v5804 = vadd.f32 0.0, %v5803
    %5805 = vdwg.mxu0
    %v5806 = vadd.f32 %v5654, %v5744
    %v5807 = vadd.f32 %v5655, %v5764
    %v5808 = vadd.f32 %v5656, %v5784
    %v5809 = vadd.f32 %v5657, %v5804
    %v5810 = vld [vmem:[#allocation3 + $0x4] sm:$0xff]
    %v5811 = vld [vmem:[#allocation3 + $0xc] sm:$0xff]
    %v5812 = vld [vmem:[#allocation3 + $0x14] sm:$0xf]
    %v5813 = vld [vmem:[%s2097] ss:$8 sm:$0xf]
    %v5815 = vperm.slane %v5813, 0
    %v5816 = vperm.slane %v5813, 1
    %v5817 = vperm.slane %v5813, 2
    %v5818 = vperm.slane %v5813, 3
    %v5819 = vrot.slane %v5816, 4
    %v5820 = vrot.slane %v5818, 4
    %v5821 = vsel %vm3347, %v5815, %v5819
    %v5822 = vsel %vm3347, %v5817, %v5820
    %5823 = vrot.lane.b32.xlu0 %v5821, 8
    %v5824 = vpop.permute.xlu0 %5823
    %5825 = vrot.lane.b32.xlu0 %v5822, 8
    %v5826 = vpop.permute.xlu0 %5825
    %v5827 = vrot.slane %v5824, 4
    %v5828 = vrot.slane %v5826, 4
    %v5829 = vsel %vm71, %v5827, %v5824
    %v5830 = vsel %vm3347, %v5827, %v5828
    %v5831 = vsel %vm71, %v5830, %v5826
    %v5835 = vmul.f32 %v5810, %v5829
    %v5836 = vmul.f32 %v5811, %v5831
    %v5837 = vmul.f32 %v5812, %v5828
    %s5838 = scalar_lea.vmem %s6, 128
    %v5839 = vld [vmem:[%s5838] sm:$0xff]
    %5843 = vst [vmem:[#allocation1] ss:$2 sm:$0xff] %v5835
    %s5844 = scalar_lea.vmem [#allocation1], 16
    %5845 = vst [vmem:[%s5844] ss:$2 sm:$0xff] %v5836
    %s5846 = scalar_lea.vmem [#allocation1], 32
    %5847 = vst [vmem:[%s5846] ss:$2 sm:$0xff] %v5837
    %v5848 = vld.sshfl [vmem:[#allocation1] sm:$0xff pattern:$0x75316420]
    %v5849 = vld.sshfl [vmem:[#allocation1 + $0x8] sm:$0xff pattern:$0x75316420]
    %v5850 = vld.sshfl [vmem:[#allocation1 + $0x10] sm:$0xff pattern:$0x75316420]
    %v5851 = vld.sshfl [vmem:[#allocation1 + $0x18] sm:$0xff pattern:$0x75316420]
    %v5852 = vld.sshfl [vmem:[#allocation1 + $0x20] sm:$0xff pattern:$0x75316420]
    %5853 = vrot.lane.b32.xlu0 %v5848, 120
    %v5854 = vpop.permute.xlu0 %5853
    %5855 = vrot.lane.b32.xlu0 %v5849, 120
    %v5856 = vpop.permute.xlu0 %5855
    %5857 = vrot.lane.b32.xlu0 %v5850, 120
    %v5858 = vpop.permute.xlu0 %5857
    %5859 = vrot.lane.b32.xlu0 %v5851, 120
    %v5860 = vpop.permute.xlu0 %5859
    %5861 = vrot.lane.b32.xlu0 %v5852, 120
    %v5862 = vpop.permute.xlu0 %5861
    %v5863 = vsel %vm2005, %v5854, %v5856
    %v5864 = vsel %vm2005, %v5856, %v5858
    %v5865 = vsel %vm2005, %v5858, %v5860
    %v5866 = vsel %vm2005, %v5860, %v5862
    %v5868 = vsel %vm3516, %v5839, 0
    %v5870 = vsel %vm3347, %v5863, 0
    %v5872 = vsel %vm3347, %v5864, 0
    %v5874 = vsel %vm3347, %v5865, 0
    %v5876 = vsel %vm3347, %v5866, 0
    %5878 = vmatpush.msra.mxu0 0.0
    %5879 = vmatpush.msra.mxu0 0.0
    %5880 = vmatpush.msra.mxu0 0.0
    %5881 = vmatpush.msra.mxu0 0.0
    %5882 = vmatpush.msra.mxu0 0.0
    %5883 = vmatpush.msra.mxu0 0.0
    %5884 = vmatpush.msra.mxu0 0.0
    %5885 = vmatpush.msra.mxu0 0.0
    %5886 = vmatpush.msra.mxu0 0.0
    %5887 = vmatpush.msra.mxu0 0.0
    %5888 = vmatpush.msra.mxu0 0.0
    %5889 = vmatpush.msra.mxu0 0.0
    %5890 = vmatpush.msra.mxu0 0.0
    %5891 = vmatpush.msra.mxu0 0.0
    %5892 = vmatpush.msra.mxu0 0.0
    %5893 = vmatpush.msra.mxu0 %v5870
    %5894 = vmatmul.f32.gmra.mxu0 %v5868
    %v5895 = vpop.f32.mrf.mxu0
    %v5896 = vadd.f32 0.0, %v5895
    %5897 = vdwg.mxu0
    %5898 = vmatpush.msra.mxu0 0.0
    %5899 = vmatpush.msra.mxu0 0.0
    %5900 = vmatpush.msra.mxu0 0.0
    %5901 = vmatpush.msra.mxu0 0.0
    %5902 = vmatpush.msra.mxu0 0.0
    %5903 = vmatpush.msra.mxu0 0.0
    %5904 = vmatpush.msra.mxu0 0.0
    %5905 = vmatpush.msra.mxu0 0.0
    %5906 = vmatpush.msra.mxu0 0.0
    %5907 = vmatpush.msra.mxu0 0.0
    %5908 = vmatpush.msra.mxu0 0.0
    %5909 = vmatpush.msra.mxu0 0.0
    %5910 = vmatpush.msra.mxu0 0.0
    %5911 = vmatpush.msra.mxu0 0.0
    %5912 = vmatpush.msra.mxu0 0.0
    %5913 = vmatpush.msra.mxu0 %v5872
    %5914 = vmatmul.f32.gmra.mxu0 %v5868
    %v5915 = vpop.f32.mrf.mxu0
    %v5916 = vadd.f32 0.0, %v5915
    %5917 = vdwg.mxu0
    %5918 = vmatpush.msra.mxu0 0.0
    %5919 = vmatpush.msra.mxu0 0.0
    %5920 = vmatpush.msra.mxu0 0.0
    %5921 = vmatpush.msra.mxu0 0.0
    %5922 = vmatpush.msra.mxu0 0.0
    %5923 = vmatpush.msra.mxu0 0.0
    %5924 = vmatpush.msra.mxu0 0.0
    %5925 = vmatpush.msra.mxu0 0.0
    %5926 = vmatpush.msra.mxu0 0.0
    %5927 = vmatpush.msra.mxu0 0.0
    %5928 = vmatpush.msra.mxu0 0.0
    %5929 = vmatpush.msra.mxu0 0.0
    %5930 = vmatpush.msra.mxu0 0.0
    %5931 = vmatpush.msra.mxu0 0.0
    %5932 = vmatpush.msra.mxu0 0.0
    %5933 = vmatpush.msra.mxu0 %v5874
    %5934 = vmatmul.f32.gmra.mxu0 %v5868
    %v5935 = vpop.f32.mrf.mxu0
    %v5936 = vadd.f32 0.0, %v5935
    %5937 = vdwg.mxu0
    %5938 = vmatpush.msra.mxu0 0.0
    %5939 = vmatpush.msra.mxu0 0.0
    %5940 = vmatpush.msra.mxu0 0.0
    %5941 = vmatpush.msra.mxu0 0.0
    %5942 = vmatpush.msra.mxu0 0.0
    %5943 = vmatpush.msra.mxu0 0.0
    %5944 = vmatpush.msra.mxu0 0.0
    %5945 = vmatpush.msra.mxu0 0.0
    %5946 = vmatpush.msra.mxu0 0.0
    %5947 = vmatpush.msra.mxu0 0.0
    %5948 = vmatpush.msra.mxu0 0.0
    %5949 = vmatpush.msra.mxu0 0.0
    %5950 = vmatpush.msra.mxu0 0.0
    %5951 = vmatpush.msra.mxu0 0.0
    %5952 = vmatpush.msra.mxu0 0.0
    %5953 = vmatpush.msra.mxu0 %v5876
    %5954 = vmatmul.f32.gmra.mxu0 %v5868
    %v5955 = vpop.f32.mrf.mxu0
    %v5956 = vadd.f32 0.0, %v5955
    %5957 = vdwg.mxu0
    %v5958 = vadd.f32 %v5806, %v5896
    %v5959 = vadd.f32 %v5807, %v5916
    %v5960 = vadd.f32 %v5808, %v5936
    %v5961 = vadd.f32 %v5809, %v5956
    %v5962 = vld [vmem:[#allocation3 + $0x4] sm:$0xff]
    %v5963 = vld [vmem:[#allocation3 + $0xc] sm:$0xff]
    %v5964 = vld [vmem:[#allocation3 + $0x14] sm:$0xf]
    %v5965 = vld [vmem:[%s2220] ss:$8 sm:$0xf]
    %v5967 = vperm.slane %v5965, 0
    %v5968 = vperm.slane %v5965, 1
    %v5969 = vperm.slane %v5965, 2
    %v5970 = vperm.slane %v5965, 3
    %v5971 = vrot.slane %v5968, 4
    %v5972 = vrot.slane %v5970, 4
    %v5973 = vsel %vm3347, %v5967, %v5971
    %v5974 = vsel %vm3347, %v5969, %v5972
    %5975 = vrot.lane.b32.xlu0 %v5973, 9
    %v5976 = vpop.permute.xlu0 %5975
    %5977 = vrot.lane.b32.xlu0 %v5974, 9
    %v5978 = vpop.permute.xlu0 %5977
    %v5979 = vrot.slane %v5976, 4
    %v5980 = vrot.slane %v5978, 4
    %v5981 = vsel %vm1169, %v5979, %v5976
    %v5982 = vsel %vm3347, %v5979, %v5980
    %v5983 = vsel %vm1169, %v5982, %v5978
    %v5987 = vmul.f32 %v5962, %v5981
    %v5988 = vmul.f32 %v5963, %v5983
    %v5989 = vmul.f32 %v5964, %v5980
    %s5990 = scalar_lea.vmem %s6, 136
    %v5991 = vld [vmem:[%s5990] sm:$0xff]
    %5995 = vst [vmem:[#allocation1] ss:$2 sm:$0xff] %v5987
    %s5996 = scalar_lea.vmem [#allocation1], 16
    %5997 = vst [vmem:[%s5996] ss:$2 sm:$0xff] %v5988
    %s5998 = scalar_lea.vmem [#allocation1], 32
    %5999 = vst [vmem:[%s5998] ss:$2 sm:$0xff] %v5989
    %v6000 = vld.sshfl [vmem:[#allocation1] sm:$0xff pattern:$0x75316420]
    %v6001 = vld.sshfl [vmem:[#allocation1 + $0x8] sm:$0xff pattern:$0x75316420]
    %v6002 = vld.sshfl [vmem:[#allocation1 + $0x10] sm:$0xff pattern:$0x75316420]
    %v6003 = vld.sshfl [vmem:[#allocation1 + $0x18] sm:$0xff pattern:$0x75316420]
    %v6004 = vld.sshfl [vmem:[#allocation1 + $0x20] sm:$0xff pattern:$0x75316420]
    %6005 = vrot.lane.b32.xlu0 %v6000, 119
    %v6006 = vpop.permute.xlu0 %6005
    %6007 = vrot.lane.b32.xlu0 %v6001, 119
    %v6008 = vpop.permute.xlu0 %6007
    %6009 = vrot.lane.b32.xlu0 %v6002, 119
    %v6010 = vpop.permute.xlu0 %6009
    %6011 = vrot.lane.b32.xlu0 %v6003, 119
    %v6012 = vpop.permute.xlu0 %6011
    %6013 = vrot.lane.b32.xlu0 %v6004, 119
    %v6014 = vpop.permute.xlu0 %6013
    %v6015 = vsel %vm2128, %v6006, %v6008
    %v6016 = vsel %vm2128, %v6008, %v6010
    %v6017 = vsel %vm2128, %v6010, %v6012
    %v6018 = vsel %vm2128, %v6012, %v6014
    %v6020 = vsel %vm3516, %v5991, 0
    %v6022 = vsel %vm3347, %v6015, 0
    %v6024 = vsel %vm3347, %v6016, 0
    %v6026 = vsel %vm3347, %v6017, 0
    %v6028 = vsel %vm3347, %v6018, 0
    %6030 = vmatpush.msra.mxu0 0.0
    %6031 = vmatpush.msra.mxu0 0.0
    %6032 = vmatpush.msra.mxu0 0.0
    %6033 = vmatpush.msra.mxu0 0.0
    %6034 = vmatpush.msra.mxu0 0.0
    %6035 = vmatpush.msra.mxu0 0.0
    %6036 = vmatpush.msra.mxu0 0.0
    %6037 = vmatpush.msra.mxu0 0.0
    %6038 = vmatpush.msra.mxu0 0.0
    %6039 = vmatpush.msra.mxu0 0.0
    %6040 = vmatpush.msra.mxu0 0.0
    %6041 = vmatpush.msra.mxu0 0.0
    %6042 = vmatpush.msra.mxu0 0.0
    %6043 = vmatpush.msra.mxu0 0.0
    %6044 = vmatpush.msra.mxu0 0.0
    %6045 = vmatpush.msra.mxu0 %v6022
    %6046 = vmatmul.f32.gmra.mxu0 %v6020
    %v6047 = vpop.f32.mrf.mxu0
    %v6048 = vadd.f32 0.0, %v6047
    %6049 = vdwg.mxu0
    %6050 = vmatpush.msra.mxu0 0.0
    %6051 = vmatpush.msra.mxu0 0.0
    %6052 = vmatpush.msra.mxu0 0.0
    %6053 = vmatpush.msra.mxu0 0.0
    %6054 = vmatpush.msra.mxu0 0.0
    %6055 = vmatpush.msra.mxu0 0.0
    %6056 = vmatpush.msra.mxu0 0.0
    %6057 = vmatpush.msra.mxu0 0.0
    %6058 = vmatpush.msra.mxu0 0.0
    %6059 = vmatpush.msra.mxu0 0.0
    %6060 = vmatpush.msra.mxu0 0.0
    %6061 = vmatpush.msra.mxu0 0.0
    %6062 = vmatpush.msra.mxu0 0.0
    %6063 = vmatpush.msra.mxu0 0.0
    %6064 = vmatpush.msra.mxu0 0.0
    %6065 = vmatpush.msra.mxu0 %v6024
    %6066 = vmatmul.f32.gmra.mxu0 %v6020
    %v6067 = vpop.f32.mrf.mxu0
    %v6068 = vadd.f32 0.0, %v6067
    %6069 = vdwg.mxu0
    %6070 = vmatpush.msra.mxu0 0.0
    %6071 = vmatpush.msra.mxu0 0.0
    %6072 = vmatpush.msra.mxu0 0.0
    %6073 = vmatpush.msra.mxu0 0.0
    %6074 = vmatpush.msra.mxu0 0.0
    %6075 = vmatpush.msra.mxu0 0.0
    %6076 = vmatpush.msra.mxu0 0.0
    %6077 = vmatpush.msra.mxu0 0.0
    %6078 = vmatpush.msra.mxu0 0.0
    %6079 = vmatpush.msra.mxu0 0.0
    %6080 = vmatpush.msra.mxu0 0.0
    %6081 = vmatpush.msra.mxu0 0.0
    %6082 = vmatpush.msra.mxu0 0.0
    %6083 = vmatpush.msra.mxu0 0.0
    %6084 = vmatpush.msra.mxu0 0.0
    %6085 = vmatpush.msra.mxu0 %v6026
    %6086 = vmatmul.f32.gmra.mxu0 %v6020
    %v6087 = vpop.f32.mrf.mxu0
    %v6088 = vadd.f32 0.0, %v6087
    %6089 = vdwg.mxu0
    %6090 = vmatpush.msra.mxu0 0.0
    %6091 = vmatpush.msra.mxu0 0.0
    %6092 = vmatpush.msra.mxu0 0.0
    %6093 = vmatpush.msra.mxu0 0.0
    %6094 = vmatpush.msra.mxu0 0.0
    %6095 = vmatpush.msra.mxu0 0.0
    %6096 = vmatpush.msra.mxu0 0.0
    %6097 = vmatpush.msra.mxu0 0.0
    %6098 = vmatpush.msra.mxu0 0.0
    %6099 = vmatpush.msra.mxu0 0.0
    %6100 = vmatpush.msra.mxu0 0.0
    %6101 = vmatpush.msra.mxu0 0.0
    %6102 = vmatpush.msra.mxu0 0.0
    %6103 = vmatpush.msra.mxu0 0.0
    %6104 = vmatpush.msra.mxu0 0.0
    %6105 = vmatpush.msra.mxu0 %v6028
    %6106 = vmatmul.f32.gmra.mxu0 %v6020
    %v6107 = vpop.f32.mrf.mxu0
    %v6108 = vadd.f32 0.0, %v6107
    %6109 = vdwg.mxu0
    %v6110 = vadd.f32 %v5958, %v6048
    %v6111 = vadd.f32 %v5959, %v6068
    %v6112 = vadd.f32 %v5960, %v6088
    %v6113 = vadd.f32 %v5961, %v6108
    %v6114 = vld [vmem:[#allocation3 + $0x4] sm:$0xff]
    %v6115 = vld [vmem:[#allocation3 + $0xc] sm:$0xff]
    %v6116 = vld [vmem:[#allocation3 + $0x14] sm:$0xf]
    %v6117 = vld [vmem:[%s2342] ss:$8 sm:$0xf]
    %v6119 = vperm.slane %v6117, 0
    %v6120 = vperm.slane %v6117, 1
    %v6121 = vperm.slane %v6117, 2
    %v6122 = vperm.slane %v6117, 3
    %v6123 = vrot.slane %v6120, 4
    %v6124 = vrot.slane %v6122, 4
    %v6125 = vsel %vm3347, %v6119, %v6123
    %v6126 = vsel %vm3347, %v6121, %v6124
    %6127 = vrot.lane.b32.xlu0 %v6125, 55
    %v6128 = vpop.permute.xlu0 %6127
    %6129 = vrot.lane.b32.xlu0 %v6126, 55
    %v6130 = vpop.permute.xlu0 %6129
    %v6131 = vrot.slane %v6128, 4
    %v6132 = vrot.slane %v6130, 4
    %v6133 = vsel %vm1046, %v6131, %v6128
    %v6134 = vsel %vm3347, %v6131, %v6132
    %v6135 = vsel %vm1046, %v6134, %v6130
    %v6139 = vmul.f32 %v6114, %v6133
    %v6140 = vmul.f32 %v6115, %v6135
    %v6141 = vmul.f32 %v6116, %v6132
    %s6142 = scalar_lea.vmem %s6, 144
    %v6143 = vld [vmem:[%s6142] sm:$0xff]
    %6147 = vst [vmem:[#allocation1] ss:$2 sm:$0xff] %v6139
    %s6148 = scalar_lea.vmem [#allocation1], 16
    %6149 = vst [vmem:[%s6148] ss:$2 sm:$0xff] %v6140
    %s6150 = scalar_lea.vmem [#allocation1], 32
    %6151 = vst [vmem:[%s6150] ss:$2 sm:$0xff] %v6141
    %v6152 = vld.sshfl [vmem:[#allocation1] sm:$0xff pattern:$0x75316420]
    %v6153 = vld.sshfl [vmem:[#allocation1 + $0x8] sm:$0xff pattern:$0x75316420]
    %v6154 = vld.sshfl [vmem:[#allocation1 + $0x10] sm:$0xff pattern:$0x75316420]
    %v6155 = vld.sshfl [vmem:[#allocation1 + $0x18] sm:$0xff pattern:$0x75316420]
    %v6156 = vld.sshfl [vmem:[#allocation1 + $0x20] sm:$0xff pattern:$0x75316420]
    %6157 = vrot.lane.b32.xlu0 %v6152, 73
    %v6158 = vpop.permute.xlu0 %6157
    %6159 = vrot.lane.b32.xlu0 %v6153, 73
    %v6160 = vpop.permute.xlu0 %6159
    %6161 = vrot.lane.b32.xlu0 %v6154, 73
    %v6162 = vpop.permute.xlu0 %6161
    %6163 = vrot.lane.b32.xlu0 %v6155, 73
    %v6164 = vpop.permute.xlu0 %6163
    %6165 = vrot.lane.b32.xlu0 %v6156, 73
    %v6166 = vpop.permute.xlu0 %6165
    %v6167 = vsel %vm62, %v6158, %v6160
    %v6168 = vsel %vm62, %v6160, %v6162
    %v6169 = vsel %vm62, %v6162, %v6164
    %v6170 = vsel %vm62, %v6164, %v6166
    %v6172 = vsel %vm3516, %v6143, 0
    %v6174 = vsel %vm3347, %v6167, 0
    %v6176 = vsel %vm3347, %v6168, 0
    %v6178 = vsel %vm3347, %v6169, 0
    %v6180 = vsel %vm3347, %v6170, 0
    %6182 = vmatpush.msra.mxu0 0.0
    %6183 = vmatpush.msra.mxu0 0.0
    %6184 = vmatpush.msra.mxu0 0.0
    %6185 = vmatpush.msra.mxu0 0.0
    %6186 = vmatpush.msra.mxu0 0.0
    %6187 = vmatpush.msra.mxu0 0.0
    %6188 = vmatpush.msra.mxu0 0.0
    %6189 = vmatpush.msra.mxu0 0.0
    %6190 = vmatpush.msra.mxu0 0.0
    %6191 = vmatpush.msra.mxu0 0.0
    %6192 = vmatpush.msra.mxu0 0.0
    %6193 = vmatpush.msra.mxu0 0.0
    %6194 = vmatpush.msra.mxu0 0.0
    %6195 = vmatpush.msra.mxu0 0.0
    %6196 = vmatpush.msra.mxu0 0.0
    %6197 = vmatpush.msra.mxu0 %v6174
    %6198 = vmatmul.f32.gmra.mxu0 %v6172
    %v6199 = vpop.f32.mrf.mxu0
    %v6200 = vadd.f32 0.0, %v6199
    %6201 = vdwg.mxu0
    %6202 = vmatpush.msra.mxu0 0.0
    %6203 = vmatpush.msra.mxu0 0.0
    %6204 = vmatpush.msra.mxu0 0.0
    %6205 = vmatpush.msra.mxu0 0.0
    %6206 = vmatpush.msra.mxu0 0.0
    %6207 = vmatpush.msra.mxu0 0.0
    %6208 = vmatpush.msra.mxu0 0.0
    %6209 = vmatpush.msra.mxu0 0.0
    %6210 = vmatpush.msra.mxu0 0.0
    %6211 = vmatpush.msra.mxu0 0.0
    %6212 = vmatpush.msra.mxu0 0.0
    %6213 = vmatpush.msra.mxu0 0.0
    %6214 = vmatpush.msra.mxu0 0.0
    %6215 = vmatpush.msra.mxu0 0.0
    %6216 = vmatpush.msra.mxu0 0.0
    %6217 = vmatpush.msra.mxu0 %v6176
    %6218 = vmatmul.f32.gmra.mxu0 %v6172
    %v6219 = vpop.f32.mrf.mxu0
    %v6220 = vadd.f32 0.0, %v6219
    %6221 = vdwg.mxu0
    %6222 = vmatpush.msra.mxu0 0.0
    %6223 = vmatpush.msra.mxu0 0.0
    %6224 = vmatpush.msra.mxu0 0.0
    %6225 = vmatpush.msra.mxu0 0.0
    %6226 = vmatpush.msra.mxu0 0.0
    %6227 = vmatpush.msra.mxu0 0.0
    %6228 = vmatpush.msra.mxu0 0.0
    %6229 = vmatpush.msra.mxu0 0.0
    %6230 = vmatpush.msra.mxu0 0.0
    %6231 = vmatpush.msra.mxu0 0.0
    %6232 = vmatpush.msra.mxu0 0.0
    %6233 = vmatpush.msra.mxu0 0.0
    %6234 = vmatpush.msra.mxu0 0.0
    %6235 = vmatpush.msra.mxu0 0.0
    %6236 = vmatpush.msra.mxu0 0.0
    %6237 = vmatpush.msra.mxu0 %v6178
    %6238 = vmatmul.f32.gmra.mxu0 %v6172
    %v6239 = vpop.f32.mrf.mxu0
    %v6240 = vadd.f32 0.0, %v6239
    %6241 = vdwg.mxu0
    %6242 = vmatpush.msra.mxu0 0.0
    %6243 = vmatpush.msra.mxu0 0.0
    %6244 = vmatpush.msra.mxu0 0.0
    %6245 = vmatpush.msra.mxu0 0.0
    %6246 = vmatpush.msra.mxu0 0.0
    %6247 = vmatpush.msra.mxu0 0.0
    %6248 = vmatpush.msra.mxu0 0.0
    %6249 = vmatpush.msra.mxu0 0.0
    %6250 = vmatpush.msra.mxu0 0.0
    %6251 = vmatpush.msra.mxu0 0.0
    %6252 = vmatpush.msra.mxu0 0.0
    %6253 = vmatpush.msra.mxu0 0.0
    %6254 = vmatpush.msra.mxu0 0.0
    %6255 = vmatpush.msra.mxu0 0.0
    %6256 = vmatpush.msra.mxu0 0.0
    %6257 = vmatpush.msra.mxu0 %v6180
    %6258 = vmatmul.f32.gmra.mxu0 %v6172
    %v6259 = vpop.f32.mrf.mxu0
    %v6260 = vadd.f32 0.0, %v6259
    %6261 = vdwg.mxu0
    %v6262 = vadd.f32 %v6110, %v6200
    %v6263 = vadd.f32 %v6111, %v6220
    %v6264 = vadd.f32 %v6112, %v6240
    %v6265 = vadd.f32 %v6113, %v6260
    %v6266 = vld [vmem:[#allocation3 + $0x4] sm:$0xff]
    %v6267 = vld [vmem:[#allocation3 + $0xc] sm:$0xff]
    %v6268 = vld [vmem:[#allocation3 + $0x14] sm:$0xf]
    %v6269 = vld [vmem:[%s2464] ss:$8 sm:$0xf]
    %v6271 = vperm.slane %v6269, 0
    %v6272 = vperm.slane %v6269, 1
    %v6273 = vperm.slane %v6269, 2
    %v6274 = vperm.slane %v6269, 3
    %v6275 = vrot.slane %v6272, 4
    %v6276 = vrot.slane %v6274, 4
    %v6277 = vsel %vm3347, %v6271, %v6275
    %v6278 = vsel %vm3347, %v6273, %v6276
    %6279 = vrot.lane.b32.xlu0 %v6277, 56
    %v6280 = vpop.permute.xlu0 %6279
    %6281 = vrot.lane.b32.xlu0 %v6278, 56
    %v6282 = vpop.permute.xlu0 %6281
    %v6283 = vrot.slane %v6280, 4
    %v6284 = vrot.slane %v6282, 4
    %v6285 = vsel %vm923, %v6283, %v6280
    %v6286 = vsel %vm3347, %v6283, %v6284
    %v6287 = vsel %vm923, %v6286, %v6282
    %v6291 = vmul.f32 %v6266, %v6285
    %v6292 = vmul.f32 %v6267, %v6287
    %v6293 = vmul.f32 %v6268, %v6284
    %s6294 = scalar_lea.vmem %s6, 152
    %v6295 = vld [vmem:[%s6294] sm:$0xff]
    %6299 = vst [vmem:[#allocation1] ss:$2 sm:$0xff] %v6291
    %s6300 = scalar_lea.vmem [#allocation1], 16
    %6301 = vst [vmem:[%s6300] ss:$2 sm:$0xff] %v6292
    %s6302 = scalar_lea.vmem [#allocation1], 32
    %6303 = vst [vmem:[%s6302] ss:$2 sm:$0xff] %v6293
    %v6304 = vld.sshfl [vmem:[#allocation1] sm:$0xff pattern:$0x75316420]
    %v6305 = vld.sshfl [vmem:[#allocation1 + $0x8] sm:$0xff pattern:$0x75316420]
    %v6306 = vld.sshfl [vmem:[#allocation1 + $0x10] sm:$0xff pattern:$0x75316420]
    %v6307 = vld.sshfl [vmem:[#allocation1 + $0x18] sm:$0xff pattern:$0x75316420]
    %v6308 = vld.sshfl [vmem:[#allocation1 + $0x20] sm:$0xff pattern:$0x75316420]
    %6309 = vrot.lane.b32.xlu0 %v6304, 72
    %v6310 = vpop.permute.xlu0 %6309
    %6311 = vrot.lane.b32.xlu0 %v6305, 72
    %v6312 = vpop.permute.xlu0 %6311
    %6313 = vrot.lane.b32.xlu0 %v6306, 72
    %v6314 = vpop.permute.xlu0 %6313
    %6315 = vrot.lane.b32.xlu0 %v6307, 72
    %v6316 = vpop.permute.xlu0 %6315
    %6317 = vrot.lane.b32.xlu0 %v6308, 72
    %v6318 = vpop.permute.xlu0 %6317
    %v6319 = vsel %vm185, %v6310, %v6312
    %v6320 = vsel %vm185, %v6312, %v6314
    %v6321 = vsel %vm185, %v6314, %v6316
    %v6322 = vsel %vm185, %v6316, %v6318
    %v6324 = vsel %vm3516, %v6295, 0
    %v6326 = vsel %vm3347, %v6319, 0
    %v6328 = vsel %vm3347, %v6320, 0
    %v6330 = vsel %vm3347, %v6321, 0
    %v6332 = vsel %vm3347, %v6322, 0
    %6334 = vmatpush.msra.mxu0 0.0
    %6335 = vmatpush.msra.mxu0 0.0
    %6336 = vmatpush.msra.mxu0 0.0
    %6337 = vmatpush.msra.mxu0 0.0
    %6338 = vmatpush.msra.mxu0 0.0
    %6339 = vmatpush.msra.mxu0 0.0
    %6340 = vmatpush.msra.mxu0 0.0
    %6341 = vmatpush.msra.mxu0 0.0
    %6342 = vmatpush.msra.mxu0 0.0
    %6343 = vmatpush.msra.mxu0 0.0
    %6344 = vmatpush.msra.mxu0 0.0
    %6345 = vmatpush.msra.mxu0 0.0
    %6346 = vmatpush.msra.mxu0 0.0
    %6347 = vmatpush.msra.mxu0 0.0
    %6348 = vmatpush.msra.mxu0 0.0
    %6349 = vmatpush.msra.mxu0 %v6326
    %6350 = vmatmul.f32.gmra.mxu0 %v6324
    %v6351 = vpop.f32.mrf.mxu0
    %v6352 = vadd.f32 0.0, %v6351
    %6353 = vdwg.mxu0
    %6354 = vmatpush.msra.mxu0 0.0
    %6355 = vmatpush.msra.mxu0 0.0
    %6356 = vmatpush.msra.mxu0 0.0
    %6357 = vmatpush.msra.mxu0 0.0
    %6358 = vmatpush.msra.mxu0 0.0
    %6359 = vmatpush.msra.mxu0 0.0
    %6360 = vmatpush.msra.mxu0 0.0
    %6361 = vmatpush.msra.mxu0 0.0
    %6362 = vmatpush.msra.mxu0 0.0
    %6363 = vmatpush.msra.mxu0 0.0
    %6364 = vmatpush.msra.mxu0 0.0
    %6365 = vmatpush.msra.mxu0 0.0
    %6366 = vmatpush.msra.mxu0 0.0
    %6367 = vmatpush.msra.mxu0 0.0
    %6368 = vmatpush.msra.mxu0 0.0
    %6369 = vmatpush.msra.mxu0 %v6328
    %6370 = vmatmul.f32.gmra.mxu0 %v6324
    %v6371 = vpop.f32.mrf.mxu0
    %v6372 = vadd.f32 0.0, %v6371
    %6373 = vdwg.mxu0
    %6374 = vmatpush.msra.mxu0 0.0
    %6375 = vmatpush.msra.mxu0 0.0
    %6376 = vmatpush.msra.mxu0 0.0
    %6377 = vmatpush.msra.mxu0 0.0
    %6378 = vmatpush.msra.mxu0 0.0
    %6379 = vmatpush.msra.mxu0 0.0
    %6380 = vmatpush.msra.mxu0 0.0
    %6381 = vmatpush.msra.mxu0 0.0
    %6382 = vmatpush.msra.mxu0 0.0
    %6383 = vmatpush.msra.mxu0 0.0
    %6384 = vmatpush.msra.mxu0 0.0
    %6385 = vmatpush.msra.mxu0 0.0
    %6386 = vmatpush.msra.mxu0 0.0
    %6387 = vmatpush.msra.mxu0 0.0
    %6388 = vmatpush.msra.mxu0 0.0
    %6389 = vmatpush.msra.mxu0 %v6330
    %6390 = vmatmul.f32.gmra.mxu0 %v6324
    %v6391 = vpop.f32.mrf.mxu0
    %v6392 = vadd.f32 0.0, %v6391
    %6393 = vdwg.mxu0
    %6394 = vmatpush.msra.mxu0 0.0
    %6395 = vmatpush.msra.mxu0 0.0
    %6396 = vmatpush.msra.mxu0 0.0
    %6397 = vmatpush.msra.mxu0 0.0
    %6398 = vmatpush.msra.mxu0 0.0
    %6399 = vmatpush.msra.mxu0 0.0
    %6400 = vmatpush.msra.mxu0 0.0
    %6401 = vmatpush.msra.mxu0 0.0
    %6402 = vmatpush.msra.mxu0 0.0
    %6403 = vmatpush.msra.mxu0 0.0
    %6404 = vmatpush.msra.mxu0 0.0
    %6405 = vmatpush.msra.mxu0 0.0
    %6406 = vmatpush.msra.mxu0 0.0
    %6407 = vmatpush.msra.mxu0 0.0
    %6408 = vmatpush.msra.mxu0 0.0
    %6409 = vmatpush.msra.mxu0 %v6332
    %6410 = vmatmul.f32.gmra.mxu0 %v6324
    %v6411 = vpop.f32.mrf.mxu0
    %v6412 = vadd.f32 0.0, %v6411
    %6413 = vdwg.mxu0
    %v6414 = vadd.f32 %v6262, %v6352
    %v6415 = vadd.f32 %v6263, %v6372
    %v6416 = vadd.f32 %v6264, %v6392
    %v6417 = vadd.f32 %v6265, %v6412
    %v6418 = vld [vmem:[#allocation3 + $0x4] sm:$0xff]
    %v6419 = vld [vmem:[#allocation3 + $0xc] sm:$0xff]
    %v6420 = vld [vmem:[#allocation3 + $0x14] sm:$0xf]
    %v6421 = vld [vmem:[%s2586] ss:$8 sm:$0xf]
    %v6423 = vperm.slane %v6421, 0
    %v6424 = vperm.slane %v6421, 1
    %v6425 = vperm.slane %v6421, 2
    %v6426 = vperm.slane %v6421, 3
    %v6427 = vrot.slane %v6424, 4
    %v6428 = vrot.slane %v6426, 4
    %v6429 = vsel %vm3347, %v6423, %v6427
    %v6430 = vsel %vm3347, %v6425, %v6428
    %6431 = vrot.lane.b32.xlu0 %v6429, 57
    %v6432 = vpop.permute.xlu0 %6431
    %6433 = vrot.lane.b32.xlu0 %v6430, 57
    %v6434 = vpop.permute.xlu0 %6433
    %v6435 = vrot.slane %v6432, 4
    %v6436 = vrot.slane %v6434, 4
    %v6437 = vsel %vm800, %v6435, %v6432
    %v6438 = vsel %vm3347, %v6435, %v6436
    %v6439 = vsel %vm800, %v6438, %v6434
    %v6443 = vmul.f32 %v6418, %v6437
    %v6444 = vmul.f32 %v6419, %v6439
    %v6445 = vmul.f32 %v6420, %v6436
    %s6446 = scalar_lea.vmem %s6, 160
    %v6447 = vld [vmem:[%s6446] sm:$0xff]
    %6451 = vst [vmem:[#allocation1] ss:$2 sm:$0xff] %v6443
    %s6452 = scalar_lea.vmem [#allocation1], 16
    %6453 = vst [vmem:[%s6452] ss:$2 sm:$0xff] %v6444
    %s6454 = scalar_lea.vmem [#allocation1], 32
    %6455 = vst [vmem:[%s6454] ss:$2 sm:$0xff] %v6445
    %v6456 = vld.sshfl [vmem:[#allocation1] sm:$0xff pattern:$0x75316420]
    %v6457 = vld.sshfl [vmem:[#allocation1 + $0x8] sm:$0xff pattern:$0x75316420]
    %v6458 = vld.sshfl [vmem:[#allocation1 + $0x10] sm:$0xff pattern:$0x75316420]
    %v6459 = vld.sshfl [vmem:[#allocation1 + $0x18] sm:$0xff pattern:$0x75316420]
    %v6460 = vld.sshfl [vmem:[#allocation1 + $0x20] sm:$0xff pattern:$0x75316420]
    %6461 = vrot.lane.b32.xlu0 %v6456, 71
    %v6462 = vpop.permute.xlu0 %6461
    %6463 = vrot.lane.b32.xlu0 %v6457, 71
    %v6464 = vpop.permute.xlu0 %6463
    %6465 = vrot.lane.b32.xlu0 %v6458, 71
    %v6466 = vpop.permute.xlu0 %6465
    %6467 = vrot.lane.b32.xlu0 %v6459, 71
    %v6468 = vpop.permute.xlu0 %6467
    %6469 = vrot.lane.b32.xlu0 %v6460, 71
    %v6470 = vpop.permute.xlu0 %6469
    %v6471 = vsel %vm308, %v6462, %v6464
    %v6472 = vsel %vm308, %v6464, %v6466
    %v6473 = vsel %vm308, %v6466, %v6468
    %v6474 = vsel %vm308, %v6468, %v6470
    %v6476 = vsel %vm3516, %v6447, 0
    %v6478 = vsel %vm3347, %v6471, 0
    %v6480 = vsel %vm3347, %v6472, 0
    %v6482 = vsel %vm3347, %v6473, 0
    %v6484 = vsel %vm3347, %v6474, 0
    %6486 = vmatpush.msra.mxu0 0.0
    %6487 = vmatpush.msra.mxu0 0.0
    %6488 = vmatpush.msra.mxu0 0.0
    %6489 = vmatpush.msra.mxu0 0.0
    %6490 = vmatpush.msra.mxu0 0.0
    %6491 = vmatpush.msra.mxu0 0.0
    %6492 = vmatpush.msra.mxu0 0.0
    %6493 = vmatpush.msra.mxu0 0.0
    %6494 = vmatpush.msra.mxu0 0.0
    %6495 = vmatpush.msra.mxu0 0.0
    %6496 = vmatpush.msra.mxu0 0.0
    %6497 = vmatpush.msra.mxu0 0.0
    %6498 = vmatpush.msra.mxu0 0.0
    %6499 = vmatpush.msra.mxu0 0.0
    %6500 = vmatpush.msra.mxu0 0.0
    %6501 = vmatpush.msra.mxu0 %v6478
    %6502 = vmatmul.f32.gmra.mxu0 %v6476
    %v6503 = vpop.f32.mrf.mxu0
    %v6504 = vadd.f32 0.0, %v6503
    %6505 = vdwg.mxu0
    %6506 = vmatpush.msra.mxu0 0.0
    %6507 = vmatpush.msra.mxu0 0.0
    %6508 = vmatpush.msra.mxu0 0.0
    %6509 = vmatpush.msra.mxu0 0.0
    %6510 = vmatpush.msra.mxu0 0.0
    %6511 = vmatpush.msra.mxu0 0.0
    %6512 = vmatpush.msra.mxu0 0.0
    %6513 = vmatpush.msra.mxu0 0.0
    %6514 = vmatpush.msra.mxu0 0.0
    %6515 = vmatpush.msra.mxu0 0.0
    %6516 = vmatpush.msra.mxu0 0.0
    %6517 = vmatpush.msra.mxu0 0.0
    %6518 = vmatpush.msra.mxu0 0.0
    %6519 = vmatpush.msra.mxu0 0.0
    %6520 = vmatpush.msra.mxu0 0.0
    %6521 = vmatpush.msra.mxu0 %v6480
    %6522 = vmatmul.f32.gmra.mxu0 %v6476
    %v6523 = vpop.f32.mrf.mxu0
    %v6524 = vadd.f32 0.0, %v6523
    %6525 = vdwg.mxu0
    %6526 = vmatpush.msra.mxu0 0.0
    %6527 = vmatpush.msra.mxu0 0.0
    %6528 = vmatpush.msra.mxu0 0.0
    %6529 = vmatpush.msra.mxu0 0.0
    %6530 = vmatpush.msra.mxu0 0.0
    %6531 = vmatpush.msra.mxu0 0.0
    %6532 = vmatpush.msra.mxu0 0.0
    %6533 = vmatpush.msra.mxu0 0.0
    %6534 = vmatpush.msra.mxu0 0.0
    %6535 = vmatpush.msra.mxu0 0.0
    %6536 = vmatpush.msra.mxu0 0.0
    %6537 = vmatpush.msra.mxu0 0.0
    %6538 = vmatpush.msra.mxu0 0.0
    %6539 = vmatpush.msra.mxu0 0.0
    %6540 = vmatpush.msra.mxu0 0.0
    %6541 = vmatpush.msra.mxu0 %v6482
    %6542 = vmatmul.f32.gmra.mxu0 %v6476
    %v6543 = vpop.f32.mrf.mxu0
    %v6544 = vadd.f32 0.0, %v6543
    %6545 = vdwg.mxu0
    %6546 = vmatpush.msra.mxu0 0.0
    %6547 = vmatpush.msra.mxu0 0.0
    %6548 = vmatpush.msra.mxu0 0.0
    %6549 = vmatpush.msra.mxu0 0.0
    %6550 = vmatpush.msra.mxu0 0.0
    %6551 = vmatpush.msra.mxu0 0.0
    %6552 = vmatpush.msra.mxu0 0.0
    %6553 = vmatpush.msra.mxu0 0.0
    %6554 = vmatpush.msra.mxu0 0.0
    %6555 = vmatpush.msra.mxu0 0.0
    %6556 = vmatpush.msra.mxu0 0.0
    %6557 = vmatpush.msra.mxu0 0.0
    %6558 = vmatpush.msra.mxu0 0.0
    %6559 = vmatpush.msra.mxu0 0.0
    %6560 = vmatpush.msra.mxu0 0.0
    %6561 = vmatpush.msra.mxu0 %v6484
    %6562 = vmatmul.f32.gmra.mxu0 %v6476
    %v6563 = vpop.f32.mrf.mxu0
    %v6564 = vadd.f32 0.0, %v6563
    %6565 = vdwg.mxu0
    %v6566 = vadd.f32 %v6414, %v6504
    %v6567 = vadd.f32 %v6415, %v6524
    %v6568 = vadd.f32 %v6416, %v6544
    %v6569 = vadd.f32 %v6417, %v6564
    %v6570 = vld [vmem:[#allocation3 + $0x4] sm:$0xff]
    %v6571 = vld [vmem:[#allocation3 + $0xc] sm:$0xff]
    %v6572 = vld [vmem:[#allocation3 + $0x14] sm:$0xf]
    %v6573 = vld [vmem:[%s2708] ss:$8 sm:$0xf]
    %v6575 = vperm.slane %v6573, 0
    %v6576 = vperm.slane %v6573, 1
    %v6577 = vperm.slane %v6573, 2
    %v6578 = vperm.slane %v6573, 3
    %v6579 = vrot.slane %v6576, 4
    %v6580 = vrot.slane %v6578, 4
    %v6581 = vsel %vm3347, %v6575, %v6579
    %v6582 = vsel %vm3347, %v6577, %v6580
    %6583 = vrot.lane.b32.xlu0 %v6581, 63
    %v6584 = vpop.permute.xlu0 %6583
    %6585 = vrot.lane.b32.xlu0 %v6582, 63
    %v6586 = vpop.permute.xlu0 %6585
    %v6587 = vrot.slane %v6584, 4
    %v6588 = vrot.slane %v6586, 4
    %v6589 = vsel %vm677, %v6587, %v6584
    %v6590 = vsel %vm3347, %v6587, %v6588
    %v6591 = vsel %vm677, %v6590, %v6586
    %v6595 = vmul.f32 %v6570, %v6589
    %v6596 = vmul.f32 %v6571, %v6591
    %v6597 = vmul.f32 %v6572, %v6588
    %s6598 = scalar_lea.vmem %s6, 168
    %v6599 = vld [vmem:[%s6598] sm:$0xff]
    %6603 = vst [vmem:[#allocation1] ss:$2 sm:$0xff] %v6595
    %s6604 = scalar_lea.vmem [#allocation1], 16
    %6605 = vst [vmem:[%s6604] ss:$2 sm:$0xff] %v6596
    %s6606 = scalar_lea.vmem [#allocation1], 32
    %6607 = vst [vmem:[%s6606] ss:$2 sm:$0xff] %v6597
    %v6608 = vld.sshfl [vmem:[#allocation1] sm:$0xff pattern:$0x75316420]
    %v6609 = vld.sshfl [vmem:[#allocation1 + $0x8] sm:$0xff pattern:$0x75316420]
    %v6610 = vld.sshfl [vmem:[#allocation1 + $0x10] sm:$0xff pattern:$0x75316420]
    %v6611 = vld.sshfl [vmem:[#allocation1 + $0x18] sm:$0xff pattern:$0x75316420]
    %v6612 = vld.sshfl [vmem:[#allocation1 + $0x20] sm:$0xff pattern:$0x75316420]
    %6613 = vrot.lane.b32.xlu0 %v6608, 65
    %v6614 = vpop.permute.xlu0 %6613
    %6615 = vrot.lane.b32.xlu0 %v6609, 65
    %v6616 = vpop.permute.xlu0 %6615
    %6617 = vrot.lane.b32.xlu0 %v6610, 65
    %v6618 = vpop.permute.xlu0 %6617
    %6619 = vrot.lane.b32.xlu0 %v6611, 65
    %v6620 = vpop.permute.xlu0 %6619
    %6621 = vrot.lane.b32.xlu0 %v6612, 65
    %v6622 = vpop.permute.xlu0 %6621
    %v6623 = vsel %vm431, %v6614, %v6616
    %v6624 = vsel %vm431, %v6616, %v6618
    %v6625 = vsel %vm431, %v6618, %v6620
    %v6626 = vsel %vm431, %v6620, %v6622
    %v6628 = vsel %vm3516, %v6599, 0
    %v6630 = vsel %vm3347, %v6623, 0
    %v6632 = vsel %vm3347, %v6624, 0
    %v6634 = vsel %vm3347, %v6625, 0
    %v6636 = vsel %vm3347, %v6626, 0
    %6638 = vmatpush.msra.mxu0 0.0
    %6639 = vmatpush.msra.mxu0 0.0
    %6640 = vmatpush.msra.mxu0 0.0
    %6641 = vmatpush.msra.mxu0 0.0
    %6642 = vmatpush.msra.mxu0 0.0
    %6643 = vmatpush.msra.mxu0 0.0
    %6644 = vmatpush.msra.mxu0 0.0
    %6645 = vmatpush.msra.mxu0 0.0
    %6646 = vmatpush.msra.mxu0 0.0
    %6647 = vmatpush.msra.mxu0 0.0
    %6648 = vmatpush.msra.mxu0 0.0
    %6649 = vmatpush.msra.mxu0 0.0
    %6650 = vmatpush.msra.mxu0 0.0
    %6651 = vmatpush.msra.mxu0 0.0
    %6652 = vmatpush.msra.mxu0 0.0
    %6653 = vmatpush.msra.mxu0 %v6630
    %6654 = vmatmul.f32.gmra.mxu0 %v6628
    %v6655 = vpop.f32.mrf.mxu0
    %v6656 = vadd.f32 0.0, %v6655
    %6657 = vdwg.mxu0
    %6658 = vmatpush.msra.mxu0 0.0
    %6659 = vmatpush.msra.mxu0 0.0
    %6660 = vmatpush.msra.mxu0 0.0
    %6661 = vmatpush.msra.mxu0 0.0
    %6662 = vmatpush.msra.mxu0 0.0
    %6663 = vmatpush.msra.mxu0 0.0
    %6664 = vmatpush.msra.mxu0 0.0
    %6665 = vmatpush.msra.mxu0 0.0
    %6666 = vmatpush.msra.mxu0 0.0
    %6667 = vmatpush.msra.mxu0 0.0
    %6668 = vmatpush.msra.mxu0 0.0
    %6669 = vmatpush.msra.mxu0 0.0
    %6670 = vmatpush.msra.mxu0 0.0
    %6671 = vmatpush.msra.mxu0 0.0
    %6672 = vmatpush.msra.mxu0 0.0
    %6673 = vmatpush.msra.mxu0 %v6632
    %6674 = vmatmul.f32.gmra.mxu0 %v6628
    %v6675 = vpop.f32.mrf.mxu0
    %v6676 = vadd.f32 0.0, %v6675
    %6677 = vdwg.mxu0
    %6678 = vmatpush.msra.mxu0 0.0
    %6679 = vmatpush.msra.mxu0 0.0
    %6680 = vmatpush.msra.mxu0 0.0
    %6681 = vmatpush.msra.mxu0 0.0
    %6682 = vmatpush.msra.mxu0 0.0
    %6683 = vmatpush.msra.mxu0 0.0
    %6684 = vmatpush.msra.mxu0 0.0
    %6685 = vmatpush.msra.mxu0 0.0
    %6686 = vmatpush.msra.mxu0 0.0
    %6687 = vmatpush.msra.mxu0 0.0
    %6688 = vmatpush.msra.mxu0 0.0
    %6689 = vmatpush.msra.mxu0 0.0
    %6690 = vmatpush.msra.mxu0 0.0
    %6691 = vmatpush.msra.mxu0 0.0
    %6692 = vmatpush.msra.mxu0 0.0
    %6693 = vmatpush.msra.mxu0 %v6634
    %6694 = vmatmul.f32.gmra.mxu0 %v6628
    %v6695 = vpop.f32.mrf.mxu0
    %v6696 = vadd.f32 0.0, %v6695
    %6697 = vdwg.mxu0
    %6698 = vmatpush.msra.mxu0 0.0
    %6699 = vmatpush.msra.mxu0 0.0
    %6700 = vmatpush.msra.mxu0 0.0
    %6701 = vmatpush.msra.mxu0 0.0
    %6702 = vmatpush.msra.mxu0 0.0
    %6703 = vmatpush.msra.mxu0 0.0
    %6704 = vmatpush.msra.mxu0 0.0
    %6705 = vmatpush.msra.mxu0 0.0
    %6706 = vmatpush.msra.mxu0 0.0
    %6707 = vmatpush.msra.mxu0 0.0
    %6708 = vmatpush.msra.mxu0 0.0
    %6709 = vmatpush.msra.mxu0 0.0
    %6710 = vmatpush.msra.mxu0 0.0
    %6711 = vmatpush.msra.mxu0 0.0
    %6712 = vmatpush.msra.mxu0 0.0
    %6713 = vmatpush.msra.mxu0 %v6636
    %6714 = vmatmul.f32.gmra.mxu0 %v6628
    %v6715 = vpop.f32.mrf.mxu0
    %v6716 = vadd.f32 0.0, %v6715
    %6717 = vdwg.mxu0
    %v6718 = vadd.f32 %v6566, %v6656
    %v6719 = vadd.f32 %v6567, %v6676
    %v6720 = vadd.f32 %v6568, %v6696
    %v6721 = vadd.f32 %v6569, %v6716
    %v6722 = vld [vmem:[#allocation3 + $0x4] sm:$0xff]
    %v6723 = vld [vmem:[#allocation3 + $0xc] sm:$0xff]
    %v6724 = vld [vmem:[#allocation3 + $0x14] sm:$0xf]
    %v6725 = vld [vmem:[%s2830] ss:$8 sm:$0xf]
    %v6727 = vperm.slane %v6725, 0
    %v6728 = vperm.slane %v6725, 1
    %v6729 = vperm.slane %v6725, 2
    %v6730 = vperm.slane %v6725, 3
    %v6731 = vrot.slane %v6728, 4
    %v6732 = vrot.slane %v6730, 4
    %v6733 = vsel %vm3347, %v6727, %v6731
    %v6734 = vsel %vm3347, %v6729, %v6732
    %6735 = vrot.lane.b32.xlu0 %v6733, 64
    %v6736 = vpop.permute.xlu0 %6735
    %6737 = vrot.lane.b32.xlu0 %v6734, 64
    %v6738 = vpop.permute.xlu0 %6737
    %v6739 = vrot.slane %v6736, 4
    %v6740 = vrot.slane %v6738, 4
    %v6741 = vsel %vm554, %v6739, %v6736
    %v6742 = vsel %vm3347, %v6739, %v6740
    %v6743 = vsel %vm554, %v6742, %v6738
    %v6747 = vmul.f32 %v6722, %v6741
    %v6748 = vmul.f32 %v6723, %v6743
    %v6749 = vmul.f32 %v6724, %v6740
    %s6750 = scalar_lea.vmem %s6, 176
    %v6751 = vld [vmem:[%s6750] sm:$0xff]
    %6755 = vst [vmem:[#allocation1] ss:$2 sm:$0xff] %v6747
    %s6756 = scalar_lea.vmem [#allocation1], 16
    %6757 = vst [vmem:[%s6756] ss:$2 sm:$0xff] %v6748
    %s6758 = scalar_lea.vmem [#allocation1], 32
    %6759 = vst [vmem:[%s6758] ss:$2 sm:$0xff] %v6749
    %v6760 = vld.sshfl [vmem:[#allocation1] sm:$0xff pattern:$0x75316420]
    %v6761 = vld.sshfl [vmem:[#allocation1 + $0x8] sm:$0xff pattern:$0x75316420]
    %v6762 = vld.sshfl [vmem:[#allocation1 + $0x10] sm:$0xff pattern:$0x75316420]
    %v6763 = vld.sshfl [vmem:[#allocation1 + $0x18] sm:$0xff pattern:$0x75316420]
    %v6764 = vld.sshfl [vmem:[#allocation1 + $0x20] sm:$0xff pattern:$0x75316420]
    %6765 = vrot.lane.b32.xlu0 %v6760, 64
    %v6766 = vpop.permute.xlu0 %6765
    %6767 = vrot.lane.b32.xlu0 %v6761, 64
    %v6768 = vpop.permute.xlu0 %6767
    %6769 = vrot.lane.b32.xlu0 %v6762, 64
    %v6770 = vpop.permute.xlu0 %6769
    %6771 = vrot.lane.b32.xlu0 %v6763, 64
    %v6772 = vpop.permute.xlu0 %6771
    %6773 = vrot.lane.b32.xlu0 %v6764, 64
    %v6774 = vpop.permute.xlu0 %6773
    %v6775 = vsel %vm554, %v6766, %v6768
    %v6776 = vsel %vm554, %v6768, %v6770
    %v6777 = vsel %vm554, %v6770, %v6772
    %v6778 = vsel %vm554, %v6772, %v6774
    %v6780 = vsel %vm3516, %v6751, 0
    %v6782 = vsel %vm3347, %v6775, 0
    %v6784 = vsel %vm3347, %v6776, 0
    %v6786 = vsel %vm3347, %v6777, 0
    %v6788 = vsel %vm3347, %v6778, 0
    %6790 = vmatpush.msra.mxu0 0.0
    %6791 = vmatpush.msra.mxu0 0.0
    %6792 = vmatpush.msra.mxu0 0.0
    %6793 = vmatpush.msra.mxu0 0.0
    %6794 = vmatpush.msra.mxu0 0.0
    %6795 = vmatpush.msra.mxu0 0.0
    %6796 = vmatpush.msra.mxu0 0.0
    %6797 = vmatpush.msra.mxu0 0.0
    %6798 = vmatpush.msra.mxu0 0.0
    %6799 = vmatpush.msra.mxu0 0.0
    %6800 = vmatpush.msra.mxu0 0.0
    %6801 = vmatpush.msra.mxu0 0.0
    %6802 = vmatpush.msra.mxu0 0.0
    %6803 = vmatpush.msra.mxu0 0.0
    %6804 = vmatpush.msra.mxu0 0.0
    %6805 = vmatpush.msra.mxu0 %v6782
    %6806 = vmatmul.f32.gmra.mxu0 %v6780
    %v6807 = vpop.f32.mrf.mxu0
    %v6808 = vadd.f32 0.0, %v6807
    %6809 = vdwg.mxu0
    %6810 = vmatpush.msra.mxu0 0.0
    %6811 = vmatpush.msra.mxu0 0.0
    %6812 = vmatpush.msra.mxu0 0.0
    %6813 = vmatpush.msra.mxu0 0.0
    %6814 = vmatpush.msra.mxu0 0.0
    %6815 = vmatpush.msra.mxu0 0.0
    %6816 = vmatpush.msra.mxu0 0.0
    %6817 = vmatpush.msra.mxu0 0.0
    %6818 = vmatpush.msra.mxu0 0.0
    %6819 = vmatpush.msra.mxu0 0.0
    %6820 = vmatpush.msra.mxu0 0.0
    %6821 = vmatpush.msra.mxu0 0.0
    %6822 = vmatpush.msra.mxu0 0.0
    %6823 = vmatpush.msra.mxu0 0.0
    %6824 = vmatpush.msra.mxu0 0.0
    %6825 = vmatpush.msra.mxu0 %v6784
    %6826 = vmatmul.f32.gmra.mxu0 %v6780
    %v6827 = vpop.f32.mrf.mxu0
    %v6828 = vadd.f32 0.0, %v6827
    %6829 = vdwg.mxu0
    %6830 = vmatpush.msra.mxu0 0.0
    %6831 = vmatpush.msra.mxu0 0.0
    %6832 = vmatpush.msra.mxu0 0.0
    %6833 = vmatpush.msra.mxu0 0.0
    %6834 = vmatpush.msra.mxu0 0.0
    %6835 = vmatpush.msra.mxu0 0.0
    %6836 = vmatpush.msra.mxu0 0.0
    %6837 = vmatpush.msra.mxu0 0.0
    %6838 = vmatpush.msra.mxu0 0.0
    %6839 = vmatpush.msra.mxu0 0.0
    %6840 = vmatpush.msra.mxu0 0.0
    %6841 = vmatpush.msra.mxu0 0.0
    %6842 = vmatpush.msra.mxu0 0.0
    %6843 = vmatpush.msra.mxu0 0.0
    %6844 = vmatpush.msra.mxu0 0.0
    %6845 = vmatpush.msra.mxu0 %v6786
    %6846 = vmatmul.f32.gmra.mxu0 %v6780
    %v6847 = vpop.f32.mrf.mxu0
    %v6848 = vadd.f32 0.0, %v6847
    %6849 = vdwg.mxu0
    %6850 = vmatpush.msra.mxu0 0.0
    %6851 = vmatpush.msra.mxu0 0.0
    %6852 = vmatpush.msra.mxu0 0.0
    %6853 = vmatpush.msra.mxu0 0.0
    %6854 = vmatpush.msra.mxu0 0.0
    %6855 = vmatpush.msra.mxu0 0.0
    %6856 = vmatpush.msra.mxu0 0.0
    %6857 = vmatpush.msra.mxu0 0.0
    %6858 = vmatpush.msra.mxu0 0.0
    %6859 = vmatpush.msra.mxu0 0.0
    %6860 = vmatpush.msra.mxu0 0.0
    %6861 = vmatpush.msra.mxu0 0.0
    %6862 = vmatpush.msra.mxu0 0.0
    %6863 = vmatpush.msra.mxu0 0.0
    %6864 = vmatpush.msra.mxu0 0.0
    %6865 = vmatpush.msra.mxu0 %v6788
    %6866 = vmatmul.f32.gmra.mxu0 %v6780
    %v6867 = vpop.f32.mrf.mxu0
    %v6868 = vadd.f32 0.0, %v6867
    %6869 = vdwg.mxu0
    %v6870 = vadd.f32 %v6718, %v6808
    %v6871 = vadd.f32 %v6719, %v6828
    %v6872 = vadd.f32 %v6720, %v6848
    %v6873 = vadd.f32 %v6721, %v6868
    %v6874 = vld [vmem:[#allocation3 + $0x4] sm:$0xff]
    %v6875 = vld [vmem:[#allocation3 + $0xc] sm:$0xff]
    %v6876 = vld [vmem:[#allocation3 + $0x14] sm:$0xf]
    %v6877 = vld [vmem:[%s2952] ss:$8 sm:$0xf]
    %v6879 = vperm.slane %v6877, 0
    %v6880 = vperm.slane %v6877, 1
    %v6881 = vperm.slane %v6877, 2
    %v6882 = vperm.slane %v6877, 3
    %v6883 = vrot.slane %v6880, 4
    %v6884 = vrot.slane %v6882, 4
    %v6885 = vsel %vm3347, %v6879, %v6883
    %v6886 = vsel %vm3347, %v6881, %v6884
    %6887 = vrot.lane.b32.xlu0 %v6885, 65
    %v6888 = vpop.permute.xlu0 %6887
    %6889 = vrot.lane.b32.xlu0 %v6886, 65
    %v6890 = vpop.permute.xlu0 %6889
    %v6891 = vrot.slane %v6888, 4
    %v6892 = vrot.slane %v6890, 4
    %v6893 = vsel %vm431, %v6891, %v6888
    %v6894 = vsel %vm3347, %v6891, %v6892
    %v6895 = vsel %vm431, %v6894, %v6890
    %v6899 = vmul.f32 %v6874, %v6893
    %v6900 = vmul.f32 %v6875, %v6895
    %v6901 = vmul.f32 %v6876, %v6892
    %s6902 = scalar_lea.vmem %s6, 184
    %v6903 = vld [vmem:[%s6902] sm:$0xff]
    %6907 = vst [vmem:[#allocation1] ss:$2 sm:$0xff] %v6899
    %s6908 = scalar_lea.vmem [#allocation1], 16
    %6909 = vst [vmem:[%s6908] ss:$2 sm:$0xff] %v6900
    %s6910 = scalar_lea.vmem [#allocation1], 32
    %6911 = vst [vmem:[%s6910] ss:$2 sm:$0xff] %v6901
    %v6912 = vld.sshfl [vmem:[#allocation1] sm:$0xff pattern:$0x75316420]
    %v6913 = vld.sshfl [vmem:[#allocation1 + $0x8] sm:$0xff pattern:$0x75316420]
    %v6914 = vld.sshfl [vmem:[#allocation1 + $0x10] sm:$0xff pattern:$0x75316420]
    %v6915 = vld.sshfl [vmem:[#allocation1 + $0x18] sm:$0xff pattern:$0x75316420]
    %v6916 = vld.sshfl [vmem:[#allocation1 + $0x20] sm:$0xff pattern:$0x75316420]
    %6917 = vrot.lane.b32.xlu0 %v6912, 63
    %v6918 = vpop.permute.xlu0 %6917
    %6919 = vrot.lane.b32.xlu0 %v6913, 63
    %v6920 = vpop.permute.xlu0 %6919
    %6921 = vrot.lane.b32.xlu0 %v6914, 63
    %v6922 = vpop.permute.xlu0 %6921
    %6923 = vrot.lane.b32.xlu0 %v6915, 63
    %v6924 = vpop.permute.xlu0 %6923
    %6925 = vrot.lane.b32.xlu0 %v6916, 63
    %v6926 = vpop.permute.xlu0 %6925
    %v6927 = vsel %vm677, %v6918, %v6920
    %v6928 = vsel %vm677, %v6920, %v6922
    %v6929 = vsel %vm677, %v6922, %v6924
    %v6930 = vsel %vm677, %v6924, %v6926
    %v6932 = vsel %vm3516, %v6903, 0
    %v6934 = vsel %vm3347, %v6927, 0
    %v6936 = vsel %vm3347, %v6928, 0
    %v6938 = vsel %vm3347, %v6929, 0
    %v6940 = vsel %vm3347, %v6930, 0
    %6942 = vmatpush.msra.mxu0 0.0
    %6943 = vmatpush.msra.mxu0 0.0
    %6944 = vmatpush.msra.mxu0 0.0
    %6945 = vmatpush.msra.mxu0 0.0
    %6946 = vmatpush.msra.mxu0 0.0
    %6947 = vmatpush.msra.mxu0 0.0
    %6948 = vmatpush.msra.mxu0 0.0
    %6949 = vmatpush.msra.mxu0 0.0
    %6950 = vmatpush.msra.mxu0 0.0
    %6951 = vmatpush.msra.mxu0 0.0
    %6952 = vmatpush.msra.mxu0 0.0
    %6953 = vmatpush.msra.mxu0 0.0
    %6954 = vmatpush.msra.mxu0 0.0
    %6955 = vmatpush.msra.mxu0 0.0
    %6956 = vmatpush.msra.mxu0 0.0
    %6957 = vmatpush.msra.mxu0 %v6934
    %6958 = vmatmul.f32.gmra.mxu0 %v6932
    %v6959 = vpop.f32.mrf.mxu0
    %v6960 = vadd.f32 0.0, %v6959
    %6961 = vdwg.mxu0
    %6962 = vmatpush.msra.mxu0 0.0
    %6963 = vmatpush.msra.mxu0 0.0
    %6964 = vmatpush.msra.mxu0 0.0
    %6965 = vmatpush.msra.mxu0 0.0
    %6966 = vmatpush.msra.mxu0 0.0
    %6967 = vmatpush.msra.mxu0 0.0
    %6968 = vmatpush.msra.mxu0 0.0
    %6969 = vmatpush.msra.mxu0 0.0
    %6970 = vmatpush.msra.mxu0 0.0
    %6971 = vmatpush.msra.mxu0 0.0
    %6972 = vmatpush.msra.mxu0 0.0
    %6973 = vmatpush.msra.mxu0 0.0
    %6974 = vmatpush.msra.mxu0 0.0
    %6975 = vmatpush.msra.mxu0 0.0
    %6976 = vmatpush.msra.mxu0 0.0
    %6977 = vmatpush.msra.mxu0 %v6936
    %6978 = vmatmul.f32.gmra.mxu0 %v6932
    %v6979 = vpop.f32.mrf.mxu0
    %v6980 = vadd.f32 0.0, %v6979
    %6981 = vdwg.mxu0
    %6982 = vmatpush.msra.mxu0 0.0
    %6983 = vmatpush.msra.mxu0 0.0
    %6984 = vmatpush.msra.mxu0 0.0
    %6985 = vmatpush.msra.mxu0 0.0
    %6986 = vmatpush.msra.mxu0 0.0
    %6987 = vmatpush.msra.mxu0 0.0
    %6988 = vmatpush.msra.mxu0 0.0
    %6989 = vmatpush.msra.mxu0 0.0
    %6990 = vmatpush.msra.mxu0 0.0
    %6991 = vmatpush.msra.mxu0 0.0
    %6992 = vmatpush.msra.mxu0 0.0
    %6993 = vmatpush.msra.mxu0 0.0
    %6994 = vmatpush.msra.mxu0 0.0
    %6995 = vmatpush.msra.mxu0 0.0
    %6996 = vmatpush.msra.mxu0 0.0
    %6997 = vmatpush.msra.mxu0 %v6938
    %6998 = vmatmul.f32.gmra.mxu0 %v6932
    %v6999 = vpop.f32.mrf.mxu0
    %v7000 = vadd.f32 0.0, %v6999
    %7001 = vdwg.mxu0
    %7002 = vmatpush.msra.mxu0 0.0
    %7003 = vmatpush.msra.mxu0 0.0
    %7004 = vmatpush.msra.mxu0 0.0
    %7005 = vmatpush.msra.mxu0 0.0
    %7006 = vmatpush.msra.mxu0 0.0
    %7007 = vmatpush.msra.mxu0 0.0
    %7008 = vmatpush.msra.mxu0 0.0
    %7009 = vmatpush.msra.mxu0 0.0
    %7010 = vmatpush.msra.mxu0 0.0
    %7011 = vmatpush.msra.mxu0 0.0
    %7012 = vmatpush.msra.mxu0 0.0
    %7013 = vmatpush.msra.mxu0 0.0
    %7014 = vmatpush.msra.mxu0 0.0
    %7015 = vmatpush.msra.mxu0 0.0
    %7016 = vmatpush.msra.mxu0 0.0
    %7017 = vmatpush.msra.mxu0 %v6940
    %7018 = vmatmul.f32.gmra.mxu0 %v6932
    %v7019 = vpop.f32.mrf.mxu0
    %v7020 = vadd.f32 0.0, %v7019
    %7021 = vdwg.mxu0
    %v7022 = vadd.f32 %v6870, %v6960
    %v7023 = vadd.f32 %v6871, %v6980
    %v7024 = vadd.f32 %v6872, %v7000
    %v7025 = vadd.f32 %v6873, %v7020
    %v7026 = vld [vmem:[#allocation3 + $0x4] sm:$0xff]
    %v7027 = vld [vmem:[#allocation3 + $0xc] sm:$0xff]
    %v7028 = vld [vmem:[#allocation3 + $0x14] sm:$0xf]
    %v7029 = vld [vmem:[%s3074] ss:$8 sm:$0xf]
    %v7031 = vperm.slane %v7029, 0
    %v7032 = vperm.slane %v7029, 1
    %v7033 = vperm.slane %v7029, 2
    %v7034 = vperm.slane %v7029, 3
    %v7035 = vrot.slane %v7032, 4
    %v7036 = vrot.slane %v7034, 4
    %v7037 = vsel %vm3347, %v7031, %v7035
    %v7038 = vsel %vm3347, %v7033, %v7036
    %7039 = vrot.lane.b32.xlu0 %v7037, 71
    %v7040 = vpop.permute.xlu0 %7039
    %7041 = vrot.lane.b32.xlu0 %v7038, 71
    %v7042 = vpop.permute.xlu0 %7041
    %v7043 = vrot.slane %v7040, 4
    %v7044 = vrot.slane %v7042, 4
    %v7045 = vsel %vm308, %v7043, %v7040
    %v7046 = vsel %vm3347, %v7043, %v7044
    %v7047 = vsel %vm308, %v7046, %v7042
    %v7051 = vmul.f32 %v7026, %v7045
    %v7052 = vmul.f32 %v7027, %v7047
    %v7053 = vmul.f32 %v7028, %v7044
    %s7054 = scalar_lea.vmem %s6, 192
    %v7055 = vld [vmem:[%s7054] sm:$0xff]
    %7059 = vst [vmem:[#allocation1] ss:$2 sm:$0xff] %v7051
    %s7060 = scalar_lea.vmem [#allocation1], 16
    %7061 = vst [vmem:[%s7060] ss:$2 sm:$0xff] %v7052
    %s7062 = scalar_lea.vmem [#allocation1], 32
    %7063 = vst [vmem:[%s7062] ss:$2 sm:$0xff] %v7053
    %v7064 = vld.sshfl [vmem:[#allocation1] sm:$0xff pattern:$0x75316420]
    %v7065 = vld.sshfl [vmem:[#allocation1 + $0x8] sm:$0xff pattern:$0x75316420]
    %v7066 = vld.sshfl [vmem:[#allocation1 + $0x10] sm:$0xff pattern:$0x75316420]
    %v7067 = vld.sshfl [vmem:[#allocation1 + $0x18] sm:$0xff pattern:$0x75316420]
    %v7068 = vld.sshfl [vmem:[#allocation1 + $0x20] sm:$0xff pattern:$0x75316420]
    %7069 = vrot.lane.b32.xlu0 %v7064, 57
    %v7070 = vpop.permute.xlu0 %7069
    %7071 = vrot.lane.b32.xlu0 %v7065, 57
    %v7072 = vpop.permute.xlu0 %7071
    %7073 = vrot.lane.b32.xlu0 %v7066, 57
    %v7074 = vpop.permute.xlu0 %7073
    %7075 = vrot.lane.b32.xlu0 %v7067, 57
    %v7076 = vpop.permute.xlu0 %7075
    %7077 = vrot.lane.b32.xlu0 %v7068, 57
    %v7078 = vpop.permute.xlu0 %7077
    %v7079 = vsel %vm800, %v7070, %v7072
    %v7080 = vsel %vm800, %v7072, %v7074
    %v7081 = vsel %vm800, %v7074, %v7076
    %v7082 = vsel %vm800, %v7076, %v7078
    %v7084 = vsel %vm3516, %v7055, 0
    %v7086 = vsel %vm3347, %v7079, 0
    %v7088 = vsel %vm3347, %v7080, 0
    %v7090 = vsel %vm3347, %v7081, 0
    %v7092 = vsel %vm3347, %v7082, 0
    %7094 = vmatpush.msra.mxu0 0.0
    %7095 = vmatpush.msra.mxu0 0.0
    %7096 = vmatpush.msra.mxu0 0.0
    %7097 = vmatpush.msra.mxu0 0.0
    %7098 = vmatpush.msra.mxu0 0.0
    %7099 = vmatpush.msra.mxu0 0.0
    %7100 = vmatpush.msra.mxu0 0.0
    %7101 = vmatpush.msra.mxu0 0.0
    %7102 = vmatpush.msra.mxu0 0.0
    %7103 = vmatpush.msra.mxu0 0.0
    %7104 = vmatpush.msra.mxu0 0.0
    %7105 = vmatpush.msra.mxu0 0.0
    %7106 = vmatpush.msra.mxu0 0.0
    %7107 = vmatpush.msra.mxu0 0.0
    %7108 = vmatpush.msra.mxu0 0.0
    %7109 = vmatpush.msra.mxu0 %v7086
    %7110 = vmatmul.f32.gmra.mxu0 %v7084
    %v7111 = vpop.f32.mrf.mxu0
    %v7112 = vadd.f32 0.0, %v7111
    %7113 = vdwg.mxu0
    %7114 = vmatpush.msra.mxu0 0.0
    %7115 = vmatpush.msra.mxu0 0.0
    %7116 = vmatpush.msra.mxu0 0.0
    %7117 = vmatpush.msra.mxu0 0.0
    %7118 = vmatpush.msra.mxu0 0.0
    %7119 = vmatpush.msra.mxu0 0.0
    %7120 = vmatpush.msra.mxu0 0.0
    %7121 = vmatpush.msra.mxu0 0.0
    %7122 = vmatpush.msra.mxu0 0.0
    %7123 = vmatpush.msra.mxu0 0.0
    %7124 = vmatpush.msra.mxu0 0.0
    %7125 = vmatpush.msra.mxu0 0.0
    %7126 = vmatpush.msra.mxu0 0.0
    %7127 = vmatpush.msra.mxu0 0.0
    %7128 = vmatpush.msra.mxu0 0.0
    %7129 = vmatpush.msra.mxu0 %v7088
    %7130 = vmatmul.f32.gmra.mxu0 %v7084
    %v7131 = vpop.f32.mrf.mxu0
    %v7132 = vadd.f32 0.0, %v7131
    %7133 = vdwg.mxu0
    %7134 = vmatpush.msra.mxu0 0.0
    %7135 = vmatpush.msra.mxu0 0.0
    %7136 = vmatpush.msra.mxu0 0.0
    %7137 = vmatpush.msra.mxu0 0.0
    %7138 = vmatpush.msra.mxu0 0.0
    %7139 = vmatpush.msra.mxu0 0.0
    %7140 = vmatpush.msra.mxu0 0.0
    %7141 = vmatpush.msra.mxu0 0.0
    %7142 = vmatpush.msra.mxu0 0.0
    %7143 = vmatpush.msra.mxu0 0.0
    %7144 = vmatpush.msra.mxu0 0.0
    %7145 = vmatpush.msra.mxu0 0.0
    %7146 = vmatpush.msra.mxu0 0.0
    %7147 = vmatpush.msra.mxu0 0.0
    %7148 = vmatpush.msra.mxu0 0.0
    %7149 = vmatpush.msra.mxu0 %v7090
    %7150 = vmatmul.f32.gmra.mxu0 %v7084
    %v7151 = vpop.f32.mrf.mxu0
    %v7152 = vadd.f32 0.0, %v7151
    %7153 = vdwg.mxu0
    %7154 = vmatpush.msra.mxu0 0.0
    %7155 = vmatpush.msra.mxu0 0.0
    %7156 = vmatpush.msra.mxu0 0.0
    %7157 = vmatpush.msra.mxu0 0.0
    %7158 = vmatpush.msra.mxu0 0.0
    %7159 = vmatpush.msra.mxu0 0.0
    %7160 = vmatpush.msra.mxu0 0.0
    %7161 = vmatpush.msra.mxu0 0.0
    %7162 = vmatpush.msra.mxu0 0.0
    %7163 = vmatpush.msra.mxu0 0.0
    %7164 = vmatpush.msra.mxu0 0.0
    %7165 = vmatpush.msra.mxu0 0.0
    %7166 = vmatpush.msra.mxu0 0.0
    %7167 = vmatpush.msra.mxu0 0.0
    %7168 = vmatpush.msra.mxu0 0.0
    %7169 = vmatpush.msra.mxu0 %v7092
    %7170 = vmatmul.f32.gmra.mxu0 %v7084
    %v7171 = vpop.f32.mrf.mxu0
    %v7172 = vadd.f32 0.0, %v7171
    %7173 = vdwg.mxu0
    %v7174 = vadd.f32 %v7022, %v7112
    %v7175 = vadd.f32 %v7023, %v7132
    %v7176 = vadd.f32 %v7024, %v7152
    %v7177 = vadd.f32 %v7025, %v7172
    %v7178 = vld [vmem:[#allocation3 + $0x4] sm:$0xff]
    %v7179 = vld [vmem:[#allocation3 + $0xc] sm:$0xff]
    %v7180 = vld [vmem:[#allocation3 + $0x14] sm:$0xf]
    %v7181 = vld [vmem:[%s3196] ss:$8 sm:$0xf]
    %v7183 = vperm.slane %v7181, 0
    %v7184 = vperm.slane %v7181, 1
    %v7185 = vperm.slane %v7181, 2
    %v7186 = vperm.slane %v7181, 3
    %v7187 = vrot.slane %v7184, 4
    %v7188 = vrot.slane %v7186, 4
    %v7189 = vsel %vm3347, %v7183, %v7187
    %v7190 = vsel %vm3347, %v7185, %v7188
    %7191 = vrot.lane.b32.xlu0 %v7189, 72
    %v7192 = vpop.permute.xlu0 %7191
    %7193 = vrot.lane.b32.xlu0 %v7190, 72
    %v7194 = vpop.permute.xlu0 %7193
    %v7195 = vrot.slane %v7192, 4
    %v7196 = vrot.slane %v7194, 4
    %v7197 = vsel %vm185, %v7195, %v7192
    %v7198 = vsel %vm3347, %v7195, %v7196
    %v7199 = vsel %vm185, %v7198, %v7194
    %v7203 = vmul.f32 %v7178, %v7197
    %v7204 = vmul.f32 %v7179, %v7199
    %v7205 = vmul.f32 %v7180, %v7196
    %s7206 = scalar_lea.vmem %s6, 200
    %v7207 = vld [vmem:[%s7206] sm:$0xff]
    %7211 = vst [vmem:[#allocation1] ss:$2 sm:$0xff] %v7203
    %s7212 = scalar_lea.vmem [#allocation1], 16
    %7213 = vst [vmem:[%s7212] ss:$2 sm:$0xff] %v7204
    %s7214 = scalar_lea.vmem [#allocation1], 32
    %7215 = vst [vmem:[%s7214] ss:$2 sm:$0xff] %v7205
    %v7216 = vld.sshfl [vmem:[#allocation1] sm:$0xff pattern:$0x75316420]
    %v7217 = vld.sshfl [vmem:[#allocation1 + $0x8] sm:$0xff pattern:$0x75316420]
    %v7218 = vld.sshfl [vmem:[#allocation1 + $0x10] sm:$0xff pattern:$0x75316420]
    %v7219 = vld.sshfl [vmem:[#allocation1 + $0x18] sm:$0xff pattern:$0x75316420]
    %v7220 = vld.sshfl [vmem:[#allocation1 + $0x20] sm:$0xff pattern:$0x75316420]
    %7221 = vrot.lane.b32.xlu0 %v7216, 56
    %v7222 = vpop.permute.xlu0 %7221
    %7223 = vrot.lane.b32.xlu0 %v7217, 56
    %v7224 = vpop.permute.xlu0 %7223
    %7225 = vrot.lane.b32.xlu0 %v7218, 56
    %v7226 = vpop.permute.xlu0 %7225
    %7227 = vrot.lane.b32.xlu0 %v7219, 56
    %v7228 = vpop.permute.xlu0 %7227
    %7229 = vrot.lane.b32.xlu0 %v7220, 56
    %v7230 = vpop.permute.xlu0 %7229
    %v7231 = vsel %vm923, %v7222, %v7224
    %v7232 = vsel %vm923, %v7224, %v7226
    %v7233 = vsel %vm923, %v7226, %v7228
    %v7234 = vsel %vm923, %v7228, %v7230
    %v7236 = vsel %vm3516, %v7207, 0
    %v7238 = vsel %vm3347, %v7231, 0
    %v7240 = vsel %vm3347, %v7232, 0
    %v7242 = vsel %vm3347, %v7233, 0
    %v7244 = vsel %vm3347, %v7234, 0
    %7246 = vmatpush.msra.mxu0 0.0
    %7247 = vmatpush.msra.mxu0 0.0
    %7248 = vmatpush.msra.mxu0 0.0
    %7249 = vmatpush.msra.mxu0 0.0
    %7250 = vmatpush.msra.mxu0 0.0
    %7251 = vmatpush.msra.mxu0 0.0
    %7252 = vmatpush.msra.mxu0 0.0
    %7253 = vmatpush.msra.mxu0 0.0
    %7254 = vmatpush.msra.mxu0 0.0
    %7255 = vmatpush.msra.mxu0 0.0
    %7256 = vmatpush.msra.mxu0 0.0
    %7257 = vmatpush.msra.mxu0 0.0
    %7258 = vmatpush.msra.mxu0 0.0
    %7259 = vmatpush.msra.mxu0 0.0
    %7260 = vmatpush.msra.mxu0 0.0
    %7261 = vmatpush.msra.mxu0 %v7238
    %7262 = vmatmul.f32.gmra.mxu0 %v7236
    %v7263 = vpop.f32.mrf.mxu0
    %v7264 = vadd.f32 0.0, %v7263
    %7265 = vdwg.mxu0
    %7266 = vmatpush.msra.mxu0 0.0
    %7267 = vmatpush.msra.mxu0 0.0
    %7268 = vmatpush.msra.mxu0 0.0
    %7269 = vmatpush.msra.mxu0 0.0
    %7270 = vmatpush.msra.mxu0 0.0
    %7271 = vmatpush.msra.mxu0 0.0
    %7272 = vmatpush.msra.mxu0 0.0
    %7273 = vmatpush.msra.mxu0 0.0
    %7274 = vmatpush.msra.mxu0 0.0
    %7275 = vmatpush.msra.mxu0 0.0
    %7276 = vmatpush.msra.mxu0 0.0
    %7277 = vmatpush.msra.mxu0 0.0
    %7278 = vmatpush.msra.mxu0 0.0
    %7279 = vmatpush.msra.mxu0 0.0
    %7280 = vmatpush.msra.mxu0 0.0
    %7281 = vmatpush.msra.mxu0 %v7240
    %7282 = vmatmul.f32.gmra.mxu0 %v7236
    %v7283 = vpop.f32.mrf.mxu0
    %v7284 = vadd.f32 0.0, %v7283
    %7285 = vdwg.mxu0
    %7286 = vmatpush.msra.mxu0 0.0
    %7287 = vmatpush.msra.mxu0 0.0
    %7288 = vmatpush.msra.mxu0 0.0
    %7289 = vmatpush.msra.mxu0 0.0
    %7290 = vmatpush.msra.mxu0 0.0
    %7291 = vmatpush.msra.mxu0 0.0
    %7292 = vmatpush.msra.mxu0 0.0
    %7293 = vmatpush.msra.mxu0 0.0
    %7294 = vmatpush.msra.mxu0 0.0
    %7295 = vmatpush.msra.mxu0 0.0
    %7296 = vmatpush.msra.mxu0 0.0
    %7297 = vmatpush.msra.mxu0 0.0
    %7298 = vmatpush.msra.mxu0 0.0
    %7299 = vmatpush.msra.mxu0 0.0
    %7300 = vmatpush.msra.mxu0 0.0
    %7301 = vmatpush.msra.mxu0 %v7242
    %7302 = vmatmul.f32.gmra.mxu0 %v7236
    %v7303 = vpop.f32.mrf.mxu0
    %v7304 = vadd.f32 0.0, %v7303
    %7305 = vdwg.mxu0
    %7306 = vmatpush.msra.mxu0 0.0
    %7307 = vmatpush.msra.mxu0 0.0
    %7308 = vmatpush.msra.mxu0 0.0
    %7309 = vmatpush.msra.mxu0 0.0
    %7310 = vmatpush.msra.mxu0 0.0
    %7311 = vmatpush.msra.mxu0 0.0
    %7312 = vmatpush.msra.mxu0 0.0
    %7313 = vmatpush.msra.mxu0 0.0
    %7314 = vmatpush.msra.mxu0 0.0
    %7315 = vmatpush.msra.mxu0 0.0
    %7316 = vmatpush.msra.mxu0 0.0
    %7317 = vmatpush.msra.mxu0 0.0
    %7318 = vmatpush.msra.mxu0 0.0
    %7319 = vmatpush.msra.mxu0 0.0
    %7320 = vmatpush.msra.mxu0 0.0
    %7321 = vmatpush.msra.mxu0 %v7244
    %7322 = vmatmul.f32.gmra.mxu0 %v7236
    %v7323 = vpop.f32.mrf.mxu0
    %v7324 = vadd.f32 0.0, %v7323
    %7325 = vdwg.mxu0
    %v7326 = vadd.f32 %v7174, %v7264
    %v7327 = vadd.f32 %v7175, %v7284
    %v7328 = vadd.f32 %v7176, %v7304
    %v7329 = vadd.f32 %v7177, %v7324
    %v7330 = vld [vmem:[#allocation3 + $0x4] sm:$0xff]
    %v7331 = vld [vmem:[#allocation3 + $0xc] sm:$0xff]
    %v7332 = vld [vmem:[#allocation3 + $0x14] sm:$0xf]
    %v7333 = vld [vmem:[%s3318] ss:$8 sm:$0xf]
    %v7335 = vperm.slane %v7333, 0
    %v7336 = vperm.slane %v7333, 1
    %v7337 = vperm.slane %v7333, 2
    %v7338 = vperm.slane %v7333, 3
    %v7339 = vrot.slane %v7336, 4
    %v7340 = vrot.slane %v7338, 4
    %v7341 = vsel %vm3347, %v7335, %v7339
    %v7342 = vsel %vm3347, %v7337, %v7340
    %7343 = vrot.lane.b32.xlu0 %v7341, 73
    %v7344 = vpop.permute.xlu0 %7343
    %7345 = vrot.lane.b32.xlu0 %v7342, 73
    %v7346 = vpop.permute.xlu0 %7345
    %v7347 = vrot.slane %v7344, 4
    %v7348 = vrot.slane %v7346, 4
    %v7349 = vsel %vm62, %v7347, %v7344
    %v7350 = vsel %vm3347, %v7347, %v7348
    %v7351 = vsel %vm62, %v7350, %v7346
    %v7355 = vmul.f32 %v7330, %v7349
    %v7356 = vmul.f32 %v7331, %v7351
    %v7357 = vmul.f32 %v7332, %v7348
    %s7358 = scalar_lea.vmem %s6, 208
    %v7359 = vld [vmem:[%s7358] sm:$0xff]
    %7363 = vst [vmem:[#allocation1] ss:$2 sm:$0xff] %v7355
    %s7364 = scalar_lea.vmem [#allocation1], 16
    %7365 = vst [vmem:[%s7364] ss:$2 sm:$0xff] %v7356
    %s7366 = scalar_lea.vmem [#allocation1], 32
    %7367 = vst [vmem:[%s7366] ss:$2 sm:$0xff] %v7357
    %v7368 = vld.sshfl [vmem:[#allocation1] sm:$0xff pattern:$0x75316420]
    %v7369 = vld.sshfl [vmem:[#allocation1 + $0x8] sm:$0xff pattern:$0x75316420]
    %v7370 = vld.sshfl [vmem:[#allocation1 + $0x10] sm:$0xff pattern:$0x75316420]
    %v7371 = vld.sshfl [vmem:[#allocation1 + $0x18] sm:$0xff pattern:$0x75316420]
    %v7372 = vld.sshfl [vmem:[#allocation1 + $0x20] sm:$0xff pattern:$0x75316420]
    %7373 = vrot.lane.b32.xlu0 %v7368, 55
    %v7374 = vpop.permute.xlu0 %7373
    %7375 = vrot.lane.b32.xlu0 %v7369, 55
    %v7376 = vpop.permute.xlu0 %7375
    %7377 = vrot.lane.b32.xlu0 %v7370, 55
    %v7378 = vpop.permute.xlu0 %7377
    %7379 = vrot.lane.b32.xlu0 %v7371, 55
    %v7380 = vpop.permute.xlu0 %7379
    %7381 = vrot.lane.b32.xlu0 %v7372, 55
    %v7382 = vpop.permute.xlu0 %7381
    %v7383 = vsel %vm1046, %v7374, %v7376
    %v7384 = vsel %vm1046, %v7376, %v7378
    %v7385 = vsel %vm1046, %v7378, %v7380
    %v7386 = vsel %vm1046, %v7380, %v7382
    %v7388 = vsel %vm3516, %v7359, 0
    %v7390 = vsel %vm3347, %v7383, 0
    %v7392 = vsel %vm3347, %v7384, 0
    %v7394 = vsel %vm3347, %v7385, 0
    %v7396 = vsel %vm3347, %v7386, 0
    %7398 = vmatpush.msra.mxu0 0.0
    %7399 = vmatpush.msra.mxu0 0.0
    %7400 = vmatpush.msra.mxu0 0.0
    %7401 = vmatpush.msra.mxu0 0.0
    %7402 = vmatpush.msra.mxu0 0.0
    %7403 = vmatpush.msra.mxu0 0.0
    %7404 = vmatpush.msra.mxu0 0.0
    %7405 = vmatpush.msra.mxu0 0.0
    %7406 = vmatpush.msra.mxu0 0.0
    %7407 = vmatpush.msra.mxu0 0.0
    %7408 = vmatpush.msra.mxu0 0.0
    %7409 = vmatpush.msra.mxu0 0.0
    %7410 = vmatpush.msra.mxu0 0.0
    %7411 = vmatpush.msra.mxu0 0.0
    %7412 = vmatpush.msra.mxu0 0.0
    %7413 = vmatpush.msra.mxu0 %v7390
    %7414 = vmatmul.f32.gmra.mxu0 %v7388
    %v7415 = vpop.f32.mrf.mxu0
    %v7416 = vadd.f32 0.0, %v7415
    %7417 = vdwg.mxu0
    %7418 = vmatpush.msra.mxu0 0.0
    %7419 = vmatpush.msra.mxu0 0.0
    %7420 = vmatpush.msra.mxu0 0.0
    %7421 = vmatpush.msra.mxu0 0.0
    %7422 = vmatpush.msra.mxu0 0.0
    %7423 = vmatpush.msra.mxu0 0.0
    %7424 = vmatpush.msra.mxu0 0.0
    %7425 = vmatpush.msra.mxu0 0.0
    %7426 = vmatpush.msra.mxu0 0.0
    %7427 = vmatpush.msra.mxu0 0.0
    %7428 = vmatpush.msra.mxu0 0.0
    %7429 = vmatpush.msra.mxu0 0.0
    %7430 = vmatpush.msra.mxu0 0.0
    %7431 = vmatpush.msra.mxu0 0.0
    %7432 = vmatpush.msra.mxu0 0.0
    %7433 = vmatpush.msra.mxu0 %v7392
    %7434 = vmatmul.f32.gmra.mxu0 %v7388
    %v7435 = vpop.f32.mrf.mxu0
    %v7436 = vadd.f32 0.0, %v7435
    %7437 = vdwg.mxu0
    %7438 = vmatpush.msra.mxu0 0.0
    %7439 = vmatpush.msra.mxu0 0.0
    %7440 = vmatpush.msra.mxu0 0.0
    %7441 = vmatpush.msra.mxu0 0.0
    %7442 = vmatpush.msra.mxu0 0.0
    %7443 = vmatpush.msra.mxu0 0.0
    %7444 = vmatpush.msra.mxu0 0.0
    %7445 = vmatpush.msra.mxu0 0.0
    %7446 = vmatpush.msra.mxu0 0.0
    %7447 = vmatpush.msra.mxu0 0.0
    %7448 = vmatpush.msra.mxu0 0.0
    %7449 = vmatpush.msra.mxu0 0.0
    %7450 = vmatpush.msra.mxu0 0.0
    %7451 = vmatpush.msra.mxu0 0.0
    %7452 = vmatpush.msra.mxu0 0.0
    %7453 = vmatpush.msra.mxu0 %v7394
    %7454 = vmatmul.f32.gmra.mxu0 %v7388
    %v7455 = vpop.f32.mrf.mxu0
    %v7456 = vadd.f32 0.0, %v7455
    %7457 = vdwg.mxu0
    %7458 = vmatpush.msra.mxu0 0.0
    %7459 = vmatpush.msra.mxu0 0.0
    %7460 = vmatpush.msra.mxu0 0.0
    %7461 = vmatpush.msra.mxu0 0.0
    %7462 = vmatpush.msra.mxu0 0.0
    %7463 = vmatpush.msra.mxu0 0.0
    %7464 = vmatpush.msra.mxu0 0.0
    %7465 = vmatpush.msra.mxu0 0.0
    %7466 = vmatpush.msra.mxu0 0.0
    %7467 = vmatpush.msra.mxu0 0.0
    %7468 = vmatpush.msra.mxu0 0.0
    %7469 = vmatpush.msra.mxu0 0.0
    %7470 = vmatpush.msra.mxu0 0.0
    %7471 = vmatpush.msra.mxu0 0.0
    %7472 = vmatpush.msra.mxu0 0.0
    %7473 = vmatpush.msra.mxu0 %v7396
    %7474 = vmatmul.f32.gmra.mxu0 %v7388
    %v7475 = vpop.f32.mrf.mxu0
    %v7476 = vadd.f32 0.0, %v7475
    %7477 = vdwg.mxu0
    %v7478 = vadd.f32 %v7326, %v7416
    %v7479 = vadd.f32 %v7327, %v7436
    %v7480 = vadd.f32 %v7328, %v7456
    %v7481 = vadd.f32 %v7329, %v7476
    %v7482 = vld [vmem:[%s7] sm:$0xff]
    %7484 = vset.pattern.permute.xlu0 0
    %7485 = vperm.xlu0 %7484, %v7482
    %v7486 = vpop.permute.xlu0 %7485
    %v7488 = vadd.f32 %v7478, %v7486
    %v7489 = vadd.f32 %v7479, %v7486
    %v7490 = vadd.f32 %v7480, %v7486
    %v7491 = vadd.f32 %v7481, %v7486
    %v7492 = vxor.u32 %v7488, 2147483648
    %v7493 = vxor.u32 %v7489, 2147483648
    %v7494 = vxor.u32 %v7490, 2147483648
    %v7495 = vxor.u32 %v7491, 2147483648
    %v7496 = vmul.f32 %v7492, 1.442695
    %v7497 = vpow.pop %v7496
    %v7498 = vmul.f32 %v7493, 1.442695
    %v7499 = vpow.pop %v7498
    %v7500 = vmul.f32 %v7494, 1.442695
    %v7501 = vpow.pop %v7500
    %v7502 = vmul.f32 %v7495, 1.442695
    %v7503 = vpow.pop %v7502
    %v7504 = vadd.f32 %v7497, 1.0
    %v7505 = vadd.f32 %v7499, 1.0
    %v7506 = vadd.f32 %v7501, 1.0
    %v7507 = vadd.f32 %v7503, 1.0
    %v7508 = vrcp.pop %v7504
    %v7509 = vmul.f32 %v7504, %v7508
    %v7510 = vsub.f32 1.0, %v7509
    %v7511 = vmul.f32 %v7508, %v7510
    %v7512 = vadd.f32 %v7508, %v7511
    %vm7513 = vweird.f32 %v7504
    %vm7514 = vweird.f32 %v7508
    %vm7515 = vmor %vm7513, %vm7514
    %v7516 = vsel %vm7515, %v7508, %v7512
    %v7517 = vand.u32 2147483647, %v7504
    %vm7518 = vcmp.eq.f32.partialorder %v7517, 8.507059e+37
    %v7519 = vand.u32 %v7504, 2147483648
    %v7520 = vor.u32 1.1754944e-38, %v7519
    %v7521 = vsel %vm7518, %v7520, %v7516
    %v7522 = vmul.f32 1.0, %v7521
    %v7523 = vrcp.pop %v7505
    %v7524 = vmul.f32 %v7505, %v7523
    %v7525 = vsub.f32 1.0, %v7524
    %v7526 = vmul.f32 %v7523, %v7525
    %v7527 = vadd.f32 %v7523, %v7526
    %vm7528 = vweird.f32 %v7505
    %vm7529 = vweird.f32 %v7523
    %vm7530 = vmor %vm7528, %vm7529
    %v7531 = vsel %vm7530, %v7523, %v7527
    %v7532 = vand.u32 2147483647, %v7505
    %vm7533 = vcmp.eq.f32.partialorder %v7532, 8.507059e+37
    %v7534 = vand.u32 %v7505, 2147483648
    %v7535 = vor.u32 1.1754944e-38, %v7534
    %v7536 = vsel %vm7533, %v7535, %v7531
    %v7537 = vmul.f32 1.0, %v7536
    %v7538 = vrcp.pop %v7506
    %v7539 = vmul.f32 %v7506, %v7538
    %v7540 = vsub.f32 1.0, %v7539
    %v7541 = vmul.f32 %v7538, %v7540
    %v7542 = vadd.f32 %v7538, %v7541
    %vm7543 = vweird.f32 %v7506
    %vm7544 = vweird.f32 %v7538
    %vm7545 = vmor %vm7543, %vm7544
    %v7546 = vsel %vm7545, %v7538, %v7542
    %v7547 = vand.u32 2147483647, %v7506
    %vm7548 = vcmp.eq.f32.partialorder %v7547, 8.507059e+37
    %v7549 = vand.u32 %v7506, 2147483648
    %v7550 = vor.u32 1.1754944e-38, %v7549
    %v7551 = vsel %vm7548, %v7550, %v7546
    %v7552 = vmul.f32 1.0, %v7551
    %v7553 = vrcp.pop %v7507
    %v7554 = vmul.f32 %v7507, %v7553
    %v7555 = vsub.f32 1.0, %v7554
    %v7556 = vmul.f32 %v7553, %v7555
    %v7557 = vadd.f32 %v7553, %v7556
    %vm7558 = vweird.f32 %v7507
    %vm7559 = vweird.f32 %v7553
    %vm7560 = vmor %vm7558, %vm7559
    %v7561 = vsel %vm7560, %v7553, %v7557
    %v7562 = vand.u32 2147483647, %v7507
    %vm7563 = vcmp.eq.f32.partialorder %v7562, 8.507059e+37
    %v7564 = vand.u32 %v7507, 2147483648
    %v7565 = vor.u32 1.1754944e-38, %v7564
    %v7566 = vsel %vm7563, %v7565, %v7561
    %v7567 = vmul.f32 1.0, %v7566
    %v7568 = vld [vmem:[#allocation2 + $0x8] sm:$0xff]
    %v7569 = vld [vmem:[#allocation2 + $0x10] sm:$0xff]
    %v7570 = vld [vmem:[#allocation2 + $0x18] sm:$0xff]
    %v7571 = vld [vmem:[#allocation2 + $0x20] sm:$0xff]
    %v7572 = vmul.f32 %v7568, %v7522
    %v7573 = vmul.f32 %v7569, %v7537
    %v7574 = vmul.f32 %v7570, %v7552
    %v7575 = vmul.f32 %v7571, %v7567
    %7576 = vst [vmem:[#allocation4] sm:$0xff] %v7572
    %7577 = vst [vmem:[#allocation4 + $0x8] sm:$0xff] %v7573
    %s7578 = scalar_lea.vmem [#allocation4], 16
    %7579 = vst [vmem:[%s7578] sm:$0xff] %v7574
    %7580 = vst [vmem:[%s7578 + $0x8] sm:$0xff] %v7575
    // Predicated region
    $region34: #{tpu_custom_call.1} parent=1 // pred_check
      _
    $region35: #{tpu_custom_call.1} parent=1 // pred_check_branch
      %7582 = sbr.rel (0) target = $region37
    $region36: #{tpu_custom_call.1} parent=1 // pred_region
      %7584 = vsyncadd [#allocation5], 0
      %s7585 = sshll.u32 [#allocation4], 4
      %s7586 = int_to_ptr.vmem [resolvable:$true] %s7585
      %s7587 = sshll.u32 %s8, 4
      %s7588 = int_to_ptr.hbm [resolvable:$true] %s7587
      %7593 = dma.vmem_to_hbm [thread:$0]  %s7586, 512, %s7588, [#allocation5], 256, 256, 16
    $region37: #{tpu_custom_call.1} parent=1 // pred_fallthru
      _
    // Predicated region
    $region38: #{tpu_custom_call.1} parent=1 // pred_check
      _
    $region39: #{tpu_custom_call.1} parent=1 // pred_check_branch
      %7595 = sbr.rel (0) target = $region41
    $region40: #{tpu_custom_call.1} parent=1 // pred_region
      %7597 = dma.done [#allocation5], 512
    $region41: #{tpu_custom_call.1} parent=1 // pred_fallthru
      _
    %7598 = vsyncpa [#allocation5], 1

</llo_original>
